<compile_context>
chip_gen: v6e
topology: v6e:2x2x1
jax: 0.10.0
libtpu: 0.0.40
codegen_flags: <defaults>
</compile_context>

<pallas_src>
import functools
import math

import jax
import jax.numpy as jnp
from jax.experimental import pallas as pl
from jax.experimental.pallas import tpu as pltpu


# ----------------------------- static architecture ------------------------------
CONV1_OUT = 32          # conv1 channels
CONV2_OUT = 64          # conv2 channels
HIDDEN = 32             # per-stream hidden size
HID_CAT = 4 * HIDDEN    # 128  : four hidden NoisyLinears packed column-wise
Z_CAT = 16              # packed output width: [v, a(6), var_v, var_a(6), pad(2)]
N_SPATIAL = 9           # conv2 output spatial positions (3x3)
N_KPOS = 25             # 5x5 kernel positions
K1_PAD = 128            # conv1 im2col K (=100) padded (+1 ones column for bias)


# --------------------------------------------------------------------------------
# Fused kernel: conv1 + conv2 + flatten + 8 NoisyLinears + dueling combine
# --------------------------------------------------------------------------------
def _fused_dqn_kernel(B, A, p1_ref, w1_ref, w2_ref, wh_ref, wz_ref, b_ref,
                      out_ref, h1_ref):
    # ---- conv1: one lane/sublane-aligned matmul (225*B, 128) @ (128, 32).
    #      Bias is folded into w1 via the ones column of the padded patches.
    h1_ref[...] = jnp.maximum(
        jnp.dot(p1_ref[...], w1_ref[...], preferred_element_type=jnp.float32),
        0.0)

    bh = b_ref[0:1, :]                  # (1, 128)  hidden-layer biases
    b2 = b_ref[1:2, 0:CONV2_OUT]        # (1, 64)   conv2 bias
    bz = b_ref[2:3, 0:Z_CAT]            # (1, 16)   packed output-layer bias

    # ---- conv2 (k=5, s=5): accumulate over the 25 kernel positions.  Thanks to
    #      the patch row ordering (and the batch padding to a multiple of 8 in the
    #      wrapper), each position's LHS is a contiguous, sublane-aligned row slice.
    rows2 = N_SPATIAL * B
    acc2 = jnp.zeros((rows2, CONV2_OUT), jnp.float32)
    for k in range(N_KPOS):
        acc2 = acc2 + jnp.dot(
            h1_ref[k * rows2:(k + 1) * rows2, :],
            w2_ref[k * CONV1_OUT:(k + 1) * CONV1_OUT, :],
            preferred_element_type=jnp.float32)
    out2 = jnp.maximum(acc2 + b2, 0.0)        # (9B, 64), rows ordered (spatial, batch)

    # ---- FC hidden layer: 4 NoisyLinear(576->32) packed into one (576,128) weight,
    #      accumulated over the 9 spatial positions (no in-kernel reshape needed;
    #      the NCHW-flatten permutation lives in the host-side weight packing).
    acc_h = jnp.zeros((B, HID_CAT), jnp.float32)
    for p in range(N_SPATIAL):
        acc_h = acc_h + jnp.dot(
            out2[p * B:(p + 1) * B, :],
            wh_ref[p * CONV2_OUT:(p + 1) * CONV2_OUT, :],
            preferred_element_type=jnp.float32)
    hidden = jnp.maximum(acc_h + bh, 0.0)     # (B, 128) = [h_v | h_a | h_var_v | h_var_a]

    # ---- FC output layer: 4 NoisyLinear(32->{1,A}) packed block-diagonally.
    z = jnp.dot(hidden, wz_ref[...], preferred_element_type=jnp.float32) + bz

    v = z[:, 0:1]
    a = z[:, 1:1 + A]
    var_v = z[:, 1 + A:2 + A]
    var_a = z[:, 2 + A:2 + 2 * A]
    q = v + a - jnp.mean(a, axis=1, keepdims=True)
    var_q = var_v + var_a - jnp.mean(var_a, axis=1, keepdims=True)

    # single combined output buffer, split in the wrapper
    out_ref[:, 0:A] = q
    out_ref[:, A:2 * A] = var_q


# --------------------------------------------------------------------------------
# Wrapper
# --------------------------------------------------------------------------------
def _im2col_conv1(x):
    """(B, C, H, W) NCHW -> (225*B, 128) conv1 patches (pure reshape/transpose).

    Row order: (kernel_r, kernel_s, conv2_spatial p, batch b) so that downstream
    conv2 / FC accumulations use contiguous row slices.  Column order (c, kh, kw)
    matches w1.reshape(32, C*25); column C*25 is a ones column (folded conv1 bias),
    the rest is zero padding up to 128.
    """
    B, C, H, W = x.shape
    assert H >= 75 and W >= 75, "data-efficient arch expects >= 80x80 input"
    xc = x[:, :, :75, :75]
    xc = xc.reshape(B, C, 3, 5, 5, 3, 5, 5)        # (b, c, oh2, r, kh, ow2, s, kw)
    xc = xc.transpose(3, 6, 2, 5, 0, 1, 4, 7)      # (r, s, oh2, ow2, b, c, kh, kw)
    rows = N_KPOS * N_SPATIAL * B
    patches = xc.reshape(rows, C * 25)
    ones = jnp.ones((rows, 1), jnp.float32)
    zeros = jnp.zeros((rows, K1_PAD - C * 25 - 1), jnp.float32)
    return jnp.concatenate([patches, ones, zeros], axis=1)


@functools.partial(jax.jit, static_argnames=("action_space",))
def mean_var_dqn_forward(x, packed, *, action_space):
    w1b, w2m, wh, wz, bcat = packed
    B = x.shape[0]
    A = action_space

    # Pad batch to a multiple of 8 so every in-kernel row slice is sublane-aligned
    # and matmul M-tiles are full.  Padded rows never mix with real rows and are
    # sliced off at the end.
    B_pad = max(8, -(-B // 8) * 8)
    if B_pad != B:
        x = jnp.pad(x, ((0, B_pad - B), (0, 0), (0, 0), (0, 0)))

    patches1 = _im2col_conv1(x)

    rows1 = N_KPOS * N_SPATIAL * B_pad
    rows2 = N_SPATIAL * B_pad
    flops = 2 * (rows1 * K1_PAD * CONV1_OUT
                 + N_KPOS * rows2 * CONV1_OUT * CONV2_OUT
                 + N_SPATIAL * B_pad * CONV2_OUT * HID_CAT
                 + B_pad * HID_CAT * Z_CAT)
    bytes_accessed = 4 * (rows1 * K1_PAD + K1_PAD * CONV1_OUT
                          + N_KPOS * CONV1_OUT * CONV2_OUT
                          + N_SPATIAL * CONV2_OUT * HID_CAT
                          + HID_CAT * Z_CAT + 3 * 128 + B_pad * 2 * A)

    out = pl.pallas_call(
        functools.partial(_fused_dqn_kernel, B_pad, A),
        out_shape=jax.ShapeDtypeStruct((B_pad, 2 * A), jnp.float32),
        in_specs=[pl.BlockSpec(memory_space=pltpu.MemorySpace.VMEM)] * 6,
        out_specs=pl.BlockSpec(memory_space=pltpu.MemorySpace.VMEM),
        scratch_shapes=[
            pltpu.VMEM((rows1, CONV1_OUT), jnp.float32),   # conv1 output
        ],
        cost_estimate=pl.CostEstimate(flops=flops, transcendentals=0,
                                      bytes_accessed=bytes_accessed),
    )(patches1, w1b, w2m, wh, wz, bcat)

    return out[:B, :A], out[:B, A:2 * A]


# --------------------------------------------------------------------------------
# Parameter construction (deterministic, mirrors the PyTorch __init__)
# --------------------------------------------------------------------------------
def _scale_noise(key, size):
    x = jax.random.normal(key, (size,), dtype=jnp.float32)
    return jnp.sign(x) * jnp.sqrt(jnp.abs(x))


def noisy_linear_params(key, in_f, out_f, std_init=0.5):
    """Effective (training-mode) weight/bias of a NoisyLinear layer.

    Returns weight as (in_f, out_f) and bias as (1, out_f).
    """
    k_wmu, k_bmu, k_ein, k_eout = jax.random.split(key, 4)
    mu_range = 1.0 / math.sqrt(in_f)
    w_mu = jax.random.uniform(
        k_wmu, (out_f, in_f), minval=-mu_range, maxval=mu_range, dtype=jnp.float32)
    w_sigma = jnp.full((out_f, in_f), std_init / math.sqrt(in_f), jnp.float32)
    b_mu = jax.random.uniform(
        k_bmu, (out_f,), minval=-mu_range, maxval=mu_range, dtype=jnp.float32)
    b_sigma = jnp.full((out_f,), std_init / math.sqrt(out_f), jnp.float32)
    eps_in = _scale_noise(k_ein, in_f)
    eps_out = _scale_noise(k_eout, out_f)
    w = w_mu + w_sigma * jnp.outer(eps_out, eps_in)     # training mode -> noisy
    b = b_mu + b_sigma * eps_out
    return w.T.astype(jnp.float32), b.reshape(1, out_f).astype(jnp.float32)


def conv_params(key, out_c, in_c, k):
    kw, kb = jax.random.split(key)
    fan_in = in_c * k * k
    bound = 1.0 / math.sqrt(fan_in)
    w = jax.random.uniform(
        kw, (out_c, in_c, k, k), minval=-bound, maxval=bound, dtype=jnp.float32)
    b = jax.random.uniform(
        kb, (out_c,), minval=-bound, maxval=bound, dtype=jnp.float32)
    return w, b


def pack_mean_var_dqn_params(conv1, conv2, head_params, action_space):
    """One-time host-side packing / permutation of all weights for the fused kernel."""
    A = action_space
    assert 2 + 2 * A <= Z_CAT

    # conv1: (100, 32) weight with the bias folded into the padded row 100.
    w1, b1 = conv1
    oc1, c_in = w1.shape[0], w1.shape[1]
    k1 = c_in * 25
    w1m = w1.reshape(oc1, k1).T.astype(jnp.float32)          # rows ordered (c, kh, kw)
    w1b = jnp.zeros((K1_PAD, oc1), jnp.float32)
    w1b = w1b.at[:k1, :].set(w1m)
    w1b = w1b.at[k1, :].set(b1)                              # folded bias row

    # conv2: rows ordered (kh, kw, c) to match the patch-group row ordering.
    w2, b2 = conv2
    w2m = w2.transpose(2, 3, 1, 0).reshape(
        N_KPOS * CONV1_OUT, CONV2_OUT).astype(jnp.float32)

    (whv, bhv), (wzv, bzv), (wha, bha), (wza, bza), \
        (whvv, bhvv), (wzvv, bzvv), (whva, bhva), (wzva, bzva) = head_params

    def perm_hidden(w):
        # torch flatten index f = c*9 + p   ->   packed row p*64 + c
        return w.reshape(CONV2_OUT, N_SPATIAL, w.shape[1]).transpose(1, 0, 2).reshape(
            CONV2_OUT * N_SPATIAL, w.shape[1])

    wh = jnp.concatenate(
        [perm_hidden(whv), perm_hidden(wha), perm_hidden(whvv), perm_hidden(whva)],
        axis=1)                                              # (576, 128), lane-dense
    bh = jnp.concatenate([bhv, bha, bhvv, bhva], axis=1)     # (1, 128)

    # block-diagonal packed output layer: cols [v | a | var_v | var_a | pad]
    wz = jnp.zeros((HID_CAT, Z_CAT), jnp.float32)
    wz = wz.at[0 * HIDDEN:1 * HIDDEN, 0:1].set(wzv)
    wz = wz.at[1 * HIDDEN:2 * HIDDEN, 1:1 + A].set(wza)
    wz = wz.at[2 * HIDDEN:3 * HIDDEN, 1 + A:2 + A].set(wzvv)
    wz = wz.at[3 * HIDDEN:4 * HIDDEN, 2 + A:2 + 2 * A].set(wzva)
    bz = jnp.zeros((1, Z_CAT), jnp.float32)
    bz = bz.at[:, 0:1].set(bzv)
    bz = bz.at[:, 1:1 + A].set(bza)
    bz = bz.at[:, 1 + A:2 + A].set(bzvv)
    bz = bz.at[:, 2 + A:2 + 2 * A].set(bzva)

    # (3, 128) row-blocked bias pack: every in-kernel bias slice starts at lane 0.
    bcat = jnp.zeros((3, 128), jnp.float32)
    bcat = bcat.at[0, :HID_CAT].set(bh[0])
    bcat = bcat.at[1, :CONV2_OUT].set(b2)
    bcat = bcat.at[2, :Z_CAT].set(bz[0])
    return (w1b, w2m, wh, wz, bcat)


# --------------------------------------------------------------------------------
# Pure-JAX reference (independent of the kernel's layout tricks)
# --------------------------------------------------------------------------------
def _reference_forward(x, conv1, conv2, head_params, action_space):
    hp = jax.lax.Precision.HIGHEST
    w1, b1 = conv1
    w2, b2 = conv2
    y = jax.lax.conv_general_dilated(
        x, w1, window_strides=(5, 5), padding="VALID",
        dimension_numbers=("NCHW", "OIHW", "NCHW"), precision=hp)
    y = jnp.maximum(y + b1[None, :, None, None], 0.0)
    y = jax.lax.conv_general_dilated(
        y, w2, window_strides=(5, 5), padding="VALID",
        dimension_numbers=("NCHW", "OIHW", "NCHW"), precision=hp)
    y = jnp.maximum(y + b2[None, :, None, None], 0.0)
    feat = y.reshape(y.shape[0], -1)

    (whv, bhv), (wzv, bzv), (wha, bha), (wza, bza), \
        (whvv, bhvv), (wzvv, bzvv), (whva, bhva), (wzva, bzva) = head_params

    def lin(h, w, b):
        return jnp.dot(h, w, precision=hp) + b

    v = lin(jnp.maximum(lin(feat, whv, bhv), 0.0), wzv, bzv)
    a = lin(jnp.maximum(lin(feat, wha, bha), 0.0), wza, bza)
    q = v + a - a.mean(1, keepdims=True)
    var_v = lin(jnp.maximum(lin(feat, whvv, bhvv), 0.0), wzvv, bzvv)
    var_a = lin(jnp.maximum(lin(feat, whva, bhva), 0.0), wzva, bzva)
    var_q = var_v + var_a - var_a.mean(1, keepdims=True)
    return q, var_q


# --------------------------------------------------------------------------------
if __name__ == "__main__":
    # args: architecture='data-efficient', history_length=4, hidden_size=32,
    #       noisy_std=0.5 ; action_space=6 ; conv_output_size=576
    B, C, H, W = 2, 4, 80, 80        # 80x80 -> 16x16 -> 3x3 (x64) = 576
    ACTIONS, NOISY_STD = 6, 0.5
    CONV_OUT = 576

    root = jax.random.PRNGKey(0)
    keys = jax.random.split(root, 12)

    x = jax.random.normal(keys[0], (B, C, H, W), dtype=jnp.float32)

    conv1 = conv_params(keys[1], 32, C, 5)
    conv2 = conv_params(keys[2], 64, 32, 5)
    head_params = [
        noisy_linear_params(keys[3], CONV_OUT, HIDDEN, NOISY_STD),   # fc_h_v
        noisy_linear_params(keys[4], HIDDEN, 1, NOISY_STD),          # fc_z_v
        noisy_linear_params(keys[5], CONV_OUT, HIDDEN, NOISY_STD),   # fc_h_a
        noisy_linear_params(keys[6], HIDDEN, ACTIONS, NOISY_STD),    # fc_z_a
        noisy_linear_params(keys[7], CONV_OUT, HIDDEN, NOISY_STD),   # fc_h_var_v
        noisy_linear_params(keys[8], HIDDEN, 1, NOISY_STD),          # fc_z_var_v
        noisy_linear_params(keys[9], CONV_OUT, HIDDEN, NOISY_STD),   # fc_h_var_a
        noisy_linear_params(keys[10], HIDDEN, ACTIONS, NOISY_STD),   # fc_z_var_a
    ]

    packed = pack_mean_var_dqn_params(conv1, conv2, head_params, ACTIONS)

    q, var_q = mean_var_dqn_forward(x, packed, action_space=ACTIONS)
    jax.block_until_ready((q, var_q))
    assert q.shape == (B, ACTIONS) and var_q.shape == (B, ACTIONS)

    # correctness check against a pure-JAX reference
    q_ref, var_ref = _reference_forward(x, conv1, conv2, head_params, ACTIONS)
    assert bool(jnp.allclose(q, q_ref, atol=1e-2, rtol=1e-2)), (q, q_ref)
    assert bool(jnp.allclose(var_q, var_ref, atol=1e-2, rtol=1e-2)), (var_q, var_ref)

    print("KERNEL_OK")
</pallas_src>

<mosaic_0001>
module attributes {stable_mosaic.version = 11 : i64} {
  func.func @_fused_dqn_kernel(%arg0: memref<1800x128xf32, #tpu.memory_space<vmem>>, %arg1: memref<128x32xf32, #tpu.memory_space<vmem>>, %arg2: memref<800x64xf32, #tpu.memory_space<vmem>>, %arg3: memref<576x128xf32, #tpu.memory_space<vmem>>, %arg4: memref<128x16xf32, #tpu.memory_space<vmem>>, %arg5: memref<3x128xf32, #tpu.memory_space<vmem>>, %arg6: memref<8x12xf32, #tpu.memory_space<vmem>>, %arg7: memref<1800x32xf32, #tpu.memory_space<vmem>>) attributes {dimension_semantics = [], scalar_prefetch = 0 : i64, scratch_operands = 1 : i64, tpu.core_type = #tpu.core_type<tc>} {
    %c0 = arith.constant 0 : index
    %c0_0 = arith.constant 0 : index
    %0 = vector.load %arg0[%c0, %c0_0] : memref<1800x128xf32, #tpu.memory_space<vmem>>, vector<1800x128xf32>
    %c0_1 = arith.constant 0 : index
    %c0_2 = arith.constant 0 : index
    %1 = vector.load %arg1[%c0_1, %c0_2] : memref<128x32xf32, #tpu.memory_space<vmem>>, vector<128x32xf32>
    %cst = arith.constant dense<0.000000e+00> : vector<1800x32xf32>
    %2 = tpu.matmul %0, %1, %cst {dimension_numbers = #tpu.dot_dimension_numbers<[1], [0], [0], [1], [0, 0, 1, 1], [], []>} : vector<1800x128xf32>, vector<128x32xf32>, vector<1800x32xf32> -> vector<1800x32xf32>
    %cst_3 = arith.constant 0.000000e+00 : f32
    %3 = vector.broadcast %cst_3 : f32 to vector<1800x32xf32>
    %4 = arith.maximumf %2, %3 : vector<1800x32xf32>
    %c0_4 = arith.constant 0 : index
    %c0_5 = arith.constant 0 : index
    %5 = vector.load %arg7[%c0_4, %c0_5] : memref<1800x32xf32, #tpu.memory_space<vmem>>, vector<1800x32xf32>
    tpu.vector_store %arg7[%c0_4, %c0_5], %4 {strides = array<i32>} : memref<1800x32xf32, #tpu.memory_space<vmem>>, vector<1800x32xf32>,
    %c0_6 = arith.constant 0 : index
    %c0_7 = arith.constant 0 : index
    %6 = vector.load %arg5[%c0_6, %c0_7] : memref<3x128xf32, #tpu.memory_space<vmem>>, vector<1x128xf32>
    %c1 = arith.constant 1 : index
    %c0_8 = arith.constant 0 : index
    %7 = vector.load %arg5[%c1, %c0_8] : memref<3x128xf32, #tpu.memory_space<vmem>>, vector<1x64xf32>
    %c2 = arith.constant 2 : index
    %c0_9 = arith.constant 0 : index
    %8 = vector.load %arg5[%c2, %c0_9] : memref<3x128xf32, #tpu.memory_space<vmem>>, vector<1x16xf32>
    %cst_10 = arith.constant 0.000000e+00 : f32
    %9 = vector.broadcast %cst_10 : f32 to vector<72x64xf32>
    %c0_11 = arith.constant 0 : index
    %c0_12 = arith.constant 0 : index
    %10 = vector.load %arg7[%c0_11, %c0_12] : memref<1800x32xf32, #tpu.memory_space<vmem>>, vector<72x32xf32>
    %c0_13 = arith.constant 0 : index
    %c0_14 = arith.constant 0 : index
    %11 = vector.load %arg2[%c0_13, %c0_14] : memref<800x64xf32, #tpu.memory_space<vmem>>, vector<32x64xf32>
    %cst_15 = arith.constant dense<0.000000e+00> : vector<72x64xf32>
    %12 = tpu.matmul %10, %11, %cst_15 {dimension_numbers = #tpu.dot_dimension_numbers<[1], [0], [0], [1], [0, 0, 1, 1], [], []>} : vector<72x32xf32>, vector<32x64xf32>, vector<72x64xf32> -> vector<72x64xf32>
    %13 = arith.addf %9, %12 : vector<72x64xf32>
    %c72 = arith.constant 72 : index
    %c0_16 = arith.constant 0 : index
    %14 = vector.load %arg7[%c72, %c0_16] : memref<1800x32xf32, #tpu.memory_space<vmem>>, vector<72x32xf32>
    %c32 = arith.constant 32 : index
    %c0_17 = arith.constant 0 : index
    %15 = vector.load %arg2[%c32, %c0_17] : memref<800x64xf32, #tpu.memory_space<vmem>>, vector<32x64xf32>
    %cst_18 = arith.constant dense<0.000000e+00> : vector<72x64xf32>
    %16 = tpu.matmul %14, %15, %cst_18 {dimension_numbers = #tpu.dot_dimension_numbers<[1], [0], [0], [1], [0, 0, 1, 1], [], []>} : vector<72x32xf32>, vector<32x64xf32>, vector<72x64xf32> -> vector<72x64xf32>
    %17 = arith.addf %13, %16 : vector<72x64xf32>
    %c144 = arith.constant 144 : index
    %c0_19 = arith.constant 0 : index
    %18 = vector.load %arg7[%c144, %c0_19] : memref<1800x32xf32, #tpu.memory_space<vmem>>, vector<72x32xf32>
    %c64 = arith.constant 64 : index
    %c0_20 = arith.constant 0 : index
    %19 = vector.load %arg2[%c64, %c0_20] : memref<800x64xf32, #tpu.memory_space<vmem>>, vector<32x64xf32>
    %cst_21 = arith.constant dense<0.000000e+00> : vector<72x64xf32>
    %20 = tpu.matmul %18, %19, %cst_21 {dimension_numbers = #tpu.dot_dimension_numbers<[1], [0], [0], [1], [0, 0, 1, 1], [], []>} : vector<72x32xf32>, vector<32x64xf32>, vector<72x64xf32> -> vector<72x64xf32>
    %21 = arith.addf %17, %20 : vector<72x64xf32>
    %c216 = arith.constant 216 : index
    %c0_22 = arith.constant 0 : index
    %22 = vector.load %arg7[%c216, %c0_22] : memref<1800x32xf32, #tpu.memory_space<vmem>>, vector<72x32xf32>
    %c96 = arith.constant 96 : index
    %c0_23 = arith.constant 0 : index
    %23 = vector.load %arg2[%c96, %c0_23] : memref<800x64xf32, #tpu.memory_space<vmem>>, vector<32x64xf32>
    %cst_24 = arith.constant dense<0.000000e+00> : vector<72x64xf32>
    %24 = tpu.matmul %22, %23, %cst_24 {dimension_numbers = #tpu.dot_dimension_numbers<[1], [0], [0], [1], [0, 0, 1, 1], [], []>} : vector<72x32xf32>, vector<32x64xf32>, vector<72x64xf32> -> vector<72x64xf32>
    %25 = arith.addf %21, %24 : vector<72x64xf32>
    %c288 = arith.constant 288 : index
    %c0_25 = arith.constant 0 : index
    %26 = vector.load %arg7[%c288, %c0_25] : memref<1800x32xf32, #tpu.memory_space<vmem>>, vector<72x32xf32>
    %c128 = arith.constant 128 : index
    %c0_26 = arith.constant 0 : index
    %27 = vector.load %arg2[%c128, %c0_26] : memref<800x64xf32, #tpu.memory_space<vmem>>, vector<32x64xf32>
    %cst_27 = arith.constant dense<0.000000e+00> : vector<72x64xf32>
    %28 = tpu.matmul %26, %27, %cst_27 {dimension_numbers = #tpu.dot_dimension_numbers<[1], [0], [0], [1], [0, 0, 1, 1], [], []>} : vector<72x32xf32>, vector<32x64xf32>, vector<72x64xf32> -> vector<72x64xf32>
    %29 = arith.addf %25, %28 : vector<72x64xf32>
    %c360 = arith.constant 360 : index
    %c0_28 = arith.constant 0 : index
    %30 = vector.load %arg7[%c360, %c0_28] : memref<1800x32xf32, #tpu.memory_space<vmem>>, vector<72x32xf32>
    %c160 = arith.constant 160 : index
    %c0_29 = arith.constant 0 : index
    %31 = vector.load %arg2[%c160, %c0_29] : memref<800x64xf32, #tpu.memory_space<vmem>>, vector<32x64xf32>
    %cst_30 = arith.constant dense<0.000000e+00> : vector<72x64xf32>
    %32 = tpu.matmul %30, %31, %cst_30 {dimension_numbers = #tpu.dot_dimension_numbers<[1], [0], [0], [1], [0, 0, 1, 1], [], []>} : vector<72x32xf32>, vector<32x64xf32>, vector<72x64xf32> -> vector<72x64xf32>
    %33 = arith.addf %29, %32 : vector<72x64xf32>
    %c432 = arith.constant 432 : index
    %c0_31 = arith.constant 0 : index
    %34 = vector.load %arg7[%c432, %c0_31] : memref<1800x32xf32, #tpu.memory_space<vmem>>, vector<72x32xf32>
    %c192 = arith.constant 192 : index
    %c0_32 = arith.constant 0 : index
    %35 = vector.load %arg2[%c192, %c0_32] : memref<800x64xf32, #tpu.memory_space<vmem>>, vector<32x64xf32>
    %cst_33 = arith.constant dense<0.000000e+00> : vector<72x64xf32>
    %36 = tpu.matmul %34, %35, %cst_33 {dimension_numbers = #tpu.dot_dimension_numbers<[1], [0], [0], [1], [0, 0, 1, 1], [], []>} : vector<72x32xf32>, vector<32x64xf32>, vector<72x64xf32> -> vector<72x64xf32>
    %37 = arith.addf %33, %36 : vector<72x64xf32>
    %c504 = arith.constant 504 : index
    %c0_34 = arith.constant 0 : index
    %38 = vector.load %arg7[%c504, %c0_34] : memref<1800x32xf32, #tpu.memory_space<vmem>>, vector<72x32xf32>
    %c224 = arith.constant 224 : index
    %c0_35 = arith.constant 0 : index
    %39 = vector.load %arg2[%c224, %c0_35] : memref<800x64xf32, #tpu.memory_space<vmem>>, vector<32x64xf32>
    %cst_36 = arith.constant dense<0.000000e+00> : vector<72x64xf32>
    %40 = tpu.matmul %38, %39, %cst_36 {dimension_numbers = #tpu.dot_dimension_numbers<[1], [0], [0], [1], [0, 0, 1, 1], [], []>} : vector<72x32xf32>, vector<32x64xf32>, vector<72x64xf32> -> vector<72x64xf32>
    %41 = arith.addf %37, %40 : vector<72x64xf32>
    %c576 = arith.constant 576 : index
    %c0_37 = arith.constant 0 : index
    %42 = vector.load %arg7[%c576, %c0_37] : memref<1800x32xf32, #tpu.memory_space<vmem>>, vector<72x32xf32>
    %c256 = arith.constant 256 : index
    %c0_38 = arith.constant 0 : index
    %43 = vector.load %arg2[%c256, %c0_38] : memref<800x64xf32, #tpu.memory_space<vmem>>, vector<32x64xf32>
    %cst_39 = arith.constant dense<0.000000e+00> : vector<72x64xf32>
    %44 = tpu.matmul %42, %43, %cst_39 {dimension_numbers = #tpu.dot_dimension_numbers<[1], [0], [0], [1], [0, 0, 1, 1], [], []>} : vector<72x32xf32>, vector<32x64xf32>, vector<72x64xf32> -> vector<72x64xf32>
    %45 = arith.addf %41, %44 : vector<72x64xf32>
    %c648 = arith.constant 648 : index
    %c0_40 = arith.constant 0 : index
    %46 = vector.load %arg7[%c648, %c0_40] : memref<1800x32xf32, #tpu.memory_space<vmem>>, vector<72x32xf32>
    %c288_41 = arith.constant 288 : index
    %c0_42 = arith.constant 0 : index
    %47 = vector.load %arg2[%c288_41, %c0_42] : memref<800x64xf32, #tpu.memory_space<vmem>>, vector<32x64xf32>
    %cst_43 = arith.constant dense<0.000000e+00> : vector<72x64xf32>
    %48 = tpu.matmul %46, %47, %cst_43 {dimension_numbers = #tpu.dot_dimension_numbers<[1], [0], [0], [1], [0, 0, 1, 1], [], []>} : vector<72x32xf32>, vector<32x64xf32>, vector<72x64xf32> -> vector<72x64xf32>
    %49 = arith.addf %45, %48 : vector<72x64xf32>
    %c720 = arith.constant 720 : index
    %c0_44 = arith.constant 0 : index
    %50 = vector.load %arg7[%c720, %c0_44] : memref<1800x32xf32, #tpu.memory_space<vmem>>, vector<72x32xf32>
    %c320 = arith.constant 320 : index
    %c0_45 = arith.constant 0 : index
    %51 = vector.load %arg2[%c320, %c0_45] : memref<800x64xf32, #tpu.memory_space<vmem>>, vector<32x64xf32>
    %cst_46 = arith.constant dense<0.000000e+00> : vector<72x64xf32>
    %52 = tpu.matmul %50, %51, %cst_46 {dimension_numbers = #tpu.dot_dimension_numbers<[1], [0], [0], [1], [0, 0, 1, 1], [], []>} : vector<72x32xf32>, vector<32x64xf32>, vector<72x64xf32> -> vector<72x64xf32>
    %53 = arith.addf %49, %52 : vector<72x64xf32>
    %c792 = arith.constant 792 : index
    %c0_47 = arith.constant 0 : index
    %54 = vector.load %arg7[%c792, %c0_47] : memref<1800x32xf32, #tpu.memory_space<vmem>>, vector<72x32xf32>
    %c352 = arith.constant 352 : index
    %c0_48 = arith.constant 0 : index
    %55 = vector.load %arg2[%c352, %c0_48] : memref<800x64xf32, #tpu.memory_space<vmem>>, vector<32x64xf32>
    %cst_49 = arith.constant dense<0.000000e+00> : vector<72x64xf32>
    %56 = tpu.matmul %54, %55, %cst_49 {dimension_numbers = #tpu.dot_dimension_numbers<[1], [0], [0], [1], [0, 0, 1, 1], [], []>} : vector<72x32xf32>, vector<32x64xf32>, vector<72x64xf32> -> vector<72x64xf32>
    %57 = arith.addf %53, %56 : vector<72x64xf32>
    %c864 = arith.constant 864 : index
    %c0_50 = arith.constant 0 : index
    %58 = vector.load %arg7[%c864, %c0_50] : memref<1800x32xf32, #tpu.memory_space<vmem>>, vector<72x32xf32>
    %c384 = arith.constant 384 : index
    %c0_51 = arith.constant 0 : index
    %59 = vector.load %arg2[%c384, %c0_51] : memref<800x64xf32, #tpu.memory_space<vmem>>, vector<32x64xf32>
    %cst_52 = arith.constant dense<0.000000e+00> : vector<72x64xf32>
    %60 = tpu.matmul %58, %59, %cst_52 {dimension_numbers = #tpu.dot_dimension_numbers<[1], [0], [0], [1], [0, 0, 1, 1], [], []>} : vector<72x32xf32>, vector<32x64xf32>, vector<72x64xf32> -> vector<72x64xf32>
    %61 = arith.addf %57, %60 : vector<72x64xf32>
    %c936 = arith.constant 936 : index
    %c0_53 = arith.constant 0 : index
    %62 = vector.load %arg7[%c936, %c0_53] : memref<1800x32xf32, #tpu.memory_space<vmem>>, vector<72x32xf32>
    %c416 = arith.constant 416 : index
    %c0_54 = arith.constant 0 : index
    %63 = vector.load %arg2[%c416, %c0_54] : memref<800x64xf32, #tpu.memory_space<vmem>>, vector<32x64xf32>
    %cst_55 = arith.constant dense<0.000000e+00> : vector<72x64xf32>
    %64 = tpu.matmul %62, %63, %cst_55 {dimension_numbers = #tpu.dot_dimension_numbers<[1], [0], [0], [1], [0, 0, 1, 1], [], []>} : vector<72x32xf32>, vector<32x64xf32>, vector<72x64xf32> -> vector<72x64xf32>
    %65 = arith.addf %61, %64 : vector<72x64xf32>
    %c1008 = arith.constant 1008 : index
    %c0_56 = arith.constant 0 : index
    %66 = vector.load %arg7[%c1008, %c0_56] : memref<1800x32xf32, #tpu.memory_space<vmem>>, vector<72x32xf32>
    %c448 = arith.constant 448 : index
    %c0_57 = arith.constant 0 : index
    %67 = vector.load %arg2[%c448, %c0_57] : memref<800x64xf32, #tpu.memory_space<vmem>>, vector<32x64xf32>
    %cst_58 = arith.constant dense<0.000000e+00> : vector<72x64xf32>
    %68 = tpu.matmul %66, %67, %cst_58 {dimension_numbers = #tpu.dot_dimension_numbers<[1], [0], [0], [1], [0, 0, 1, 1], [], []>} : vector<72x32xf32>, vector<32x64xf32>, vector<72x64xf32> -> vector<72x64xf32>
    %69 = arith.addf %65, %68 : vector<72x64xf32>
    %c1080 = arith.constant 1080 : index
    %c0_59 = arith.constant 0 : index
    %70 = vector.load %arg7[%c1080, %c0_59] : memref<1800x32xf32, #tpu.memory_space<vmem>>, vector<72x32xf32>
    %c480 = arith.constant 480 : index
    %c0_60 = arith.constant 0 : index
    %71 = vector.load %arg2[%c480, %c0_60] : memref<800x64xf32, #tpu.memory_space<vmem>>, vector<32x64xf32>
    %cst_61 = arith.constant dense<0.000000e+00> : vector<72x64xf32>
    %72 = tpu.matmul %70, %71, %cst_61 {dimension_numbers = #tpu.dot_dimension_numbers<[1], [0], [0], [1], [0, 0, 1, 1], [], []>} : vector<72x32xf32>, vector<32x64xf32>, vector<72x64xf32> -> vector<72x64xf32>
    %73 = arith.addf %69, %72 : vector<72x64xf32>
    %c1152 = arith.constant 1152 : index
    %c0_62 = arith.constant 0 : index
    %74 = vector.load %arg7[%c1152, %c0_62] : memref<1800x32xf32, #tpu.memory_space<vmem>>, vector<72x32xf32>
    %c512 = arith.constant 512 : index
    %c0_63 = arith.constant 0 : index
    %75 = vector.load %arg2[%c512, %c0_63] : memref<800x64xf32, #tpu.memory_space<vmem>>, vector<32x64xf32>
    %cst_64 = arith.constant dense<0.000000e+00> : vector<72x64xf32>
    %76 = tpu.matmul %74, %75, %cst_64 {dimension_numbers = #tpu.dot_dimension_numbers<[1], [0], [0], [1], [0, 0, 1, 1], [], []>} : vector<72x32xf32>, vector<32x64xf32>, vector<72x64xf32> -> vector<72x64xf32>
    %77 = arith.addf %73, %76 : vector<72x64xf32>
    %c1224 = arith.constant 1224 : index
    %c0_65 = arith.constant 0 : index
    %78 = vector.load %arg7[%c1224, %c0_65] : memref<1800x32xf32, #tpu.memory_space<vmem>>, vector<72x32xf32>
    %c544 = arith.constant 544 : index
    %c0_66 = arith.constant 0 : index
    %79 = vector.load %arg2[%c544, %c0_66] : memref<800x64xf32, #tpu.memory_space<vmem>>, vector<32x64xf32>
    %cst_67 = arith.constant dense<0.000000e+00> : vector<72x64xf32>
    %80 = tpu.matmul %78, %79, %cst_67 {dimension_numbers = #tpu.dot_dimension_numbers<[1], [0], [0], [1], [0, 0, 1, 1], [], []>} : vector<72x32xf32>, vector<32x64xf32>, vector<72x64xf32> -> vector<72x64xf32>
    %81 = arith.addf %77, %80 : vector<72x64xf32>
    %c1296 = arith.constant 1296 : index
    %c0_68 = arith.constant 0 : index
    %82 = vector.load %arg7[%c1296, %c0_68] : memref<1800x32xf32, #tpu.memory_space<vmem>>, vector<72x32xf32>
    %c576_69 = arith.constant 576 : index
    %c0_70 = arith.constant 0 : index
    %83 = vector.load %arg2[%c576_69, %c0_70] : memref<800x64xf32, #tpu.memory_space<vmem>>, vector<32x64xf32>
    %cst_71 = arith.constant dense<0.000000e+00> : vector<72x64xf32>
    %84 = tpu.matmul %82, %83, %cst_71 {dimension_numbers = #tpu.dot_dimension_numbers<[1], [0], [0], [1], [0, 0, 1, 1], [], []>} : vector<72x32xf32>, vector<32x64xf32>, vector<72x64xf32> -> vector<72x64xf32>
    %85 = arith.addf %81, %84 : vector<72x64xf32>
    %c1368 = arith.constant 1368 : index
    %c0_72 = arith.constant 0 : index
    %86 = vector.load %arg7[%c1368, %c0_72] : memref<1800x32xf32, #tpu.memory_space<vmem>>, vector<72x32xf32>
    %c608 = arith.constant 608 : index
    %c0_73 = arith.constant 0 : index
    %87 = vector.load %arg2[%c608, %c0_73] : memref<800x64xf32, #tpu.memory_space<vmem>>, vector<32x64xf32>
    %cst_74 = arith.constant dense<0.000000e+00> : vector<72x64xf32>
    %88 = tpu.matmul %86, %87, %cst_74 {dimension_numbers = #tpu.dot_dimension_numbers<[1], [0], [0], [1], [0, 0, 1, 1], [], []>} : vector<72x32xf32>, vector<32x64xf32>, vector<72x64xf32> -> vector<72x64xf32>
    %89 = arith.addf %85, %88 : vector<72x64xf32>
    %c1440 = arith.constant 1440 : index
    %c0_75 = arith.constant 0 : index
    %90 = vector.load %arg7[%c1440, %c0_75] : memref<1800x32xf32, #tpu.memory_space<vmem>>, vector<72x32xf32>
    %c640 = arith.constant 640 : index
    %c0_76 = arith.constant 0 : index
    %91 = vector.load %arg2[%c640, %c0_76] : memref<800x64xf32, #tpu.memory_space<vmem>>, vector<32x64xf32>
    %cst_77 = arith.constant dense<0.000000e+00> : vector<72x64xf32>
    %92 = tpu.matmul %90, %91, %cst_77 {dimension_numbers = #tpu.dot_dimension_numbers<[1], [0], [0], [1], [0, 0, 1, 1], [], []>} : vector<72x32xf32>, vector<32x64xf32>, vector<72x64xf32> -> vector<72x64xf32>
    %93 = arith.addf %89, %92 : vector<72x64xf32>
    %c1512 = arith.constant 1512 : index
    %c0_78 = arith.constant 0 : index
    %94 = vector.load %arg7[%c1512, %c0_78] : memref<1800x32xf32, #tpu.memory_space<vmem>>, vector<72x32xf32>
    %c672 = arith.constant 672 : index
    %c0_79 = arith.constant 0 : index
    %95 = vector.load %arg2[%c672, %c0_79] : memref<800x64xf32, #tpu.memory_space<vmem>>, vector<32x64xf32>
    %cst_80 = arith.constant dense<0.000000e+00> : vector<72x64xf32>
    %96 = tpu.matmul %94, %95, %cst_80 {dimension_numbers = #tpu.dot_dimension_numbers<[1], [0], [0], [1], [0, 0, 1, 1], [], []>} : vector<72x32xf32>, vector<32x64xf32>, vector<72x64xf32> -> vector<72x64xf32>
    %97 = arith.addf %93, %96 : vector<72x64xf32>
    %c1584 = arith.constant 1584 : index
    %c0_81 = arith.constant 0 : index
    %98 = vector.load %arg7[%c1584, %c0_81] : memref<1800x32xf32, #tpu.memory_space<vmem>>, vector<72x32xf32>
    %c704 = arith.constant 704 : index
    %c0_82 = arith.constant 0 : index
    %99 = vector.load %arg2[%c704, %c0_82] : memref<800x64xf32, #tpu.memory_space<vmem>>, vector<32x64xf32>
    %cst_83 = arith.constant dense<0.000000e+00> : vector<72x64xf32>
    %100 = tpu.matmul %98, %99, %cst_83 {dimension_numbers = #tpu.dot_dimension_numbers<[1], [0], [0], [1], [0, 0, 1, 1], [], []>} : vector<72x32xf32>, vector<32x64xf32>, vector<72x64xf32> -> vector<72x64xf32>
    %101 = arith.addf %97, %100 : vector<72x64xf32>
    %c1656 = arith.constant 1656 : index
    %c0_84 = arith.constant 0 : index
    %102 = vector.load %arg7[%c1656, %c0_84] : memref<1800x32xf32, #tpu.memory_space<vmem>>, vector<72x32xf32>
    %c736 = arith.constant 736 : index
    %c0_85 = arith.constant 0 : index
    %103 = vector.load %arg2[%c736, %c0_85] : memref<800x64xf32, #tpu.memory_space<vmem>>, vector<32x64xf32>
    %cst_86 = arith.constant dense<0.000000e+00> : vector<72x64xf32>
    %104 = tpu.matmul %102, %103, %cst_86 {dimension_numbers = #tpu.dot_dimension_numbers<[1], [0], [0], [1], [0, 0, 1, 1], [], []>} : vector<72x32xf32>, vector<32x64xf32>, vector<72x64xf32> -> vector<72x64xf32>
    %105 = arith.addf %101, %104 : vector<72x64xf32>
    %c1728 = arith.constant 1728 : index
    %c0_87 = arith.constant 0 : index
    %106 = vector.load %arg7[%c1728, %c0_87] : memref<1800x32xf32, #tpu.memory_space<vmem>>, vector<72x32xf32>
    %c768 = arith.constant 768 : index
    %c0_88 = arith.constant 0 : index
    %107 = vector.load %arg2[%c768, %c0_88] : memref<800x64xf32, #tpu.memory_space<vmem>>, vector<32x64xf32>
    %cst_89 = arith.constant dense<0.000000e+00> : vector<72x64xf32>
    %108 = tpu.matmul %106, %107, %cst_89 {dimension_numbers = #tpu.dot_dimension_numbers<[1], [0], [0], [1], [0, 0, 1, 1], [], []>} : vector<72x32xf32>, vector<32x64xf32>, vector<72x64xf32> -> vector<72x64xf32>
    %109 = arith.addf %105, %108 : vector<72x64xf32>
    %110 = vector.broadcast %7 : vector<1x64xf32> to vector<72x64xf32>
    %111 = arith.addf %109, %110 : vector<72x64xf32>
    %cst_90 = arith.constant 0.000000e+00 : f32
    %112 = vector.broadcast %cst_90 : f32 to vector<72x64xf32>
    %113 = arith.maximumf %111, %112 : vector<72x64xf32>
    %cst_91 = arith.constant 0.000000e+00 : f32
    %114 = vector.broadcast %cst_91 : f32 to vector<8x128xf32>
    %115 = vector.extract_strided_slice %113 {offsets = [0, 0], sizes = [8, 64], strides = [1, 1]} : vector<72x64xf32> to vector<8x64xf32>
    %c0_92 = arith.constant 0 : index
    %c0_93 = arith.constant 0 : index
    %116 = vector.load %arg3[%c0_92, %c0_93] : memref<576x128xf32, #tpu.memory_space<vmem>>, vector<64x128xf32>
    %cst_94 = arith.constant dense<0.000000e+00> : vector<8x128xf32>
    %117 = tpu.matmul %115, %116, %cst_94 {dimension_numbers = #tpu.dot_dimension_numbers<[1], [0], [0], [1], [0, 0, 1, 1], [], []>} : vector<8x64xf32>, vector<64x128xf32>, vector<8x128xf32> -> vector<8x128xf32>
    %118 = arith.addf %114, %117 : vector<8x128xf32>
    %119 = vector.extract_strided_slice %113 {offsets = [8, 0], sizes = [8, 64], strides = [1, 1]} : vector<72x64xf32> to vector<8x64xf32>
    %c64_95 = arith.constant 64 : index
    %c0_96 = arith.constant 0 : index
    %120 = vector.load %arg3[%c64_95, %c0_96] : memref<576x128xf32, #tpu.memory_space<vmem>>, vector<64x128xf32>
    %cst_97 = arith.constant dense<0.000000e+00> : vector<8x128xf32>
    %121 = tpu.matmul %119, %120, %cst_97 {dimension_numbers = #tpu.dot_dimension_numbers<[1], [0], [0], [1], [0, 0, 1, 1], [], []>} : vector<8x64xf32>, vector<64x128xf32>, vector<8x128xf32> -> vector<8x128xf32>
    %122 = arith.addf %118, %121 : vector<8x128xf32>
    %123 = vector.extract_strided_slice %113 {offsets = [16, 0], sizes = [8, 64], strides = [1, 1]} : vector<72x64xf32> to vector<8x64xf32>
    %c128_98 = arith.constant 128 : index
    %c0_99 = arith.constant 0 : index
    %124 = vector.load %arg3[%c128_98, %c0_99] : memref<576x128xf32, #tpu.memory_space<vmem>>, vector<64x128xf32>
    %cst_100 = arith.constant dense<0.000000e+00> : vector<8x128xf32>
    %125 = tpu.matmul %123, %124, %cst_100 {dimension_numbers = #tpu.dot_dimension_numbers<[1], [0], [0], [1], [0, 0, 1, 1], [], []>} : vector<8x64xf32>, vector<64x128xf32>, vector<8x128xf32> -> vector<8x128xf32>
    %126 = arith.addf %122, %125 : vector<8x128xf32>
    %127 = vector.extract_strided_slice %113 {offsets = [24, 0], sizes = [8, 64], strides = [1, 1]} : vector<72x64xf32> to vector<8x64xf32>
    %c192_101 = arith.constant 192 : index
    %c0_102 = arith.constant 0 : index
    %128 = vector.load %arg3[%c192_101, %c0_102] : memref<576x128xf32, #tpu.memory_space<vmem>>, vector<64x128xf32>
    %cst_103 = arith.constant dense<0.000000e+00> : vector<8x128xf32>
    %129 = tpu.matmul %127, %128, %cst_103 {dimension_numbers = #tpu.dot_dimension_numbers<[1], [0], [0], [1], [0, 0, 1, 1], [], []>} : vector<8x64xf32>, vector<64x128xf32>, vector<8x128xf32> -> vector<8x128xf32>
    %130 = arith.addf %126, %129 : vector<8x128xf32>
    %131 = vector.extract_strided_slice %113 {offsets = [32, 0], sizes = [8, 64], strides = [1, 1]} : vector<72x64xf32> to vector<8x64xf32>
    %c256_104 = arith.constant 256 : index
    %c0_105 = arith.constant 0 : index
    %132 = vector.load %arg3[%c256_104, %c0_105] : memref<576x128xf32, #tpu.memory_space<vmem>>, vector<64x128xf32>
    %cst_106 = arith.constant dense<0.000000e+00> : vector<8x128xf32>
    %133 = tpu.matmul %131, %132, %cst_106 {dimension_numbers = #tpu.dot_dimension_numbers<[1], [0], [0], [1], [0, 0, 1, 1], [], []>} : vector<8x64xf32>, vector<64x128xf32>, vector<8x128xf32> -> vector<8x128xf32>
    %134 = arith.addf %130, %133 : vector<8x128xf32>
    %135 = vector.extract_strided_slice %113 {offsets = [40, 0], sizes = [8, 64], strides = [1, 1]} : vector<72x64xf32> to vector<8x64xf32>
    %c320_107 = arith.constant 320 : index
    %c0_108 = arith.constant 0 : index
    %136 = vector.load %arg3[%c320_107, %c0_108] : memref<576x128xf32, #tpu.memory_space<vmem>>, vector<64x128xf32>
    %cst_109 = arith.constant dense<0.000000e+00> : vector<8x128xf32>
    %137 = tpu.matmul %135, %136, %cst_109 {dimension_numbers = #tpu.dot_dimension_numbers<[1], [0], [0], [1], [0, 0, 1, 1], [], []>} : vector<8x64xf32>, vector<64x128xf32>, vector<8x128xf32> -> vector<8x128xf32>
    %138 = arith.addf %134, %137 : vector<8x128xf32>
    %139 = vector.extract_strided_slice %113 {offsets = [48, 0], sizes = [8, 64], strides = [1, 1]} : vector<72x64xf32> to vector<8x64xf32>
    %c384_110 = arith.constant 384 : index
    %c0_111 = arith.constant 0 : index
    %140 = vector.load %arg3[%c384_110, %c0_111] : memref<576x128xf32, #tpu.memory_space<vmem>>, vector<64x128xf32>
    %cst_112 = arith.constant dense<0.000000e+00> : vector<8x128xf32>
    %141 = tpu.matmul %139, %140, %cst_112 {dimension_numbers = #tpu.dot_dimension_numbers<[1], [0], [0], [1], [0, 0, 1, 1], [], []>} : vector<8x64xf32>, vector<64x128xf32>, vector<8x128xf32> -> vector<8x128xf32>
    %142 = arith.addf %138, %141 : vector<8x128xf32>
    %143 = vector.extract_strided_slice %113 {offsets = [56, 0], sizes = [8, 64], strides = [1, 1]} : vector<72x64xf32> to vector<8x64xf32>
    %c448_113 = arith.constant 448 : index
    %c0_114 = arith.constant 0 : index
    %144 = vector.load %arg3[%c448_113, %c0_114] : memref<576x128xf32, #tpu.memory_space<vmem>>, vector<64x128xf32>
    %cst_115 = arith.constant dense<0.000000e+00> : vector<8x128xf32>
    %145 = tpu.matmul %143, %144, %cst_115 {dimension_numbers = #tpu.dot_dimension_numbers<[1], [0], [0], [1], [0, 0, 1, 1], [], []>} : vector<8x64xf32>, vector<64x128xf32>, vector<8x128xf32> -> vector<8x128xf32>
    %146 = arith.addf %142, %145 : vector<8x128xf32>
    %147 = vector.extract_strided_slice %113 {offsets = [64, 0], sizes = [8, 64], strides = [1, 1]} : vector<72x64xf32> to vector<8x64xf32>
    %c512_116 = arith.constant 512 : index
    %c0_117 = arith.constant 0 : index
    %148 = vector.load %arg3[%c512_116, %c0_117] : memref<576x128xf32, #tpu.memory_space<vmem>>, vector<64x128xf32>
    %cst_118 = arith.constant dense<0.000000e+00> : vector<8x128xf32>
    %149 = tpu.matmul %147, %148, %cst_118 {dimension_numbers = #tpu.dot_dimension_numbers<[1], [0], [0], [1], [0, 0, 1, 1], [], []>} : vector<8x64xf32>, vector<64x128xf32>, vector<8x128xf32> -> vector<8x128xf32>
    %150 = arith.addf %146, %149 : vector<8x128xf32>
    %151 = vector.broadcast %6 : vector<1x128xf32> to vector<8x128xf32>
    %152 = arith.addf %150, %151 : vector<8x128xf32>
    %cst_119 = arith.constant 0.000000e+00 : f32
    %153 = vector.broadcast %cst_119 : f32 to vector<8x128xf32>
    %154 = arith.maximumf %152, %153 : vector<8x128xf32>
    %c0_120 = arith.constant 0 : index
    %c0_121 = arith.constant 0 : index
    %155 = vector.load %arg4[%c0_120, %c0_121] : memref<128x16xf32, #tpu.memory_space<vmem>>, vector<128x16xf32>
    %cst_122 = arith.constant dense<0.000000e+00> : vector<8x16xf32>
    %156 = tpu.matmul %154, %155, %cst_122 {dimension_numbers = #tpu.dot_dimension_numbers<[1], [0], [0], [1], [0, 0, 1, 1], [], []>} : vector<8x128xf32>, vector<128x16xf32>, vector<8x16xf32> -> vector<8x16xf32>
    %157 = vector.broadcast %8 : vector<1x16xf32> to vector<8x16xf32>
    %158 = arith.addf %156, %157 : vector<8x16xf32>
    %159 = vector.extract_strided_slice %158 {offsets = [0, 0], sizes = [8, 1], strides = [1, 1]} : vector<8x16xf32> to vector<8x1xf32>
    %160 = vector.extract_strided_slice %158 {offsets = [0, 1], sizes = [8, 6], strides = [1, 1]} : vector<8x16xf32> to vector<8x6xf32>
    %161 = vector.extract_strided_slice %158 {offsets = [0, 7], sizes = [8, 1], strides = [1, 1]} : vector<8x16xf32> to vector<8x1xf32>
    %162 = vector.extract_strided_slice %158 {offsets = [0, 8], sizes = [8, 6], strides = [1, 1]} : vector<8x16xf32> to vector<8x6xf32>
    %163 = vector.broadcast %159 : vector<8x1xf32> to vector<8x6xf32>
    %164 = arith.addf %163, %160 : vector<8x6xf32>
    %cst_123 = arith.constant dense<0.000000e+00> : vector<8xf32>
    %165 = vector.multi_reduction <add>, %160, %cst_123 [1] : vector<8x6xf32> to vector<8xf32>
    %166 = vector.shape_cast %165 : vector<8xf32> to vector<8x1xf32>
    %cst_124 = arith.constant 6.000000e+00 : f32
    %167 = vector.broadcast %cst_124 : f32 to vector<8x1xf32>
    %168 = arith.divf %166, %167 : vector<8x1xf32>
    %169 = vector.broadcast %168 : vector<8x1xf32> to vector<8x6xf32>
    %170 = arith.subf %164, %169 : vector<8x6xf32>
    %171 = vector.broadcast %161 : vector<8x1xf32> to vector<8x6xf32>
    %172 = arith.addf %171, %162 : vector<8x6xf32>
    %cst_125 = arith.constant dense<0.000000e+00> : vector<8xf32>
    %173 = vector.multi_reduction <add>, %162, %cst_125 [1] : vector<8x6xf32> to vector<8xf32>
    %174 = vector.shape_cast %173 : vector<8xf32> to vector<8x1xf32>
    %cst_126 = arith.constant 6.000000e+00 : f32
    %175 = vector.broadcast %cst_126 : f32 to vector<8x1xf32>
    %176 = arith.divf %174, %175 : vector<8x1xf32>
    %177 = vector.broadcast %176 : vector<8x1xf32> to vector<8x6xf32>
    %178 = arith.subf %172, %177 : vector<8x6xf32>
    %c0_127 = arith.constant 0 : index
    %c0_128 = arith.constant 0 : index
    %179 = vector.load %arg6[%c0_127, %c0_128] : memref<8x12xf32, #tpu.memory_space<vmem>>, vector<8x6xf32>
    tpu.vector_store %arg6[%c0_127, %c0_128], %170 {strides = array<i32>} : memref<8x12xf32, #tpu.memory_space<vmem>>, vector<8x6xf32>,
    %c0_129 = arith.constant 0 : index
    %c6 = arith.constant 6 : index
    %180 = vector.load %arg6[%c0_129, %c6] : memref<8x12xf32, #tpu.memory_space<vmem>>, vector<8x6xf32>
    tpu.vector_store %arg6[%c0_129, %c6], %178 {strides = array<i32>} : memref<8x12xf32, #tpu.memory_space<vmem>>, vector<8x6xf32>,
    return
  }
}

</mosaic_0001>

<llo_original>
// kernel: mean_var_dqn_forward.1
$region0: #{mean_var_dqn_forward.1}
  #allocation0 [shape = 'u32[]', space=smem, size = 0x4, offset = 0x4, fixed_abs, tag = 'smem constant byte address 0x4 - core index']
  #allocation1 [shape = 'u32[144,128]{1,0:T(1,128)}', space=vmem, size = 0x12000, scoped, tag = 'internal scratch']
  #allocation2 [shape = 'f32[1800,32]{1,0:T(8,128)}', space=vmem, size = 0xe1000, scoped, tag = 'scratch operand']
  %s0 = inlined_call_operand.vmem [shape: f32[1800,128], index: 0, kind: input, shape index: {}]
  %s1 = inlined_call_operand.vmem [shape: f32[128,32], index: 1, kind: input, shape index: {}]
  %s2 = inlined_call_operand.vmem [shape: f32[800,64], index: 2, kind: input, shape index: {}]
  %s3 = inlined_call_operand.vmem [shape: f32[576,128], index: 3, kind: input, shape index: {}]
  %s4 = inlined_call_operand.vmem [shape: f32[128,16], index: 4, kind: input, shape index: {}]
  %s5 = inlined_call_operand.vmem [shape: f32[3,128], index: 5, kind: input, shape index: {}]
  %s6 = inlined_call_operand.vmem [shape: f32[8,12], index: 6, kind: output, shape index: {}]
  %s7 = sld [smem:[#allocation0]]
  $region34: #{mean_var_dqn_forward.1} parent=0
    _
  %s9 = ssub.s32 1, %s7
  %s10 = scalar_select 0, %s9, %s7
  // Predicated region
  $region2: #{mean_var_dqn_forward.1} parent=0 // pred_check
    _
  $region3: #{mean_var_dqn_forward.1} parent=0 // pred_check_branch
    %12 = sbr.rel (0) target = $region5
  $region4: #{mean_var_dqn_forward.1} parent=0 // pred_region
    _
  $region5: #{mean_var_dqn_forward.1} parent=0 // pred_fallthru
    _
  // Predicated region
  $region6: #{mean_var_dqn_forward.1} parent=0 // pred_check
    _
  $region7: #{mean_var_dqn_forward.1} parent=0 // pred_check_branch
    %14 = sbr.rel (0) target = $region9
  $region8: #{mean_var_dqn_forward.1} parent=0 // pred_region
    _
  $region9: #{mean_var_dqn_forward.1} parent=0 // pred_fallthru
    _
  // Predicated region
  $region10: #{mean_var_dqn_forward.1} parent=0 // pred_check
    _
  $region11: #{mean_var_dqn_forward.1} parent=0 // pred_check_branch
    %16 = sbr.rel (0) target = $region13
  $region12: #{mean_var_dqn_forward.1} parent=0 // pred_region
    _
  $region13: #{mean_var_dqn_forward.1} parent=0 // pred_fallthru
    _
  // Predicated region
  $region14: #{mean_var_dqn_forward.1} parent=0 // pred_check
    _
  $region15: #{mean_var_dqn_forward.1} parent=0 // pred_check_branch
    %18 = sbr.rel (0) target = $region17
  $region16: #{mean_var_dqn_forward.1} parent=0 // pred_region
    _
  $region17: #{mean_var_dqn_forward.1} parent=0 // pred_fallthru
    _
  // Predicated region
  $region18: #{mean_var_dqn_forward.1} parent=0 // pred_check
    _
  $region19: #{mean_var_dqn_forward.1} parent=0 // pred_check_branch
    %20 = sbr.rel (0) target = $region21
  $region20: #{mean_var_dqn_forward.1} parent=0 // pred_region
    _
  $region21: #{mean_var_dqn_forward.1} parent=0 // pred_fallthru
    _
  // Predicated region
  $region22: #{mean_var_dqn_forward.1} parent=0 // pred_check
    _
  $region23: #{mean_var_dqn_forward.1} parent=0 // pred_check_branch
    %22 = sbr.rel (0) target = $region25
  $region24: #{mean_var_dqn_forward.1} parent=0 // pred_region
    _
  $region25: #{mean_var_dqn_forward.1} parent=0 // pred_fallthru
    _
  %v23 = vld [vmem:[%s0] sm:$0xff]
  %v24 = vld [vmem:[%s0 + $0x8] sm:$0xff]
  %v25 = vld [vmem:[%s0 + $0x10] sm:$0xff]
  %v26 = vld [vmem:[%s0 + $0x18] sm:$0xff]
  %v27 = vld [vmem:[%s0 + $0x20] sm:$0xff]
  %v28 = vld [vmem:[%s0 + $0x28] sm:$0xff]
  %v29 = vld [vmem:[%s0 + $0x30] sm:$0xff]
  %v30 = vld [vmem:[%s0 + $0x38] sm:$0xff]
  %v31 = vld [vmem:[%s0 + $0x40] sm:$0xff]
  %v32 = vld [vmem:[%s0 + $0x48] sm:$0xff]
  %v33 = vld [vmem:[%s0 + $0x50] sm:$0xff]
  %v34 = vld [vmem:[%s0 + $0x58] sm:$0xff]
  %v35 = vld [vmem:[%s0 + $0x60] sm:$0xff]
  %v36 = vld [vmem:[%s0 + $0x68] sm:$0xff]
  %v37 = vld [vmem:[%s0 + $0x70] sm:$0xff]
  %v38 = vld [vmem:[%s0 + $0x78] sm:$0xff]
  %v39 = vld [vmem:[%s0 + $0x80] sm:$0xff]
  %v40 = vld [vmem:[%s0 + $0x88] sm:$0xff]
  %v41 = vld [vmem:[%s0 + $0x90] sm:$0xff]
  %v42 = vld [vmem:[%s0 + $0x98] sm:$0xff]
  %v43 = vld [vmem:[%s0 + $0xa0] sm:$0xff]
  %v44 = vld [vmem:[%s0 + $0xa8] sm:$0xff]
  %v45 = vld [vmem:[%s0 + $0xb0] sm:$0xff]
  %v46 = vld [vmem:[%s0 + $0xb8] sm:$0xff]
  %v47 = vld [vmem:[%s0 + $0xc0] sm:$0xff]
  %v48 = vld [vmem:[%s0 + $0xc8] sm:$0xff]
  %v49 = vld [vmem:[%s0 + $0xd0] sm:$0xff]
  %v50 = vld [vmem:[%s0 + $0xd8] sm:$0xff]
  %v51 = vld [vmem:[%s0 + $0xe0] sm:$0xff]
  %v52 = vld [vmem:[%s0 + $0xe8] sm:$0xff]
  %v53 = vld [vmem:[%s0 + $0xf0] sm:$0xff]
  %v54 = vld [vmem:[%s0 + $0xf8] sm:$0xff]
  %v55 = vld [vmem:[%s0 + $0x100] sm:$0xff]
  %v56 = vld [vmem:[%s0 + $0x108] sm:$0xff]
  %v57 = vld [vmem:[%s0 + $0x110] sm:$0xff]
  %v58 = vld [vmem:[%s0 + $0x118] sm:$0xff]
  %v59 = vld [vmem:[%s0 + $0x120] sm:$0xff]
  %v60 = vld [vmem:[%s0 + $0x128] sm:$0xff]
  %v61 = vld [vmem:[%s0 + $0x130] sm:$0xff]
  %v62 = vld [vmem:[%s0 + $0x138] sm:$0xff]
  %v63 = vld [vmem:[%s0 + $0x140] sm:$0xff]
  %v64 = vld [vmem:[%s0 + $0x148] sm:$0xff]
  %v65 = vld [vmem:[%s0 + $0x150] sm:$0xff]
  %v66 = vld [vmem:[%s0 + $0x158] sm:$0xff]
  %v67 = vld [vmem:[%s0 + $0x160] sm:$0xff]
  %v68 = vld [vmem:[%s0 + $0x168] sm:$0xff]
  %v69 = vld [vmem:[%s0 + $0x170] sm:$0xff]
  %v70 = vld [vmem:[%s0 + $0x178] sm:$0xff]
  %v71 = vld [vmem:[%s0 + $0x180] sm:$0xff]
  %v72 = vld [vmem:[%s0 + $0x188] sm:$0xff]
  %v73 = vld [vmem:[%s0 + $0x190] sm:$0xff]
  %v74 = vld [vmem:[%s0 + $0x198] sm:$0xff]
  %v75 = vld [vmem:[%s0 + $0x1a0] sm:$0xff]
  %v76 = vld [vmem:[%s0 + $0x1a8] sm:$0xff]
  %v77 = vld [vmem:[%s0 + $0x1b0] sm:$0xff]
  %v78 = vld [vmem:[%s0 + $0x1b8] sm:$0xff]
  %v79 = vld [vmem:[%s0 + $0x1c0] sm:$0xff]
  %v80 = vld [vmem:[%s0 + $0x1c8] sm:$0xff]
  %v81 = vld [vmem:[%s0 + $0x1d0] sm:$0xff]
  %v82 = vld [vmem:[%s0 + $0x1d8] sm:$0xff]
  %v83 = vld [vmem:[%s0 + $0x1e0] sm:$0xff]
  %v84 = vld [vmem:[%s0 + $0x1e8] sm:$0xff]
  %v85 = vld [vmem:[%s0 + $0x1f0] sm:$0xff]
  %v86 = vld [vmem:[%s0 + $0x1f8] sm:$0xff]
  %v87 = vld [vmem:[%s0 + $0x200] sm:$0xff]
  %v88 = vld [vmem:[%s0 + $0x208] sm:$0xff]
  %v89 = vld [vmem:[%s0 + $0x210] sm:$0xff]
  %v90 = vld [vmem:[%s0 + $0x218] sm:$0xff]
  %v91 = vld [vmem:[%s0 + $0x220] sm:$0xff]
  %v92 = vld [vmem:[%s0 + $0x228] sm:$0xff]
  %v93 = vld [vmem:[%s0 + $0x230] sm:$0xff]
  %v94 = vld [vmem:[%s0 + $0x238] sm:$0xff]
  %v95 = vld [vmem:[%s0 + $0x240] sm:$0xff]
  %v96 = vld [vmem:[%s0 + $0x248] sm:$0xff]
  %v97 = vld [vmem:[%s0 + $0x250] sm:$0xff]
  %v98 = vld [vmem:[%s0 + $0x258] sm:$0xff]
  %v99 = vld [vmem:[%s0 + $0x260] sm:$0xff]
  %v100 = vld [vmem:[%s0 + $0x268] sm:$0xff]
  %v101 = vld [vmem:[%s0 + $0x270] sm:$0xff]
  %v102 = vld [vmem:[%s0 + $0x278] sm:$0xff]
  %v103 = vld [vmem:[%s0 + $0x280] sm:$0xff]
  %v104 = vld [vmem:[%s0 + $0x288] sm:$0xff]
  %v105 = vld [vmem:[%s0 + $0x290] sm:$0xff]
  %v106 = vld [vmem:[%s0 + $0x298] sm:$0xff]
  %v107 = vld [vmem:[%s0 + $0x2a0] sm:$0xff]
  %v108 = vld [vmem:[%s0 + $0x2a8] sm:$0xff]
  %v109 = vld [vmem:[%s0 + $0x2b0] sm:$0xff]
  %v110 = vld [vmem:[%s0 + $0x2b8] sm:$0xff]
  %v111 = vld [vmem:[%s0 + $0x2c0] sm:$0xff]
  %v112 = vld [vmem:[%s0 + $0x2c8] sm:$0xff]
  %v113 = vld [vmem:[%s0 + $0x2d0] sm:$0xff]
  %v114 = vld [vmem:[%s0 + $0x2d8] sm:$0xff]
  %v115 = vld [vmem:[%s0 + $0x2e0] sm:$0xff]
  %v116 = vld [vmem:[%s0 + $0x2e8] sm:$0xff]
  %v117 = vld [vmem:[%s0 + $0x2f0] sm:$0xff]
  %v118 = vld [vmem:[%s0 + $0x2f8] sm:$0xff]
  %v119 = vld [vmem:[%s0 + $0x300] sm:$0xff]
  %v120 = vld [vmem:[%s0 + $0x308] sm:$0xff]
  %v121 = vld [vmem:[%s0 + $0x310] sm:$0xff]
  %v122 = vld [vmem:[%s0 + $0x318] sm:$0xff]
  %v123 = vld [vmem:[%s0 + $0x320] sm:$0xff]
  %v124 = vld [vmem:[%s0 + $0x328] sm:$0xff]
  %v125 = vld [vmem:[%s0 + $0x330] sm:$0xff]
  %v126 = vld [vmem:[%s0 + $0x338] sm:$0xff]
  %v127 = vld [vmem:[%s0 + $0x340] sm:$0xff]
  %v128 = vld [vmem:[%s0 + $0x348] sm:$0xff]
  %v129 = vld [vmem:[%s0 + $0x350] sm:$0xff]
  %v130 = vld [vmem:[%s0 + $0x358] sm:$0xff]
  %v131 = vld [vmem:[%s0 + $0x360] sm:$0xff]
  %v132 = vld [vmem:[%s0 + $0x368] sm:$0xff]
  %v133 = vld [vmem:[%s0 + $0x370] sm:$0xff]
  %v134 = vld [vmem:[%s0 + $0x378] sm:$0xff]
  %v135 = vld [vmem:[%s0 + $0x380] sm:$0xff]
  %v136 = vld [vmem:[%s0 + $0x388] sm:$0xff]
  %v137 = vld [vmem:[%s0 + $0x390] sm:$0xff]
  %v138 = vld [vmem:[%s0 + $0x398] sm:$0xff]
  %v139 = vld [vmem:[%s0 + $0x3a0] sm:$0xff]
  %v140 = vld [vmem:[%s0 + $0x3a8] sm:$0xff]
  %v141 = vld [vmem:[%s0 + $0x3b0] sm:$0xff]
  %v142 = vld [vmem:[%s0 + $0x3b8] sm:$0xff]
  %v143 = vld [vmem:[%s0 + $0x3c0] sm:$0xff]
  %v144 = vld [vmem:[%s0 + $0x3c8] sm:$0xff]
  %v145 = vld [vmem:[%s0 + $0x3d0] sm:$0xff]
  %v146 = vld [vmem:[%s0 + $0x3d8] sm:$0xff]
  %v147 = vld [vmem:[%s0 + $0x3e0] sm:$0xff]
  %v148 = vld [vmem:[%s0 + $0x3e8] sm:$0xff]
  %v149 = vld [vmem:[%s0 + $0x3f0] sm:$0xff]
  %v150 = vld [vmem:[%s0 + $0x3f8] sm:$0xff]
  %v151 = vld [vmem:[%s0 + $0x400] sm:$0xff]
  %v152 = vld [vmem:[%s0 + $0x408] sm:$0xff]
  %v153 = vld [vmem:[%s0 + $0x410] sm:$0xff]
  %v154 = vld [vmem:[%s0 + $0x418] sm:$0xff]
  %v155 = vld [vmem:[%s0 + $0x420] sm:$0xff]
  %v156 = vld [vmem:[%s0 + $0x428] sm:$0xff]
  %v157 = vld [vmem:[%s0 + $0x430] sm:$0xff]
  %v158 = vld [vmem:[%s0 + $0x438] sm:$0xff]
  %v159 = vld [vmem:[%s0 + $0x440] sm:$0xff]
  %v160 = vld [vmem:[%s0 + $0x448] sm:$0xff]
  %v161 = vld [vmem:[%s0 + $0x450] sm:$0xff]
  %v162 = vld [vmem:[%s0 + $0x458] sm:$0xff]
  %v163 = vld [vmem:[%s0 + $0x460] sm:$0xff]
  %v164 = vld [vmem:[%s0 + $0x468] sm:$0xff]
  %v165 = vld [vmem:[%s0 + $0x470] sm:$0xff]
  %v166 = vld [vmem:[%s0 + $0x478] sm:$0xff]
  %v167 = vld [vmem:[%s0 + $0x480] sm:$0xff]
  %v168 = vld [vmem:[%s0 + $0x488] sm:$0xff]
  %v169 = vld [vmem:[%s0 + $0x490] sm:$0xff]
  %v170 = vld [vmem:[%s0 + $0x498] sm:$0xff]
  %v171 = vld [vmem:[%s0 + $0x4a0] sm:$0xff]
  %v172 = vld [vmem:[%s0 + $0x4a8] sm:$0xff]
  %v173 = vld [vmem:[%s0 + $0x4b0] sm:$0xff]
  %v174 = vld [vmem:[%s0 + $0x4b8] sm:$0xff]
  %v175 = vld [vmem:[%s0 + $0x4c0] sm:$0xff]
  %v176 = vld [vmem:[%s0 + $0x4c8] sm:$0xff]
  %v177 = vld [vmem:[%s0 + $0x4d0] sm:$0xff]
  %v178 = vld [vmem:[%s0 + $0x4d8] sm:$0xff]
  %v179 = vld [vmem:[%s0 + $0x4e0] sm:$0xff]
  %v180 = vld [vmem:[%s0 + $0x4e8] sm:$0xff]
  %v181 = vld [vmem:[%s0 + $0x4f0] sm:$0xff]
  %v182 = vld [vmem:[%s0 + $0x4f8] sm:$0xff]
  %v183 = vld [vmem:[%s0 + $0x500] sm:$0xff]
  %v184 = vld [vmem:[%s0 + $0x508] sm:$0xff]
  %v185 = vld [vmem:[%s0 + $0x510] sm:$0xff]
  %v186 = vld [vmem:[%s0 + $0x518] sm:$0xff]
  %v187 = vld [vmem:[%s0 + $0x520] sm:$0xff]
  %v188 = vld [vmem:[%s0 + $0x528] sm:$0xff]
  %v189 = vld [vmem:[%s0 + $0x530] sm:$0xff]
  %v190 = vld [vmem:[%s0 + $0x538] sm:$0xff]
  %v191 = vld [vmem:[%s0 + $0x540] sm:$0xff]
  %v192 = vld [vmem:[%s0 + $0x548] sm:$0xff]
  %v193 = vld [vmem:[%s0 + $0x550] sm:$0xff]
  %v194 = vld [vmem:[%s0 + $0x558] sm:$0xff]
  %v195 = vld [vmem:[%s0 + $0x560] sm:$0xff]
  %v196 = vld [vmem:[%s0 + $0x568] sm:$0xff]
  %v197 = vld [vmem:[%s0 + $0x570] sm:$0xff]
  %v198 = vld [vmem:[%s0 + $0x578] sm:$0xff]
  %v199 = vld [vmem:[%s0 + $0x580] sm:$0xff]
  %v200 = vld [vmem:[%s0 + $0x588] sm:$0xff]
  %v201 = vld [vmem:[%s0 + $0x590] sm:$0xff]
  %v202 = vld [vmem:[%s0 + $0x598] sm:$0xff]
  %v203 = vld [vmem:[%s0 + $0x5a0] sm:$0xff]
  %v204 = vld [vmem:[%s0 + $0x5a8] sm:$0xff]
  %v205 = vld [vmem:[%s0 + $0x5b0] sm:$0xff]
  %v206 = vld [vmem:[%s0 + $0x5b8] sm:$0xff]
  %v207 = vld [vmem:[%s0 + $0x5c0] sm:$0xff]
  %v208 = vld [vmem:[%s0 + $0x5c8] sm:$0xff]
  %v209 = vld [vmem:[%s0 + $0x5d0] sm:$0xff]
  %v210 = vld [vmem:[%s0 + $0x5d8] sm:$0xff]
  %v211 = vld [vmem:[%s0 + $0x5e0] sm:$0xff]
  %v212 = vld [vmem:[%s0 + $0x5e8] sm:$0xff]
  %v213 = vld [vmem:[%s0 + $0x5f0] sm:$0xff]
  %v214 = vld [vmem:[%s0 + $0x5f8] sm:$0xff]
  %v215 = vld [vmem:[%s0 + $0x600] sm:$0xff]
  %v216 = vld [vmem:[%s0 + $0x608] sm:$0xff]
  %v217 = vld [vmem:[%s0 + $0x610] sm:$0xff]
  %v218 = vld [vmem:[%s0 + $0x618] sm:$0xff]
  %v219 = vld [vmem:[%s0 + $0x620] sm:$0xff]
  %v220 = vld [vmem:[%s0 + $0x628] sm:$0xff]
  %v221 = vld [vmem:[%s0 + $0x630] sm:$0xff]
  %v222 = vld [vmem:[%s0 + $0x638] sm:$0xff]
  %v223 = vld [vmem:[%s0 + $0x640] sm:$0xff]
  %v224 = vld [vmem:[%s0 + $0x648] sm:$0xff]
  %v225 = vld [vmem:[%s0 + $0x650] sm:$0xff]
  %v226 = vld [vmem:[%s0 + $0x658] sm:$0xff]
  %v227 = vld [vmem:[%s0 + $0x660] sm:$0xff]
  %v228 = vld [vmem:[%s0 + $0x668] sm:$0xff]
  %v229 = vld [vmem:[%s0 + $0x670] sm:$0xff]
  %v230 = vld [vmem:[%s0 + $0x678] sm:$0xff]
  %v231 = vld [vmem:[%s0 + $0x680] sm:$0xff]
  %v232 = vld [vmem:[%s0 + $0x688] sm:$0xff]
  %v233 = vld [vmem:[%s0 + $0x690] sm:$0xff]
  %v234 = vld [vmem:[%s0 + $0x698] sm:$0xff]
  %v235 = vld [vmem:[%s0 + $0x6a0] sm:$0xff]
  %v236 = vld [vmem:[%s0 + $0x6a8] sm:$0xff]
  %v237 = vld [vmem:[%s0 + $0x6b0] sm:$0xff]
  %v238 = vld [vmem:[%s0 + $0x6b8] sm:$0xff]
  %v239 = vld [vmem:[%s0 + $0x6c0] sm:$0xff]
  %v240 = vld [vmem:[%s0 + $0x6c8] sm:$0xff]
  %v241 = vld [vmem:[%s0 + $0x6d0] sm:$0xff]
  %v242 = vld [vmem:[%s0 + $0x6d8] sm:$0xff]
  %v243 = vld [vmem:[%s0 + $0x6e0] sm:$0xff]
  %v244 = vld [vmem:[%s0 + $0x6e8] sm:$0xff]
  %v245 = vld [vmem:[%s0 + $0x6f0] sm:$0xff]
  %v246 = vld [vmem:[%s0 + $0x6f8] sm:$0xff]
  %v247 = vld [vmem:[%s0 + $0x700] sm:$0xff]
  %v248 = vld [vmem:[%s1] sm:$0xff]
  %v249 = vld [vmem:[%s1 + $0x8] sm:$0xff]
  %v250 = vld [vmem:[%s1 + $0x10] sm:$0xff]
  %v251 = vld [vmem:[%s1 + $0x18] sm:$0xff]
  %v252 = vld [vmem:[%s1 + $0x20] sm:$0xff]
  %v253 = vld [vmem:[%s1 + $0x28] sm:$0xff]
  %v254 = vld [vmem:[%s1 + $0x30] sm:$0xff]
  %v255 = vld [vmem:[%s1 + $0x38] sm:$0xff]
  %v256 = vld [vmem:[%s1 + $0x40] sm:$0xff]
  %v257 = vld [vmem:[%s1 + $0x48] sm:$0xff]
  %v258 = vld [vmem:[%s1 + $0x50] sm:$0xff]
  %v259 = vld [vmem:[%s1 + $0x58] sm:$0xff]
  %v260 = vld [vmem:[%s1 + $0x60] sm:$0xff]
  %v261 = vld [vmem:[%s1 + $0x68] sm:$0xff]
  %v262 = vld [vmem:[%s1 + $0x70] sm:$0xff]
  %v263 = vld [vmem:[%s1 + $0x78] sm:$0xff]
  %264 = vmatprep.subr.mxu0 0.0
  %265 = vmatpush1.msra.mxu0 %v263
  %266 = vmatprep.subr.mxu0 0.0
  %267 = vmatpush1.msra.mxu0 %v262
  %268 = vmatprep.subr.mxu0 0.0
  %269 = vmatpush1.msra.mxu0 %v261
  %270 = vmatprep.subr.mxu0 0.0
  %271 = vmatpush1.msra.mxu0 %v260
  %272 = vmatprep.subr.mxu0 0.0
  %273 = vmatpush1.msra.mxu0 %v259
  %274 = vmatprep.subr.mxu0 0.0
  %275 = vmatpush1.msra.mxu0 %v258
  %276 = vmatprep.subr.mxu0 0.0
  %277 = vmatpush1.msra.mxu0 %v257
  %278 = vmatprep.subr.mxu0 0.0
  %279 = vmatpush1.msra.mxu0 %v256
  %280 = vmatprep.subr.mxu0 0.0
  %281 = vmatpush1.msra.mxu0 %v255
  %282 = vmatprep.subr.mxu0 0.0
  %283 = vmatpush1.msra.mxu0 %v254
  %284 = vmatprep.subr.mxu0 0.0
  %285 = vmatpush1.msra.mxu0 %v253
  %286 = vmatprep.subr.mxu0 0.0
  %287 = vmatpush1.msra.mxu0 %v252
  %288 = vmatprep.subr.mxu0 0.0
  %289 = vmatpush1.msra.mxu0 %v251
  %290 = vmatprep.subr.mxu0 0.0
  %291 = vmatpush1.msra.mxu0 %v250
  %292 = vmatprep.subr.mxu0 0.0
  %293 = vmatpush1.msra.mxu0 %v249
  %294 = vmatprep.subr.mxu0 0.0
  %295 = vmatpush1.msra.mxu0 %v248
  %296 = vmatprep.subr.mxu0 0.0
  %297 = vmatpush2.msra.mxu0 0.0
  %298 = vmatprep.subr.mxu0 0.0
  %299 = vmatpush2.msra.mxu0 0.0
  %300 = vmatprep.subr.mxu0 0.0
  %301 = vmatpush2.msra.mxu0 0.0
  %302 = vmatprep.subr.mxu0 0.0
  %303 = vmatpush2.msra.mxu0 0.0
  %304 = vmatprep.subr.mxu0 0.0
  %305 = vmatpush2.msra.mxu0 0.0
  %306 = vmatprep.subr.mxu0 0.0
  %307 = vmatpush2.msra.mxu0 0.0
  %308 = vmatprep.subr.mxu0 0.0
  %309 = vmatpush2.msra.mxu0 0.0
  %310 = vmatprep.subr.mxu0 0.0
  %311 = vmatpush2.msra.mxu0 0.0
  %312 = vmatprep.subr.mxu0 0.0
  %313 = vmatpush2.msra.mxu0 0.0
  %314 = vmatprep.subr.mxu0 0.0
  %315 = vmatpush2.msra.mxu0 0.0
  %316 = vmatprep.subr.mxu0 0.0
  %317 = vmatpush2.msra.mxu0 0.0
  %318 = vmatprep.subr.mxu0 0.0
  %319 = vmatpush2.msra.mxu0 0.0
  %320 = vmatprep.subr.mxu0 0.0
  %321 = vmatpush2.msra.mxu0 0.0
  %322 = vmatprep.subr.mxu0 0.0
  %323 = vmatpush2.msra.mxu0 0.0
  %324 = vmatprep.subr.mxu0 0.0
  %325 = vmatpush2.msra.mxu0 0.0
  %326 = vmatprep.subr.mxu0 0.0
  %327 = vmatpush2.msra.mxu0 0.0
  %328 = vmatprep.mubr.f32.mxu0 0.0
  %329 = vmatmul.mubr.f32.gmra.mxu0 %v23
  %v330 = vpop.f32.mrf.mxu0
  %v331 = vadd.f32 0.0, %v330
  %v332 = vpop.f32.mrf.mxu0
  %333 = vmatprep.mubr.f32.mxu0 0.0
  %334 = vmatmul.mubr.f32.gmra.mxu0 %v24
  %v335 = vpop.f32.mrf.mxu0
  %v336 = vadd.f32 0.0, %v335
  %v337 = vpop.f32.mrf.mxu0
  %338 = vmatprep.mubr.f32.mxu0 0.0
  %339 = vmatmul.mubr.f32.gmra.mxu0 %v25
  %v340 = vpop.f32.mrf.mxu0
  %v341 = vadd.f32 0.0, %v340
  %v342 = vpop.f32.mrf.mxu0
  %343 = vmatprep.mubr.f32.mxu0 0.0
  %344 = vmatmul.mubr.f32.gmra.mxu0 %v26
  %v345 = vpop.f32.mrf.mxu0
  %v346 = vadd.f32 0.0, %v345
  %v347 = vpop.f32.mrf.mxu0
  %348 = vmatprep.mubr.f32.mxu0 0.0
  %349 = vmatmul.mubr.f32.gmra.mxu0 %v27
  %v350 = vpop.f32.mrf.mxu0
  %v351 = vadd.f32 0.0, %v350
  %v352 = vpop.f32.mrf.mxu0
  %353 = vmatprep.mubr.f32.mxu0 0.0
  %354 = vmatmul.mubr.f32.gmra.mxu0 %v28
  %v355 = vpop.f32.mrf.mxu0
  %v356 = vadd.f32 0.0, %v355
  %v357 = vpop.f32.mrf.mxu0
  %358 = vmatprep.mubr.f32.mxu0 0.0
  %359 = vmatmul.mubr.f32.gmra.mxu0 %v29
  %v360 = vpop.f32.mrf.mxu0
  %v361 = vadd.f32 0.0, %v360
  %v362 = vpop.f32.mrf.mxu0
  %363 = vmatprep.mubr.f32.mxu0 0.0
  %364 = vmatmul.mubr.f32.gmra.mxu0 %v30
  %v365 = vpop.f32.mrf.mxu0
  %v366 = vadd.f32 0.0, %v365
  %v367 = vpop.f32.mrf.mxu0
  %368 = vmatprep.mubr.f32.mxu0 0.0
  %369 = vmatmul.mubr.f32.gmra.mxu0 %v31
  %v370 = vpop.f32.mrf.mxu0
  %v371 = vadd.f32 0.0, %v370
  %v372 = vpop.f32.mrf.mxu0
  %373 = vmatprep.mubr.f32.mxu0 0.0
  %374 = vmatmul.mubr.f32.gmra.mxu0 %v32
  %v375 = vpop.f32.mrf.mxu0
  %v376 = vadd.f32 0.0, %v375
  %v377 = vpop.f32.mrf.mxu0
  %378 = vmatprep.mubr.f32.mxu0 0.0
  %379 = vmatmul.mubr.f32.gmra.mxu0 %v33
  %v380 = vpop.f32.mrf.mxu0
  %v381 = vadd.f32 0.0, %v380
  %v382 = vpop.f32.mrf.mxu0
  %383 = vmatprep.mubr.f32.mxu0 0.0
  %384 = vmatmul.mubr.f32.gmra.mxu0 %v34
  %v385 = vpop.f32.mrf.mxu0
  %v386 = vadd.f32 0.0, %v385
  %v387 = vpop.f32.mrf.mxu0
  %388 = vmatprep.mubr.f32.mxu0 0.0
  %389 = vmatmul.mubr.f32.gmra.mxu0 %v35
  %v390 = vpop.f32.mrf.mxu0
  %v391 = vadd.f32 0.0, %v390
  %v392 = vpop.f32.mrf.mxu0
  %393 = vmatprep.mubr.f32.mxu0 0.0
  %394 = vmatmul.mubr.f32.gmra.mxu0 %v36
  %v395 = vpop.f32.mrf.mxu0
  %v396 = vadd.f32 0.0, %v395
  %v397 = vpop.f32.mrf.mxu0
  %398 = vmatprep.mubr.f32.mxu0 0.0
  %399 = vmatmul.mubr.f32.gmra.mxu0 %v37
  %v400 = vpop.f32.mrf.mxu0
  %v401 = vadd.f32 0.0, %v400
  %v402 = vpop.f32.mrf.mxu0
  %403 = vmatprep.mubr.f32.mxu0 0.0
  %404 = vmatmul.mubr.f32.gmra.mxu0 %v38
  %v405 = vpop.f32.mrf.mxu0
  %v406 = vadd.f32 0.0, %v405
  %v407 = vpop.f32.mrf.mxu0
  %408 = vmatprep.mubr.f32.mxu0 0.0
  %409 = vmatmul.mubr.f32.gmra.mxu0 %v39
  %v410 = vpop.f32.mrf.mxu0
  %v411 = vadd.f32 0.0, %v410
  %v412 = vpop.f32.mrf.mxu0
  %413 = vmatprep.mubr.f32.mxu0 0.0
  %414 = vmatmul.mubr.f32.gmra.mxu0 %v40
  %v415 = vpop.f32.mrf.mxu0
  %v416 = vadd.f32 0.0, %v415
  %v417 = vpop.f32.mrf.mxu0
  %418 = vmatprep.mubr.f32.mxu0 0.0
  %419 = vmatmul.mubr.f32.gmra.mxu0 %v41
  %v420 = vpop.f32.mrf.mxu0
  %v421 = vadd.f32 0.0, %v420
  %v422 = vpop.f32.mrf.mxu0
  %423 = vmatprep.mubr.f32.mxu0 0.0
  %424 = vmatmul.mubr.f32.gmra.mxu0 %v42
  %v425 = vpop.f32.mrf.mxu0
  %v426 = vadd.f32 0.0, %v425
  %v427 = vpop.f32.mrf.mxu0
  %428 = vmatprep.mubr.f32.mxu0 0.0
  %429 = vmatmul.mubr.f32.gmra.mxu0 %v43
  %v430 = vpop.f32.mrf.mxu0
  %v431 = vadd.f32 0.0, %v430
  %v432 = vpop.f32.mrf.mxu0
  %433 = vmatprep.mubr.f32.mxu0 0.0
  %434 = vmatmul.mubr.f32.gmra.mxu0 %v44
  %v435 = vpop.f32.mrf.mxu0
  %v436 = vadd.f32 0.0, %v435
  %v437 = vpop.f32.mrf.mxu0
  %438 = vmatprep.mubr.f32.mxu0 0.0
  %439 = vmatmul.mubr.f32.gmra.mxu0 %v45
  %v440 = vpop.f32.mrf.mxu0
  %v441 = vadd.f32 0.0, %v440
  %v442 = vpop.f32.mrf.mxu0
  %443 = vmatprep.mubr.f32.mxu0 0.0
  %444 = vmatmul.mubr.f32.gmra.mxu0 %v46
  %v445 = vpop.f32.mrf.mxu0
  %v446 = vadd.f32 0.0, %v445
  %v447 = vpop.f32.mrf.mxu0
  %448 = vmatprep.mubr.f32.mxu0 0.0
  %449 = vmatmul.mubr.f32.gmra.mxu0 %v47
  %v450 = vpop.f32.mrf.mxu0
  %v451 = vadd.f32 0.0, %v450
  %v452 = vpop.f32.mrf.mxu0
  %453 = vmatprep.mubr.f32.mxu0 0.0
  %454 = vmatmul.mubr.f32.gmra.mxu0 %v48
  %v455 = vpop.f32.mrf.mxu0
  %v456 = vadd.f32 0.0, %v455
  %v457 = vpop.f32.mrf.mxu0
  %458 = vmatprep.mubr.f32.mxu0 0.0
  %459 = vmatmul.mubr.f32.gmra.mxu0 %v49
  %v460 = vpop.f32.mrf.mxu0
  %v461 = vadd.f32 0.0, %v460
  %v462 = vpop.f32.mrf.mxu0
  %463 = vmatprep.mubr.f32.mxu0 0.0
  %464 = vmatmul.mubr.f32.gmra.mxu0 %v50
  %v465 = vpop.f32.mrf.mxu0
  %v466 = vadd.f32 0.0, %v465
  %v467 = vpop.f32.mrf.mxu0
  %468 = vmatprep.mubr.f32.mxu0 0.0
  %469 = vmatmul.mubr.f32.gmra.mxu0 %v51
  %v470 = vpop.f32.mrf.mxu0
  %v471 = vadd.f32 0.0, %v470
  %v472 = vpop.f32.mrf.mxu0
  %473 = vmatprep.mubr.f32.mxu0 0.0
  %474 = vmatmul.mubr.f32.gmra.mxu0 %v52
  %v475 = vpop.f32.mrf.mxu0
  %v476 = vadd.f32 0.0, %v475
  %v477 = vpop.f32.mrf.mxu0
  %478 = vmatprep.mubr.f32.mxu0 0.0
  %479 = vmatmul.mubr.f32.gmra.mxu0 %v53
  %v480 = vpop.f32.mrf.mxu0
  %v481 = vadd.f32 0.0, %v480
  %v482 = vpop.f32.mrf.mxu0
  %483 = vmatprep.mubr.f32.mxu0 0.0
  %484 = vmatmul.mubr.f32.gmra.mxu0 %v54
  %v485 = vpop.f32.mrf.mxu0
  %v486 = vadd.f32 0.0, %v485
  %v487 = vpop.f32.mrf.mxu0
  %488 = vmatprep.mubr.f32.mxu0 0.0
  %489 = vmatmul.mubr.f32.gmra.mxu0 %v55
  %v490 = vpop.f32.mrf.mxu0
  %v491 = vadd.f32 0.0, %v490
  %v492 = vpop.f32.mrf.mxu0
  %493 = vmatprep.mubr.f32.mxu0 0.0
  %494 = vmatmul.mubr.f32.gmra.mxu0 %v56
  %v495 = vpop.f32.mrf.mxu0
  %v496 = vadd.f32 0.0, %v495
  %v497 = vpop.f32.mrf.mxu0
  %498 = vmatprep.mubr.f32.mxu0 0.0
  %499 = vmatmul.mubr.f32.gmra.mxu0 %v57
  %v500 = vpop.f32.mrf.mxu0
  %v501 = vadd.f32 0.0, %v500
  %v502 = vpop.f32.mrf.mxu0
  %503 = vmatprep.mubr.f32.mxu0 0.0
  %504 = vmatmul.mubr.f32.gmra.mxu0 %v58
  %v505 = vpop.f32.mrf.mxu0
  %v506 = vadd.f32 0.0, %v505
  %v507 = vpop.f32.mrf.mxu0
  %508 = vmatprep.mubr.f32.mxu0 0.0
  %509 = vmatmul.mubr.f32.gmra.mxu0 %v59
  %v510 = vpop.f32.mrf.mxu0
  %v511 = vadd.f32 0.0, %v510
  %v512 = vpop.f32.mrf.mxu0
  %513 = vmatprep.mubr.f32.mxu0 0.0
  %514 = vmatmul.mubr.f32.gmra.mxu0 %v60
  %v515 = vpop.f32.mrf.mxu0
  %v516 = vadd.f32 0.0, %v515
  %v517 = vpop.f32.mrf.mxu0
  %518 = vmatprep.mubr.f32.mxu0 0.0
  %519 = vmatmul.mubr.f32.gmra.mxu0 %v61
  %v520 = vpop.f32.mrf.mxu0
  %v521 = vadd.f32 0.0, %v520
  %v522 = vpop.f32.mrf.mxu0
  %523 = vmatprep.mubr.f32.mxu0 0.0
  %524 = vmatmul.mubr.f32.gmra.mxu0 %v62
  %v525 = vpop.f32.mrf.mxu0
  %v526 = vadd.f32 0.0, %v525
  %v527 = vpop.f32.mrf.mxu0
  %528 = vmatprep.mubr.f32.mxu0 0.0
  %529 = vmatmul.mubr.f32.gmra.mxu0 %v63
  %v530 = vpop.f32.mrf.mxu0
  %v531 = vadd.f32 0.0, %v530
  %v532 = vpop.f32.mrf.mxu0
  %533 = vmatprep.mubr.f32.mxu0 0.0
  %534 = vmatmul.mubr.f32.gmra.mxu0 %v64
  %v535 = vpop.f32.mrf.mxu0
  %v536 = vadd.f32 0.0, %v535
  %v537 = vpop.f32.mrf.mxu0
  %538 = vmatprep.mubr.f32.mxu0 0.0
  %539 = vmatmul.mubr.f32.gmra.mxu0 %v65
  %v540 = vpop.f32.mrf.mxu0
  %v541 = vadd.f32 0.0, %v540
  %v542 = vpop.f32.mrf.mxu0
  %543 = vmatprep.mubr.f32.mxu0 0.0
  %544 = vmatmul.mubr.f32.gmra.mxu0 %v66
  %v545 = vpop.f32.mrf.mxu0
  %v546 = vadd.f32 0.0, %v545
  %v547 = vpop.f32.mrf.mxu0
  %548 = vmatprep.mubr.f32.mxu0 0.0
  %549 = vmatmul.mubr.f32.gmra.mxu0 %v67
  %v550 = vpop.f32.mrf.mxu0
  %v551 = vadd.f32 0.0, %v550
  %v552 = vpop.f32.mrf.mxu0
  %553 = vmatprep.mubr.f32.mxu0 0.0
  %554 = vmatmul.mubr.f32.gmra.mxu0 %v68
  %v555 = vpop.f32.mrf.mxu0
  %v556 = vadd.f32 0.0, %v555
  %v557 = vpop.f32.mrf.mxu0
  %558 = vmatprep.mubr.f32.mxu0 0.0
  %559 = vmatmul.mubr.f32.gmra.mxu0 %v69
  %v560 = vpop.f32.mrf.mxu0
  %v561 = vadd.f32 0.0, %v560
  %v562 = vpop.f32.mrf.mxu0
  %563 = vmatprep.mubr.f32.mxu0 0.0
  %564 = vmatmul.mubr.f32.gmra.mxu0 %v70
  %v565 = vpop.f32.mrf.mxu0
  %v566 = vadd.f32 0.0, %v565
  %v567 = vpop.f32.mrf.mxu0
  %568 = vmatprep.mubr.f32.mxu0 0.0
  %569 = vmatmul.mubr.f32.gmra.mxu0 %v71
  %v570 = vpop.f32.mrf.mxu0
  %v571 = vadd.f32 0.0, %v570
  %v572 = vpop.f32.mrf.mxu0
  %573 = vmatprep.mubr.f32.mxu0 0.0
  %574 = vmatmul.mubr.f32.gmra.mxu0 %v72
  %v575 = vpop.f32.mrf.mxu0
  %v576 = vadd.f32 0.0, %v575
  %v577 = vpop.f32.mrf.mxu0
  %578 = vmatprep.mubr.f32.mxu0 0.0
  %579 = vmatmul.mubr.f32.gmra.mxu0 %v73
  %v580 = vpop.f32.mrf.mxu0
  %v581 = vadd.f32 0.0, %v580
  %v582 = vpop.f32.mrf.mxu0
  %583 = vmatprep.mubr.f32.mxu0 0.0
  %584 = vmatmul.mubr.f32.gmra.mxu0 %v74
  %v585 = vpop.f32.mrf.mxu0
  %v586 = vadd.f32 0.0, %v585
  %v587 = vpop.f32.mrf.mxu0
  %588 = vmatprep.mubr.f32.mxu0 0.0
  %589 = vmatmul.mubr.f32.gmra.mxu0 %v75
  %v590 = vpop.f32.mrf.mxu0
  %v591 = vadd.f32 0.0, %v590
  %v592 = vpop.f32.mrf.mxu0
  %593 = vmatprep.mubr.f32.mxu0 0.0
  %594 = vmatmul.mubr.f32.gmra.mxu0 %v76
  %v595 = vpop.f32.mrf.mxu0
  %v596 = vadd.f32 0.0, %v595
  %v597 = vpop.f32.mrf.mxu0
  %598 = vmatprep.mubr.f32.mxu0 0.0
  %599 = vmatmul.mubr.f32.gmra.mxu0 %v77
  %v600 = vpop.f32.mrf.mxu0
  %v601 = vadd.f32 0.0, %v600
  %v602 = vpop.f32.mrf.mxu0
  %603 = vmatprep.mubr.f32.mxu0 0.0
  %604 = vmatmul.mubr.f32.gmra.mxu0 %v78
  %v605 = vpop.f32.mrf.mxu0
  %v606 = vadd.f32 0.0, %v605
  %v607 = vpop.f32.mrf.mxu0
  %608 = vmatprep.mubr.f32.mxu0 0.0
  %609 = vmatmul.mubr.f32.gmra.mxu0 %v79
  %v610 = vpop.f32.mrf.mxu0
  %v611 = vadd.f32 0.0, %v610
  %v612 = vpop.f32.mrf.mxu0
  %613 = vmatprep.mubr.f32.mxu0 0.0
  %614 = vmatmul.mubr.f32.gmra.mxu0 %v80
  %v615 = vpop.f32.mrf.mxu0
  %v616 = vadd.f32 0.0, %v615
  %v617 = vpop.f32.mrf.mxu0
  %618 = vmatprep.mubr.f32.mxu0 0.0
  %619 = vmatmul.mubr.f32.gmra.mxu0 %v81
  %v620 = vpop.f32.mrf.mxu0
  %v621 = vadd.f32 0.0, %v620
  %v622 = vpop.f32.mrf.mxu0
  %623 = vmatprep.mubr.f32.mxu0 0.0
  %624 = vmatmul.mubr.f32.gmra.mxu0 %v82
  %v625 = vpop.f32.mrf.mxu0
  %v626 = vadd.f32 0.0, %v625
  %v627 = vpop.f32.mrf.mxu0
  %628 = vmatprep.mubr.f32.mxu0 0.0
  %629 = vmatmul.mubr.f32.gmra.mxu0 %v83
  %v630 = vpop.f32.mrf.mxu0
  %v631 = vadd.f32 0.0, %v630
  %v632 = vpop.f32.mrf.mxu0
  %633 = vmatprep.mubr.f32.mxu0 0.0
  %634 = vmatmul.mubr.f32.gmra.mxu0 %v84
  %v635 = vpop.f32.mrf.mxu0
  %v636 = vadd.f32 0.0, %v635
  %v637 = vpop.f32.mrf.mxu0
  %638 = vmatprep.mubr.f32.mxu0 0.0
  %639 = vmatmul.mubr.f32.gmra.mxu0 %v85
  %v640 = vpop.f32.mrf.mxu0
  %v641 = vadd.f32 0.0, %v640
  %v642 = vpop.f32.mrf.mxu0
  %643 = vmatprep.mubr.f32.mxu0 0.0
  %644 = vmatmul.mubr.f32.gmra.mxu0 %v86
  %v645 = vpop.f32.mrf.mxu0
  %v646 = vadd.f32 0.0, %v645
  %v647 = vpop.f32.mrf.mxu0
  %648 = vmatprep.mubr.f32.mxu0 0.0
  %649 = vmatmul.mubr.f32.gmra.mxu0 %v87
  %v650 = vpop.f32.mrf.mxu0
  %v651 = vadd.f32 0.0, %v650
  %v652 = vpop.f32.mrf.mxu0
  %653 = vmatprep.mubr.f32.mxu0 0.0
  %654 = vmatmul.mubr.f32.gmra.mxu0 %v88
  %v655 = vpop.f32.mrf.mxu0
  %v656 = vadd.f32 0.0, %v655
  %v657 = vpop.f32.mrf.mxu0
  %658 = vmatprep.mubr.f32.mxu0 0.0
  %659 = vmatmul.mubr.f32.gmra.mxu0 %v89
  %v660 = vpop.f32.mrf.mxu0
  %v661 = vadd.f32 0.0, %v660
  %v662 = vpop.f32.mrf.mxu0
  %663 = vmatprep.mubr.f32.mxu0 0.0
  %664 = vmatmul.mubr.f32.gmra.mxu0 %v90
  %v665 = vpop.f32.mrf.mxu0
  %v666 = vadd.f32 0.0, %v665
  %v667 = vpop.f32.mrf.mxu0
  %668 = vmatprep.mubr.f32.mxu0 0.0
  %669 = vmatmul.mubr.f32.gmra.mxu0 %v91
  %v670 = vpop.f32.mrf.mxu0
  %v671 = vadd.f32 0.0, %v670
  %v672 = vpop.f32.mrf.mxu0
  %673 = vmatprep.mubr.f32.mxu0 0.0
  %674 = vmatmul.mubr.f32.gmra.mxu0 %v92
  %v675 = vpop.f32.mrf.mxu0
  %v676 = vadd.f32 0.0, %v675
  %v677 = vpop.f32.mrf.mxu0
  %678 = vmatprep.mubr.f32.mxu0 0.0
  %679 = vmatmul.mubr.f32.gmra.mxu0 %v93
  %v680 = vpop.f32.mrf.mxu0
  %v681 = vadd.f32 0.0, %v680
  %v682 = vpop.f32.mrf.mxu0
  %683 = vmatprep.mubr.f32.mxu0 0.0
  %684 = vmatmul.mubr.f32.gmra.mxu0 %v94
  %v685 = vpop.f32.mrf.mxu0
  %v686 = vadd.f32 0.0, %v685
  %v687 = vpop.f32.mrf.mxu0
  %688 = vmatprep.mubr.f32.mxu0 0.0
  %689 = vmatmul.mubr.f32.gmra.mxu0 %v95
  %v690 = vpop.f32.mrf.mxu0
  %v691 = vadd.f32 0.0, %v690
  %v692 = vpop.f32.mrf.mxu0
  %693 = vmatprep.mubr.f32.mxu0 0.0
  %694 = vmatmul.mubr.f32.gmra.mxu0 %v96
  %v695 = vpop.f32.mrf.mxu0
  %v696 = vadd.f32 0.0, %v695
  %v697 = vpop.f32.mrf.mxu0
  %698 = vmatprep.mubr.f32.mxu0 0.0
  %699 = vmatmul.mubr.f32.gmra.mxu0 %v97
  %v700 = vpop.f32.mrf.mxu0
  %v701 = vadd.f32 0.0, %v700
  %v702 = vpop.f32.mrf.mxu0
  %703 = vmatprep.mubr.f32.mxu0 0.0
  %704 = vmatmul.mubr.f32.gmra.mxu0 %v98
  %v705 = vpop.f32.mrf.mxu0
  %v706 = vadd.f32 0.0, %v705
  %v707 = vpop.f32.mrf.mxu0
  %708 = vmatprep.mubr.f32.mxu0 0.0
  %709 = vmatmul.mubr.f32.gmra.mxu0 %v99
  %v710 = vpop.f32.mrf.mxu0
  %v711 = vadd.f32 0.0, %v710
  %v712 = vpop.f32.mrf.mxu0
  %713 = vmatprep.mubr.f32.mxu0 0.0
  %714 = vmatmul.mubr.f32.gmra.mxu0 %v100
  %v715 = vpop.f32.mrf.mxu0
  %v716 = vadd.f32 0.0, %v715
  %v717 = vpop.f32.mrf.mxu0
  %718 = vmatprep.mubr.f32.mxu0 0.0
  %719 = vmatmul.mubr.f32.gmra.mxu0 %v101
  %v720 = vpop.f32.mrf.mxu0
  %v721 = vadd.f32 0.0, %v720
  %v722 = vpop.f32.mrf.mxu0
  %723 = vmatprep.mubr.f32.mxu0 0.0
  %724 = vmatmul.mubr.f32.gmra.mxu0 %v102
  %v725 = vpop.f32.mrf.mxu0
  %v726 = vadd.f32 0.0, %v725
  %v727 = vpop.f32.mrf.mxu0
  %728 = vmatprep.mubr.f32.mxu0 0.0
  %729 = vmatmul.mubr.f32.gmra.mxu0 %v103
  %v730 = vpop.f32.mrf.mxu0
  %v731 = vadd.f32 0.0, %v730
  %v732 = vpop.f32.mrf.mxu0
  %733 = vmatprep.mubr.f32.mxu0 0.0
  %734 = vmatmul.mubr.f32.gmra.mxu0 %v104
  %v735 = vpop.f32.mrf.mxu0
  %v736 = vadd.f32 0.0, %v735
  %v737 = vpop.f32.mrf.mxu0
  %738 = vmatprep.mubr.f32.mxu0 0.0
  %739 = vmatmul.mubr.f32.gmra.mxu0 %v105
  %v740 = vpop.f32.mrf.mxu0
  %v741 = vadd.f32 0.0, %v740
  %v742 = vpop.f32.mrf.mxu0
  %743 = vmatprep.mubr.f32.mxu0 0.0
  %744 = vmatmul.mubr.f32.gmra.mxu0 %v106
  %v745 = vpop.f32.mrf.mxu0
  %v746 = vadd.f32 0.0, %v745
  %v747 = vpop.f32.mrf.mxu0
  %748 = vmatprep.mubr.f32.mxu0 0.0
  %749 = vmatmul.mubr.f32.gmra.mxu0 %v107
  %v750 = vpop.f32.mrf.mxu0
  %v751 = vadd.f32 0.0, %v750
  %v752 = vpop.f32.mrf.mxu0
  %753 = vmatprep.mubr.f32.mxu0 0.0
  %754 = vmatmul.mubr.f32.gmra.mxu0 %v108
  %v755 = vpop.f32.mrf.mxu0
  %v756 = vadd.f32 0.0, %v755
  %v757 = vpop.f32.mrf.mxu0
  %758 = vmatprep.mubr.f32.mxu0 0.0
  %759 = vmatmul.mubr.f32.gmra.mxu0 %v109
  %v760 = vpop.f32.mrf.mxu0
  %v761 = vadd.f32 0.0, %v760
  %v762 = vpop.f32.mrf.mxu0
  %763 = vmatprep.mubr.f32.mxu0 0.0
  %764 = vmatmul.mubr.f32.gmra.mxu0 %v110
  %v765 = vpop.f32.mrf.mxu0
  %v766 = vadd.f32 0.0, %v765
  %v767 = vpop.f32.mrf.mxu0
  %768 = vmatprep.mubr.f32.mxu0 0.0
  %769 = vmatmul.mubr.f32.gmra.mxu0 %v111
  %v770 = vpop.f32.mrf.mxu0
  %v771 = vadd.f32 0.0, %v770
  %v772 = vpop.f32.mrf.mxu0
  %773 = vmatprep.mubr.f32.mxu0 0.0
  %774 = vmatmul.mubr.f32.gmra.mxu0 %v112
  %v775 = vpop.f32.mrf.mxu0
  %v776 = vadd.f32 0.0, %v775
  %v777 = vpop.f32.mrf.mxu0
  %778 = vmatprep.mubr.f32.mxu0 0.0
  %779 = vmatmul.mubr.f32.gmra.mxu0 %v113
  %v780 = vpop.f32.mrf.mxu0
  %v781 = vadd.f32 0.0, %v780
  %v782 = vpop.f32.mrf.mxu0
  %783 = vmatprep.mubr.f32.mxu0 0.0
  %784 = vmatmul.mubr.f32.gmra.mxu0 %v114
  %v785 = vpop.f32.mrf.mxu0
  %v786 = vadd.f32 0.0, %v785
  %v787 = vpop.f32.mrf.mxu0
  %788 = vmatprep.mubr.f32.mxu0 0.0
  %789 = vmatmul.mubr.f32.gmra.mxu0 %v115
  %v790 = vpop.f32.mrf.mxu0
  %v791 = vadd.f32 0.0, %v790
  %v792 = vpop.f32.mrf.mxu0
  %793 = vmatprep.mubr.f32.mxu0 0.0
  %794 = vmatmul.mubr.f32.gmra.mxu0 %v116
  %v795 = vpop.f32.mrf.mxu0
  %v796 = vadd.f32 0.0, %v795
  %v797 = vpop.f32.mrf.mxu0
  %798 = vmatprep.mubr.f32.mxu0 0.0
  %799 = vmatmul.mubr.f32.gmra.mxu0 %v117
  %v800 = vpop.f32.mrf.mxu0
  %v801 = vadd.f32 0.0, %v800
  %v802 = vpop.f32.mrf.mxu0
  %803 = vmatprep.mubr.f32.mxu0 0.0
  %804 = vmatmul.mubr.f32.gmra.mxu0 %v118
  %v805 = vpop.f32.mrf.mxu0
  %v806 = vadd.f32 0.0, %v805
  %v807 = vpop.f32.mrf.mxu0
  %808 = vmatprep.mubr.f32.mxu0 0.0
  %809 = vmatmul.mubr.f32.gmra.mxu0 %v119
  %v810 = vpop.f32.mrf.mxu0
  %v811 = vadd.f32 0.0, %v810
  %v812 = vpop.f32.mrf.mxu0
  %813 = vmatprep.mubr.f32.mxu0 0.0
  %814 = vmatmul.mubr.f32.gmra.mxu0 %v120
  %v815 = vpop.f32.mrf.mxu0
  %v816 = vadd.f32 0.0, %v815
  %v817 = vpop.f32.mrf.mxu0
  %818 = vmatprep.mubr.f32.mxu0 0.0
  %819 = vmatmul.mubr.f32.gmra.mxu0 %v121
  %v820 = vpop.f32.mrf.mxu0
  %v821 = vadd.f32 0.0, %v820
  %v822 = vpop.f32.mrf.mxu0
  %823 = vmatprep.mubr.f32.mxu0 0.0
  %824 = vmatmul.mubr.f32.gmra.mxu0 %v122
  %v825 = vpop.f32.mrf.mxu0
  %v826 = vadd.f32 0.0, %v825
  %v827 = vpop.f32.mrf.mxu0
  %828 = vmatprep.mubr.f32.mxu0 0.0
  %829 = vmatmul.mubr.f32.gmra.mxu0 %v123
  %v830 = vpop.f32.mrf.mxu0
  %v831 = vadd.f32 0.0, %v830
  %v832 = vpop.f32.mrf.mxu0
  %833 = vmatprep.mubr.f32.mxu0 0.0
  %834 = vmatmul.mubr.f32.gmra.mxu0 %v124
  %v835 = vpop.f32.mrf.mxu0
  %v836 = vadd.f32 0.0, %v835
  %v837 = vpop.f32.mrf.mxu0
  %838 = vmatprep.mubr.f32.mxu0 0.0
  %839 = vmatmul.mubr.f32.gmra.mxu0 %v125
  %v840 = vpop.f32.mrf.mxu0
  %v841 = vadd.f32 0.0, %v840
  %v842 = vpop.f32.mrf.mxu0
  %843 = vmatprep.mubr.f32.mxu0 0.0
  %844 = vmatmul.mubr.f32.gmra.mxu0 %v126
  %v845 = vpop.f32.mrf.mxu0
  %v846 = vadd.f32 0.0, %v845
  %v847 = vpop.f32.mrf.mxu0
  %848 = vmatprep.mubr.f32.mxu0 0.0
  %849 = vmatmul.mubr.f32.gmra.mxu0 %v127
  %v850 = vpop.f32.mrf.mxu0
  %v851 = vadd.f32 0.0, %v850
  %v852 = vpop.f32.mrf.mxu0
  %853 = vmatprep.mubr.f32.mxu0 0.0
  %854 = vmatmul.mubr.f32.gmra.mxu0 %v128
  %v855 = vpop.f32.mrf.mxu0
  %v856 = vadd.f32 0.0, %v855
  %v857 = vpop.f32.mrf.mxu0
  %858 = vmatprep.mubr.f32.mxu0 0.0
  %859 = vmatmul.mubr.f32.gmra.mxu0 %v129
  %v860 = vpop.f32.mrf.mxu0
  %v861 = vadd.f32 0.0, %v860
  %v862 = vpop.f32.mrf.mxu0
  %863 = vmatprep.mubr.f32.mxu0 0.0
  %864 = vmatmul.mubr.f32.gmra.mxu0 %v130
  %v865 = vpop.f32.mrf.mxu0
  %v866 = vadd.f32 0.0, %v865
  %v867 = vpop.f32.mrf.mxu0
  %868 = vmatprep.mubr.f32.mxu0 0.0
  %869 = vmatmul.mubr.f32.gmra.mxu0 %v131
  %v870 = vpop.f32.mrf.mxu0
  %v871 = vadd.f32 0.0, %v870
  %v872 = vpop.f32.mrf.mxu0
  %873 = vmatprep.mubr.f32.mxu0 0.0
  %874 = vmatmul.mubr.f32.gmra.mxu0 %v132
  %v875 = vpop.f32.mrf.mxu0
  %v876 = vadd.f32 0.0, %v875
  %v877 = vpop.f32.mrf.mxu0
  %878 = vmatprep.mubr.f32.mxu0 0.0
  %879 = vmatmul.mubr.f32.gmra.mxu0 %v133
  %v880 = vpop.f32.mrf.mxu0
  %v881 = vadd.f32 0.0, %v880
  %v882 = vpop.f32.mrf.mxu0
  %883 = vmatprep.mubr.f32.mxu0 0.0
  %884 = vmatmul.mubr.f32.gmra.mxu0 %v134
  %v885 = vpop.f32.mrf.mxu0
  %v886 = vadd.f32 0.0, %v885
  %v887 = vpop.f32.mrf.mxu0
  %888 = vmatprep.mubr.f32.mxu0 0.0
  %889 = vmatmul.mubr.f32.gmra.mxu0 %v135
  %v890 = vpop.f32.mrf.mxu0
  %v891 = vadd.f32 0.0, %v890
  %v892 = vpop.f32.mrf.mxu0
  %893 = vmatprep.mubr.f32.mxu0 0.0
  %894 = vmatmul.mubr.f32.gmra.mxu0 %v136
  %v895 = vpop.f32.mrf.mxu0
  %v896 = vadd.f32 0.0, %v895
  %v897 = vpop.f32.mrf.mxu0
  %898 = vmatprep.mubr.f32.mxu0 0.0
  %899 = vmatmul.mubr.f32.gmra.mxu0 %v137
  %v900 = vpop.f32.mrf.mxu0
  %v901 = vadd.f32 0.0, %v900
  %v902 = vpop.f32.mrf.mxu0
  %903 = vmatprep.mubr.f32.mxu0 0.0
  %904 = vmatmul.mubr.f32.gmra.mxu0 %v138
  %v905 = vpop.f32.mrf.mxu0
  %v906 = vadd.f32 0.0, %v905
  %v907 = vpop.f32.mrf.mxu0
  %908 = vmatprep.mubr.f32.mxu0 0.0
  %909 = vmatmul.mubr.f32.gmra.mxu0 %v139
  %v910 = vpop.f32.mrf.mxu0
  %v911 = vadd.f32 0.0, %v910
  %v912 = vpop.f32.mrf.mxu0
  %913 = vmatprep.mubr.f32.mxu0 0.0
  %914 = vmatmul.mubr.f32.gmra.mxu0 %v140
  %v915 = vpop.f32.mrf.mxu0
  %v916 = vadd.f32 0.0, %v915
  %v917 = vpop.f32.mrf.mxu0
  %918 = vmatprep.mubr.f32.mxu0 0.0
  %919 = vmatmul.mubr.f32.gmra.mxu0 %v141
  %v920 = vpop.f32.mrf.mxu0
  %v921 = vadd.f32 0.0, %v920
  %v922 = vpop.f32.mrf.mxu0
  %923 = vmatprep.mubr.f32.mxu0 0.0
  %924 = vmatmul.mubr.f32.gmra.mxu0 %v142
  %v925 = vpop.f32.mrf.mxu0
  %v926 = vadd.f32 0.0, %v925
  %v927 = vpop.f32.mrf.mxu0
  %928 = vmatprep.mubr.f32.mxu0 0.0
  %929 = vmatmul.mubr.f32.gmra.mxu0 %v143
  %v930 = vpop.f32.mrf.mxu0
  %v931 = vadd.f32 0.0, %v930
  %v932 = vpop.f32.mrf.mxu0
  %933 = vmatprep.mubr.f32.mxu0 0.0
  %934 = vmatmul.mubr.f32.gmra.mxu0 %v144
  %v935 = vpop.f32.mrf.mxu0
  %v936 = vadd.f32 0.0, %v935
  %v937 = vpop.f32.mrf.mxu0
  %938 = vmatprep.mubr.f32.mxu0 0.0
  %939 = vmatmul.mubr.f32.gmra.mxu0 %v145
  %v940 = vpop.f32.mrf.mxu0
  %v941 = vadd.f32 0.0, %v940
  %v942 = vpop.f32.mrf.mxu0
  %943 = vmatprep.mubr.f32.mxu0 0.0
  %944 = vmatmul.mubr.f32.gmra.mxu0 %v146
  %v945 = vpop.f32.mrf.mxu0
  %v946 = vadd.f32 0.0, %v945
  %v947 = vpop.f32.mrf.mxu0
  %948 = vmatprep.mubr.f32.mxu0 0.0
  %949 = vmatmul.mubr.f32.gmra.mxu0 %v147
  %v950 = vpop.f32.mrf.mxu0
  %v951 = vadd.f32 0.0, %v950
  %v952 = vpop.f32.mrf.mxu0
  %953 = vmatprep.mubr.f32.mxu0 0.0
  %954 = vmatmul.mubr.f32.gmra.mxu0 %v148
  %v955 = vpop.f32.mrf.mxu0
  %v956 = vadd.f32 0.0, %v955
  %v957 = vpop.f32.mrf.mxu0
  %958 = vmatprep.mubr.f32.mxu0 0.0
  %959 = vmatmul.mubr.f32.gmra.mxu0 %v149
  %v960 = vpop.f32.mrf.mxu0
  %v961 = vadd.f32 0.0, %v960
  %v962 = vpop.f32.mrf.mxu0
  %963 = vmatprep.mubr.f32.mxu0 0.0
  %964 = vmatmul.mubr.f32.gmra.mxu0 %v150
  %v965 = vpop.f32.mrf.mxu0
  %v966 = vadd.f32 0.0, %v965
  %v967 = vpop.f32.mrf.mxu0
  %968 = vmatprep.mubr.f32.mxu0 0.0
  %969 = vmatmul.mubr.f32.gmra.mxu0 %v151
  %v970 = vpop.f32.mrf.mxu0
  %v971 = vadd.f32 0.0, %v970
  %v972 = vpop.f32.mrf.mxu0
  %973 = vmatprep.mubr.f32.mxu0 0.0
  %974 = vmatmul.mubr.f32.gmra.mxu0 %v152
  %v975 = vpop.f32.mrf.mxu0
  %v976 = vadd.f32 0.0, %v975
  %v977 = vpop.f32.mrf.mxu0
  %978 = vmatprep.mubr.f32.mxu0 0.0
  %979 = vmatmul.mubr.f32.gmra.mxu0 %v153
  %v980 = vpop.f32.mrf.mxu0
  %v981 = vadd.f32 0.0, %v980
  %v982 = vpop.f32.mrf.mxu0
  %983 = vmatprep.mubr.f32.mxu0 0.0
  %984 = vmatmul.mubr.f32.gmra.mxu0 %v154
  %v985 = vpop.f32.mrf.mxu0
  %v986 = vadd.f32 0.0, %v985
  %v987 = vpop.f32.mrf.mxu0
  %988 = vmatprep.mubr.f32.mxu0 0.0
  %989 = vmatmul.mubr.f32.gmra.mxu0 %v155
  %v990 = vpop.f32.mrf.mxu0
  %v991 = vadd.f32 0.0, %v990
  %v992 = vpop.f32.mrf.mxu0
  %993 = vmatprep.mubr.f32.mxu0 0.0
  %994 = vmatmul.mubr.f32.gmra.mxu0 %v156
  %v995 = vpop.f32.mrf.mxu0
  %v996 = vadd.f32 0.0, %v995
  %v997 = vpop.f32.mrf.mxu0
  %998 = vmatprep.mubr.f32.mxu0 0.0
  %999 = vmatmul.mubr.f32.gmra.mxu0 %v157
  %v1000 = vpop.f32.mrf.mxu0
  %v1001 = vadd.f32 0.0, %v1000
  %v1002 = vpop.f32.mrf.mxu0
  %1003 = vmatprep.mubr.f32.mxu0 0.0
  %1004 = vmatmul.mubr.f32.gmra.mxu0 %v158
  %v1005 = vpop.f32.mrf.mxu0
  %v1006 = vadd.f32 0.0, %v1005
  %v1007 = vpop.f32.mrf.mxu0
  %1008 = vmatprep.mubr.f32.mxu0 0.0
  %1009 = vmatmul.mubr.f32.gmra.mxu0 %v159
  %v1010 = vpop.f32.mrf.mxu0
  %v1011 = vadd.f32 0.0, %v1010
  %v1012 = vpop.f32.mrf.mxu0
  %1013 = vmatprep.mubr.f32.mxu0 0.0
  %1014 = vmatmul.mubr.f32.gmra.mxu0 %v160
  %v1015 = vpop.f32.mrf.mxu0
  %v1016 = vadd.f32 0.0, %v1015
  %v1017 = vpop.f32.mrf.mxu0
  %1018 = vmatprep.mubr.f32.mxu0 0.0
  %1019 = vmatmul.mubr.f32.gmra.mxu0 %v161
  %v1020 = vpop.f32.mrf.mxu0
  %v1021 = vadd.f32 0.0, %v1020
  %v1022 = vpop.f32.mrf.mxu0
  %1023 = vmatprep.mubr.f32.mxu0 0.0
  %1024 = vmatmul.mubr.f32.gmra.mxu0 %v162
  %v1025 = vpop.f32.mrf.mxu0
  %v1026 = vadd.f32 0.0, %v1025
  %v1027 = vpop.f32.mrf.mxu0
  %1028 = vmatprep.mubr.f32.mxu0 0.0
  %1029 = vmatmul.mubr.f32.gmra.mxu0 %v163
  %v1030 = vpop.f32.mrf.mxu0
  %v1031 = vadd.f32 0.0, %v1030
  %v1032 = vpop.f32.mrf.mxu0
  %1033 = vmatprep.mubr.f32.mxu0 0.0
  %1034 = vmatmul.mubr.f32.gmra.mxu0 %v164
  %v1035 = vpop.f32.mrf.mxu0
  %v1036 = vadd.f32 0.0, %v1035
  %v1037 = vpop.f32.mrf.mxu0
  %1038 = vmatprep.mubr.f32.mxu0 0.0
  %1039 = vmatmul.mubr.f32.gmra.mxu0 %v165
  %v1040 = vpop.f32.mrf.mxu0
  %v1041 = vadd.f32 0.0, %v1040
  %v1042 = vpop.f32.mrf.mxu0
  %1043 = vmatprep.mubr.f32.mxu0 0.0
  %1044 = vmatmul.mubr.f32.gmra.mxu0 %v166
  %v1045 = vpop.f32.mrf.mxu0
  %v1046 = vadd.f32 0.0, %v1045
  %v1047 = vpop.f32.mrf.mxu0
  %1048 = vmatprep.mubr.f32.mxu0 0.0
  %1049 = vmatmul.mubr.f32.gmra.mxu0 %v167
  %v1050 = vpop.f32.mrf.mxu0
  %v1051 = vadd.f32 0.0, %v1050
  %v1052 = vpop.f32.mrf.mxu0
  %1053 = vmatprep.mubr.f32.mxu0 0.0
  %1054 = vmatmul.mubr.f32.gmra.mxu0 %v168
  %v1055 = vpop.f32.mrf.mxu0
  %v1056 = vadd.f32 0.0, %v1055
  %v1057 = vpop.f32.mrf.mxu0
  %1058 = vmatprep.mubr.f32.mxu0 0.0
  %1059 = vmatmul.mubr.f32.gmra.mxu0 %v169
  %v1060 = vpop.f32.mrf.mxu0
  %v1061 = vadd.f32 0.0, %v1060
  %v1062 = vpop.f32.mrf.mxu0
  %1063 = vmatprep.mubr.f32.mxu0 0.0
  %1064 = vmatmul.mubr.f32.gmra.mxu0 %v170
  %v1065 = vpop.f32.mrf.mxu0
  %v1066 = vadd.f32 0.0, %v1065
  %v1067 = vpop.f32.mrf.mxu0
  %1068 = vmatprep.mubr.f32.mxu0 0.0
  %1069 = vmatmul.mubr.f32.gmra.mxu0 %v171
  %v1070 = vpop.f32.mrf.mxu0
  %v1071 = vadd.f32 0.0, %v1070
  %v1072 = vpop.f32.mrf.mxu0
  %1073 = vmatprep.mubr.f32.mxu0 0.0
  %1074 = vmatmul.mubr.f32.gmra.mxu0 %v172
  %v1075 = vpop.f32.mrf.mxu0
  %v1076 = vadd.f32 0.0, %v1075
  %v1077 = vpop.f32.mrf.mxu0
  %1078 = vmatprep.mubr.f32.mxu0 0.0
  %1079 = vmatmul.mubr.f32.gmra.mxu0 %v173
  %v1080 = vpop.f32.mrf.mxu0
  %v1081 = vadd.f32 0.0, %v1080
  %v1082 = vpop.f32.mrf.mxu0
  %1083 = vmatprep.mubr.f32.mxu0 0.0
  %1084 = vmatmul.mubr.f32.gmra.mxu0 %v174
  %v1085 = vpop.f32.mrf.mxu0
  %v1086 = vadd.f32 0.0, %v1085
  %v1087 = vpop.f32.mrf.mxu0
  %1088 = vmatprep.mubr.f32.mxu0 0.0
  %1089 = vmatmul.mubr.f32.gmra.mxu0 %v175
  %v1090 = vpop.f32.mrf.mxu0
  %v1091 = vadd.f32 0.0, %v1090
  %v1092 = vpop.f32.mrf.mxu0
  %1093 = vmatprep.mubr.f32.mxu0 0.0
  %1094 = vmatmul.mubr.f32.gmra.mxu0 %v176
  %v1095 = vpop.f32.mrf.mxu0
  %v1096 = vadd.f32 0.0, %v1095
  %v1097 = vpop.f32.mrf.mxu0
  %1098 = vmatprep.mubr.f32.mxu0 0.0
  %1099 = vmatmul.mubr.f32.gmra.mxu0 %v177
  %v1100 = vpop.f32.mrf.mxu0
  %v1101 = vadd.f32 0.0, %v1100
  %v1102 = vpop.f32.mrf.mxu0
  %1103 = vmatprep.mubr.f32.mxu0 0.0
  %1104 = vmatmul.mubr.f32.gmra.mxu0 %v178
  %v1105 = vpop.f32.mrf.mxu0
  %v1106 = vadd.f32 0.0, %v1105
  %v1107 = vpop.f32.mrf.mxu0
  %1108 = vmatprep.mubr.f32.mxu0 0.0
  %1109 = vmatmul.mubr.f32.gmra.mxu0 %v179
  %v1110 = vpop.f32.mrf.mxu0
  %v1111 = vadd.f32 0.0, %v1110
  %v1112 = vpop.f32.mrf.mxu0
  %1113 = vmatprep.mubr.f32.mxu0 0.0
  %1114 = vmatmul.mubr.f32.gmra.mxu0 %v180
  %v1115 = vpop.f32.mrf.mxu0
  %v1116 = vadd.f32 0.0, %v1115
  %v1117 = vpop.f32.mrf.mxu0
  %1118 = vmatprep.mubr.f32.mxu0 0.0
  %1119 = vmatmul.mubr.f32.gmra.mxu0 %v181
  %v1120 = vpop.f32.mrf.mxu0
  %v1121 = vadd.f32 0.0, %v1120
  %v1122 = vpop.f32.mrf.mxu0
  %1123 = vmatprep.mubr.f32.mxu0 0.0
  %1124 = vmatmul.mubr.f32.gmra.mxu0 %v182
  %v1125 = vpop.f32.mrf.mxu0
  %v1126 = vadd.f32 0.0, %v1125
  %v1127 = vpop.f32.mrf.mxu0
  %1128 = vmatprep.mubr.f32.mxu0 0.0
  %1129 = vmatmul.mubr.f32.gmra.mxu0 %v183
  %v1130 = vpop.f32.mrf.mxu0
  %v1131 = vadd.f32 0.0, %v1130
  %v1132 = vpop.f32.mrf.mxu0
  %1133 = vmatprep.mubr.f32.mxu0 0.0
  %1134 = vmatmul.mubr.f32.gmra.mxu0 %v184
  %v1135 = vpop.f32.mrf.mxu0
  %v1136 = vadd.f32 0.0, %v1135
  %v1137 = vpop.f32.mrf.mxu0
  %1138 = vmatprep.mubr.f32.mxu0 0.0
  %1139 = vmatmul.mubr.f32.gmra.mxu0 %v185
  %v1140 = vpop.f32.mrf.mxu0
  %v1141 = vadd.f32 0.0, %v1140
  %v1142 = vpop.f32.mrf.mxu0
  %1143 = vmatprep.mubr.f32.mxu0 0.0
  %1144 = vmatmul.mubr.f32.gmra.mxu0 %v186
  %v1145 = vpop.f32.mrf.mxu0
  %v1146 = vadd.f32 0.0, %v1145
  %v1147 = vpop.f32.mrf.mxu0
  %1148 = vmatprep.mubr.f32.mxu0 0.0
  %1149 = vmatmul.mubr.f32.gmra.mxu0 %v187
  %v1150 = vpop.f32.mrf.mxu0
  %v1151 = vadd.f32 0.0, %v1150
  %v1152 = vpop.f32.mrf.mxu0
  %1153 = vmatprep.mubr.f32.mxu0 0.0
  %1154 = vmatmul.mubr.f32.gmra.mxu0 %v188
  %v1155 = vpop.f32.mrf.mxu0
  %v1156 = vadd.f32 0.0, %v1155
  %v1157 = vpop.f32.mrf.mxu0
  %1158 = vmatprep.mubr.f32.mxu0 0.0
  %1159 = vmatmul.mubr.f32.gmra.mxu0 %v189
  %v1160 = vpop.f32.mrf.mxu0
  %v1161 = vadd.f32 0.0, %v1160
  %v1162 = vpop.f32.mrf.mxu0
  %1163 = vmatprep.mubr.f32.mxu0 0.0
  %1164 = vmatmul.mubr.f32.gmra.mxu0 %v190
  %v1165 = vpop.f32.mrf.mxu0
  %v1166 = vadd.f32 0.0, %v1165
  %v1167 = vpop.f32.mrf.mxu0
  %1168 = vmatprep.mubr.f32.mxu0 0.0
  %1169 = vmatmul.mubr.f32.gmra.mxu0 %v191
  %v1170 = vpop.f32.mrf.mxu0
  %v1171 = vadd.f32 0.0, %v1170
  %v1172 = vpop.f32.mrf.mxu0
  %1173 = vmatprep.mubr.f32.mxu0 0.0
  %1174 = vmatmul.mubr.f32.gmra.mxu0 %v192
  %v1175 = vpop.f32.mrf.mxu0
  %v1176 = vadd.f32 0.0, %v1175
  %v1177 = vpop.f32.mrf.mxu0
  %1178 = vmatprep.mubr.f32.mxu0 0.0
  %1179 = vmatmul.mubr.f32.gmra.mxu0 %v193
  %v1180 = vpop.f32.mrf.mxu0
  %v1181 = vadd.f32 0.0, %v1180
  %v1182 = vpop.f32.mrf.mxu0
  %1183 = vmatprep.mubr.f32.mxu0 0.0
  %1184 = vmatmul.mubr.f32.gmra.mxu0 %v194
  %v1185 = vpop.f32.mrf.mxu0
  %v1186 = vadd.f32 0.0, %v1185
  %v1187 = vpop.f32.mrf.mxu0
  %1188 = vmatprep.mubr.f32.mxu0 0.0
  %1189 = vmatmul.mubr.f32.gmra.mxu0 %v195
  %v1190 = vpop.f32.mrf.mxu0
  %v1191 = vadd.f32 0.0, %v1190
  %v1192 = vpop.f32.mrf.mxu0
  %1193 = vmatprep.mubr.f32.mxu0 0.0
  %1194 = vmatmul.mubr.f32.gmra.mxu0 %v196
  %v1195 = vpop.f32.mrf.mxu0
  %v1196 = vadd.f32 0.0, %v1195
  %v1197 = vpop.f32.mrf.mxu0
  %1198 = vmatprep.mubr.f32.mxu0 0.0
  %1199 = vmatmul.mubr.f32.gmra.mxu0 %v197
  %v1200 = vpop.f32.mrf.mxu0
  %v1201 = vadd.f32 0.0, %v1200
  %v1202 = vpop.f32.mrf.mxu0
  %1203 = vmatprep.mubr.f32.mxu0 0.0
  %1204 = vmatmul.mubr.f32.gmra.mxu0 %v198
  %v1205 = vpop.f32.mrf.mxu0
  %v1206 = vadd.f32 0.0, %v1205
  %v1207 = vpop.f32.mrf.mxu0
  %1208 = vmatprep.mubr.f32.mxu0 0.0
  %1209 = vmatmul.mubr.f32.gmra.mxu0 %v199
  %v1210 = vpop.f32.mrf.mxu0
  %v1211 = vadd.f32 0.0, %v1210
  %v1212 = vpop.f32.mrf.mxu0
  %1213 = vmatprep.mubr.f32.mxu0 0.0
  %1214 = vmatmul.mubr.f32.gmra.mxu0 %v200
  %v1215 = vpop.f32.mrf.mxu0
  %v1216 = vadd.f32 0.0, %v1215
  %v1217 = vpop.f32.mrf.mxu0
  %1218 = vmatprep.mubr.f32.mxu0 0.0
  %1219 = vmatmul.mubr.f32.gmra.mxu0 %v201
  %v1220 = vpop.f32.mrf.mxu0
  %v1221 = vadd.f32 0.0, %v1220
  %v1222 = vpop.f32.mrf.mxu0
  %1223 = vmatprep.mubr.f32.mxu0 0.0
  %1224 = vmatmul.mubr.f32.gmra.mxu0 %v202
  %v1225 = vpop.f32.mrf.mxu0
  %v1226 = vadd.f32 0.0, %v1225
  %v1227 = vpop.f32.mrf.mxu0
  %1228 = vmatprep.mubr.f32.mxu0 0.0
  %1229 = vmatmul.mubr.f32.gmra.mxu0 %v203
  %v1230 = vpop.f32.mrf.mxu0
  %v1231 = vadd.f32 0.0, %v1230
  %v1232 = vpop.f32.mrf.mxu0
  %1233 = vmatprep.mubr.f32.mxu0 0.0
  %1234 = vmatmul.mubr.f32.gmra.mxu0 %v204
  %v1235 = vpop.f32.mrf.mxu0
  %v1236 = vadd.f32 0.0, %v1235
  %v1237 = vpop.f32.mrf.mxu0
  %1238 = vmatprep.mubr.f32.mxu0 0.0
  %1239 = vmatmul.mubr.f32.gmra.mxu0 %v205
  %v1240 = vpop.f32.mrf.mxu0
  %v1241 = vadd.f32 0.0, %v1240
  %v1242 = vpop.f32.mrf.mxu0
  %1243 = vmatprep.mubr.f32.mxu0 0.0
  %1244 = vmatmul.mubr.f32.gmra.mxu0 %v206
  %v1245 = vpop.f32.mrf.mxu0
  %v1246 = vadd.f32 0.0, %v1245
  %v1247 = vpop.f32.mrf.mxu0
  %1248 = vmatprep.mubr.f32.mxu0 0.0
  %1249 = vmatmul.mubr.f32.gmra.mxu0 %v207
  %v1250 = vpop.f32.mrf.mxu0
  %v1251 = vadd.f32 0.0, %v1250
  %v1252 = vpop.f32.mrf.mxu0
  %1253 = vmatprep.mubr.f32.mxu0 0.0
  %1254 = vmatmul.mubr.f32.gmra.mxu0 %v208
  %v1255 = vpop.f32.mrf.mxu0
  %v1256 = vadd.f32 0.0, %v1255
  %v1257 = vpop.f32.mrf.mxu0
  %1258 = vmatprep.mubr.f32.mxu0 0.0
  %1259 = vmatmul.mubr.f32.gmra.mxu0 %v209
  %v1260 = vpop.f32.mrf.mxu0
  %v1261 = vadd.f32 0.0, %v1260
  %v1262 = vpop.f32.mrf.mxu0
  %1263 = vmatprep.mubr.f32.mxu0 0.0
  %1264 = vmatmul.mubr.f32.gmra.mxu0 %v210
  %v1265 = vpop.f32.mrf.mxu0
  %v1266 = vadd.f32 0.0, %v1265
  %v1267 = vpop.f32.mrf.mxu0
  %1268 = vmatprep.mubr.f32.mxu0 0.0
  %1269 = vmatmul.mubr.f32.gmra.mxu0 %v211
  %v1270 = vpop.f32.mrf.mxu0
  %v1271 = vadd.f32 0.0, %v1270
  %v1272 = vpop.f32.mrf.mxu0
  %1273 = vmatprep.mubr.f32.mxu0 0.0
  %1274 = vmatmul.mubr.f32.gmra.mxu0 %v212
  %v1275 = vpop.f32.mrf.mxu0
  %v1276 = vadd.f32 0.0, %v1275
  %v1277 = vpop.f32.mrf.mxu0
  %1278 = vmatprep.mubr.f32.mxu0 0.0
  %1279 = vmatmul.mubr.f32.gmra.mxu0 %v213
  %v1280 = vpop.f32.mrf.mxu0
  %v1281 = vadd.f32 0.0, %v1280
  %v1282 = vpop.f32.mrf.mxu0
  %1283 = vmatprep.mubr.f32.mxu0 0.0
  %1284 = vmatmul.mubr.f32.gmra.mxu0 %v214
  %v1285 = vpop.f32.mrf.mxu0
  %v1286 = vadd.f32 0.0, %v1285
  %v1287 = vpop.f32.mrf.mxu0
  %1288 = vmatprep.mubr.f32.mxu0 0.0
  %1289 = vmatmul.mubr.f32.gmra.mxu0 %v215
  %v1290 = vpop.f32.mrf.mxu0
  %v1291 = vadd.f32 0.0, %v1290
  %v1292 = vpop.f32.mrf.mxu0
  %1293 = vmatprep.mubr.f32.mxu0 0.0
  %1294 = vmatmul.mubr.f32.gmra.mxu0 %v216
  %v1295 = vpop.f32.mrf.mxu0
  %v1296 = vadd.f32 0.0, %v1295
  %v1297 = vpop.f32.mrf.mxu0
  %1298 = vmatprep.mubr.f32.mxu0 0.0
  %1299 = vmatmul.mubr.f32.gmra.mxu0 %v217
  %v1300 = vpop.f32.mrf.mxu0
  %v1301 = vadd.f32 0.0, %v1300
  %v1302 = vpop.f32.mrf.mxu0
  %1303 = vmatprep.mubr.f32.mxu0 0.0
  %1304 = vmatmul.mubr.f32.gmra.mxu0 %v218
  %v1305 = vpop.f32.mrf.mxu0
  %v1306 = vadd.f32 0.0, %v1305
  %v1307 = vpop.f32.mrf.mxu0
  %1308 = vmatprep.mubr.f32.mxu0 0.0
  %1309 = vmatmul.mubr.f32.gmra.mxu0 %v219
  %v1310 = vpop.f32.mrf.mxu0
  %v1311 = vadd.f32 0.0, %v1310
  %v1312 = vpop.f32.mrf.mxu0
  %1313 = vmatprep.mubr.f32.mxu0 0.0
  %1314 = vmatmul.mubr.f32.gmra.mxu0 %v220
  %v1315 = vpop.f32.mrf.mxu0
  %v1316 = vadd.f32 0.0, %v1315
  %v1317 = vpop.f32.mrf.mxu0
  %1318 = vmatprep.mubr.f32.mxu0 0.0
  %1319 = vmatmul.mubr.f32.gmra.mxu0 %v221
  %v1320 = vpop.f32.mrf.mxu0
  %v1321 = vadd.f32 0.0, %v1320
  %v1322 = vpop.f32.mrf.mxu0
  %1323 = vmatprep.mubr.f32.mxu0 0.0
  %1324 = vmatmul.mubr.f32.gmra.mxu0 %v222
  %v1325 = vpop.f32.mrf.mxu0
  %v1326 = vadd.f32 0.0, %v1325
  %v1327 = vpop.f32.mrf.mxu0
  %1328 = vmatprep.mubr.f32.mxu0 0.0
  %1329 = vmatmul.mubr.f32.gmra.mxu0 %v223
  %v1330 = vpop.f32.mrf.mxu0
  %v1331 = vadd.f32 0.0, %v1330
  %v1332 = vpop.f32.mrf.mxu0
  %1333 = vmatprep.mubr.f32.mxu0 0.0
  %1334 = vmatmul.mubr.f32.gmra.mxu0 %v224
  %v1335 = vpop.f32.mrf.mxu0
  %v1336 = vadd.f32 0.0, %v1335
  %v1337 = vpop.f32.mrf.mxu0
  %1338 = vmatprep.mubr.f32.mxu0 0.0
  %1339 = vmatmul.mubr.f32.gmra.mxu0 %v225
  %v1340 = vpop.f32.mrf.mxu0
  %v1341 = vadd.f32 0.0, %v1340
  %v1342 = vpop.f32.mrf.mxu0
  %1343 = vmatprep.mubr.f32.mxu0 0.0
  %1344 = vmatmul.mubr.f32.gmra.mxu0 %v226
  %v1345 = vpop.f32.mrf.mxu0
  %v1346 = vadd.f32 0.0, %v1345
  %v1347 = vpop.f32.mrf.mxu0
  %1348 = vmatprep.mubr.f32.mxu0 0.0
  %1349 = vmatmul.mubr.f32.gmra.mxu0 %v227
  %v1350 = vpop.f32.mrf.mxu0
  %v1351 = vadd.f32 0.0, %v1350
  %v1352 = vpop.f32.mrf.mxu0
  %1353 = vmatprep.mubr.f32.mxu0 0.0
  %1354 = vmatmul.mubr.f32.gmra.mxu0 %v228
  %v1355 = vpop.f32.mrf.mxu0
  %v1356 = vadd.f32 0.0, %v1355
  %v1357 = vpop.f32.mrf.mxu0
  %1358 = vmatprep.mubr.f32.mxu0 0.0
  %1359 = vmatmul.mubr.f32.gmra.mxu0 %v229
  %v1360 = vpop.f32.mrf.mxu0
  %v1361 = vadd.f32 0.0, %v1360
  %v1362 = vpop.f32.mrf.mxu0
  %1363 = vmatprep.mubr.f32.mxu0 0.0
  %1364 = vmatmul.mubr.f32.gmra.mxu0 %v230
  %v1365 = vpop.f32.mrf.mxu0
  %v1366 = vadd.f32 0.0, %v1365
  %v1367 = vpop.f32.mrf.mxu0
  %1368 = vmatprep.mubr.f32.mxu0 0.0
  %1369 = vmatmul.mubr.f32.gmra.mxu0 %v231
  %v1370 = vpop.f32.mrf.mxu0
  %v1371 = vadd.f32 0.0, %v1370
  %v1372 = vpop.f32.mrf.mxu0
  %1373 = vmatprep.mubr.f32.mxu0 0.0
  %1374 = vmatmul.mubr.f32.gmra.mxu0 %v232
  %v1375 = vpop.f32.mrf.mxu0
  %v1376 = vadd.f32 0.0, %v1375
  %v1377 = vpop.f32.mrf.mxu0
  %1378 = vmatprep.mubr.f32.mxu0 0.0
  %1379 = vmatmul.mubr.f32.gmra.mxu0 %v233
  %v1380 = vpop.f32.mrf.mxu0
  %v1381 = vadd.f32 0.0, %v1380
  %v1382 = vpop.f32.mrf.mxu0
  %1383 = vmatprep.mubr.f32.mxu0 0.0
  %1384 = vmatmul.mubr.f32.gmra.mxu0 %v234
  %v1385 = vpop.f32.mrf.mxu0
  %v1386 = vadd.f32 0.0, %v1385
  %v1387 = vpop.f32.mrf.mxu0
  %1388 = vmatprep.mubr.f32.mxu0 0.0
  %1389 = vmatmul.mubr.f32.gmra.mxu0 %v235
  %v1390 = vpop.f32.mrf.mxu0
  %v1391 = vadd.f32 0.0, %v1390
  %v1392 = vpop.f32.mrf.mxu0
  %1393 = vmatprep.mubr.f32.mxu0 0.0
  %1394 = vmatmul.mubr.f32.gmra.mxu0 %v236
  %v1395 = vpop.f32.mrf.mxu0
  %v1396 = vadd.f32 0.0, %v1395
  %v1397 = vpop.f32.mrf.mxu0
  %1398 = vmatprep.mubr.f32.mxu0 0.0
  %1399 = vmatmul.mubr.f32.gmra.mxu0 %v237
  %v1400 = vpop.f32.mrf.mxu0
  %v1401 = vadd.f32 0.0, %v1400
  %v1402 = vpop.f32.mrf.mxu0
  %1403 = vmatprep.mubr.f32.mxu0 0.0
  %1404 = vmatmul.mubr.f32.gmra.mxu0 %v238
  %v1405 = vpop.f32.mrf.mxu0
  %v1406 = vadd.f32 0.0, %v1405
  %v1407 = vpop.f32.mrf.mxu0
  %1408 = vmatprep.mubr.f32.mxu0 0.0
  %1409 = vmatmul.mubr.f32.gmra.mxu0 %v239
  %v1410 = vpop.f32.mrf.mxu0
  %v1411 = vadd.f32 0.0, %v1410
  %v1412 = vpop.f32.mrf.mxu0
  %1413 = vmatprep.mubr.f32.mxu0 0.0
  %1414 = vmatmul.mubr.f32.gmra.mxu0 %v240
  %v1415 = vpop.f32.mrf.mxu0
  %v1416 = vadd.f32 0.0, %v1415
  %v1417 = vpop.f32.mrf.mxu0
  %1418 = vmatprep.mubr.f32.mxu0 0.0
  %1419 = vmatmul.mubr.f32.gmra.mxu0 %v241
  %v1420 = vpop.f32.mrf.mxu0
  %v1421 = vadd.f32 0.0, %v1420
  %v1422 = vpop.f32.mrf.mxu0
  %1423 = vmatprep.mubr.f32.mxu0 0.0
  %1424 = vmatmul.mubr.f32.gmra.mxu0 %v242
  %v1425 = vpop.f32.mrf.mxu0
  %v1426 = vadd.f32 0.0, %v1425
  %v1427 = vpop.f32.mrf.mxu0
  %1428 = vmatprep.mubr.f32.mxu0 0.0
  %1429 = vmatmul.mubr.f32.gmra.mxu0 %v243
  %v1430 = vpop.f32.mrf.mxu0
  %v1431 = vadd.f32 0.0, %v1430
  %v1432 = vpop.f32.mrf.mxu0
  %1433 = vmatprep.mubr.f32.mxu0 0.0
  %1434 = vmatmul.mubr.f32.gmra.mxu0 %v244
  %v1435 = vpop.f32.mrf.mxu0
  %v1436 = vadd.f32 0.0, %v1435
  %v1437 = vpop.f32.mrf.mxu0
  %1438 = vmatprep.mubr.f32.mxu0 0.0
  %1439 = vmatmul.mubr.f32.gmra.mxu0 %v245
  %v1440 = vpop.f32.mrf.mxu0
  %v1441 = vadd.f32 0.0, %v1440
  %v1442 = vpop.f32.mrf.mxu0
  %1443 = vmatprep.mubr.f32.mxu0 0.0
  %1444 = vmatmul.mubr.f32.gmra.mxu0 %v246
  %v1445 = vpop.f32.mrf.mxu0
  %v1446 = vadd.f32 0.0, %v1445
  %v1447 = vpop.f32.mrf.mxu0
  %1448 = vmatprep.mubr.f32.mxu0 0.0
  %1449 = vmatmul.mubr.f32.gmra.mxu0 %v247
  %v1450 = vpop.f32.mrf.mxu0
  %v1451 = vadd.f32 0.0, %v1450
  %v1452 = vpop.f32.mrf.mxu0
  %1453 = vdwg.mxu0
  %v1454 = vmax.f32 %v331, 0.0
  %v1455 = vmax.f32 %v336, 0.0
  %v1456 = vmax.f32 %v341, 0.0
  %v1457 = vmax.f32 %v346, 0.0
  %v1458 = vmax.f32 %v351, 0.0
  %v1459 = vmax.f32 %v356, 0.0
  %v1460 = vmax.f32 %v361, 0.0
  %v1461 = vmax.f32 %v366, 0.0
  %v1462 = vmax.f32 %v371, 0.0
  %v1463 = vmax.f32 %v376, 0.0
  %v1464 = vmax.f32 %v381, 0.0
  %v1465 = vmax.f32 %v386, 0.0
  %v1466 = vmax.f32 %v391, 0.0
  %v1467 = vmax.f32 %v396, 0.0
  %v1468 = vmax.f32 %v401, 0.0
  %v1469 = vmax.f32 %v406, 0.0
  %v1470 = vmax.f32 %v411, 0.0
  %v1471 = vmax.f32 %v416, 0.0
  %v1472 = vmax.f32 %v421, 0.0
  %v1473 = vmax.f32 %v426, 0.0
  %v1474 = vmax.f32 %v431, 0.0
  %v1475 = vmax.f32 %v436, 0.0
  %v1476 = vmax.f32 %v441, 0.0
  %v1477 = vmax.f32 %v446, 0.0
  %v1478 = vmax.f32 %v451, 0.0
  %v1479 = vmax.f32 %v456, 0.0
  %v1480 = vmax.f32 %v461, 0.0
  %v1481 = vmax.f32 %v466, 0.0
  %v1482 = vmax.f32 %v471, 0.0
  %v1483 = vmax.f32 %v476, 0.0
  %v1484 = vmax.f32 %v481, 0.0
  %v1485 = vmax.f32 %v486, 0.0
  %v1486 = vmax.f32 %v491, 0.0
  %v1487 = vmax.f32 %v496, 0.0
  %v1488 = vmax.f32 %v501, 0.0
  %v1489 = vmax.f32 %v506, 0.0
  %v1490 = vmax.f32 %v511, 0.0
  %v1491 = vmax.f32 %v516, 0.0
  %v1492 = vmax.f32 %v521, 0.0
  %v1493 = vmax.f32 %v526, 0.0
  %v1494 = vmax.f32 %v531, 0.0
  %v1495 = vmax.f32 %v536, 0.0
  %v1496 = vmax.f32 %v541, 0.0
  %v1497 = vmax.f32 %v546, 0.0
  %v1498 = vmax.f32 %v551, 0.0
  %v1499 = vmax.f32 %v556, 0.0
  %v1500 = vmax.f32 %v561, 0.0
  %v1501 = vmax.f32 %v566, 0.0
  %v1502 = vmax.f32 %v571, 0.0
  %v1503 = vmax.f32 %v576, 0.0
  %v1504 = vmax.f32 %v581, 0.0
  %v1505 = vmax.f32 %v586, 0.0
  %v1506 = vmax.f32 %v591, 0.0
  %v1507 = vmax.f32 %v596, 0.0
  %v1508 = vmax.f32 %v601, 0.0
  %v1509 = vmax.f32 %v606, 0.0
  %v1510 = vmax.f32 %v611, 0.0
  %v1511 = vmax.f32 %v616, 0.0
  %v1512 = vmax.f32 %v621, 0.0
  %v1513 = vmax.f32 %v626, 0.0
  %v1514 = vmax.f32 %v631, 0.0
  %v1515 = vmax.f32 %v636, 0.0
  %v1516 = vmax.f32 %v641, 0.0
  %v1517 = vmax.f32 %v646, 0.0
  %v1518 = vmax.f32 %v651, 0.0
  %v1519 = vmax.f32 %v656, 0.0
  %v1520 = vmax.f32 %v661, 0.0
  %v1521 = vmax.f32 %v666, 0.0
  %v1522 = vmax.f32 %v671, 0.0
  %v1523 = vmax.f32 %v676, 0.0
  %v1524 = vmax.f32 %v681, 0.0
  %v1525 = vmax.f32 %v686, 0.0
  %v1526 = vmax.f32 %v691, 0.0
  %v1527 = vmax.f32 %v696, 0.0
  %v1528 = vmax.f32 %v701, 0.0
  %v1529 = vmax.f32 %v706, 0.0
  %v1530 = vmax.f32 %v711, 0.0
  %v1531 = vmax.f32 %v716, 0.0
  %v1532 = vmax.f32 %v721, 0.0
  %v1533 = vmax.f32 %v726, 0.0
  %v1534 = vmax.f32 %v731, 0.0
  %v1535 = vmax.f32 %v736, 0.0
  %v1536 = vmax.f32 %v741, 0.0
  %v1537 = vmax.f32 %v746, 0.0
  %v1538 = vmax.f32 %v751, 0.0
  %v1539 = vmax.f32 %v756, 0.0
  %v1540 = vmax.f32 %v761, 0.0
  %v1541 = vmax.f32 %v766, 0.0
  %v1542 = vmax.f32 %v771, 0.0
  %v1543 = vmax.f32 %v776, 0.0
  %v1544 = vmax.f32 %v781, 0.0
  %v1545 = vmax.f32 %v786, 0.0
  %v1546 = vmax.f32 %v791, 0.0
  %v1547 = vmax.f32 %v796, 0.0
  %v1548 = vmax.f32 %v801, 0.0
  %v1549 = vmax.f32 %v806, 0.0
  %v1550 = vmax.f32 %v811, 0.0
  %v1551 = vmax.f32 %v816, 0.0
  %v1552 = vmax.f32 %v821, 0.0
  %v1553 = vmax.f32 %v826, 0.0
  %v1554 = vmax.f32 %v831, 0.0
  %v1555 = vmax.f32 %v836, 0.0
  %v1556 = vmax.f32 %v841, 0.0
  %v1557 = vmax.f32 %v846, 0.0
  %v1558 = vmax.f32 %v851, 0.0
  %v1559 = vmax.f32 %v856, 0.0
  %v1560 = vmax.f32 %v861, 0.0
  %v1561 = vmax.f32 %v866, 0.0
  %v1562 = vmax.f32 %v871, 0.0
  %v1563 = vmax.f32 %v876, 0.0
  %v1564 = vmax.f32 %v881, 0.0
  %v1565 = vmax.f32 %v886, 0.0
  %v1566 = vmax.f32 %v891, 0.0
  %v1567 = vmax.f32 %v896, 0.0
  %v1568 = vmax.f32 %v901, 0.0
  %v1569 = vmax.f32 %v906, 0.0
  %v1570 = vmax.f32 %v911, 0.0
  %v1571 = vmax.f32 %v916, 0.0
  %v1572 = vmax.f32 %v921, 0.0
  %v1573 = vmax.f32 %v926, 0.0
  %v1574 = vmax.f32 %v931, 0.0
  %v1575 = vmax.f32 %v936, 0.0
  %v1576 = vmax.f32 %v941, 0.0
  %v1577 = vmax.f32 %v946, 0.0
  %v1578 = vmax.f32 %v951, 0.0
  %v1579 = vmax.f32 %v956, 0.0
  %v1580 = vmax.f32 %v961, 0.0
  %v1581 = vmax.f32 %v966, 0.0
  %v1582 = vmax.f32 %v971, 0.0
  %v1583 = vmax.f32 %v976, 0.0
  %v1584 = vmax.f32 %v981, 0.0
  %v1585 = vmax.f32 %v986, 0.0
  %v1586 = vmax.f32 %v991, 0.0
  %v1587 = vmax.f32 %v996, 0.0
  %v1588 = vmax.f32 %v1001, 0.0
  %v1589 = vmax.f32 %v1006, 0.0
  %v1590 = vmax.f32 %v1011, 0.0
  %v1591 = vmax.f32 %v1016, 0.0
  %v1592 = vmax.f32 %v1021, 0.0
  %v1593 = vmax.f32 %v1026, 0.0
  %v1594 = vmax.f32 %v1031, 0.0
  %v1595 = vmax.f32 %v1036, 0.0
  %v1596 = vmax.f32 %v1041, 0.0
  %v1597 = vmax.f32 %v1046, 0.0
  %v1598 = vmax.f32 %v1051, 0.0
  %v1599 = vmax.f32 %v1056, 0.0
  %v1600 = vmax.f32 %v1061, 0.0
  %v1601 = vmax.f32 %v1066, 0.0
  %v1602 = vmax.f32 %v1071, 0.0
  %v1603 = vmax.f32 %v1076, 0.0
  %v1604 = vmax.f32 %v1081, 0.0
  %v1605 = vmax.f32 %v1086, 0.0
  %v1606 = vmax.f32 %v1091, 0.0
  %v1607 = vmax.f32 %v1096, 0.0
  %v1608 = vmax.f32 %v1101, 0.0
  %v1609 = vmax.f32 %v1106, 0.0
  %v1610 = vmax.f32 %v1111, 0.0
  %v1611 = vmax.f32 %v1116, 0.0
  %v1612 = vmax.f32 %v1121, 0.0
  %v1613 = vmax.f32 %v1126, 0.0
  %v1614 = vmax.f32 %v1131, 0.0
  %v1615 = vmax.f32 %v1136, 0.0
  %v1616 = vmax.f32 %v1141, 0.0
  %v1617 = vmax.f32 %v1146, 0.0
  %v1618 = vmax.f32 %v1151, 0.0
  %v1619 = vmax.f32 %v1156, 0.0
  %v1620 = vmax.f32 %v1161, 0.0
  %v1621 = vmax.f32 %v1166, 0.0
  %v1622 = vmax.f32 %v1171, 0.0
  %v1623 = vmax.f32 %v1176, 0.0
  %v1624 = vmax.f32 %v1181, 0.0
  %v1625 = vmax.f32 %v1186, 0.0
  %v1626 = vmax.f32 %v1191, 0.0
  %v1627 = vmax.f32 %v1196, 0.0
  %v1628 = vmax.f32 %v1201, 0.0
  %v1629 = vmax.f32 %v1206, 0.0
  %v1630 = vmax.f32 %v1211, 0.0
  %v1631 = vmax.f32 %v1216, 0.0
  %v1632 = vmax.f32 %v1221, 0.0
  %v1633 = vmax.f32 %v1226, 0.0
  %v1634 = vmax.f32 %v1231, 0.0
  %v1635 = vmax.f32 %v1236, 0.0
  %v1636 = vmax.f32 %v1241, 0.0
  %v1637 = vmax.f32 %v1246, 0.0
  %v1638 = vmax.f32 %v1251, 0.0
  %v1639 = vmax.f32 %v1256, 0.0
  %v1640 = vmax.f32 %v1261, 0.0
  %v1641 = vmax.f32 %v1266, 0.0
  %v1642 = vmax.f32 %v1271, 0.0
  %v1643 = vmax.f32 %v1276, 0.0
  %v1644 = vmax.f32 %v1281, 0.0
  %v1645 = vmax.f32 %v1286, 0.0
  %v1646 = vmax.f32 %v1291, 0.0
  %v1647 = vmax.f32 %v1296, 0.0
  %v1648 = vmax.f32 %v1301, 0.0
  %v1649 = vmax.f32 %v1306, 0.0
  %v1650 = vmax.f32 %v1311, 0.0
  %v1651 = vmax.f32 %v1316, 0.0
  %v1652 = vmax.f32 %v1321, 0.0
  %v1653 = vmax.f32 %v1326, 0.0
  %v1654 = vmax.f32 %v1331, 0.0
  %v1655 = vmax.f32 %v1336, 0.0
  %v1656 = vmax.f32 %v1341, 0.0
  %v1657 = vmax.f32 %v1346, 0.0
  %v1658 = vmax.f32 %v1351, 0.0
  %v1659 = vmax.f32 %v1356, 0.0
  %v1660 = vmax.f32 %v1361, 0.0
  %v1661 = vmax.f32 %v1366, 0.0
  %v1662 = vmax.f32 %v1371, 0.0
  %v1663 = vmax.f32 %v1376, 0.0
  %v1664 = vmax.f32 %v1381, 0.0
  %v1665 = vmax.f32 %v1386, 0.0
  %v1666 = vmax.f32 %v1391, 0.0
  %v1667 = vmax.f32 %v1396, 0.0
  %v1668 = vmax.f32 %v1401, 0.0
  %v1669 = vmax.f32 %v1406, 0.0
  %v1670 = vmax.f32 %v1411, 0.0
  %v1671 = vmax.f32 %v1416, 0.0
  %v1672 = vmax.f32 %v1421, 0.0
  %v1673 = vmax.f32 %v1426, 0.0
  %v1674 = vmax.f32 %v1431, 0.0
  %v1675 = vmax.f32 %v1436, 0.0
  %v1676 = vmax.f32 %v1441, 0.0
  %v1677 = vmax.f32 %v1446, 0.0
  %v1678 = vmax.f32 %v1451, 0.0
  %vm1679 = vcmask 261120
  %1680 = vst.msk [vmem:[#allocation2] sm:$0xff] %vm1679, %v1454
  %1681 = vst.msk [vmem:[#allocation2 + $0x8] sm:$0xff] %vm1679, %v1455
  %1682 = vst.msk [vmem:[#allocation2 + $0x10] sm:$0xff] %vm1679, %v1456
  %1683 = vst.msk [vmem:[#allocation2 + $0x18] sm:$0xff] %vm1679, %v1457
  %1684 = vst.msk [vmem:[#allocation2 + $0x20] sm:$0xff] %vm1679, %v1458
  %1685 = vst.msk [vmem:[#allocation2 + $0x28] sm:$0xff] %vm1679, %v1459
  %1686 = vst.msk [vmem:[#allocation2 + $0x30] sm:$0xff] %vm1679, %v1460
  %1687 = vst.msk [vmem:[#allocation2 + $0x38] sm:$0xff] %vm1679, %v1461
  %1688 = vst.msk [vmem:[#allocation2 + $0x40] sm:$0xff] %vm1679, %v1462
  %1689 = vst.msk [vmem:[#allocation2 + $0x48] sm:$0xff] %vm1679, %v1463
  %1690 = vst.msk [vmem:[#allocation2 + $0x50] sm:$0xff] %vm1679, %v1464
  %1691 = vst.msk [vmem:[#allocation2 + $0x58] sm:$0xff] %vm1679, %v1465
  %1692 = vst.msk [vmem:[#allocation2 + $0x60] sm:$0xff] %vm1679, %v1466
  %1693 = vst.msk [vmem:[#allocation2 + $0x68] sm:$0xff] %vm1679, %v1467
  %1694 = vst.msk [vmem:[#allocation2 + $0x70] sm:$0xff] %vm1679, %v1468
  %1695 = vst.msk [vmem:[#allocation2 + $0x78] sm:$0xff] %vm1679, %v1469
  %1696 = vst.msk [vmem:[#allocation2 + $0x80] sm:$0xff] %vm1679, %v1470
  %1697 = vst.msk [vmem:[#allocation2 + $0x88] sm:$0xff] %vm1679, %v1471
  %1698 = vst.msk [vmem:[#allocation2 + $0x90] sm:$0xff] %vm1679, %v1472
  %1699 = vst.msk [vmem:[#allocation2 + $0x98] sm:$0xff] %vm1679, %v1473
  %1700 = vst.msk [vmem:[#allocation2 + $0xa0] sm:$0xff] %vm1679, %v1474
  %1701 = vst.msk [vmem:[#allocation2 + $0xa8] sm:$0xff] %vm1679, %v1475
  %1702 = vst.msk [vmem:[#allocation2 + $0xb0] sm:$0xff] %vm1679, %v1476
  %1703 = vst.msk [vmem:[#allocation2 + $0xb8] sm:$0xff] %vm1679, %v1477
  %1704 = vst.msk [vmem:[#allocation2 + $0xc0] sm:$0xff] %vm1679, %v1478
  %1705 = vst.msk [vmem:[#allocation2 + $0xc8] sm:$0xff] %vm1679, %v1479
  %1706 = vst.msk [vmem:[#allocation2 + $0xd0] sm:$0xff] %vm1679, %v1480
  %1707 = vst.msk [vmem:[#allocation2 + $0xd8] sm:$0xff] %vm1679, %v1481
  %1708 = vst.msk [vmem:[#allocation2 + $0xe0] sm:$0xff] %vm1679, %v1482
  %1709 = vst.msk [vmem:[#allocation2 + $0xe8] sm:$0xff] %vm1679, %v1483
  %1710 = vst.msk [vmem:[#allocation2 + $0xf0] sm:$0xff] %vm1679, %v1484
  %1711 = vst.msk [vmem:[#allocation2 + $0xf8] sm:$0xff] %vm1679, %v1485
  %1712 = vst.msk [vmem:[#allocation2 + $0x100] sm:$0xff] %vm1679, %v1486
  %1713 = vst.msk [vmem:[#allocation2 + $0x108] sm:$0xff] %vm1679, %v1487
  %1714 = vst.msk [vmem:[#allocation2 + $0x110] sm:$0xff] %vm1679, %v1488
  %1715 = vst.msk [vmem:[#allocation2 + $0x118] sm:$0xff] %vm1679, %v1489
  %1716 = vst.msk [vmem:[#allocation2 + $0x120] sm:$0xff] %vm1679, %v1490
  %1717 = vst.msk [vmem:[#allocation2 + $0x128] sm:$0xff] %vm1679, %v1491
  %1718 = vst.msk [vmem:[#allocation2 + $0x130] sm:$0xff] %vm1679, %v1492
  %1719 = vst.msk [vmem:[#allocation2 + $0x138] sm:$0xff] %vm1679, %v1493
  %1720 = vst.msk [vmem:[#allocation2 + $0x140] sm:$0xff] %vm1679, %v1494
  %1721 = vst.msk [vmem:[#allocation2 + $0x148] sm:$0xff] %vm1679, %v1495
  %1722 = vst.msk [vmem:[#allocation2 + $0x150] sm:$0xff] %vm1679, %v1496
  %1723 = vst.msk [vmem:[#allocation2 + $0x158] sm:$0xff] %vm1679, %v1497
  %1724 = vst.msk [vmem:[#allocation2 + $0x160] sm:$0xff] %vm1679, %v1498
  %1725 = vst.msk [vmem:[#allocation2 + $0x168] sm:$0xff] %vm1679, %v1499
  %1726 = vst.msk [vmem:[#allocation2 + $0x170] sm:$0xff] %vm1679, %v1500
  %1727 = vst.msk [vmem:[#allocation2 + $0x178] sm:$0xff] %vm1679, %v1501
  %1728 = vst.msk [vmem:[#allocation2 + $0x180] sm:$0xff] %vm1679, %v1502
  %1729 = vst.msk [vmem:[#allocation2 + $0x188] sm:$0xff] %vm1679, %v1503
  %1730 = vst.msk [vmem:[#allocation2 + $0x190] sm:$0xff] %vm1679, %v1504
  %1731 = vst.msk [vmem:[#allocation2 + $0x198] sm:$0xff] %vm1679, %v1505
  %1732 = vst.msk [vmem:[#allocation2 + $0x1a0] sm:$0xff] %vm1679, %v1506
  %1733 = vst.msk [vmem:[#allocation2 + $0x1a8] sm:$0xff] %vm1679, %v1507
  %1734 = vst.msk [vmem:[#allocation2 + $0x1b0] sm:$0xff] %vm1679, %v1508
  %1735 = vst.msk [vmem:[#allocation2 + $0x1b8] sm:$0xff] %vm1679, %v1509
  %1736 = vst.msk [vmem:[#allocation2 + $0x1c0] sm:$0xff] %vm1679, %v1510
  %1737 = vst.msk [vmem:[#allocation2 + $0x1c8] sm:$0xff] %vm1679, %v1511
  %1738 = vst.msk [vmem:[#allocation2 + $0x1d0] sm:$0xff] %vm1679, %v1512
  %1739 = vst.msk [vmem:[#allocation2 + $0x1d8] sm:$0xff] %vm1679, %v1513
  %1740 = vst.msk [vmem:[#allocation2 + $0x1e0] sm:$0xff] %vm1679, %v1514
  %1741 = vst.msk [vmem:[#allocation2 + $0x1e8] sm:$0xff] %vm1679, %v1515
  %1742 = vst.msk [vmem:[#allocation2 + $0x1f0] sm:$0xff] %vm1679, %v1516
  %1743 = vst.msk [vmem:[#allocation2 + $0x1f8] sm:$0xff] %vm1679, %v1517
  %1744 = vst.msk [vmem:[#allocation2 + $0x200] sm:$0xff] %vm1679, %v1518
  %1745 = vst.msk [vmem:[#allocation2 + $0x208] sm:$0xff] %vm1679, %v1519
  %1746 = vst.msk [vmem:[#allocation2 + $0x210] sm:$0xff] %vm1679, %v1520
  %1747 = vst.msk [vmem:[#allocation2 + $0x218] sm:$0xff] %vm1679, %v1521
  %1748 = vst.msk [vmem:[#allocation2 + $0x220] sm:$0xff] %vm1679, %v1522
  %1749 = vst.msk [vmem:[#allocation2 + $0x228] sm:$0xff] %vm1679, %v1523
  %1750 = vst.msk [vmem:[#allocation2 + $0x230] sm:$0xff] %vm1679, %v1524
  %1751 = vst.msk [vmem:[#allocation2 + $0x238] sm:$0xff] %vm1679, %v1525
  %1752 = vst.msk [vmem:[#allocation2 + $0x240] sm:$0xff] %vm1679, %v1526
  %1753 = vst.msk [vmem:[#allocation2 + $0x248] sm:$0xff] %vm1679, %v1527
  %1754 = vst.msk [vmem:[#allocation2 + $0x250] sm:$0xff] %vm1679, %v1528
  %1755 = vst.msk [vmem:[#allocation2 + $0x258] sm:$0xff] %vm1679, %v1529
  %1756 = vst.msk [vmem:[#allocation2 + $0x260] sm:$0xff] %vm1679, %v1530
  %1757 = vst.msk [vmem:[#allocation2 + $0x268] sm:$0xff] %vm1679, %v1531
  %1758 = vst.msk [vmem:[#allocation2 + $0x270] sm:$0xff] %vm1679, %v1532
  %1759 = vst.msk [vmem:[#allocation2 + $0x278] sm:$0xff] %vm1679, %v1533
  %1760 = vst.msk [vmem:[#allocation2 + $0x280] sm:$0xff] %vm1679, %v1534
  %1761 = vst.msk [vmem:[#allocation2 + $0x288] sm:$0xff] %vm1679, %v1535
  %1762 = vst.msk [vmem:[#allocation2 + $0x290] sm:$0xff] %vm1679, %v1536
  %1763 = vst.msk [vmem:[#allocation2 + $0x298] sm:$0xff] %vm1679, %v1537
  %1764 = vst.msk [vmem:[#allocation2 + $0x2a0] sm:$0xff] %vm1679, %v1538
  %1765 = vst.msk [vmem:[#allocation2 + $0x2a8] sm:$0xff] %vm1679, %v1539
  %1766 = vst.msk [vmem:[#allocation2 + $0x2b0] sm:$0xff] %vm1679, %v1540
  %1767 = vst.msk [vmem:[#allocation2 + $0x2b8] sm:$0xff] %vm1679, %v1541
  %1768 = vst.msk [vmem:[#allocation2 + $0x2c0] sm:$0xff] %vm1679, %v1542
  %1769 = vst.msk [vmem:[#allocation2 + $0x2c8] sm:$0xff] %vm1679, %v1543
  %1770 = vst.msk [vmem:[#allocation2 + $0x2d0] sm:$0xff] %vm1679, %v1544
  %1771 = vst.msk [vmem:[#allocation2 + $0x2d8] sm:$0xff] %vm1679, %v1545
  %1772 = vst.msk [vmem:[#allocation2 + $0x2e0] sm:$0xff] %vm1679, %v1546
  %1773 = vst.msk [vmem:[#allocation2 + $0x2e8] sm:$0xff] %vm1679, %v1547
  %1774 = vst.msk [vmem:[#allocation2 + $0x2f0] sm:$0xff] %vm1679, %v1548
  %1775 = vst.msk [vmem:[#allocation2 + $0x2f8] sm:$0xff] %vm1679, %v1549
  %1776 = vst.msk [vmem:[#allocation2 + $0x300] sm:$0xff] %vm1679, %v1550
  %1777 = vst.msk [vmem:[#allocation2 + $0x308] sm:$0xff] %vm1679, %v1551
  %1778 = vst.msk [vmem:[#allocation2 + $0x310] sm:$0xff] %vm1679, %v1552
  %1779 = vst.msk [vmem:[#allocation2 + $0x318] sm:$0xff] %vm1679, %v1553
  %1780 = vst.msk [vmem:[#allocation2 + $0x320] sm:$0xff] %vm1679, %v1554
  %1781 = vst.msk [vmem:[#allocation2 + $0x328] sm:$0xff] %vm1679, %v1555
  %1782 = vst.msk [vmem:[#allocation2 + $0x330] sm:$0xff] %vm1679, %v1556
  %1783 = vst.msk [vmem:[#allocation2 + $0x338] sm:$0xff] %vm1679, %v1557
  %1784 = vst.msk [vmem:[#allocation2 + $0x340] sm:$0xff] %vm1679, %v1558
  %1785 = vst.msk [vmem:[#allocation2 + $0x348] sm:$0xff] %vm1679, %v1559
  %1786 = vst.msk [vmem:[#allocation2 + $0x350] sm:$0xff] %vm1679, %v1560
  %1787 = vst.msk [vmem:[#allocation2 + $0x358] sm:$0xff] %vm1679, %v1561
  %1788 = vst.msk [vmem:[#allocation2 + $0x360] sm:$0xff] %vm1679, %v1562
  %1789 = vst.msk [vmem:[#allocation2 + $0x368] sm:$0xff] %vm1679, %v1563
  %1790 = vst.msk [vmem:[#allocation2 + $0x370] sm:$0xff] %vm1679, %v1564
  %1791 = vst.msk [vmem:[#allocation2 + $0x378] sm:$0xff] %vm1679, %v1565
  %1792 = vst.msk [vmem:[#allocation2 + $0x380] sm:$0xff] %vm1679, %v1566
  %1793 = vst.msk [vmem:[#allocation2 + $0x388] sm:$0xff] %vm1679, %v1567
  %1794 = vst.msk [vmem:[#allocation2 + $0x390] sm:$0xff] %vm1679, %v1568
  %1795 = vst.msk [vmem:[#allocation2 + $0x398] sm:$0xff] %vm1679, %v1569
  %1796 = vst.msk [vmem:[#allocation2 + $0x3a0] sm:$0xff] %vm1679, %v1570
  %1797 = vst.msk [vmem:[#allocation2 + $0x3a8] sm:$0xff] %vm1679, %v1571
  %1798 = vst.msk [vmem:[#allocation2 + $0x3b0] sm:$0xff] %vm1679, %v1572
  %1799 = vst.msk [vmem:[#allocation2 + $0x3b8] sm:$0xff] %vm1679, %v1573
  %1800 = vst.msk [vmem:[#allocation2 + $0x3c0] sm:$0xff] %vm1679, %v1574
  %1801 = vst.msk [vmem:[#allocation2 + $0x3c8] sm:$0xff] %vm1679, %v1575
  %1802 = vst.msk [vmem:[#allocation2 + $0x3d0] sm:$0xff] %vm1679, %v1576
  %1803 = vst.msk [vmem:[#allocation2 + $0x3d8] sm:$0xff] %vm1679, %v1577
  %1804 = vst.msk [vmem:[#allocation2 + $0x3e0] sm:$0xff] %vm1679, %v1578
  %1805 = vst.msk [vmem:[#allocation2 + $0x3e8] sm:$0xff] %vm1679, %v1579
  %1806 = vst.msk [vmem:[#allocation2 + $0x3f0] sm:$0xff] %vm1679, %v1580
  %1807 = vst.msk [vmem:[#allocation2 + $0x3f8] sm:$0xff] %vm1679, %v1581
  %1808 = vst.msk [vmem:[#allocation2 + $0x400] sm:$0xff] %vm1679, %v1582
  %1809 = vst.msk [vmem:[#allocation2 + $0x408] sm:$0xff] %vm1679, %v1583
  %1810 = vst.msk [vmem:[#allocation2 + $0x410] sm:$0xff] %vm1679, %v1584
  %1811 = vst.msk [vmem:[#allocation2 + $0x418] sm:$0xff] %vm1679, %v1585
  %1812 = vst.msk [vmem:[#allocation2 + $0x420] sm:$0xff] %vm1679, %v1586
  %1813 = vst.msk [vmem:[#allocation2 + $0x428] sm:$0xff] %vm1679, %v1587
  %1814 = vst.msk [vmem:[#allocation2 + $0x430] sm:$0xff] %vm1679, %v1588
  %1815 = vst.msk [vmem:[#allocation2 + $0x438] sm:$0xff] %vm1679, %v1589
  %1816 = vst.msk [vmem:[#allocation2 + $0x440] sm:$0xff] %vm1679, %v1590
  %1817 = vst.msk [vmem:[#allocation2 + $0x448] sm:$0xff] %vm1679, %v1591
  %1818 = vst.msk [vmem:[#allocation2 + $0x450] sm:$0xff] %vm1679, %v1592
  %1819 = vst.msk [vmem:[#allocation2 + $0x458] sm:$0xff] %vm1679, %v1593
  %1820 = vst.msk [vmem:[#allocation2 + $0x460] sm:$0xff] %vm1679, %v1594
  %1821 = vst.msk [vmem:[#allocation2 + $0x468] sm:$0xff] %vm1679, %v1595
  %1822 = vst.msk [vmem:[#allocation2 + $0x470] sm:$0xff] %vm1679, %v1596
  %1823 = vst.msk [vmem:[#allocation2 + $0x478] sm:$0xff] %vm1679, %v1597
  %1824 = vst.msk [vmem:[#allocation2 + $0x480] sm:$0xff] %vm1679, %v1598
  %1825 = vst.msk [vmem:[#allocation2 + $0x488] sm:$0xff] %vm1679, %v1599
  %1826 = vst.msk [vmem:[#allocation2 + $0x490] sm:$0xff] %vm1679, %v1600
  %1827 = vst.msk [vmem:[#allocation2 + $0x498] sm:$0xff] %vm1679, %v1601
  %1828 = vst.msk [vmem:[#allocation2 + $0x4a0] sm:$0xff] %vm1679, %v1602
  %1829 = vst.msk [vmem:[#allocation2 + $0x4a8] sm:$0xff] %vm1679, %v1603
  %1830 = vst.msk [vmem:[#allocation2 + $0x4b0] sm:$0xff] %vm1679, %v1604
  %1831 = vst.msk [vmem:[#allocation2 + $0x4b8] sm:$0xff] %vm1679, %v1605
  %1832 = vst.msk [vmem:[#allocation2 + $0x4c0] sm:$0xff] %vm1679, %v1606
  %1833 = vst.msk [vmem:[#allocation2 + $0x4c8] sm:$0xff] %vm1679, %v1607
  %1834 = vst.msk [vmem:[#allocation2 + $0x4d0] sm:$0xff] %vm1679, %v1608
  %1835 = vst.msk [vmem:[#allocation2 + $0x4d8] sm:$0xff] %vm1679, %v1609
  %1836 = vst.msk [vmem:[#allocation2 + $0x4e0] sm:$0xff] %vm1679, %v1610
  %1837 = vst.msk [vmem:[#allocation2 + $0x4e8] sm:$0xff] %vm1679, %v1611
  %1838 = vst.msk [vmem:[#allocation2 + $0x4f0] sm:$0xff] %vm1679, %v1612
  %1839 = vst.msk [vmem:[#allocation2 + $0x4f8] sm:$0xff] %vm1679, %v1613
  %1840 = vst.msk [vmem:[#allocation2 + $0x500] sm:$0xff] %vm1679, %v1614
  %1841 = vst.msk [vmem:[#allocation2 + $0x508] sm:$0xff] %vm1679, %v1615
  %1842 = vst.msk [vmem:[#allocation2 + $0x510] sm:$0xff] %vm1679, %v1616
  %1843 = vst.msk [vmem:[#allocation2 + $0x518] sm:$0xff] %vm1679, %v1617
  %1844 = vst.msk [vmem:[#allocation2 + $0x520] sm:$0xff] %vm1679, %v1618
  %1845 = vst.msk [vmem:[#allocation2 + $0x528] sm:$0xff] %vm1679, %v1619
  %1846 = vst.msk [vmem:[#allocation2 + $0x530] sm:$0xff] %vm1679, %v1620
  %1847 = vst.msk [vmem:[#allocation2 + $0x538] sm:$0xff] %vm1679, %v1621
  %1848 = vst.msk [vmem:[#allocation2 + $0x540] sm:$0xff] %vm1679, %v1622
  %1849 = vst.msk [vmem:[#allocation2 + $0x548] sm:$0xff] %vm1679, %v1623
  %1850 = vst.msk [vmem:[#allocation2 + $0x550] sm:$0xff] %vm1679, %v1624
  %1851 = vst.msk [vmem:[#allocation2 + $0x558] sm:$0xff] %vm1679, %v1625
  %1852 = vst.msk [vmem:[#allocation2 + $0x560] sm:$0xff] %vm1679, %v1626
  %1853 = vst.msk [vmem:[#allocation2 + $0x568] sm:$0xff] %vm1679, %v1627
  %1854 = vst.msk [vmem:[#allocation2 + $0x570] sm:$0xff] %vm1679, %v1628
  %1855 = vst.msk [vmem:[#allocation2 + $0x578] sm:$0xff] %vm1679, %v1629
  %1856 = vst.msk [vmem:[#allocation2 + $0x580] sm:$0xff] %vm1679, %v1630
  %1857 = vst.msk [vmem:[#allocation2 + $0x588] sm:$0xff] %vm1679, %v1631
  %1858 = vst.msk [vmem:[#allocation2 + $0x590] sm:$0xff] %vm1679, %v1632
  %1859 = vst.msk [vmem:[#allocation2 + $0x598] sm:$0xff] %vm1679, %v1633
  %1860 = vst.msk [vmem:[#allocation2 + $0x5a0] sm:$0xff] %vm1679, %v1634
  %1861 = vst.msk [vmem:[#allocation2 + $0x5a8] sm:$0xff] %vm1679, %v1635
  %1862 = vst.msk [vmem:[#allocation2 + $0x5b0] sm:$0xff] %vm1679, %v1636
  %1863 = vst.msk [vmem:[#allocation2 + $0x5b8] sm:$0xff] %vm1679, %v1637
  %1864 = vst.msk [vmem:[#allocation2 + $0x5c0] sm:$0xff] %vm1679, %v1638
  %1865 = vst.msk [vmem:[#allocation2 + $0x5c8] sm:$0xff] %vm1679, %v1639
  %1866 = vst.msk [vmem:[#allocation2 + $0x5d0] sm:$0xff] %vm1679, %v1640
  %1867 = vst.msk [vmem:[#allocation2 + $0x5d8] sm:$0xff] %vm1679, %v1641
  %1868 = vst.msk [vmem:[#allocation2 + $0x5e0] sm:$0xff] %vm1679, %v1642
  %1869 = vst.msk [vmem:[#allocation2 + $0x5e8] sm:$0xff] %vm1679, %v1643
  %1870 = vst.msk [vmem:[#allocation2 + $0x5f0] sm:$0xff] %vm1679, %v1644
  %1871 = vst.msk [vmem:[#allocation2 + $0x5f8] sm:$0xff] %vm1679, %v1645
  %1872 = vst.msk [vmem:[#allocation2 + $0x600] sm:$0xff] %vm1679, %v1646
  %1873 = vst.msk [vmem:[#allocation2 + $0x608] sm:$0xff] %vm1679, %v1647
  %1874 = vst.msk [vmem:[#allocation2 + $0x610] sm:$0xff] %vm1679, %v1648
  %1875 = vst.msk [vmem:[#allocation2 + $0x618] sm:$0xff] %vm1679, %v1649
  %1876 = vst.msk [vmem:[#allocation2 + $0x620] sm:$0xff] %vm1679, %v1650
  %1877 = vst.msk [vmem:[#allocation2 + $0x628] sm:$0xff] %vm1679, %v1651
  %1878 = vst.msk [vmem:[#allocation2 + $0x630] sm:$0xff] %vm1679, %v1652
  %1879 = vst.msk [vmem:[#allocation2 + $0x638] sm:$0xff] %vm1679, %v1653
  %1880 = vst.msk [vmem:[#allocation2 + $0x640] sm:$0xff] %vm1679, %v1654
  %1881 = vst.msk [vmem:[#allocation2 + $0x648] sm:$0xff] %vm1679, %v1655
  %1882 = vst.msk [vmem:[#allocation2 + $0x650] sm:$0xff] %vm1679, %v1656
  %1883 = vst.msk [vmem:[#allocation2 + $0x658] sm:$0xff] %vm1679, %v1657
  %1884 = vst.msk [vmem:[#allocation2 + $0x660] sm:$0xff] %vm1679, %v1658
  %1885 = vst.msk [vmem:[#allocation2 + $0x668] sm:$0xff] %vm1679, %v1659
  %1886 = vst.msk [vmem:[#allocation2 + $0x670] sm:$0xff] %vm1679, %v1660
  %1887 = vst.msk [vmem:[#allocation2 + $0x678] sm:$0xff] %vm1679, %v1661
  %1888 = vst.msk [vmem:[#allocation2 + $0x680] sm:$0xff] %vm1679, %v1662
  %1889 = vst.msk [vmem:[#allocation2 + $0x688] sm:$0xff] %vm1679, %v1663
  %1890 = vst.msk [vmem:[#allocation2 + $0x690] sm:$0xff] %vm1679, %v1664
  %1891 = vst.msk [vmem:[#allocation2 + $0x698] sm:$0xff] %vm1679, %v1665
  %1892 = vst.msk [vmem:[#allocation2 + $0x6a0] sm:$0xff] %vm1679, %v1666
  %1893 = vst.msk [vmem:[#allocation2 + $0x6a8] sm:$0xff] %vm1679, %v1667
  %1894 = vst.msk [vmem:[#allocation2 + $0x6b0] sm:$0xff] %vm1679, %v1668
  %1895 = vst.msk [vmem:[#allocation2 + $0x6b8] sm:$0xff] %vm1679, %v1669
  %1896 = vst.msk [vmem:[#allocation2 + $0x6c0] sm:$0xff] %vm1679, %v1670
  %1897 = vst.msk [vmem:[#allocation2 + $0x6c8] sm:$0xff] %vm1679, %v1671
  %1898 = vst.msk [vmem:[#allocation2 + $0x6d0] sm:$0xff] %vm1679, %v1672
  %1899 = vst.msk [vmem:[#allocation2 + $0x6d8] sm:$0xff] %vm1679, %v1673
  %1900 = vst.msk [vmem:[#allocation2 + $0x6e0] sm:$0xff] %vm1679, %v1674
  %1901 = vst.msk [vmem:[#allocation2 + $0x6e8] sm:$0xff] %vm1679, %v1675
  %1902 = vst.msk [vmem:[#allocation2 + $0x6f0] sm:$0xff] %vm1679, %v1676
  %1903 = vst.msk [vmem:[#allocation2 + $0x6f8] sm:$0xff] %vm1679, %v1677
  %1904 = vst.msk [vmem:[#allocation2 + $0x700] sm:$0xff] %vm1679, %v1678
  %v1905 = vld [vmem:[%s5] sm:$0x1]
  %v1906 = vld [vmem:[%s5 + $0x1] sm:$0x1]
  %v1907 = vld [vmem:[%s5 + $0x2] sm:$0x1]
  %v1908 = vld [vmem:[#allocation2] sm:$0xff]
  %v1909 = vld [vmem:[#allocation2 + $0x8] sm:$0xff]
  %v1910 = vld [vmem:[#allocation2 + $0x10] sm:$0xff]
  %v1911 = vld [vmem:[#allocation2 + $0x18] sm:$0xff]
  %v1912 = vld [vmem:[#allocation2 + $0x20] sm:$0xff]
  %v1913 = vld [vmem:[#allocation2 + $0x28] sm:$0xff]
  %v1914 = vld [vmem:[#allocation2 + $0x30] sm:$0xff]
  %v1915 = vld [vmem:[#allocation2 + $0x38] sm:$0xff]
  %v1916 = vld [vmem:[#allocation2 + $0x40] sm:$0xff]
  %v1917 = vld [vmem:[%s2] sm:$0xff]
  %v1918 = vld [vmem:[%s2 + $0x8] sm:$0xff]
  %v1919 = vld [vmem:[%s2 + $0x10] sm:$0xff]
  %v1920 = vld [vmem:[%s2 + $0x18] sm:$0xff]
  %v1921 = vld [vmem:[#allocation2 + $0x48] sm:$0xff]
  %v1922 = vld [vmem:[#allocation2 + $0x50] sm:$0xff]
  %v1923 = vld [vmem:[#allocation2 + $0x58] sm:$0xff]
  %v1924 = vld [vmem:[#allocation2 + $0x60] sm:$0xff]
  %v1925 = vld [vmem:[#allocation2 + $0x68] sm:$0xff]
  %v1926 = vld [vmem:[#allocation2 + $0x70] sm:$0xff]
  %v1927 = vld [vmem:[#allocation2 + $0x78] sm:$0xff]
  %v1928 = vld [vmem:[#allocation2 + $0x80] sm:$0xff]
  %v1929 = vld [vmem:[#allocation2 + $0x88] sm:$0xff]
  %v1930 = vld [vmem:[%s2 + $0x20] sm:$0xff]
  %v1931 = vld [vmem:[%s2 + $0x28] sm:$0xff]
  %v1932 = vld [vmem:[%s2 + $0x30] sm:$0xff]
  %v1933 = vld [vmem:[%s2 + $0x38] sm:$0xff]
  %v1935 = vsel %vm1679, %v1921, 0
  %v1938 = vsel %vm1679, %v1922, 0
  %v1941 = vsel %vm1679, %v1923, 0
  %v1944 = vsel %vm1679, %v1924, 0
  %v1947 = vsel %vm1679, %v1925, 0
  %v1950 = vsel %vm1679, %v1926, 0
  %v1953 = vsel %vm1679, %v1927, 0
  %v1956 = vsel %vm1679, %v1928, 0
  %v1959 = vsel %vm1679, %v1929, 0
  %1961 = vmatprep.subr.mxu0 0.0
  %1962 = vmatpush1.msra.mxu0 0.0
  %1963 = vmatprep.subr.mxu0 0.0
  %1964 = vmatpush1.msra.mxu0 0.0
  %1965 = vmatprep.subr.mxu0 0.0
  %1966 = vmatpush1.msra.mxu0 0.0
  %1967 = vmatprep.subr.mxu0 0.0
  %1968 = vmatpush1.msra.mxu0 0.0
  %1969 = vmatprep.subr.mxu0 0.0
  %1970 = vmatpush1.msra.mxu0 0.0
  %1971 = vmatprep.subr.mxu0 0.0
  %1972 = vmatpush1.msra.mxu0 0.0
  %1973 = vmatprep.subr.mxu0 0.0
  %1974 = vmatpush1.msra.mxu0 0.0
  %1975 = vmatprep.subr.mxu0 0.0
  %1976 = vmatpush1.msra.mxu0 0.0
  %1977 = vmatprep.subr.mxu0 0.0
  %1978 = vmatpush1.msra.mxu0 0.0
  %1979 = vmatprep.subr.mxu0 0.0
  %1980 = vmatpush1.msra.mxu0 0.0
  %1981 = vmatprep.subr.mxu0 0.0
  %1982 = vmatpush1.msra.mxu0 0.0
  %1983 = vmatprep.subr.mxu0 0.0
  %1984 = vmatpush1.msra.mxu0 0.0
  %1985 = vmatprep.subr.mxu0 0.0
  %1986 = vmatpush1.msra.mxu0 %v1933
  %1987 = vmatprep.subr.mxu0 0.0
  %1988 = vmatpush1.msra.mxu0 %v1932
  %1989 = vmatprep.subr.mxu0 0.0
  %1990 = vmatpush1.msra.mxu0 %v1931
  %1991 = vmatprep.subr.mxu0 0.0
  %1992 = vmatpush1.msra.mxu0 %v1930
  %1993 = vmatprep.subr.mxu0 0.0
  %1994 = vmatpush2.msra.mxu0 0.0
  %1995 = vmatprep.subr.mxu0 0.0
  %1996 = vmatpush2.msra.mxu0 0.0
  %1997 = vmatprep.subr.mxu0 0.0
  %1998 = vmatpush2.msra.mxu0 0.0
  %1999 = vmatprep.subr.mxu0 0.0
  %2000 = vmatpush2.msra.mxu0 0.0
  %2001 = vmatprep.subr.mxu0 0.0
  %2002 = vmatpush2.msra.mxu0 0.0
  %2003 = vmatprep.subr.mxu0 0.0
  %2004 = vmatpush2.msra.mxu0 0.0
  %2005 = vmatprep.subr.mxu0 0.0
  %2006 = vmatpush2.msra.mxu0 0.0
  %2007 = vmatprep.subr.mxu0 0.0
  %2008 = vmatpush2.msra.mxu0 0.0
  %2009 = vmatprep.subr.mxu0 0.0
  %2010 = vmatpush2.msra.mxu0 0.0
  %2011 = vmatprep.subr.mxu0 0.0
  %2012 = vmatpush2.msra.mxu0 0.0
  %2013 = vmatprep.subr.mxu0 0.0
  %2014 = vmatpush2.msra.mxu0 0.0
  %2015 = vmatprep.subr.mxu0 0.0
  %2016 = vmatpush2.msra.mxu0 0.0
  %2017 = vmatprep.subr.mxu0 0.0
  %2018 = vmatpush2.msra.mxu0 0.0
  %2019 = vmatprep.subr.mxu0 0.0
  %2020 = vmatpush2.msra.mxu0 0.0
  %2021 = vmatprep.subr.mxu0 0.0
  %2022 = vmatpush2.msra.mxu0 0.0
  %2023 = vmatprep.subr.mxu0 0.0
  %2024 = vmatpush2.msra.mxu0 0.0
  %2025 = vmatprep.mubr.f32.mxu0 0.0
  %2026 = vmatmul.mubr.f32.gmra.mxu0 %v1935
  %v2027 = vpop.f32.mrf.mxu0
  %v2028 = vadd.f32 0.0, %v2027
  %v2029 = vpop.f32.mrf.mxu0
  %2030 = vmatprep.mubr.f32.mxu0 0.0
  %2031 = vmatmul.mubr.f32.gmra.mxu0 %v1938
  %v2032 = vpop.f32.mrf.mxu0
  %v2033 = vadd.f32 0.0, %v2032
  %v2034 = vpop.f32.mrf.mxu0
  %2035 = vmatprep.mubr.f32.mxu0 0.0
  %2036 = vmatmul.mubr.f32.gmra.mxu0 %v1941
  %v2037 = vpop.f32.mrf.mxu0
  %v2038 = vadd.f32 0.0, %v2037
  %v2039 = vpop.f32.mrf.mxu0
  %2040 = vmatprep.mubr.f32.mxu0 0.0
  %2041 = vmatmul.mubr.f32.gmra.mxu0 %v1944
  %v2042 = vpop.f32.mrf.mxu0
  %v2043 = vadd.f32 0.0, %v2042
  %v2044 = vpop.f32.mrf.mxu0
  %2045 = vmatprep.mubr.f32.mxu0 0.0
  %2046 = vmatmul.mubr.f32.gmra.mxu0 %v1947
  %v2047 = vpop.f32.mrf.mxu0
  %v2048 = vadd.f32 0.0, %v2047
  %v2049 = vpop.f32.mrf.mxu0
  %2050 = vmatprep.mubr.f32.mxu0 0.0
  %2051 = vmatmul.mubr.f32.gmra.mxu0 %v1950
  %v2052 = vpop.f32.mrf.mxu0
  %v2053 = vadd.f32 0.0, %v2052
  %v2054 = vpop.f32.mrf.mxu0
  %2055 = vmatprep.mubr.f32.mxu0 0.0
  %2056 = vmatmul.mubr.f32.gmra.mxu0 %v1953
  %v2057 = vpop.f32.mrf.mxu0
  %v2058 = vadd.f32 0.0, %v2057
  %v2059 = vpop.f32.mrf.mxu0
  %2060 = vmatprep.mubr.f32.mxu0 0.0
  %2061 = vmatmul.mubr.f32.gmra.mxu0 %v1956
  %v2062 = vpop.f32.mrf.mxu0
  %v2063 = vadd.f32 0.0, %v2062
  %v2064 = vpop.f32.mrf.mxu0
  %2065 = vmatprep.mubr.f32.mxu0 0.0
  %2066 = vmatmul.mubr.f32.gmra.mxu0 %v1959
  %v2067 = vpop.f32.mrf.mxu0
  %v2068 = vadd.f32 0.0, %v2067
  %v2069 = vpop.f32.mrf.mxu0
  %2070 = vdwg.mxu0
  %v2072 = vsel %vm1679, %v1908, 0
  %v2075 = vsel %vm1679, %v1909, 0
  %v2078 = vsel %vm1679, %v1910, 0
  %v2081 = vsel %vm1679, %v1911, 0
  %v2084 = vsel %vm1679, %v1912, 0
  %v2087 = vsel %vm1679, %v1913, 0
  %v2090 = vsel %vm1679, %v1914, 0
  %v2093 = vsel %vm1679, %v1915, 0
  %v2096 = vsel %vm1679, %v1916, 0
  %2098 = vmatprep.subr.mxu0 0.0
  %2099 = vmatpush1.msra.mxu0 0.0
  %2100 = vmatprep.subr.mxu0 0.0
  %2101 = vmatpush1.msra.mxu0 0.0
  %2102 = vmatprep.subr.mxu0 0.0
  %2103 = vmatpush1.msra.mxu0 0.0
  %2104 = vmatprep.subr.mxu0 0.0
  %2105 = vmatpush1.msra.mxu0 0.0
  %2106 = vmatprep.subr.mxu0 0.0
  %2107 = vmatpush1.msra.mxu0 0.0
  %2108 = vmatprep.subr.mxu0 0.0
  %2109 = vmatpush1.msra.mxu0 0.0
  %2110 = vmatprep.subr.mxu0 0.0
  %2111 = vmatpush1.msra.mxu0 0.0
  %2112 = vmatprep.subr.mxu0 0.0
  %2113 = vmatpush1.msra.mxu0 0.0
  %2114 = vmatprep.subr.mxu0 0.0
  %2115 = vmatpush1.msra.mxu0 0.0
  %2116 = vmatprep.subr.mxu0 0.0
  %2117 = vmatpush1.msra.mxu0 0.0
  %2118 = vmatprep.subr.mxu0 0.0
  %2119 = vmatpush1.msra.mxu0 0.0
  %2120 = vmatprep.subr.mxu0 0.0
  %2121 = vmatpush1.msra.mxu0 0.0
  %2122 = vmatprep.subr.mxu0 0.0
  %2123 = vmatpush1.msra.mxu0 %v1920
  %2124 = vmatprep.subr.mxu0 0.0
  %2125 = vmatpush1.msra.mxu0 %v1919
  %2126 = vmatprep.subr.mxu0 0.0
  %2127 = vmatpush1.msra.mxu0 %v1918
  %2128 = vmatprep.subr.mxu0 0.0
  %2129 = vmatpush1.msra.mxu0 %v1917
  %2130 = vmatprep.subr.mxu0 0.0
  %2131 = vmatpush2.msra.mxu0 0.0
  %2132 = vmatprep.subr.mxu0 0.0
  %2133 = vmatpush2.msra.mxu0 0.0
  %2134 = vmatprep.subr.mxu0 0.0
  %2135 = vmatpush2.msra.mxu0 0.0
  %2136 = vmatprep.subr.mxu0 0.0
  %2137 = vmatpush2.msra.mxu0 0.0
  %2138 = vmatprep.subr.mxu0 0.0
  %2139 = vmatpush2.msra.mxu0 0.0
  %2140 = vmatprep.subr.mxu0 0.0
  %2141 = vmatpush2.msra.mxu0 0.0
  %2142 = vmatprep.subr.mxu0 0.0
  %2143 = vmatpush2.msra.mxu0 0.0
  %2144 = vmatprep.subr.mxu0 0.0
  %2145 = vmatpush2.msra.mxu0 0.0
  %2146 = vmatprep.subr.mxu0 0.0
  %2147 = vmatpush2.msra.mxu0 0.0
  %2148 = vmatprep.subr.mxu0 0.0
  %2149 = vmatpush2.msra.mxu0 0.0
  %2150 = vmatprep.subr.mxu0 0.0
  %2151 = vmatpush2.msra.mxu0 0.0
  %2152 = vmatprep.subr.mxu0 0.0
  %2153 = vmatpush2.msra.mxu0 0.0
  %2154 = vmatprep.subr.mxu0 0.0
  %2155 = vmatpush2.msra.mxu0 0.0
  %2156 = vmatprep.subr.mxu0 0.0
  %2157 = vmatpush2.msra.mxu0 0.0
  %2158 = vmatprep.subr.mxu0 0.0
  %2159 = vmatpush2.msra.mxu0 0.0
  %2160 = vmatprep.subr.mxu0 0.0
  %2161 = vmatpush2.msra.mxu0 0.0
  %2162 = vmatprep.mubr.f32.mxu0 0.0
  %2163 = vmatmul.mubr.f32.gmra.mxu0 %v2072
  %v2164 = vpop.f32.mrf.mxu0
  %v2165 = vadd.f32 %v2028, %v2164
  %v2166 = vpop.f32.mrf.mxu0
  %2167 = vmatprep.mubr.f32.mxu0 0.0
  %2168 = vmatmul.mubr.f32.gmra.mxu0 %v2075
  %v2169 = vpop.f32.mrf.mxu0
  %v2170 = vadd.f32 %v2033, %v2169
  %v2171 = vpop.f32.mrf.mxu0
  %2172 = vmatprep.mubr.f32.mxu0 0.0
  %2173 = vmatmul.mubr.f32.gmra.mxu0 %v2078
  %v2174 = vpop.f32.mrf.mxu0
  %v2175 = vadd.f32 %v2038, %v2174
  %v2176 = vpop.f32.mrf.mxu0
  %2177 = vmatprep.mubr.f32.mxu0 0.0
  %2178 = vmatmul.mubr.f32.gmra.mxu0 %v2081
  %v2179 = vpop.f32.mrf.mxu0
  %v2180 = vadd.f32 %v2043, %v2179
  %v2181 = vpop.f32.mrf.mxu0
  %2182 = vmatprep.mubr.f32.mxu0 0.0
  %2183 = vmatmul.mubr.f32.gmra.mxu0 %v2084
  %v2184 = vpop.f32.mrf.mxu0
  %v2185 = vadd.f32 %v2048, %v2184
  %v2186 = vpop.f32.mrf.mxu0
  %2187 = vmatprep.mubr.f32.mxu0 0.0
  %2188 = vmatmul.mubr.f32.gmra.mxu0 %v2087
  %v2189 = vpop.f32.mrf.mxu0
  %v2190 = vadd.f32 %v2053, %v2189
  %v2191 = vpop.f32.mrf.mxu0
  %2192 = vmatprep.mubr.f32.mxu0 0.0
  %2193 = vmatmul.mubr.f32.gmra.mxu0 %v2090
  %v2194 = vpop.f32.mrf.mxu0
  %v2195 = vadd.f32 %v2058, %v2194
  %v2196 = vpop.f32.mrf.mxu0
  %2197 = vmatprep.mubr.f32.mxu0 0.0
  %2198 = vmatmul.mubr.f32.gmra.mxu0 %v2093
  %v2199 = vpop.f32.mrf.mxu0
  %v2200 = vadd.f32 %v2063, %v2199
  %v2201 = vpop.f32.mrf.mxu0
  %2202 = vmatprep.mubr.f32.mxu0 0.0
  %2203 = vmatmul.mubr.f32.gmra.mxu0 %v2096
  %v2204 = vpop.f32.mrf.mxu0
  %v2205 = vadd.f32 %v2068, %v2204
  %v2206 = vpop.f32.mrf.mxu0
  %2207 = vdwg.mxu0
  %v2208 = vld [vmem:[#allocation2 + $0x90] sm:$0xff]
  %v2209 = vld [vmem:[#allocation2 + $0x98] sm:$0xff]
  %v2210 = vld [vmem:[#allocation2 + $0xa0] sm:$0xff]
  %v2211 = vld [vmem:[#allocation2 + $0xa8] sm:$0xff]
  %v2212 = vld [vmem:[#allocation2 + $0xb0] sm:$0xff]
  %v2213 = vld [vmem:[#allocation2 + $0xb8] sm:$0xff]
  %v2214 = vld [vmem:[#allocation2 + $0xc0] sm:$0xff]
  %v2215 = vld [vmem:[#allocation2 + $0xc8] sm:$0xff]
  %v2216 = vld [vmem:[#allocation2 + $0xd0] sm:$0xff]
  %v2217 = vld [vmem:[%s2 + $0x40] sm:$0xff]
  %v2218 = vld [vmem:[%s2 + $0x48] sm:$0xff]
  %v2219 = vld [vmem:[%s2 + $0x50] sm:$0xff]
  %v2220 = vld [vmem:[%s2 + $0x58] sm:$0xff]
  %v2222 = vsel %vm1679, %v2208, 0
  %v2225 = vsel %vm1679, %v2209, 0
  %v2228 = vsel %vm1679, %v2210, 0
  %v2231 = vsel %vm1679, %v2211, 0
  %v2234 = vsel %vm1679, %v2212, 0
  %v2237 = vsel %vm1679, %v2213, 0
  %v2240 = vsel %vm1679, %v2214, 0
  %v2243 = vsel %vm1679, %v2215, 0
  %v2246 = vsel %vm1679, %v2216, 0
  %2248 = vmatprep.subr.mxu0 0.0
  %2249 = vmatpush1.msra.mxu0 0.0
  %2250 = vmatprep.subr.mxu0 0.0
  %2251 = vmatpush1.msra.mxu0 0.0
  %2252 = vmatprep.subr.mxu0 0.0
  %2253 = vmatpush1.msra.mxu0 0.0
  %2254 = vmatprep.subr.mxu0 0.0
  %2255 = vmatpush1.msra.mxu0 0.0
  %2256 = vmatprep.subr.mxu0 0.0
  %2257 = vmatpush1.msra.mxu0 0.0
  %2258 = vmatprep.subr.mxu0 0.0
  %2259 = vmatpush1.msra.mxu0 0.0
  %2260 = vmatprep.subr.mxu0 0.0
  %2261 = vmatpush1.msra.mxu0 0.0
  %2262 = vmatprep.subr.mxu0 0.0
  %2263 = vmatpush1.msra.mxu0 0.0
  %2264 = vmatprep.subr.mxu0 0.0
  %2265 = vmatpush1.msra.mxu0 0.0
  %2266 = vmatprep.subr.mxu0 0.0
  %2267 = vmatpush1.msra.mxu0 0.0
  %2268 = vmatprep.subr.mxu0 0.0
  %2269 = vmatpush1.msra.mxu0 0.0
  %2270 = vmatprep.subr.mxu0 0.0
  %2271 = vmatpush1.msra.mxu0 0.0
  %2272 = vmatprep.subr.mxu0 0.0
  %2273 = vmatpush1.msra.mxu0 %v2220
  %2274 = vmatprep.subr.mxu0 0.0
  %2275 = vmatpush1.msra.mxu0 %v2219
  %2276 = vmatprep.subr.mxu0 0.0
  %2277 = vmatpush1.msra.mxu0 %v2218
  %2278 = vmatprep.subr.mxu0 0.0
  %2279 = vmatpush1.msra.mxu0 %v2217
  %2280 = vmatprep.subr.mxu0 0.0
  %2281 = vmatpush2.msra.mxu0 0.0
  %2282 = vmatprep.subr.mxu0 0.0
  %2283 = vmatpush2.msra.mxu0 0.0
  %2284 = vmatprep.subr.mxu0 0.0
  %2285 = vmatpush2.msra.mxu0 0.0
  %2286 = vmatprep.subr.mxu0 0.0
  %2287 = vmatpush2.msra.mxu0 0.0
  %2288 = vmatprep.subr.mxu0 0.0
  %2289 = vmatpush2.msra.mxu0 0.0
  %2290 = vmatprep.subr.mxu0 0.0
  %2291 = vmatpush2.msra.mxu0 0.0
  %2292 = vmatprep.subr.mxu0 0.0
  %2293 = vmatpush2.msra.mxu0 0.0
  %2294 = vmatprep.subr.mxu0 0.0
  %2295 = vmatpush2.msra.mxu0 0.0
  %2296 = vmatprep.subr.mxu0 0.0
  %2297 = vmatpush2.msra.mxu0 0.0
  %2298 = vmatprep.subr.mxu0 0.0
  %2299 = vmatpush2.msra.mxu0 0.0
  %2300 = vmatprep.subr.mxu0 0.0
  %2301 = vmatpush2.msra.mxu0 0.0
  %2302 = vmatprep.subr.mxu0 0.0
  %2303 = vmatpush2.msra.mxu0 0.0
  %2304 = vmatprep.subr.mxu0 0.0
  %2305 = vmatpush2.msra.mxu0 0.0
  %2306 = vmatprep.subr.mxu0 0.0
  %2307 = vmatpush2.msra.mxu0 0.0
  %2308 = vmatprep.subr.mxu0 0.0
  %2309 = vmatpush2.msra.mxu0 0.0
  %2310 = vmatprep.subr.mxu0 0.0
  %2311 = vmatpush2.msra.mxu0 0.0
  %2312 = vmatprep.mubr.f32.mxu0 0.0
  %2313 = vmatmul.mubr.f32.gmra.mxu0 %v2222
  %v2314 = vpop.f32.mrf.mxu0
  %v2315 = vadd.f32 0.0, %v2314
  %v2316 = vpop.f32.mrf.mxu0
  %2317 = vmatprep.mubr.f32.mxu0 0.0
  %2318 = vmatmul.mubr.f32.gmra.mxu0 %v2225
  %v2319 = vpop.f32.mrf.mxu0
  %v2320 = vadd.f32 0.0, %v2319
  %v2321 = vpop.f32.mrf.mxu0
  %2322 = vmatprep.mubr.f32.mxu0 0.0
  %2323 = vmatmul.mubr.f32.gmra.mxu0 %v2228
  %v2324 = vpop.f32.mrf.mxu0
  %v2325 = vadd.f32 0.0, %v2324
  %v2326 = vpop.f32.mrf.mxu0
  %2327 = vmatprep.mubr.f32.mxu0 0.0
  %2328 = vmatmul.mubr.f32.gmra.mxu0 %v2231
  %v2329 = vpop.f32.mrf.mxu0
  %v2330 = vadd.f32 0.0, %v2329
  %v2331 = vpop.f32.mrf.mxu0
  %2332 = vmatprep.mubr.f32.mxu0 0.0
  %2333 = vmatmul.mubr.f32.gmra.mxu0 %v2234
  %v2334 = vpop.f32.mrf.mxu0
  %v2335 = vadd.f32 0.0, %v2334
  %v2336 = vpop.f32.mrf.mxu0
  %2337 = vmatprep.mubr.f32.mxu0 0.0
  %2338 = vmatmul.mubr.f32.gmra.mxu0 %v2237
  %v2339 = vpop.f32.mrf.mxu0
  %v2340 = vadd.f32 0.0, %v2339
  %v2341 = vpop.f32.mrf.mxu0
  %2342 = vmatprep.mubr.f32.mxu0 0.0
  %2343 = vmatmul.mubr.f32.gmra.mxu0 %v2240
  %v2344 = vpop.f32.mrf.mxu0
  %v2345 = vadd.f32 0.0, %v2344
  %v2346 = vpop.f32.mrf.mxu0
  %2347 = vmatprep.mubr.f32.mxu0 0.0
  %2348 = vmatmul.mubr.f32.gmra.mxu0 %v2243
  %v2349 = vpop.f32.mrf.mxu0
  %v2350 = vadd.f32 0.0, %v2349
  %v2351 = vpop.f32.mrf.mxu0
  %2352 = vmatprep.mubr.f32.mxu0 0.0
  %2353 = vmatmul.mubr.f32.gmra.mxu0 %v2246
  %v2354 = vpop.f32.mrf.mxu0
  %v2355 = vadd.f32 0.0, %v2354
  %v2356 = vpop.f32.mrf.mxu0
  %2357 = vdwg.mxu0
  %v2358 = vadd.f32 %v2165, %v2315
  %v2359 = vadd.f32 %v2170, %v2320
  %v2360 = vadd.f32 %v2175, %v2325
  %v2361 = vadd.f32 %v2180, %v2330
  %v2362 = vadd.f32 %v2185, %v2335
  %v2363 = vadd.f32 %v2190, %v2340
  %v2364 = vadd.f32 %v2195, %v2345
  %v2365 = vadd.f32 %v2200, %v2350
  %v2366 = vadd.f32 %v2205, %v2355
  %v2367 = vld [vmem:[#allocation2 + $0xd8] sm:$0xff]
  %v2368 = vld [vmem:[#allocation2 + $0xe0] sm:$0xff]
  %v2369 = vld [vmem:[#allocation2 + $0xe8] sm:$0xff]
  %v2370 = vld [vmem:[#allocation2 + $0xf0] sm:$0xff]
  %v2371 = vld [vmem:[#allocation2 + $0xf8] sm:$0xff]
  %v2372 = vld [vmem:[#allocation2 + $0x100] sm:$0xff]
  %v2373 = vld [vmem:[#allocation2 + $0x108] sm:$0xff]
  %v2374 = vld [vmem:[#allocation2 + $0x110] sm:$0xff]
  %v2375 = vld [vmem:[#allocation2 + $0x118] sm:$0xff]
  %v2376 = vld [vmem:[%s2 + $0x60] sm:$0xff]
  %v2377 = vld [vmem:[%s2 + $0x68] sm:$0xff]
  %v2378 = vld [vmem:[%s2 + $0x70] sm:$0xff]
  %v2379 = vld [vmem:[%s2 + $0x78] sm:$0xff]
  %v2381 = vsel %vm1679, %v2367, 0
  %v2384 = vsel %vm1679, %v2368, 0
  %v2387 = vsel %vm1679, %v2369, 0
  %v2390 = vsel %vm1679, %v2370, 0
  %v2393 = vsel %vm1679, %v2371, 0
  %v2396 = vsel %vm1679, %v2372, 0
  %v2399 = vsel %vm1679, %v2373, 0
  %v2402 = vsel %vm1679, %v2374, 0
  %v2405 = vsel %vm1679, %v2375, 0
  %2407 = vmatprep.subr.mxu0 0.0
  %2408 = vmatpush1.msra.mxu0 0.0
  %2409 = vmatprep.subr.mxu0 0.0
  %2410 = vmatpush1.msra.mxu0 0.0
  %2411 = vmatprep.subr.mxu0 0.0
  %2412 = vmatpush1.msra.mxu0 0.0
  %2413 = vmatprep.subr.mxu0 0.0
  %2414 = vmatpush1.msra.mxu0 0.0
  %2415 = vmatprep.subr.mxu0 0.0
  %2416 = vmatpush1.msra.mxu0 0.0
  %2417 = vmatprep.subr.mxu0 0.0
  %2418 = vmatpush1.msra.mxu0 0.0
  %2419 = vmatprep.subr.mxu0 0.0
  %2420 = vmatpush1.msra.mxu0 0.0
  %2421 = vmatprep.subr.mxu0 0.0
  %2422 = vmatpush1.msra.mxu0 0.0
  %2423 = vmatprep.subr.mxu0 0.0
  %2424 = vmatpush1.msra.mxu0 0.0
  %2425 = vmatprep.subr.mxu0 0.0
  %2426 = vmatpush1.msra.mxu0 0.0
  %2427 = vmatprep.subr.mxu0 0.0
  %2428 = vmatpush1.msra.mxu0 0.0
  %2429 = vmatprep.subr.mxu0 0.0
  %2430 = vmatpush1.msra.mxu0 0.0
  %2431 = vmatprep.subr.mxu0 0.0
  %2432 = vmatpush1.msra.mxu0 %v2379
  %2433 = vmatprep.subr.mxu0 0.0
  %2434 = vmatpush1.msra.mxu0 %v2378
  %2435 = vmatprep.subr.mxu0 0.0
  %2436 = vmatpush1.msra.mxu0 %v2377
  %2437 = vmatprep.subr.mxu0 0.0
  %2438 = vmatpush1.msra.mxu0 %v2376
  %2439 = vmatprep.subr.mxu0 0.0
  %2440 = vmatpush2.msra.mxu0 0.0
  %2441 = vmatprep.subr.mxu0 0.0
  %2442 = vmatpush2.msra.mxu0 0.0
  %2443 = vmatprep.subr.mxu0 0.0
  %2444 = vmatpush2.msra.mxu0 0.0
  %2445 = vmatprep.subr.mxu0 0.0
  %2446 = vmatpush2.msra.mxu0 0.0
  %2447 = vmatprep.subr.mxu0 0.0
  %2448 = vmatpush2.msra.mxu0 0.0
  %2449 = vmatprep.subr.mxu0 0.0
  %2450 = vmatpush2.msra.mxu0 0.0
  %2451 = vmatprep.subr.mxu0 0.0
  %2452 = vmatpush2.msra.mxu0 0.0
  %2453 = vmatprep.subr.mxu0 0.0
  %2454 = vmatpush2.msra.mxu0 0.0
  %2455 = vmatprep.subr.mxu0 0.0
  %2456 = vmatpush2.msra.mxu0 0.0
  %2457 = vmatprep.subr.mxu0 0.0
  %2458 = vmatpush2.msra.mxu0 0.0
  %2459 = vmatprep.subr.mxu0 0.0
  %2460 = vmatpush2.msra.mxu0 0.0
  %2461 = vmatprep.subr.mxu0 0.0
  %2462 = vmatpush2.msra.mxu0 0.0
  %2463 = vmatprep.subr.mxu0 0.0
  %2464 = vmatpush2.msra.mxu0 0.0
  %2465 = vmatprep.subr.mxu0 0.0
  %2466 = vmatpush2.msra.mxu0 0.0
  %2467 = vmatprep.subr.mxu0 0.0
  %2468 = vmatpush2.msra.mxu0 0.0
  %2469 = vmatprep.subr.mxu0 0.0
  %2470 = vmatpush2.msra.mxu0 0.0
  %2471 = vmatprep.mubr.f32.mxu0 0.0
  %2472 = vmatmul.mubr.f32.gmra.mxu0 %v2381
  %v2473 = vpop.f32.mrf.mxu0
  %v2474 = vadd.f32 0.0, %v2473
  %v2475 = vpop.f32.mrf.mxu0
  %2476 = vmatprep.mubr.f32.mxu0 0.0
  %2477 = vmatmul.mubr.f32.gmra.mxu0 %v2384
  %v2478 = vpop.f32.mrf.mxu0
  %v2479 = vadd.f32 0.0, %v2478
  %v2480 = vpop.f32.mrf.mxu0
  %2481 = vmatprep.mubr.f32.mxu0 0.0
  %2482 = vmatmul.mubr.f32.gmra.mxu0 %v2387
  %v2483 = vpop.f32.mrf.mxu0
  %v2484 = vadd.f32 0.0, %v2483
  %v2485 = vpop.f32.mrf.mxu0
  %2486 = vmatprep.mubr.f32.mxu0 0.0
  %2487 = vmatmul.mubr.f32.gmra.mxu0 %v2390
  %v2488 = vpop.f32.mrf.mxu0
  %v2489 = vadd.f32 0.0, %v2488
  %v2490 = vpop.f32.mrf.mxu0
  %2491 = vmatprep.mubr.f32.mxu0 0.0
  %2492 = vmatmul.mubr.f32.gmra.mxu0 %v2393
  %v2493 = vpop.f32.mrf.mxu0
  %v2494 = vadd.f32 0.0, %v2493
  %v2495 = vpop.f32.mrf.mxu0
  %2496 = vmatprep.mubr.f32.mxu0 0.0
  %2497 = vmatmul.mubr.f32.gmra.mxu0 %v2396
  %v2498 = vpop.f32.mrf.mxu0
  %v2499 = vadd.f32 0.0, %v2498
  %v2500 = vpop.f32.mrf.mxu0
  %2501 = vmatprep.mubr.f32.mxu0 0.0
  %2502 = vmatmul.mubr.f32.gmra.mxu0 %v2399
  %v2503 = vpop.f32.mrf.mxu0
  %v2504 = vadd.f32 0.0, %v2503
  %v2505 = vpop.f32.mrf.mxu0
  %2506 = vmatprep.mubr.f32.mxu0 0.0
  %2507 = vmatmul.mubr.f32.gmra.mxu0 %v2402
  %v2508 = vpop.f32.mrf.mxu0
  %v2509 = vadd.f32 0.0, %v2508
  %v2510 = vpop.f32.mrf.mxu0
  %2511 = vmatprep.mubr.f32.mxu0 0.0
  %2512 = vmatmul.mubr.f32.gmra.mxu0 %v2405
  %v2513 = vpop.f32.mrf.mxu0
  %v2514 = vadd.f32 0.0, %v2513
  %v2515 = vpop.f32.mrf.mxu0
  %2516 = vdwg.mxu0
  %v2517 = vadd.f32 %v2358, %v2474
  %v2518 = vadd.f32 %v2359, %v2479
  %v2519 = vadd.f32 %v2360, %v2484
  %v2520 = vadd.f32 %v2361, %v2489
  %v2521 = vadd.f32 %v2362, %v2494
  %v2522 = vadd.f32 %v2363, %v2499
  %v2523 = vadd.f32 %v2364, %v2504
  %v2524 = vadd.f32 %v2365, %v2509
  %v2525 = vadd.f32 %v2366, %v2514
  %v2526 = vld [vmem:[#allocation2 + $0x120] sm:$0xff]
  %v2527 = vld [vmem:[#allocation2 + $0x128] sm:$0xff]
  %v2528 = vld [vmem:[#allocation2 + $0x130] sm:$0xff]
  %v2529 = vld [vmem:[#allocation2 + $0x138] sm:$0xff]
  %v2530 = vld [vmem:[#allocation2 + $0x140] sm:$0xff]
  %v2531 = vld [vmem:[#allocation2 + $0x148] sm:$0xff]
  %v2532 = vld [vmem:[#allocation2 + $0x150] sm:$0xff]
  %v2533 = vld [vmem:[#allocation2 + $0x158] sm:$0xff]
  %v2534 = vld [vmem:[#allocation2 + $0x160] sm:$0xff]
  %v2535 = vld [vmem:[%s2 + $0x80] sm:$0xff]
  %v2536 = vld [vmem:[%s2 + $0x88] sm:$0xff]
  %v2537 = vld [vmem:[%s2 + $0x90] sm:$0xff]
  %v2538 = vld [vmem:[%s2 + $0x98] sm:$0xff]
  %v2540 = vsel %vm1679, %v2526, 0
  %v2543 = vsel %vm1679, %v2527, 0
  %v2546 = vsel %vm1679, %v2528, 0
  %v2549 = vsel %vm1679, %v2529, 0
  %v2552 = vsel %vm1679, %v2530, 0
  %v2555 = vsel %vm1679, %v2531, 0
  %v2558 = vsel %vm1679, %v2532, 0
  %v2561 = vsel %vm1679, %v2533, 0
  %v2564 = vsel %vm1679, %v2534, 0
  %2566 = vmatprep.subr.mxu0 0.0
  %2567 = vmatpush1.msra.mxu0 0.0
  %2568 = vmatprep.subr.mxu0 0.0
  %2569 = vmatpush1.msra.mxu0 0.0
  %2570 = vmatprep.subr.mxu0 0.0
  %2571 = vmatpush1.msra.mxu0 0.0
  %2572 = vmatprep.subr.mxu0 0.0
  %2573 = vmatpush1.msra.mxu0 0.0
  %2574 = vmatprep.subr.mxu0 0.0
  %2575 = vmatpush1.msra.mxu0 0.0
  %2576 = vmatprep.subr.mxu0 0.0
  %2577 = vmatpush1.msra.mxu0 0.0
  %2578 = vmatprep.subr.mxu0 0.0
  %2579 = vmatpush1.msra.mxu0 0.0
  %2580 = vmatprep.subr.mxu0 0.0
  %2581 = vmatpush1.msra.mxu0 0.0
  %2582 = vmatprep.subr.mxu0 0.0
  %2583 = vmatpush1.msra.mxu0 0.0
  %2584 = vmatprep.subr.mxu0 0.0
  %2585 = vmatpush1.msra.mxu0 0.0
  %2586 = vmatprep.subr.mxu0 0.0
  %2587 = vmatpush1.msra.mxu0 0.0
  %2588 = vmatprep.subr.mxu0 0.0
  %2589 = vmatpush1.msra.mxu0 0.0
  %2590 = vmatprep.subr.mxu0 0.0
  %2591 = vmatpush1.msra.mxu0 %v2538
  %2592 = vmatprep.subr.mxu0 0.0
  %2593 = vmatpush1.msra.mxu0 %v2537
  %2594 = vmatprep.subr.mxu0 0.0
  %2595 = vmatpush1.msra.mxu0 %v2536
  %2596 = vmatprep.subr.mxu0 0.0
  %2597 = vmatpush1.msra.mxu0 %v2535
  %2598 = vmatprep.subr.mxu0 0.0
  %2599 = vmatpush2.msra.mxu0 0.0
  %2600 = vmatprep.subr.mxu0 0.0
  %2601 = vmatpush2.msra.mxu0 0.0
  %2602 = vmatprep.subr.mxu0 0.0
  %2603 = vmatpush2.msra.mxu0 0.0
  %2604 = vmatprep.subr.mxu0 0.0
  %2605 = vmatpush2.msra.mxu0 0.0
  %2606 = vmatprep.subr.mxu0 0.0
  %2607 = vmatpush2.msra.mxu0 0.0
  %2608 = vmatprep.subr.mxu0 0.0
  %2609 = vmatpush2.msra.mxu0 0.0
  %2610 = vmatprep.subr.mxu0 0.0
  %2611 = vmatpush2.msra.mxu0 0.0
  %2612 = vmatprep.subr.mxu0 0.0
  %2613 = vmatpush2.msra.mxu0 0.0
  %2614 = vmatprep.subr.mxu0 0.0
  %2615 = vmatpush2.msra.mxu0 0.0
  %2616 = vmatprep.subr.mxu0 0.0
  %2617 = vmatpush2.msra.mxu0 0.0
  %2618 = vmatprep.subr.mxu0 0.0
  %2619 = vmatpush2.msra.mxu0 0.0
  %2620 = vmatprep.subr.mxu0 0.0
  %2621 = vmatpush2.msra.mxu0 0.0
  %2622 = vmatprep.subr.mxu0 0.0
  %2623 = vmatpush2.msra.mxu0 0.0
  %2624 = vmatprep.subr.mxu0 0.0
  %2625 = vmatpush2.msra.mxu0 0.0
  %2626 = vmatprep.subr.mxu0 0.0
  %2627 = vmatpush2.msra.mxu0 0.0
  %2628 = vmatprep.subr.mxu0 0.0
  %2629 = vmatpush2.msra.mxu0 0.0
  %2630 = vmatprep.mubr.f32.mxu0 0.0
  %2631 = vmatmul.mubr.f32.gmra.mxu0 %v2540
  %v2632 = vpop.f32.mrf.mxu0
  %v2633 = vadd.f32 0.0, %v2632
  %v2634 = vpop.f32.mrf.mxu0
  %2635 = vmatprep.mubr.f32.mxu0 0.0
  %2636 = vmatmul.mubr.f32.gmra.mxu0 %v2543
  %v2637 = vpop.f32.mrf.mxu0
  %v2638 = vadd.f32 0.0, %v2637
  %v2639 = vpop.f32.mrf.mxu0
  %2640 = vmatprep.mubr.f32.mxu0 0.0
  %2641 = vmatmul.mubr.f32.gmra.mxu0 %v2546
  %v2642 = vpop.f32.mrf.mxu0
  %v2643 = vadd.f32 0.0, %v2642
  %v2644 = vpop.f32.mrf.mxu0
  %2645 = vmatprep.mubr.f32.mxu0 0.0
  %2646 = vmatmul.mubr.f32.gmra.mxu0 %v2549
  %v2647 = vpop.f32.mrf.mxu0
  %v2648 = vadd.f32 0.0, %v2647
  %v2649 = vpop.f32.mrf.mxu0
  %2650 = vmatprep.mubr.f32.mxu0 0.0
  %2651 = vmatmul.mubr.f32.gmra.mxu0 %v2552
  %v2652 = vpop.f32.mrf.mxu0
  %v2653 = vadd.f32 0.0, %v2652
  %v2654 = vpop.f32.mrf.mxu0
  %2655 = vmatprep.mubr.f32.mxu0 0.0
  %2656 = vmatmul.mubr.f32.gmra.mxu0 %v2555
  %v2657 = vpop.f32.mrf.mxu0
  %v2658 = vadd.f32 0.0, %v2657
  %v2659 = vpop.f32.mrf.mxu0
  %2660 = vmatprep.mubr.f32.mxu0 0.0
  %2661 = vmatmul.mubr.f32.gmra.mxu0 %v2558
  %v2662 = vpop.f32.mrf.mxu0
  %v2663 = vadd.f32 0.0, %v2662
  %v2664 = vpop.f32.mrf.mxu0
  %2665 = vmatprep.mubr.f32.mxu0 0.0
  %2666 = vmatmul.mubr.f32.gmra.mxu0 %v2561
  %v2667 = vpop.f32.mrf.mxu0
  %v2668 = vadd.f32 0.0, %v2667
  %v2669 = vpop.f32.mrf.mxu0
  %2670 = vmatprep.mubr.f32.mxu0 0.0
  %2671 = vmatmul.mubr.f32.gmra.mxu0 %v2564
  %v2672 = vpop.f32.mrf.mxu0
  %v2673 = vadd.f32 0.0, %v2672
  %v2674 = vpop.f32.mrf.mxu0
  %2675 = vdwg.mxu0
  %v2676 = vadd.f32 %v2517, %v2633
  %v2677 = vadd.f32 %v2518, %v2638
  %v2678 = vadd.f32 %v2519, %v2643
  %v2679 = vadd.f32 %v2520, %v2648
  %v2680 = vadd.f32 %v2521, %v2653
  %v2681 = vadd.f32 %v2522, %v2658
  %v2682 = vadd.f32 %v2523, %v2663
  %v2683 = vadd.f32 %v2524, %v2668
  %v2684 = vadd.f32 %v2525, %v2673
  %v2685 = vld [vmem:[#allocation2 + $0x168] sm:$0xff]
  %v2686 = vld [vmem:[#allocation2 + $0x170] sm:$0xff]
  %v2687 = vld [vmem:[#allocation2 + $0x178] sm:$0xff]
  %v2688 = vld [vmem:[#allocation2 + $0x180] sm:$0xff]
  %v2689 = vld [vmem:[#allocation2 + $0x188] sm:$0xff]
  %v2690 = vld [vmem:[#allocation2 + $0x190] sm:$0xff]
  %v2691 = vld [vmem:[#allocation2 + $0x198] sm:$0xff]
  %v2692 = vld [vmem:[#allocation2 + $0x1a0] sm:$0xff]
  %v2693 = vld [vmem:[#allocation2 + $0x1a8] sm:$0xff]
  %v2694 = vld [vmem:[%s2 + $0xa0] sm:$0xff]
  %v2695 = vld [vmem:[%s2 + $0xa8] sm:$0xff]
  %v2696 = vld [vmem:[%s2 + $0xb0] sm:$0xff]
  %v2697 = vld [vmem:[%s2 + $0xb8] sm:$0xff]
  %v2699 = vsel %vm1679, %v2685, 0
  %v2702 = vsel %vm1679, %v2686, 0
  %v2705 = vsel %vm1679, %v2687, 0
  %v2708 = vsel %vm1679, %v2688, 0
  %v2711 = vsel %vm1679, %v2689, 0
  %v2714 = vsel %vm1679, %v2690, 0
  %v2717 = vsel %vm1679, %v2691, 0
  %v2720 = vsel %vm1679, %v2692, 0
  %v2723 = vsel %vm1679, %v2693, 0
  %2725 = vmatprep.subr.mxu0 0.0
  %2726 = vmatpush1.msra.mxu0 0.0
  %2727 = vmatprep.subr.mxu0 0.0
  %2728 = vmatpush1.msra.mxu0 0.0
  %2729 = vmatprep.subr.mxu0 0.0
  %2730 = vmatpush1.msra.mxu0 0.0
  %2731 = vmatprep.subr.mxu0 0.0
  %2732 = vmatpush1.msra.mxu0 0.0
  %2733 = vmatprep.subr.mxu0 0.0
  %2734 = vmatpush1.msra.mxu0 0.0
  %2735 = vmatprep.subr.mxu0 0.0
  %2736 = vmatpush1.msra.mxu0 0.0
  %2737 = vmatprep.subr.mxu0 0.0
  %2738 = vmatpush1.msra.mxu0 0.0
  %2739 = vmatprep.subr.mxu0 0.0
  %2740 = vmatpush1.msra.mxu0 0.0
  %2741 = vmatprep.subr.mxu0 0.0
  %2742 = vmatpush1.msra.mxu0 0.0
  %2743 = vmatprep.subr.mxu0 0.0
  %2744 = vmatpush1.msra.mxu0 0.0
  %2745 = vmatprep.subr.mxu0 0.0
  %2746 = vmatpush1.msra.mxu0 0.0
  %2747 = vmatprep.subr.mxu0 0.0
  %2748 = vmatpush1.msra.mxu0 0.0
  %2749 = vmatprep.subr.mxu0 0.0
  %2750 = vmatpush1.msra.mxu0 %v2697
  %2751 = vmatprep.subr.mxu0 0.0
  %2752 = vmatpush1.msra.mxu0 %v2696
  %2753 = vmatprep.subr.mxu0 0.0
  %2754 = vmatpush1.msra.mxu0 %v2695
  %2755 = vmatprep.subr.mxu0 0.0
  %2756 = vmatpush1.msra.mxu0 %v2694
  %2757 = vmatprep.subr.mxu0 0.0
  %2758 = vmatpush2.msra.mxu0 0.0
  %2759 = vmatprep.subr.mxu0 0.0
  %2760 = vmatpush2.msra.mxu0 0.0
  %2761 = vmatprep.subr.mxu0 0.0
  %2762 = vmatpush2.msra.mxu0 0.0
  %2763 = vmatprep.subr.mxu0 0.0
  %2764 = vmatpush2.msra.mxu0 0.0
  %2765 = vmatprep.subr.mxu0 0.0
  %2766 = vmatpush2.msra.mxu0 0.0
  %2767 = vmatprep.subr.mxu0 0.0
  %2768 = vmatpush2.msra.mxu0 0.0
  %2769 = vmatprep.subr.mxu0 0.0
  %2770 = vmatpush2.msra.mxu0 0.0
  %2771 = vmatprep.subr.mxu0 0.0
  %2772 = vmatpush2.msra.mxu0 0.0
  %2773 = vmatprep.subr.mxu0 0.0
  %2774 = vmatpush2.msra.mxu0 0.0
  %2775 = vmatprep.subr.mxu0 0.0
  %2776 = vmatpush2.msra.mxu0 0.0
  %2777 = vmatprep.subr.mxu0 0.0
  %2778 = vmatpush2.msra.mxu0 0.0
  %2779 = vmatprep.subr.mxu0 0.0
  %2780 = vmatpush2.msra.mxu0 0.0
  %2781 = vmatprep.subr.mxu0 0.0
  %2782 = vmatpush2.msra.mxu0 0.0
  %2783 = vmatprep.subr.mxu0 0.0
  %2784 = vmatpush2.msra.mxu0 0.0
  %2785 = vmatprep.subr.mxu0 0.0
  %2786 = vmatpush2.msra.mxu0 0.0
  %2787 = vmatprep.subr.mxu0 0.0
  %2788 = vmatpush2.msra.mxu0 0.0
  %2789 = vmatprep.mubr.f32.mxu0 0.0
  %2790 = vmatmul.mubr.f32.gmra.mxu0 %v2699
  %v2791 = vpop.f32.mrf.mxu0
  %v2792 = vadd.f32 0.0, %v2791
  %v2793 = vpop.f32.mrf.mxu0
  %2794 = vmatprep.mubr.f32.mxu0 0.0
  %2795 = vmatmul.mubr.f32.gmra.mxu0 %v2702
  %v2796 = vpop.f32.mrf.mxu0
  %v2797 = vadd.f32 0.0, %v2796
  %v2798 = vpop.f32.mrf.mxu0
  %2799 = vmatprep.mubr.f32.mxu0 0.0
  %2800 = vmatmul.mubr.f32.gmra.mxu0 %v2705
  %v2801 = vpop.f32.mrf.mxu0
  %v2802 = vadd.f32 0.0, %v2801
  %v2803 = vpop.f32.mrf.mxu0
  %2804 = vmatprep.mubr.f32.mxu0 0.0
  %2805 = vmatmul.mubr.f32.gmra.mxu0 %v2708
  %v2806 = vpop.f32.mrf.mxu0
  %v2807 = vadd.f32 0.0, %v2806
  %v2808 = vpop.f32.mrf.mxu0
  %2809 = vmatprep.mubr.f32.mxu0 0.0
  %2810 = vmatmul.mubr.f32.gmra.mxu0 %v2711
  %v2811 = vpop.f32.mrf.mxu0
  %v2812 = vadd.f32 0.0, %v2811
  %v2813 = vpop.f32.mrf.mxu0
  %2814 = vmatprep.mubr.f32.mxu0 0.0
  %2815 = vmatmul.mubr.f32.gmra.mxu0 %v2714
  %v2816 = vpop.f32.mrf.mxu0
  %v2817 = vadd.f32 0.0, %v2816
  %v2818 = vpop.f32.mrf.mxu0
  %2819 = vmatprep.mubr.f32.mxu0 0.0
  %2820 = vmatmul.mubr.f32.gmra.mxu0 %v2717
  %v2821 = vpop.f32.mrf.mxu0
  %v2822 = vadd.f32 0.0, %v2821
  %v2823 = vpop.f32.mrf.mxu0
  %2824 = vmatprep.mubr.f32.mxu0 0.0
  %2825 = vmatmul.mubr.f32.gmra.mxu0 %v2720
  %v2826 = vpop.f32.mrf.mxu0
  %v2827 = vadd.f32 0.0, %v2826
  %v2828 = vpop.f32.mrf.mxu0
  %2829 = vmatprep.mubr.f32.mxu0 0.0
  %2830 = vmatmul.mubr.f32.gmra.mxu0 %v2723
  %v2831 = vpop.f32.mrf.mxu0
  %v2832 = vadd.f32 0.0, %v2831
  %v2833 = vpop.f32.mrf.mxu0
  %2834 = vdwg.mxu0
  %v2835 = vadd.f32 %v2676, %v2792
  %v2836 = vadd.f32 %v2677, %v2797
  %v2837 = vadd.f32 %v2678, %v2802
  %v2838 = vadd.f32 %v2679, %v2807
  %v2839 = vadd.f32 %v2680, %v2812
  %v2840 = vadd.f32 %v2681, %v2817
  %v2841 = vadd.f32 %v2682, %v2822
  %v2842 = vadd.f32 %v2683, %v2827
  %v2843 = vadd.f32 %v2684, %v2832
  %v2844 = vld [vmem:[#allocation2 + $0x1b0] sm:$0xff]
  %v2845 = vld [vmem:[#allocation2 + $0x1b8] sm:$0xff]
  %v2846 = vld [vmem:[#allocation2 + $0x1c0] sm:$0xff]
  %v2847 = vld [vmem:[#allocation2 + $0x1c8] sm:$0xff]
  %v2848 = vld [vmem:[#allocation2 + $0x1d0] sm:$0xff]
  %v2849 = vld [vmem:[#allocation2 + $0x1d8] sm:$0xff]
  %v2850 = vld [vmem:[#allocation2 + $0x1e0] sm:$0xff]
  %v2851 = vld [vmem:[#allocation2 + $0x1e8] sm:$0xff]
  %v2852 = vld [vmem:[#allocation2 + $0x1f0] sm:$0xff]
  %v2853 = vld [vmem:[%s2 + $0xc0] sm:$0xff]
  %v2854 = vld [vmem:[%s2 + $0xc8] sm:$0xff]
  %v2855 = vld [vmem:[%s2 + $0xd0] sm:$0xff]
  %v2856 = vld [vmem:[%s2 + $0xd8] sm:$0xff]
  %v2858 = vsel %vm1679, %v2844, 0
  %v2861 = vsel %vm1679, %v2845, 0
  %v2864 = vsel %vm1679, %v2846, 0
  %v2867 = vsel %vm1679, %v2847, 0
  %v2870 = vsel %vm1679, %v2848, 0
  %v2873 = vsel %vm1679, %v2849, 0
  %v2876 = vsel %vm1679, %v2850, 0
  %v2879 = vsel %vm1679, %v2851, 0
  %v2882 = vsel %vm1679, %v2852, 0
  %2884 = vmatprep.subr.mxu0 0.0
  %2885 = vmatpush1.msra.mxu0 0.0
  %2886 = vmatprep.subr.mxu0 0.0
  %2887 = vmatpush1.msra.mxu0 0.0
  %2888 = vmatprep.subr.mxu0 0.0
  %2889 = vmatpush1.msra.mxu0 0.0
  %2890 = vmatprep.subr.mxu0 0.0
  %2891 = vmatpush1.msra.mxu0 0.0
  %2892 = vmatprep.subr.mxu0 0.0
  %2893 = vmatpush1.msra.mxu0 0.0
  %2894 = vmatprep.subr.mxu0 0.0
  %2895 = vmatpush1.msra.mxu0 0.0
  %2896 = vmatprep.subr.mxu0 0.0
  %2897 = vmatpush1.msra.mxu0 0.0
  %2898 = vmatprep.subr.mxu0 0.0
  %2899 = vmatpush1.msra.mxu0 0.0
  %2900 = vmatprep.subr.mxu0 0.0
  %2901 = vmatpush1.msra.mxu0 0.0
  %2902 = vmatprep.subr.mxu0 0.0
  %2903 = vmatpush1.msra.mxu0 0.0
  %2904 = vmatprep.subr.mxu0 0.0
  %2905 = vmatpush1.msra.mxu0 0.0
  %2906 = vmatprep.subr.mxu0 0.0
  %2907 = vmatpush1.msra.mxu0 0.0
  %2908 = vmatprep.subr.mxu0 0.0
  %2909 = vmatpush1.msra.mxu0 %v2856
  %2910 = vmatprep.subr.mxu0 0.0
  %2911 = vmatpush1.msra.mxu0 %v2855
  %2912 = vmatprep.subr.mxu0 0.0
  %2913 = vmatpush1.msra.mxu0 %v2854
  %2914 = vmatprep.subr.mxu0 0.0
  %2915 = vmatpush1.msra.mxu0 %v2853
  %2916 = vmatprep.subr.mxu0 0.0
  %2917 = vmatpush2.msra.mxu0 0.0
  %2918 = vmatprep.subr.mxu0 0.0
  %2919 = vmatpush2.msra.mxu0 0.0
  %2920 = vmatprep.subr.mxu0 0.0
  %2921 = vmatpush2.msra.mxu0 0.0
  %2922 = vmatprep.subr.mxu0 0.0
  %2923 = vmatpush2.msra.mxu0 0.0
  %2924 = vmatprep.subr.mxu0 0.0
  %2925 = vmatpush2.msra.mxu0 0.0
  %2926 = vmatprep.subr.mxu0 0.0
  %2927 = vmatpush2.msra.mxu0 0.0
  %2928 = vmatprep.subr.mxu0 0.0
  %2929 = vmatpush2.msra.mxu0 0.0
  %2930 = vmatprep.subr.mxu0 0.0
  %2931 = vmatpush2.msra.mxu0 0.0
  %2932 = vmatprep.subr.mxu0 0.0
  %2933 = vmatpush2.msra.mxu0 0.0
  %2934 = vmatprep.subr.mxu0 0.0
  %2935 = vmatpush2.msra.mxu0 0.0
  %2936 = vmatprep.subr.mxu0 0.0
  %2937 = vmatpush2.msra.mxu0 0.0
  %2938 = vmatprep.subr.mxu0 0.0
  %2939 = vmatpush2.msra.mxu0 0.0
  %2940 = vmatprep.subr.mxu0 0.0
  %2941 = vmatpush2.msra.mxu0 0.0
  %2942 = vmatprep.subr.mxu0 0.0
  %2943 = vmatpush2.msra.mxu0 0.0
  %2944 = vmatprep.subr.mxu0 0.0
  %2945 = vmatpush2.msra.mxu0 0.0
  %2946 = vmatprep.subr.mxu0 0.0
  %2947 = vmatpush2.msra.mxu0 0.0
  %2948 = vmatprep.mubr.f32.mxu0 0.0
  %2949 = vmatmul.mubr.f32.gmra.mxu0 %v2858
  %v2950 = vpop.f32.mrf.mxu0
  %v2951 = vadd.f32 0.0, %v2950
  %v2952 = vpop.f32.mrf.mxu0
  %2953 = vmatprep.mubr.f32.mxu0 0.0
  %2954 = vmatmul.mubr.f32.gmra.mxu0 %v2861
  %v2955 = vpop.f32.mrf.mxu0
  %v2956 = vadd.f32 0.0, %v2955
  %v2957 = vpop.f32.mrf.mxu0
  %2958 = vmatprep.mubr.f32.mxu0 0.0
  %2959 = vmatmul.mubr.f32.gmra.mxu0 %v2864
  %v2960 = vpop.f32.mrf.mxu0
  %v2961 = vadd.f32 0.0, %v2960
  %v2962 = vpop.f32.mrf.mxu0
  %2963 = vmatprep.mubr.f32.mxu0 0.0
  %2964 = vmatmul.mubr.f32.gmra.mxu0 %v2867
  %v2965 = vpop.f32.mrf.mxu0
  %v2966 = vadd.f32 0.0, %v2965
  %v2967 = vpop.f32.mrf.mxu0
  %2968 = vmatprep.mubr.f32.mxu0 0.0
  %2969 = vmatmul.mubr.f32.gmra.mxu0 %v2870
  %v2970 = vpop.f32.mrf.mxu0
  %v2971 = vadd.f32 0.0, %v2970
  %v2972 = vpop.f32.mrf.mxu0
  %2973 = vmatprep.mubr.f32.mxu0 0.0
  %2974 = vmatmul.mubr.f32.gmra.mxu0 %v2873
  %v2975 = vpop.f32.mrf.mxu0
  %v2976 = vadd.f32 0.0, %v2975
  %v2977 = vpop.f32.mrf.mxu0
  %2978 = vmatprep.mubr.f32.mxu0 0.0
  %2979 = vmatmul.mubr.f32.gmra.mxu0 %v2876
  %v2980 = vpop.f32.mrf.mxu0
  %v2981 = vadd.f32 0.0, %v2980
  %v2982 = vpop.f32.mrf.mxu0
  %2983 = vmatprep.mubr.f32.mxu0 0.0
  %2984 = vmatmul.mubr.f32.gmra.mxu0 %v2879
  %v2985 = vpop.f32.mrf.mxu0
  %v2986 = vadd.f32 0.0, %v2985
  %v2987 = vpop.f32.mrf.mxu0
  %2988 = vmatprep.mubr.f32.mxu0 0.0
  %2989 = vmatmul.mubr.f32.gmra.mxu0 %v2882
  %v2990 = vpop.f32.mrf.mxu0
  %v2991 = vadd.f32 0.0, %v2990
  %v2992 = vpop.f32.mrf.mxu0
  %2993 = vdwg.mxu0
  %v2994 = vadd.f32 %v2835, %v2951
  %v2995 = vadd.f32 %v2836, %v2956
  %v2996 = vadd.f32 %v2837, %v2961
  %v2997 = vadd.f32 %v2838, %v2966
  %v2998 = vadd.f32 %v2839, %v2971
  %v2999 = vadd.f32 %v2840, %v2976
  %v3000 = vadd.f32 %v2841, %v2981
  %v3001 = vadd.f32 %v2842, %v2986
  %v3002 = vadd.f32 %v2843, %v2991
  %v3003 = vld [vmem:[#allocation2 + $0x1f8] sm:$0xff]
  %v3004 = vld [vmem:[#allocation2 + $0x200] sm:$0xff]
  %v3005 = vld [vmem:[#allocation2 + $0x208] sm:$0xff]
  %v3006 = vld [vmem:[#allocation2 + $0x210] sm:$0xff]
  %v3007 = vld [vmem:[#allocation2 + $0x218] sm:$0xff]
  %v3008 = vld [vmem:[#allocation2 + $0x220] sm:$0xff]
  %v3009 = vld [vmem:[#allocation2 + $0x228] sm:$0xff]
  %v3010 = vld [vmem:[#allocation2 + $0x230] sm:$0xff]
  %v3011 = vld [vmem:[#allocation2 + $0x238] sm:$0xff]
  %v3012 = vld [vmem:[%s2 + $0xe0] sm:$0xff]
  %v3013 = vld [vmem:[%s2 + $0xe8] sm:$0xff]
  %v3014 = vld [vmem:[%s2 + $0xf0] sm:$0xff]
  %v3015 = vld [vmem:[%s2 + $0xf8] sm:$0xff]
  %v3017 = vsel %vm1679, %v3003, 0
  %v3020 = vsel %vm1679, %v3004, 0
  %v3023 = vsel %vm1679, %v3005, 0
  %v3026 = vsel %vm1679, %v3006, 0
  %v3029 = vsel %vm1679, %v3007, 0
  %v3032 = vsel %vm1679, %v3008, 0
  %v3035 = vsel %vm1679, %v3009, 0
  %v3038 = vsel %vm1679, %v3010, 0
  %v3041 = vsel %vm1679, %v3011, 0
  %3043 = vmatprep.subr.mxu0 0.0
  %3044 = vmatpush1.msra.mxu0 0.0
  %3045 = vmatprep.subr.mxu0 0.0
  %3046 = vmatpush1.msra.mxu0 0.0
  %3047 = vmatprep.subr.mxu0 0.0
  %3048 = vmatpush1.msra.mxu0 0.0
  %3049 = vmatprep.subr.mxu0 0.0
  %3050 = vmatpush1.msra.mxu0 0.0
  %3051 = vmatprep.subr.mxu0 0.0
  %3052 = vmatpush1.msra.mxu0 0.0
  %3053 = vmatprep.subr.mxu0 0.0
  %3054 = vmatpush1.msra.mxu0 0.0
  %3055 = vmatprep.subr.mxu0 0.0
  %3056 = vmatpush1.msra.mxu0 0.0
  %3057 = vmatprep.subr.mxu0 0.0
  %3058 = vmatpush1.msra.mxu0 0.0
  %3059 = vmatprep.subr.mxu0 0.0
  %3060 = vmatpush1.msra.mxu0 0.0
  %3061 = vmatprep.subr.mxu0 0.0
  %3062 = vmatpush1.msra.mxu0 0.0
  %3063 = vmatprep.subr.mxu0 0.0
  %3064 = vmatpush1.msra.mxu0 0.0
  %3065 = vmatprep.subr.mxu0 0.0
  %3066 = vmatpush1.msra.mxu0 0.0
  %3067 = vmatprep.subr.mxu0 0.0
  %3068 = vmatpush1.msra.mxu0 %v3015
  %3069 = vmatprep.subr.mxu0 0.0
  %3070 = vmatpush1.msra.mxu0 %v3014
  %3071 = vmatprep.subr.mxu0 0.0
  %3072 = vmatpush1.msra.mxu0 %v3013
  %3073 = vmatprep.subr.mxu0 0.0
  %3074 = vmatpush1.msra.mxu0 %v3012
  %3075 = vmatprep.subr.mxu0 0.0
  %3076 = vmatpush2.msra.mxu0 0.0
  %3077 = vmatprep.subr.mxu0 0.0
  %3078 = vmatpush2.msra.mxu0 0.0
  %3079 = vmatprep.subr.mxu0 0.0
  %3080 = vmatpush2.msra.mxu0 0.0
  %3081 = vmatprep.subr.mxu0 0.0
  %3082 = vmatpush2.msra.mxu0 0.0
  %3083 = vmatprep.subr.mxu0 0.0
  %3084 = vmatpush2.msra.mxu0 0.0
  %3085 = vmatprep.subr.mxu0 0.0
  %3086 = vmatpush2.msra.mxu0 0.0
  %3087 = vmatprep.subr.mxu0 0.0
  %3088 = vmatpush2.msra.mxu0 0.0
  %3089 = vmatprep.subr.mxu0 0.0
  %3090 = vmatpush2.msra.mxu0 0.0
  %3091 = vmatprep.subr.mxu0 0.0
  %3092 = vmatpush2.msra.mxu0 0.0
  %3093 = vmatprep.subr.mxu0 0.0
  %3094 = vmatpush2.msra.mxu0 0.0
  %3095 = vmatprep.subr.mxu0 0.0
  %3096 = vmatpush2.msra.mxu0 0.0
  %3097 = vmatprep.subr.mxu0 0.0
  %3098 = vmatpush2.msra.mxu0 0.0
  %3099 = vmatprep.subr.mxu0 0.0
  %3100 = vmatpush2.msra.mxu0 0.0
  %3101 = vmatprep.subr.mxu0 0.0
  %3102 = vmatpush2.msra.mxu0 0.0
  %3103 = vmatprep.subr.mxu0 0.0
  %3104 = vmatpush2.msra.mxu0 0.0
  %3105 = vmatprep.subr.mxu0 0.0
  %3106 = vmatpush2.msra.mxu0 0.0
  %3107 = vmatprep.mubr.f32.mxu0 0.0
  %3108 = vmatmul.mubr.f32.gmra.mxu0 %v3017
  %v3109 = vpop.f32.mrf.mxu0
  %v3110 = vadd.f32 0.0, %v3109
  %v3111 = vpop.f32.mrf.mxu0
  %3112 = vmatprep.mubr.f32.mxu0 0.0
  %3113 = vmatmul.mubr.f32.gmra.mxu0 %v3020
  %v3114 = vpop.f32.mrf.mxu0
  %v3115 = vadd.f32 0.0, %v3114
  %v3116 = vpop.f32.mrf.mxu0
  %3117 = vmatprep.mubr.f32.mxu0 0.0
  %3118 = vmatmul.mubr.f32.gmra.mxu0 %v3023
  %v3119 = vpop.f32.mrf.mxu0
  %v3120 = vadd.f32 0.0, %v3119
  %v3121 = vpop.f32.mrf.mxu0
  %3122 = vmatprep.mubr.f32.mxu0 0.0
  %3123 = vmatmul.mubr.f32.gmra.mxu0 %v3026
  %v3124 = vpop.f32.mrf.mxu0
  %v3125 = vadd.f32 0.0, %v3124
  %v3126 = vpop.f32.mrf.mxu0
  %3127 = vmatprep.mubr.f32.mxu0 0.0
  %3128 = vmatmul.mubr.f32.gmra.mxu0 %v3029
  %v3129 = vpop.f32.mrf.mxu0
  %v3130 = vadd.f32 0.0, %v3129
  %v3131 = vpop.f32.mrf.mxu0
  %3132 = vmatprep.mubr.f32.mxu0 0.0
  %3133 = vmatmul.mubr.f32.gmra.mxu0 %v3032
  %v3134 = vpop.f32.mrf.mxu0
  %v3135 = vadd.f32 0.0, %v3134
  %v3136 = vpop.f32.mrf.mxu0
  %3137 = vmatprep.mubr.f32.mxu0 0.0
  %3138 = vmatmul.mubr.f32.gmra.mxu0 %v3035
  %v3139 = vpop.f32.mrf.mxu0
  %v3140 = vadd.f32 0.0, %v3139
  %v3141 = vpop.f32.mrf.mxu0
  %3142 = vmatprep.mubr.f32.mxu0 0.0
  %3143 = vmatmul.mubr.f32.gmra.mxu0 %v3038
  %v3144 = vpop.f32.mrf.mxu0
  %v3145 = vadd.f32 0.0, %v3144
  %v3146 = vpop.f32.mrf.mxu0
  %3147 = vmatprep.mubr.f32.mxu0 0.0
  %3148 = vmatmul.mubr.f32.gmra.mxu0 %v3041
  %v3149 = vpop.f32.mrf.mxu0
  %v3150 = vadd.f32 0.0, %v3149
  %v3151 = vpop.f32.mrf.mxu0
  %3152 = vdwg.mxu0
  %v3153 = vadd.f32 %v2994, %v3110
  %v3154 = vadd.f32 %v2995, %v3115
  %v3155 = vadd.f32 %v2996, %v3120
  %v3156 = vadd.f32 %v2997, %v3125
  %v3157 = vadd.f32 %v2998, %v3130
  %v3158 = vadd.f32 %v2999, %v3135
  %v3159 = vadd.f32 %v3000, %v3140
  %v3160 = vadd.f32 %v3001, %v3145
  %v3161 = vadd.f32 %v3002, %v3150
  %v3162 = vld [vmem:[#allocation2 + $0x240] sm:$0xff]
  %v3163 = vld [vmem:[#allocation2 + $0x248] sm:$0xff]
  %v3164 = vld [vmem:[#allocation2 + $0x250] sm:$0xff]
  %v3165 = vld [vmem:[#allocation2 + $0x258] sm:$0xff]
  %v3166 = vld [vmem:[#allocation2 + $0x260] sm:$0xff]
  %v3167 = vld [vmem:[#allocation2 + $0x268] sm:$0xff]
  %v3168 = vld [vmem:[#allocation2 + $0x270] sm:$0xff]
  %v3169 = vld [vmem:[#allocation2 + $0x278] sm:$0xff]
  %v3170 = vld [vmem:[#allocation2 + $0x280] sm:$0xff]
  %v3171 = vld [vmem:[%s2 + $0x100] sm:$0xff]
  %v3172 = vld [vmem:[%s2 + $0x108] sm:$0xff]
  %v3173 = vld [vmem:[%s2 + $0x110] sm:$0xff]
  %v3174 = vld [vmem:[%s2 + $0x118] sm:$0xff]
  %v3176 = vsel %vm1679, %v3162, 0
  %v3179 = vsel %vm1679, %v3163, 0
  %v3182 = vsel %vm1679, %v3164, 0
  %v3185 = vsel %vm1679, %v3165, 0
  %v3188 = vsel %vm1679, %v3166, 0
  %v3191 = vsel %vm1679, %v3167, 0
  %v3194 = vsel %vm1679, %v3168, 0
  %v3197 = vsel %vm1679, %v3169, 0
  %v3200 = vsel %vm1679, %v3170, 0
  %3202 = vmatprep.subr.mxu0 0.0
  %3203 = vmatpush1.msra.mxu0 0.0
  %3204 = vmatprep.subr.mxu0 0.0
  %3205 = vmatpush1.msra.mxu0 0.0
  %3206 = vmatprep.subr.mxu0 0.0
  %3207 = vmatpush1.msra.mxu0 0.0
  %3208 = vmatprep.subr.mxu0 0.0
  %3209 = vmatpush1.msra.mxu0 0.0
  %3210 = vmatprep.subr.mxu0 0.0
  %3211 = vmatpush1.msra.mxu0 0.0
  %3212 = vmatprep.subr.mxu0 0.0
  %3213 = vmatpush1.msra.mxu0 0.0
  %3214 = vmatprep.subr.mxu0 0.0
  %3215 = vmatpush1.msra.mxu0 0.0
  %3216 = vmatprep.subr.mxu0 0.0
  %3217 = vmatpush1.msra.mxu0 0.0
  %3218 = vmatprep.subr.mxu0 0.0
  %3219 = vmatpush1.msra.mxu0 0.0
  %3220 = vmatprep.subr.mxu0 0.0
  %3221 = vmatpush1.msra.mxu0 0.0
  %3222 = vmatprep.subr.mxu0 0.0
  %3223 = vmatpush1.msra.mxu0 0.0
  %3224 = vmatprep.subr.mxu0 0.0
  %3225 = vmatpush1.msra.mxu0 0.0
  %3226 = vmatprep.subr.mxu0 0.0
  %3227 = vmatpush1.msra.mxu0 %v3174
  %3228 = vmatprep.subr.mxu0 0.0
  %3229 = vmatpush1.msra.mxu0 %v3173
  %3230 = vmatprep.subr.mxu0 0.0
  %3231 = vmatpush1.msra.mxu0 %v3172
  %3232 = vmatprep.subr.mxu0 0.0
  %3233 = vmatpush1.msra.mxu0 %v3171
  %3234 = vmatprep.subr.mxu0 0.0
  %3235 = vmatpush2.msra.mxu0 0.0
  %3236 = vmatprep.subr.mxu0 0.0
  %3237 = vmatpush2.msra.mxu0 0.0
  %3238 = vmatprep.subr.mxu0 0.0
  %3239 = vmatpush2.msra.mxu0 0.0
  %3240 = vmatprep.subr.mxu0 0.0
  %3241 = vmatpush2.msra.mxu0 0.0
  %3242 = vmatprep.subr.mxu0 0.0
  %3243 = vmatpush2.msra.mxu0 0.0
  %3244 = vmatprep.subr.mxu0 0.0
  %3245 = vmatpush2.msra.mxu0 0.0
  %3246 = vmatprep.subr.mxu0 0.0
  %3247 = vmatpush2.msra.mxu0 0.0
  %3248 = vmatprep.subr.mxu0 0.0
  %3249 = vmatpush2.msra.mxu0 0.0
  %3250 = vmatprep.subr.mxu0 0.0
  %3251 = vmatpush2.msra.mxu0 0.0
  %3252 = vmatprep.subr.mxu0 0.0
  %3253 = vmatpush2.msra.mxu0 0.0
  %3254 = vmatprep.subr.mxu0 0.0
  %3255 = vmatpush2.msra.mxu0 0.0
  %3256 = vmatprep.subr.mxu0 0.0
  %3257 = vmatpush2.msra.mxu0 0.0
  %3258 = vmatprep.subr.mxu0 0.0
  %3259 = vmatpush2.msra.mxu0 0.0
  %3260 = vmatprep.subr.mxu0 0.0
  %3261 = vmatpush2.msra.mxu0 0.0
  %3262 = vmatprep.subr.mxu0 0.0
  %3263 = vmatpush2.msra.mxu0 0.0
  %3264 = vmatprep.subr.mxu0 0.0
  %3265 = vmatpush2.msra.mxu0 0.0
  %3266 = vmatprep.mubr.f32.mxu0 0.0
  %3267 = vmatmul.mubr.f32.gmra.mxu0 %v3176
  %v3268 = vpop.f32.mrf.mxu0
  %v3269 = vadd.f32 0.0, %v3268
  %v3270 = vpop.f32.mrf.mxu0
  %3271 = vmatprep.mubr.f32.mxu0 0.0
  %3272 = vmatmul.mubr.f32.gmra.mxu0 %v3179
  %v3273 = vpop.f32.mrf.mxu0
  %v3274 = vadd.f32 0.0, %v3273
  %v3275 = vpop.f32.mrf.mxu0
  %3276 = vmatprep.mubr.f32.mxu0 0.0
  %3277 = vmatmul.mubr.f32.gmra.mxu0 %v3182
  %v3278 = vpop.f32.mrf.mxu0
  %v3279 = vadd.f32 0.0, %v3278
  %v3280 = vpop.f32.mrf.mxu0
  %3281 = vmatprep.mubr.f32.mxu0 0.0
  %3282 = vmatmul.mubr.f32.gmra.mxu0 %v3185
  %v3283 = vpop.f32.mrf.mxu0
  %v3284 = vadd.f32 0.0, %v3283
  %v3285 = vpop.f32.mrf.mxu0
  %3286 = vmatprep.mubr.f32.mxu0 0.0
  %3287 = vmatmul.mubr.f32.gmra.mxu0 %v3188
  %v3288 = vpop.f32.mrf.mxu0
  %v3289 = vadd.f32 0.0, %v3288
  %v3290 = vpop.f32.mrf.mxu0
  %3291 = vmatprep.mubr.f32.mxu0 0.0
  %3292 = vmatmul.mubr.f32.gmra.mxu0 %v3191
  %v3293 = vpop.f32.mrf.mxu0
  %v3294 = vadd.f32 0.0, %v3293
  %v3295 = vpop.f32.mrf.mxu0
  %3296 = vmatprep.mubr.f32.mxu0 0.0
  %3297 = vmatmul.mubr.f32.gmra.mxu0 %v3194
  %v3298 = vpop.f32.mrf.mxu0
  %v3299 = vadd.f32 0.0, %v3298
  %v3300 = vpop.f32.mrf.mxu0
  %3301 = vmatprep.mubr.f32.mxu0 0.0
  %3302 = vmatmul.mubr.f32.gmra.mxu0 %v3197
  %v3303 = vpop.f32.mrf.mxu0
  %v3304 = vadd.f32 0.0, %v3303
  %v3305 = vpop.f32.mrf.mxu0
  %3306 = vmatprep.mubr.f32.mxu0 0.0
  %3307 = vmatmul.mubr.f32.gmra.mxu0 %v3200
  %v3308 = vpop.f32.mrf.mxu0
  %v3309 = vadd.f32 0.0, %v3308
  %v3310 = vpop.f32.mrf.mxu0
  %3311 = vdwg.mxu0
  %v3312 = vadd.f32 %v3153, %v3269
  %v3313 = vadd.f32 %v3154, %v3274
  %v3314 = vadd.f32 %v3155, %v3279
  %v3315 = vadd.f32 %v3156, %v3284
  %v3316 = vadd.f32 %v3157, %v3289
  %v3317 = vadd.f32 %v3158, %v3294
  %v3318 = vadd.f32 %v3159, %v3299
  %v3319 = vadd.f32 %v3160, %v3304
  %v3320 = vadd.f32 %v3161, %v3309
  %v3321 = vld [vmem:[#allocation2 + $0x288] sm:$0xff]
  %v3322 = vld [vmem:[#allocation2 + $0x290] sm:$0xff]
  %v3323 = vld [vmem:[#allocation2 + $0x298] sm:$0xff]
  %v3324 = vld [vmem:[#allocation2 + $0x2a0] sm:$0xff]
  %v3325 = vld [vmem:[#allocation2 + $0x2a8] sm:$0xff]
  %v3326 = vld [vmem:[#allocation2 + $0x2b0] sm:$0xff]
  %v3327 = vld [vmem:[#allocation2 + $0x2b8] sm:$0xff]
  %v3328 = vld [vmem:[#allocation2 + $0x2c0] sm:$0xff]
  %v3329 = vld [vmem:[#allocation2 + $0x2c8] sm:$0xff]
  %v3330 = vld [vmem:[%s2 + $0x120] sm:$0xff]
  %v3331 = vld [vmem:[%s2 + $0x128] sm:$0xff]
  %v3332 = vld [vmem:[%s2 + $0x130] sm:$0xff]
  %v3333 = vld [vmem:[%s2 + $0x138] sm:$0xff]
  %v3335 = vsel %vm1679, %v3321, 0
  %v3338 = vsel %vm1679, %v3322, 0
  %v3341 = vsel %vm1679, %v3323, 0
  %v3344 = vsel %vm1679, %v3324, 0
  %v3347 = vsel %vm1679, %v3325, 0
  %v3350 = vsel %vm1679, %v3326, 0
  %v3353 = vsel %vm1679, %v3327, 0
  %v3356 = vsel %vm1679, %v3328, 0
  %v3359 = vsel %vm1679, %v3329, 0
  %3361 = vmatprep.subr.mxu0 0.0
  %3362 = vmatpush1.msra.mxu0 0.0
  %3363 = vmatprep.subr.mxu0 0.0
  %3364 = vmatpush1.msra.mxu0 0.0
  %3365 = vmatprep.subr.mxu0 0.0
  %3366 = vmatpush1.msra.mxu0 0.0
  %3367 = vmatprep.subr.mxu0 0.0
  %3368 = vmatpush1.msra.mxu0 0.0
  %3369 = vmatprep.subr.mxu0 0.0
  %3370 = vmatpush1.msra.mxu0 0.0
  %3371 = vmatprep.subr.mxu0 0.0
  %3372 = vmatpush1.msra.mxu0 0.0
  %3373 = vmatprep.subr.mxu0 0.0
  %3374 = vmatpush1.msra.mxu0 0.0
  %3375 = vmatprep.subr.mxu0 0.0
  %3376 = vmatpush1.msra.mxu0 0.0
  %3377 = vmatprep.subr.mxu0 0.0
  %3378 = vmatpush1.msra.mxu0 0.0
  %3379 = vmatprep.subr.mxu0 0.0
  %3380 = vmatpush1.msra.mxu0 0.0
  %3381 = vmatprep.subr.mxu0 0.0
  %3382 = vmatpush1.msra.mxu0 0.0
  %3383 = vmatprep.subr.mxu0 0.0
  %3384 = vmatpush1.msra.mxu0 0.0
  %3385 = vmatprep.subr.mxu0 0.0
  %3386 = vmatpush1.msra.mxu0 %v3333
  %3387 = vmatprep.subr.mxu0 0.0
  %3388 = vmatpush1.msra.mxu0 %v3332
  %3389 = vmatprep.subr.mxu0 0.0
  %3390 = vmatpush1.msra.mxu0 %v3331
  %3391 = vmatprep.subr.mxu0 0.0
  %3392 = vmatpush1.msra.mxu0 %v3330
  %3393 = vmatprep.subr.mxu0 0.0
  %3394 = vmatpush2.msra.mxu0 0.0
  %3395 = vmatprep.subr.mxu0 0.0
  %3396 = vmatpush2.msra.mxu0 0.0
  %3397 = vmatprep.subr.mxu0 0.0
  %3398 = vmatpush2.msra.mxu0 0.0
  %3399 = vmatprep.subr.mxu0 0.0
  %3400 = vmatpush2.msra.mxu0 0.0
  %3401 = vmatprep.subr.mxu0 0.0
  %3402 = vmatpush2.msra.mxu0 0.0
  %3403 = vmatprep.subr.mxu0 0.0
  %3404 = vmatpush2.msra.mxu0 0.0
  %3405 = vmatprep.subr.mxu0 0.0
  %3406 = vmatpush2.msra.mxu0 0.0
  %3407 = vmatprep.subr.mxu0 0.0
  %3408 = vmatpush2.msra.mxu0 0.0
  %3409 = vmatprep.subr.mxu0 0.0
  %3410 = vmatpush2.msra.mxu0 0.0
  %3411 = vmatprep.subr.mxu0 0.0
  %3412 = vmatpush2.msra.mxu0 0.0
  %3413 = vmatprep.subr.mxu0 0.0
  %3414 = vmatpush2.msra.mxu0 0.0
  %3415 = vmatprep.subr.mxu0 0.0
  %3416 = vmatpush2.msra.mxu0 0.0
  %3417 = vmatprep.subr.mxu0 0.0
  %3418 = vmatpush2.msra.mxu0 0.0
  %3419 = vmatprep.subr.mxu0 0.0
  %3420 = vmatpush2.msra.mxu0 0.0
  %3421 = vmatprep.subr.mxu0 0.0
  %3422 = vmatpush2.msra.mxu0 0.0
  %3423 = vmatprep.subr.mxu0 0.0
  %3424 = vmatpush2.msra.mxu0 0.0
  %3425 = vmatprep.mubr.f32.mxu0 0.0
  %3426 = vmatmul.mubr.f32.gmra.mxu0 %v3335
  %v3427 = vpop.f32.mrf.mxu0
  %v3428 = vadd.f32 0.0, %v3427
  %v3429 = vpop.f32.mrf.mxu0
  %3430 = vmatprep.mubr.f32.mxu0 0.0
  %3431 = vmatmul.mubr.f32.gmra.mxu0 %v3338
  %v3432 = vpop.f32.mrf.mxu0
  %v3433 = vadd.f32 0.0, %v3432
  %v3434 = vpop.f32.mrf.mxu0
  %3435 = vmatprep.mubr.f32.mxu0 0.0
  %3436 = vmatmul.mubr.f32.gmra.mxu0 %v3341
  %v3437 = vpop.f32.mrf.mxu0
  %v3438 = vadd.f32 0.0, %v3437
  %v3439 = vpop.f32.mrf.mxu0
  %3440 = vmatprep.mubr.f32.mxu0 0.0
  %3441 = vmatmul.mubr.f32.gmra.mxu0 %v3344
  %v3442 = vpop.f32.mrf.mxu0
  %v3443 = vadd.f32 0.0, %v3442
  %v3444 = vpop.f32.mrf.mxu0
  %3445 = vmatprep.mubr.f32.mxu0 0.0
  %3446 = vmatmul.mubr.f32.gmra.mxu0 %v3347
  %v3447 = vpop.f32.mrf.mxu0
  %v3448 = vadd.f32 0.0, %v3447
  %v3449 = vpop.f32.mrf.mxu0
  %3450 = vmatprep.mubr.f32.mxu0 0.0
  %3451 = vmatmul.mubr.f32.gmra.mxu0 %v3350
  %v3452 = vpop.f32.mrf.mxu0
  %v3453 = vadd.f32 0.0, %v3452
  %v3454 = vpop.f32.mrf.mxu0
  %3455 = vmatprep.mubr.f32.mxu0 0.0
  %3456 = vmatmul.mubr.f32.gmra.mxu0 %v3353
  %v3457 = vpop.f32.mrf.mxu0
  %v3458 = vadd.f32 0.0, %v3457
  %v3459 = vpop.f32.mrf.mxu0
  %3460 = vmatprep.mubr.f32.mxu0 0.0
  %3461 = vmatmul.mubr.f32.gmra.mxu0 %v3356
  %v3462 = vpop.f32.mrf.mxu0
  %v3463 = vadd.f32 0.0, %v3462
  %v3464 = vpop.f32.mrf.mxu0
  %3465 = vmatprep.mubr.f32.mxu0 0.0
  %3466 = vmatmul.mubr.f32.gmra.mxu0 %v3359
  %v3467 = vpop.f32.mrf.mxu0
  %v3468 = vadd.f32 0.0, %v3467
  %v3469 = vpop.f32.mrf.mxu0
  %3470 = vdwg.mxu0
  %v3471 = vadd.f32 %v3312, %v3428
  %v3472 = vadd.f32 %v3313, %v3433
  %v3473 = vadd.f32 %v3314, %v3438
  %v3474 = vadd.f32 %v3315, %v3443
  %v3475 = vadd.f32 %v3316, %v3448
  %v3476 = vadd.f32 %v3317, %v3453
  %v3477 = vadd.f32 %v3318, %v3458
  %v3478 = vadd.f32 %v3319, %v3463
  %v3479 = vadd.f32 %v3320, %v3468
  %v3480 = vld [vmem:[#allocation2 + $0x2d0] sm:$0xff]
  %v3481 = vld [vmem:[#allocation2 + $0x2d8] sm:$0xff]
  %v3482 = vld [vmem:[#allocation2 + $0x2e0] sm:$0xff]
  %v3483 = vld [vmem:[#allocation2 + $0x2e8] sm:$0xff]
  %v3484 = vld [vmem:[#allocation2 + $0x2f0] sm:$0xff]
  %v3485 = vld [vmem:[#allocation2 + $0x2f8] sm:$0xff]
  %v3486 = vld [vmem:[#allocation2 + $0x300] sm:$0xff]
  %v3487 = vld [vmem:[#allocation2 + $0x308] sm:$0xff]
  %v3488 = vld [vmem:[#allocation2 + $0x310] sm:$0xff]
  %v3489 = vld [vmem:[%s2 + $0x140] sm:$0xff]
  %v3490 = vld [vmem:[%s2 + $0x148] sm:$0xff]
  %v3491 = vld [vmem:[%s2 + $0x150] sm:$0xff]
  %v3492 = vld [vmem:[%s2 + $0x158] sm:$0xff]
  %v3494 = vsel %vm1679, %v3480, 0
  %v3497 = vsel %vm1679, %v3481, 0
  %v3500 = vsel %vm1679, %v3482, 0
  %v3503 = vsel %vm1679, %v3483, 0
  %v3506 = vsel %vm1679, %v3484, 0
  %v3509 = vsel %vm1679, %v3485, 0
  %v3512 = vsel %vm1679, %v3486, 0
  %v3515 = vsel %vm1679, %v3487, 0
  %v3518 = vsel %vm1679, %v3488, 0
  %3520 = vmatprep.subr.mxu0 0.0
  %3521 = vmatpush1.msra.mxu0 0.0
  %3522 = vmatprep.subr.mxu0 0.0
  %3523 = vmatpush1.msra.mxu0 0.0
  %3524 = vmatprep.subr.mxu0 0.0
  %3525 = vmatpush1.msra.mxu0 0.0
  %3526 = vmatprep.subr.mxu0 0.0
  %3527 = vmatpush1.msra.mxu0 0.0
  %3528 = vmatprep.subr.mxu0 0.0
  %3529 = vmatpush1.msra.mxu0 0.0
  %3530 = vmatprep.subr.mxu0 0.0
  %3531 = vmatpush1.msra.mxu0 0.0
  %3532 = vmatprep.subr.mxu0 0.0
  %3533 = vmatpush1.msra.mxu0 0.0
  %3534 = vmatprep.subr.mxu0 0.0
  %3535 = vmatpush1.msra.mxu0 0.0
  %3536 = vmatprep.subr.mxu0 0.0
  %3537 = vmatpush1.msra.mxu0 0.0
  %3538 = vmatprep.subr.mxu0 0.0
  %3539 = vmatpush1.msra.mxu0 0.0
  %3540 = vmatprep.subr.mxu0 0.0
  %3541 = vmatpush1.msra.mxu0 0.0
  %3542 = vmatprep.subr.mxu0 0.0
  %3543 = vmatpush1.msra.mxu0 0.0
  %3544 = vmatprep.subr.mxu0 0.0
  %3545 = vmatpush1.msra.mxu0 %v3492
  %3546 = vmatprep.subr.mxu0 0.0
  %3547 = vmatpush1.msra.mxu0 %v3491
  %3548 = vmatprep.subr.mxu0 0.0
  %3549 = vmatpush1.msra.mxu0 %v3490
  %3550 = vmatprep.subr.mxu0 0.0
  %3551 = vmatpush1.msra.mxu0 %v3489
  %3552 = vmatprep.subr.mxu0 0.0
  %3553 = vmatpush2.msra.mxu0 0.0
  %3554 = vmatprep.subr.mxu0 0.0
  %3555 = vmatpush2.msra.mxu0 0.0
  %3556 = vmatprep.subr.mxu0 0.0
  %3557 = vmatpush2.msra.mxu0 0.0
  %3558 = vmatprep.subr.mxu0 0.0
  %3559 = vmatpush2.msra.mxu0 0.0
  %3560 = vmatprep.subr.mxu0 0.0
  %3561 = vmatpush2.msra.mxu0 0.0
  %3562 = vmatprep.subr.mxu0 0.0
  %3563 = vmatpush2.msra.mxu0 0.0
  %3564 = vmatprep.subr.mxu0 0.0
  %3565 = vmatpush2.msra.mxu0 0.0
  %3566 = vmatprep.subr.mxu0 0.0
  %3567 = vmatpush2.msra.mxu0 0.0
  %3568 = vmatprep.subr.mxu0 0.0
  %3569 = vmatpush2.msra.mxu0 0.0
  %3570 = vmatprep.subr.mxu0 0.0
  %3571 = vmatpush2.msra.mxu0 0.0
  %3572 = vmatprep.subr.mxu0 0.0
  %3573 = vmatpush2.msra.mxu0 0.0
  %3574 = vmatprep.subr.mxu0 0.0
  %3575 = vmatpush2.msra.mxu0 0.0
  %3576 = vmatprep.subr.mxu0 0.0
  %3577 = vmatpush2.msra.mxu0 0.0
  %3578 = vmatprep.subr.mxu0 0.0
  %3579 = vmatpush2.msra.mxu0 0.0
  %3580 = vmatprep.subr.mxu0 0.0
  %3581 = vmatpush2.msra.mxu0 0.0
  %3582 = vmatprep.subr.mxu0 0.0
  %3583 = vmatpush2.msra.mxu0 0.0
  %3584 = vmatprep.mubr.f32.mxu0 0.0
  %3585 = vmatmul.mubr.f32.gmra.mxu0 %v3494
  %v3586 = vpop.f32.mrf.mxu0
  %v3587 = vadd.f32 0.0, %v3586
  %v3588 = vpop.f32.mrf.mxu0
  %3589 = vmatprep.mubr.f32.mxu0 0.0
  %3590 = vmatmul.mubr.f32.gmra.mxu0 %v3497
  %v3591 = vpop.f32.mrf.mxu0
  %v3592 = vadd.f32 0.0, %v3591
  %v3593 = vpop.f32.mrf.mxu0
  %3594 = vmatprep.mubr.f32.mxu0 0.0
  %3595 = vmatmul.mubr.f32.gmra.mxu0 %v3500
  %v3596 = vpop.f32.mrf.mxu0
  %v3597 = vadd.f32 0.0, %v3596
  %v3598 = vpop.f32.mrf.mxu0
  %3599 = vmatprep.mubr.f32.mxu0 0.0
  %3600 = vmatmul.mubr.f32.gmra.mxu0 %v3503
  %v3601 = vpop.f32.mrf.mxu0
  %v3602 = vadd.f32 0.0, %v3601
  %v3603 = vpop.f32.mrf.mxu0
  %3604 = vmatprep.mubr.f32.mxu0 0.0
  %3605 = vmatmul.mubr.f32.gmra.mxu0 %v3506
  %v3606 = vpop.f32.mrf.mxu0
  %v3607 = vadd.f32 0.0, %v3606
  %v3608 = vpop.f32.mrf.mxu0
  %3609 = vmatprep.mubr.f32.mxu0 0.0
  %3610 = vmatmul.mubr.f32.gmra.mxu0 %v3509
  %v3611 = vpop.f32.mrf.mxu0
  %v3612 = vadd.f32 0.0, %v3611
  %v3613 = vpop.f32.mrf.mxu0
  %3614 = vmatprep.mubr.f32.mxu0 0.0
  %3615 = vmatmul.mubr.f32.gmra.mxu0 %v3512
  %v3616 = vpop.f32.mrf.mxu0
  %v3617 = vadd.f32 0.0, %v3616
  %v3618 = vpop.f32.mrf.mxu0
  %3619 = vmatprep.mubr.f32.mxu0 0.0
  %3620 = vmatmul.mubr.f32.gmra.mxu0 %v3515
  %v3621 = vpop.f32.mrf.mxu0
  %v3622 = vadd.f32 0.0, %v3621
  %v3623 = vpop.f32.mrf.mxu0
  %3624 = vmatprep.mubr.f32.mxu0 0.0
  %3625 = vmatmul.mubr.f32.gmra.mxu0 %v3518
  %v3626 = vpop.f32.mrf.mxu0
  %v3627 = vadd.f32 0.0, %v3626
  %v3628 = vpop.f32.mrf.mxu0
  %3629 = vdwg.mxu0
  %v3630 = vadd.f32 %v3471, %v3587
  %v3631 = vadd.f32 %v3472, %v3592
  %v3632 = vadd.f32 %v3473, %v3597
  %v3633 = vadd.f32 %v3474, %v3602
  %v3634 = vadd.f32 %v3475, %v3607
  %v3635 = vadd.f32 %v3476, %v3612
  %v3636 = vadd.f32 %v3477, %v3617
  %v3637 = vadd.f32 %v3478, %v3622
  %v3638 = vadd.f32 %v3479, %v3627
  %v3639 = vld [vmem:[#allocation2 + $0x318] sm:$0xff]
  %v3640 = vld [vmem:[#allocation2 + $0x320] sm:$0xff]
  %v3641 = vld [vmem:[#allocation2 + $0x328] sm:$0xff]
  %v3642 = vld [vmem:[#allocation2 + $0x330] sm:$0xff]
  %v3643 = vld [vmem:[#allocation2 + $0x338] sm:$0xff]
  %v3644 = vld [vmem:[#allocation2 + $0x340] sm:$0xff]
  %v3645 = vld [vmem:[#allocation2 + $0x348] sm:$0xff]
  %v3646 = vld [vmem:[#allocation2 + $0x350] sm:$0xff]
  %v3647 = vld [vmem:[#allocation2 + $0x358] sm:$0xff]
  %v3648 = vld [vmem:[%s2 + $0x160] sm:$0xff]
  %v3649 = vld [vmem:[%s2 + $0x168] sm:$0xff]
  %v3650 = vld [vmem:[%s2 + $0x170] sm:$0xff]
  %v3651 = vld [vmem:[%s2 + $0x178] sm:$0xff]
  %v3653 = vsel %vm1679, %v3639, 0
  %v3656 = vsel %vm1679, %v3640, 0
  %v3659 = vsel %vm1679, %v3641, 0
  %v3662 = vsel %vm1679, %v3642, 0
  %v3665 = vsel %vm1679, %v3643, 0
  %v3668 = vsel %vm1679, %v3644, 0
  %v3671 = vsel %vm1679, %v3645, 0
  %v3674 = vsel %vm1679, %v3646, 0
  %v3677 = vsel %vm1679, %v3647, 0
  %3679 = vmatprep.subr.mxu0 0.0
  %3680 = vmatpush1.msra.mxu0 0.0
  %3681 = vmatprep.subr.mxu0 0.0
  %3682 = vmatpush1.msra.mxu0 0.0
  %3683 = vmatprep.subr.mxu0 0.0
  %3684 = vmatpush1.msra.mxu0 0.0
  %3685 = vmatprep.subr.mxu0 0.0
  %3686 = vmatpush1.msra.mxu0 0.0
  %3687 = vmatprep.subr.mxu0 0.0
  %3688 = vmatpush1.msra.mxu0 0.0
  %3689 = vmatprep.subr.mxu0 0.0
  %3690 = vmatpush1.msra.mxu0 0.0
  %3691 = vmatprep.subr.mxu0 0.0
  %3692 = vmatpush1.msra.mxu0 0.0
  %3693 = vmatprep.subr.mxu0 0.0
  %3694 = vmatpush1.msra.mxu0 0.0
  %3695 = vmatprep.subr.mxu0 0.0
  %3696 = vmatpush1.msra.mxu0 0.0
  %3697 = vmatprep.subr.mxu0 0.0
  %3698 = vmatpush1.msra.mxu0 0.0
  %3699 = vmatprep.subr.mxu0 0.0
  %3700 = vmatpush1.msra.mxu0 0.0
  %3701 = vmatprep.subr.mxu0 0.0
  %3702 = vmatpush1.msra.mxu0 0.0
  %3703 = vmatprep.subr.mxu0 0.0
  %3704 = vmatpush1.msra.mxu0 %v3651
  %3705 = vmatprep.subr.mxu0 0.0
  %3706 = vmatpush1.msra.mxu0 %v3650
  %3707 = vmatprep.subr.mxu0 0.0
  %3708 = vmatpush1.msra.mxu0 %v3649
  %3709 = vmatprep.subr.mxu0 0.0
  %3710 = vmatpush1.msra.mxu0 %v3648
  %3711 = vmatprep.subr.mxu0 0.0
  %3712 = vmatpush2.msra.mxu0 0.0
  %3713 = vmatprep.subr.mxu0 0.0
  %3714 = vmatpush2.msra.mxu0 0.0
  %3715 = vmatprep.subr.mxu0 0.0
  %3716 = vmatpush2.msra.mxu0 0.0
  %3717 = vmatprep.subr.mxu0 0.0
  %3718 = vmatpush2.msra.mxu0 0.0
  %3719 = vmatprep.subr.mxu0 0.0
  %3720 = vmatpush2.msra.mxu0 0.0
  %3721 = vmatprep.subr.mxu0 0.0
  %3722 = vmatpush2.msra.mxu0 0.0
  %3723 = vmatprep.subr.mxu0 0.0
  %3724 = vmatpush2.msra.mxu0 0.0
  %3725 = vmatprep.subr.mxu0 0.0
  %3726 = vmatpush2.msra.mxu0 0.0
  %3727 = vmatprep.subr.mxu0 0.0
  %3728 = vmatpush2.msra.mxu0 0.0
  %3729 = vmatprep.subr.mxu0 0.0
  %3730 = vmatpush2.msra.mxu0 0.0
  %3731 = vmatprep.subr.mxu0 0.0
  %3732 = vmatpush2.msra.mxu0 0.0
  %3733 = vmatprep.subr.mxu0 0.0
  %3734 = vmatpush2.msra.mxu0 0.0
  %3735 = vmatprep.subr.mxu0 0.0
  %3736 = vmatpush2.msra.mxu0 0.0
  %3737 = vmatprep.subr.mxu0 0.0
  %3738 = vmatpush2.msra.mxu0 0.0
  %3739 = vmatprep.subr.mxu0 0.0
  %3740 = vmatpush2.msra.mxu0 0.0
  %3741 = vmatprep.subr.mxu0 0.0
  %3742 = vmatpush2.msra.mxu0 0.0
  %3743 = vmatprep.mubr.f32.mxu0 0.0
  %3744 = vmatmul.mubr.f32.gmra.mxu0 %v3653
  %v3745 = vpop.f32.mrf.mxu0
  %v3746 = vadd.f32 0.0, %v3745
  %v3747 = vpop.f32.mrf.mxu0
  %3748 = vmatprep.mubr.f32.mxu0 0.0
  %3749 = vmatmul.mubr.f32.gmra.mxu0 %v3656
  %v3750 = vpop.f32.mrf.mxu0
  %v3751 = vadd.f32 0.0, %v3750
  %v3752 = vpop.f32.mrf.mxu0
  %3753 = vmatprep.mubr.f32.mxu0 0.0
  %3754 = vmatmul.mubr.f32.gmra.mxu0 %v3659
  %v3755 = vpop.f32.mrf.mxu0
  %v3756 = vadd.f32 0.0, %v3755
  %v3757 = vpop.f32.mrf.mxu0
  %3758 = vmatprep.mubr.f32.mxu0 0.0
  %3759 = vmatmul.mubr.f32.gmra.mxu0 %v3662
  %v3760 = vpop.f32.mrf.mxu0
  %v3761 = vadd.f32 0.0, %v3760
  %v3762 = vpop.f32.mrf.mxu0
  %3763 = vmatprep.mubr.f32.mxu0 0.0
  %3764 = vmatmul.mubr.f32.gmra.mxu0 %v3665
  %v3765 = vpop.f32.mrf.mxu0
  %v3766 = vadd.f32 0.0, %v3765
  %v3767 = vpop.f32.mrf.mxu0
  %3768 = vmatprep.mubr.f32.mxu0 0.0
  %3769 = vmatmul.mubr.f32.gmra.mxu0 %v3668
  %v3770 = vpop.f32.mrf.mxu0
  %v3771 = vadd.f32 0.0, %v3770
  %v3772 = vpop.f32.mrf.mxu0
  %3773 = vmatprep.mubr.f32.mxu0 0.0
  %3774 = vmatmul.mubr.f32.gmra.mxu0 %v3671
  %v3775 = vpop.f32.mrf.mxu0
  %v3776 = vadd.f32 0.0, %v3775
  %v3777 = vpop.f32.mrf.mxu0
  %3778 = vmatprep.mubr.f32.mxu0 0.0
  %3779 = vmatmul.mubr.f32.gmra.mxu0 %v3674
  %v3780 = vpop.f32.mrf.mxu0
  %v3781 = vadd.f32 0.0, %v3780
  %v3782 = vpop.f32.mrf.mxu0
  %3783 = vmatprep.mubr.f32.mxu0 0.0
  %3784 = vmatmul.mubr.f32.gmra.mxu0 %v3677
  %v3785 = vpop.f32.mrf.mxu0
  %v3786 = vadd.f32 0.0, %v3785
  %v3787 = vpop.f32.mrf.mxu0
  %3788 = vdwg.mxu0
  %v3789 = vadd.f32 %v3630, %v3746
  %v3790 = vadd.f32 %v3631, %v3751
  %v3791 = vadd.f32 %v3632, %v3756
  %v3792 = vadd.f32 %v3633, %v3761
  %v3793 = vadd.f32 %v3634, %v3766
  %v3794 = vadd.f32 %v3635, %v3771
  %v3795 = vadd.f32 %v3636, %v3776
  %v3796 = vadd.f32 %v3637, %v3781
  %v3797 = vadd.f32 %v3638, %v3786
  %v3798 = vld [vmem:[#allocation2 + $0x360] sm:$0xff]
  %v3799 = vld [vmem:[#allocation2 + $0x368] sm:$0xff]
  %v3800 = vld [vmem:[#allocation2 + $0x370] sm:$0xff]
  %v3801 = vld [vmem:[#allocation2 + $0x378] sm:$0xff]
  %v3802 = vld [vmem:[#allocation2 + $0x380] sm:$0xff]
  %v3803 = vld [vmem:[#allocation2 + $0x388] sm:$0xff]
  %v3804 = vld [vmem:[#allocation2 + $0x390] sm:$0xff]
  %v3805 = vld [vmem:[#allocation2 + $0x398] sm:$0xff]
  %v3806 = vld [vmem:[#allocation2 + $0x3a0] sm:$0xff]
  %v3807 = vld [vmem:[%s2 + $0x180] sm:$0xff]
  %v3808 = vld [vmem:[%s2 + $0x188] sm:$0xff]
  %v3809 = vld [vmem:[%s2 + $0x190] sm:$0xff]
  %v3810 = vld [vmem:[%s2 + $0x198] sm:$0xff]
  %v3812 = vsel %vm1679, %v3798, 0
  %v3815 = vsel %vm1679, %v3799, 0
  %v3818 = vsel %vm1679, %v3800, 0
  %v3821 = vsel %vm1679, %v3801, 0
  %v3824 = vsel %vm1679, %v3802, 0
  %v3827 = vsel %vm1679, %v3803, 0
  %v3830 = vsel %vm1679, %v3804, 0
  %v3833 = vsel %vm1679, %v3805, 0
  %v3836 = vsel %vm1679, %v3806, 0
  %3838 = vmatprep.subr.mxu0 0.0
  %3839 = vmatpush1.msra.mxu0 0.0
  %3840 = vmatprep.subr.mxu0 0.0
  %3841 = vmatpush1.msra.mxu0 0.0
  %3842 = vmatprep.subr.mxu0 0.0
  %3843 = vmatpush1.msra.mxu0 0.0
  %3844 = vmatprep.subr.mxu0 0.0
  %3845 = vmatpush1.msra.mxu0 0.0
  %3846 = vmatprep.subr.mxu0 0.0
  %3847 = vmatpush1.msra.mxu0 0.0
  %3848 = vmatprep.subr.mxu0 0.0
  %3849 = vmatpush1.msra.mxu0 0.0
  %3850 = vmatprep.subr.mxu0 0.0
  %3851 = vmatpush1.msra.mxu0 0.0
  %3852 = vmatprep.subr.mxu0 0.0
  %3853 = vmatpush1.msra.mxu0 0.0
  %3854 = vmatprep.subr.mxu0 0.0
  %3855 = vmatpush1.msra.mxu0 0.0
  %3856 = vmatprep.subr.mxu0 0.0
  %3857 = vmatpush1.msra.mxu0 0.0
  %3858 = vmatprep.subr.mxu0 0.0
  %3859 = vmatpush1.msra.mxu0 0.0
  %3860 = vmatprep.subr.mxu0 0.0
  %3861 = vmatpush1.msra.mxu0 0.0
  %3862 = vmatprep.subr.mxu0 0.0
  %3863 = vmatpush1.msra.mxu0 %v3810
  %3864 = vmatprep.subr.mxu0 0.0
  %3865 = vmatpush1.msra.mxu0 %v3809
  %3866 = vmatprep.subr.mxu0 0.0
  %3867 = vmatpush1.msra.mxu0 %v3808
  %3868 = vmatprep.subr.mxu0 0.0
  %3869 = vmatpush1.msra.mxu0 %v3807
  %3870 = vmatprep.subr.mxu0 0.0
  %3871 = vmatpush2.msra.mxu0 0.0
  %3872 = vmatprep.subr.mxu0 0.0
  %3873 = vmatpush2.msra.mxu0 0.0
  %3874 = vmatprep.subr.mxu0 0.0
  %3875 = vmatpush2.msra.mxu0 0.0
  %3876 = vmatprep.subr.mxu0 0.0
  %3877 = vmatpush2.msra.mxu0 0.0
  %3878 = vmatprep.subr.mxu0 0.0
  %3879 = vmatpush2.msra.mxu0 0.0
  %3880 = vmatprep.subr.mxu0 0.0
  %3881 = vmatpush2.msra.mxu0 0.0
  %3882 = vmatprep.subr.mxu0 0.0
  %3883 = vmatpush2.msra.mxu0 0.0
  %3884 = vmatprep.subr.mxu0 0.0
  %3885 = vmatpush2.msra.mxu0 0.0
  %3886 = vmatprep.subr.mxu0 0.0
  %3887 = vmatpush2.msra.mxu0 0.0
  %3888 = vmatprep.subr.mxu0 0.0
  %3889 = vmatpush2.msra.mxu0 0.0
  %3890 = vmatprep.subr.mxu0 0.0
  %3891 = vmatpush2.msra.mxu0 0.0
  %3892 = vmatprep.subr.mxu0 0.0
  %3893 = vmatpush2.msra.mxu0 0.0
  %3894 = vmatprep.subr.mxu0 0.0
  %3895 = vmatpush2.msra.mxu0 0.0
  %3896 = vmatprep.subr.mxu0 0.0
  %3897 = vmatpush2.msra.mxu0 0.0
  %3898 = vmatprep.subr.mxu0 0.0
  %3899 = vmatpush2.msra.mxu0 0.0
  %3900 = vmatprep.subr.mxu0 0.0
  %3901 = vmatpush2.msra.mxu0 0.0
  %3902 = vmatprep.mubr.f32.mxu0 0.0
  %3903 = vmatmul.mubr.f32.gmra.mxu0 %v3812
  %v3904 = vpop.f32.mrf.mxu0
  %v3905 = vadd.f32 0.0, %v3904
  %v3906 = vpop.f32.mrf.mxu0
  %3907 = vmatprep.mubr.f32.mxu0 0.0
  %3908 = vmatmul.mubr.f32.gmra.mxu0 %v3815
  %v3909 = vpop.f32.mrf.mxu0
  %v3910 = vadd.f32 0.0, %v3909
  %v3911 = vpop.f32.mrf.mxu0
  %3912 = vmatprep.mubr.f32.mxu0 0.0
  %3913 = vmatmul.mubr.f32.gmra.mxu0 %v3818
  %v3914 = vpop.f32.mrf.mxu0
  %v3915 = vadd.f32 0.0, %v3914
  %v3916 = vpop.f32.mrf.mxu0
  %3917 = vmatprep.mubr.f32.mxu0 0.0
  %3918 = vmatmul.mubr.f32.gmra.mxu0 %v3821
  %v3919 = vpop.f32.mrf.mxu0
  %v3920 = vadd.f32 0.0, %v3919
  %v3921 = vpop.f32.mrf.mxu0
  %3922 = vmatprep.mubr.f32.mxu0 0.0
  %3923 = vmatmul.mubr.f32.gmra.mxu0 %v3824
  %v3924 = vpop.f32.mrf.mxu0
  %v3925 = vadd.f32 0.0, %v3924
  %v3926 = vpop.f32.mrf.mxu0
  %3927 = vmatprep.mubr.f32.mxu0 0.0
  %3928 = vmatmul.mubr.f32.gmra.mxu0 %v3827
  %v3929 = vpop.f32.mrf.mxu0
  %v3930 = vadd.f32 0.0, %v3929
  %v3931 = vpop.f32.mrf.mxu0
  %3932 = vmatprep.mubr.f32.mxu0 0.0
  %3933 = vmatmul.mubr.f32.gmra.mxu0 %v3830
  %v3934 = vpop.f32.mrf.mxu0
  %v3935 = vadd.f32 0.0, %v3934
  %v3936 = vpop.f32.mrf.mxu0
  %3937 = vmatprep.mubr.f32.mxu0 0.0
  %3938 = vmatmul.mubr.f32.gmra.mxu0 %v3833
  %v3939 = vpop.f32.mrf.mxu0
  %v3940 = vadd.f32 0.0, %v3939
  %v3941 = vpop.f32.mrf.mxu0
  %3942 = vmatprep.mubr.f32.mxu0 0.0
  %3943 = vmatmul.mubr.f32.gmra.mxu0 %v3836
  %v3944 = vpop.f32.mrf.mxu0
  %v3945 = vadd.f32 0.0, %v3944
  %v3946 = vpop.f32.mrf.mxu0
  %3947 = vdwg.mxu0
  %v3948 = vadd.f32 %v3789, %v3905
  %v3949 = vadd.f32 %v3790, %v3910
  %v3950 = vadd.f32 %v3791, %v3915
  %v3951 = vadd.f32 %v3792, %v3920
  %v3952 = vadd.f32 %v3793, %v3925
  %v3953 = vadd.f32 %v3794, %v3930
  %v3954 = vadd.f32 %v3795, %v3935
  %v3955 = vadd.f32 %v3796, %v3940
  %v3956 = vadd.f32 %v3797, %v3945
  %v3957 = vld [vmem:[#allocation2 + $0x3a8] sm:$0xff]
  %v3958 = vld [vmem:[#allocation2 + $0x3b0] sm:$0xff]
  %v3959 = vld [vmem:[#allocation2 + $0x3b8] sm:$0xff]
  %v3960 = vld [vmem:[#allocation2 + $0x3c0] sm:$0xff]
  %v3961 = vld [vmem:[#allocation2 + $0x3c8] sm:$0xff]
  %v3962 = vld [vmem:[#allocation2 + $0x3d0] sm:$0xff]
  %v3963 = vld [vmem:[#allocation2 + $0x3d8] sm:$0xff]
  %v3964 = vld [vmem:[#allocation2 + $0x3e0] sm:$0xff]
  %v3965 = vld [vmem:[#allocation2 + $0x3e8] sm:$0xff]
  %v3966 = vld [vmem:[%s2 + $0x1a0] sm:$0xff]
  %v3967 = vld [vmem:[%s2 + $0x1a8] sm:$0xff]
  %v3968 = vld [vmem:[%s2 + $0x1b0] sm:$0xff]
  %v3969 = vld [vmem:[%s2 + $0x1b8] sm:$0xff]
  %v3971 = vsel %vm1679, %v3957, 0
  %v3974 = vsel %vm1679, %v3958, 0
  %v3977 = vsel %vm1679, %v3959, 0
  %v3980 = vsel %vm1679, %v3960, 0
  %v3983 = vsel %vm1679, %v3961, 0
  %v3986 = vsel %vm1679, %v3962, 0
  %v3989 = vsel %vm1679, %v3963, 0
  %v3992 = vsel %vm1679, %v3964, 0
  %v3995 = vsel %vm1679, %v3965, 0
  %3997 = vmatprep.subr.mxu0 0.0
  %3998 = vmatpush1.msra.mxu0 0.0
  %3999 = vmatprep.subr.mxu0 0.0
  %4000 = vmatpush1.msra.mxu0 0.0
  %4001 = vmatprep.subr.mxu0 0.0
  %4002 = vmatpush1.msra.mxu0 0.0
  %4003 = vmatprep.subr.mxu0 0.0
  %4004 = vmatpush1.msra.mxu0 0.0
  %4005 = vmatprep.subr.mxu0 0.0
  %4006 = vmatpush1.msra.mxu0 0.0
  %4007 = vmatprep.subr.mxu0 0.0
  %4008 = vmatpush1.msra.mxu0 0.0
  %4009 = vmatprep.subr.mxu0 0.0
  %4010 = vmatpush1.msra.mxu0 0.0
  %4011 = vmatprep.subr.mxu0 0.0
  %4012 = vmatpush1.msra.mxu0 0.0
  %4013 = vmatprep.subr.mxu0 0.0
  %4014 = vmatpush1.msra.mxu0 0.0
  %4015 = vmatprep.subr.mxu0 0.0
  %4016 = vmatpush1.msra.mxu0 0.0
  %4017 = vmatprep.subr.mxu0 0.0
  %4018 = vmatpush1.msra.mxu0 0.0
  %4019 = vmatprep.subr.mxu0 0.0
  %4020 = vmatpush1.msra.mxu0 0.0
  %4021 = vmatprep.subr.mxu0 0.0
  %4022 = vmatpush1.msra.mxu0 %v3969
  %4023 = vmatprep.subr.mxu0 0.0
  %4024 = vmatpush1.msra.mxu0 %v3968
  %4025 = vmatprep.subr.mxu0 0.0
  %4026 = vmatpush1.msra.mxu0 %v3967
  %4027 = vmatprep.subr.mxu0 0.0
  %4028 = vmatpush1.msra.mxu0 %v3966
  %4029 = vmatprep.subr.mxu0 0.0
  %4030 = vmatpush2.msra.mxu0 0.0
  %4031 = vmatprep.subr.mxu0 0.0
  %4032 = vmatpush2.msra.mxu0 0.0
  %4033 = vmatprep.subr.mxu0 0.0
  %4034 = vmatpush2.msra.mxu0 0.0
  %4035 = vmatprep.subr.mxu0 0.0
  %4036 = vmatpush2.msra.mxu0 0.0
  %4037 = vmatprep.subr.mxu0 0.0
  %4038 = vmatpush2.msra.mxu0 0.0
  %4039 = vmatprep.subr.mxu0 0.0
  %4040 = vmatpush2.msra.mxu0 0.0
  %4041 = vmatprep.subr.mxu0 0.0
  %4042 = vmatpush2.msra.mxu0 0.0
  %4043 = vmatprep.subr.mxu0 0.0
  %4044 = vmatpush2.msra.mxu0 0.0
  %4045 = vmatprep.subr.mxu0 0.0
  %4046 = vmatpush2.msra.mxu0 0.0
  %4047 = vmatprep.subr.mxu0 0.0
  %4048 = vmatpush2.msra.mxu0 0.0
  %4049 = vmatprep.subr.mxu0 0.0
  %4050 = vmatpush2.msra.mxu0 0.0
  %4051 = vmatprep.subr.mxu0 0.0
  %4052 = vmatpush2.msra.mxu0 0.0
  %4053 = vmatprep.subr.mxu0 0.0
  %4054 = vmatpush2.msra.mxu0 0.0
  %4055 = vmatprep.subr.mxu0 0.0
  %4056 = vmatpush2.msra.mxu0 0.0
  %4057 = vmatprep.subr.mxu0 0.0
  %4058 = vmatpush2.msra.mxu0 0.0
  %4059 = vmatprep.subr.mxu0 0.0
  %4060 = vmatpush2.msra.mxu0 0.0
  %4061 = vmatprep.mubr.f32.mxu0 0.0
  %4062 = vmatmul.mubr.f32.gmra.mxu0 %v3971
  %v4063 = vpop.f32.mrf.mxu0
  %v4064 = vadd.f32 0.0, %v4063
  %v4065 = vpop.f32.mrf.mxu0
  %4066 = vmatprep.mubr.f32.mxu0 0.0
  %4067 = vmatmul.mubr.f32.gmra.mxu0 %v3974
  %v4068 = vpop.f32.mrf.mxu0
  %v4069 = vadd.f32 0.0, %v4068
  %v4070 = vpop.f32.mrf.mxu0
  %4071 = vmatprep.mubr.f32.mxu0 0.0
  %4072 = vmatmul.mubr.f32.gmra.mxu0 %v3977
  %v4073 = vpop.f32.mrf.mxu0
  %v4074 = vadd.f32 0.0, %v4073
  %v4075 = vpop.f32.mrf.mxu0
  %4076 = vmatprep.mubr.f32.mxu0 0.0
  %4077 = vmatmul.mubr.f32.gmra.mxu0 %v3980
  %v4078 = vpop.f32.mrf.mxu0
  %v4079 = vadd.f32 0.0, %v4078
  %v4080 = vpop.f32.mrf.mxu0
  %4081 = vmatprep.mubr.f32.mxu0 0.0
  %4082 = vmatmul.mubr.f32.gmra.mxu0 %v3983
  %v4083 = vpop.f32.mrf.mxu0
  %v4084 = vadd.f32 0.0, %v4083
  %v4085 = vpop.f32.mrf.mxu0
  %4086 = vmatprep.mubr.f32.mxu0 0.0
  %4087 = vmatmul.mubr.f32.gmra.mxu0 %v3986
  %v4088 = vpop.f32.mrf.mxu0
  %v4089 = vadd.f32 0.0, %v4088
  %v4090 = vpop.f32.mrf.mxu0
  %4091 = vmatprep.mubr.f32.mxu0 0.0
  %4092 = vmatmul.mubr.f32.gmra.mxu0 %v3989
  %v4093 = vpop.f32.mrf.mxu0
  %v4094 = vadd.f32 0.0, %v4093
  %v4095 = vpop.f32.mrf.mxu0
  %4096 = vmatprep.mubr.f32.mxu0 0.0
  %4097 = vmatmul.mubr.f32.gmra.mxu0 %v3992
  %v4098 = vpop.f32.mrf.mxu0
  %v4099 = vadd.f32 0.0, %v4098
  %v4100 = vpop.f32.mrf.mxu0
  %4101 = vmatprep.mubr.f32.mxu0 0.0
  %4102 = vmatmul.mubr.f32.gmra.mxu0 %v3995
  %v4103 = vpop.f32.mrf.mxu0
  %v4104 = vadd.f32 0.0, %v4103
  %v4105 = vpop.f32.mrf.mxu0
  %4106 = vdwg.mxu0
  %v4107 = vadd.f32 %v3948, %v4064
  %v4108 = vadd.f32 %v3949, %v4069
  %v4109 = vadd.f32 %v3950, %v4074
  %v4110 = vadd.f32 %v3951, %v4079
  %v4111 = vadd.f32 %v3952, %v4084
  %v4112 = vadd.f32 %v3953, %v4089
  %v4113 = vadd.f32 %v3954, %v4094
  %v4114 = vadd.f32 %v3955, %v4099
  %v4115 = vadd.f32 %v3956, %v4104
  %v4116 = vld [vmem:[#allocation2 + $0x3f0] sm:$0xff]
  %v4117 = vld [vmem:[#allocation2 + $0x3f8] sm:$0xff]
  %v4118 = vld [vmem:[#allocation2 + $0x400] sm:$0xff]
  %v4119 = vld [vmem:[#allocation2 + $0x408] sm:$0xff]
  %v4120 = vld [vmem:[#allocation2 + $0x410] sm:$0xff]
  %v4121 = vld [vmem:[#allocation2 + $0x418] sm:$0xff]
  %v4122 = vld [vmem:[#allocation2 + $0x420] sm:$0xff]
  %v4123 = vld [vmem:[#allocation2 + $0x428] sm:$0xff]
  %v4124 = vld [vmem:[#allocation2 + $0x430] sm:$0xff]
  %v4125 = vld [vmem:[%s2 + $0x1c0] sm:$0xff]
  %v4126 = vld [vmem:[%s2 + $0x1c8] sm:$0xff]
  %v4127 = vld [vmem:[%s2 + $0x1d0] sm:$0xff]
  %v4128 = vld [vmem:[%s2 + $0x1d8] sm:$0xff]
  %v4130 = vsel %vm1679, %v4116, 0
  %v4133 = vsel %vm1679, %v4117, 0
  %v4136 = vsel %vm1679, %v4118, 0
  %v4139 = vsel %vm1679, %v4119, 0
  %v4142 = vsel %vm1679, %v4120, 0
  %v4145 = vsel %vm1679, %v4121, 0
  %v4148 = vsel %vm1679, %v4122, 0
  %v4151 = vsel %vm1679, %v4123, 0
  %v4154 = vsel %vm1679, %v4124, 0
  %4156 = vmatprep.subr.mxu0 0.0
  %4157 = vmatpush1.msra.mxu0 0.0
  %4158 = vmatprep.subr.mxu0 0.0
  %4159 = vmatpush1.msra.mxu0 0.0
  %4160 = vmatprep.subr.mxu0 0.0
  %4161 = vmatpush1.msra.mxu0 0.0
  %4162 = vmatprep.subr.mxu0 0.0
  %4163 = vmatpush1.msra.mxu0 0.0
  %4164 = vmatprep.subr.mxu0 0.0
  %4165 = vmatpush1.msra.mxu0 0.0
  %4166 = vmatprep.subr.mxu0 0.0
  %4167 = vmatpush1.msra.mxu0 0.0
  %4168 = vmatprep.subr.mxu0 0.0
  %4169 = vmatpush1.msra.mxu0 0.0
  %4170 = vmatprep.subr.mxu0 0.0
  %4171 = vmatpush1.msra.mxu0 0.0
  %4172 = vmatprep.subr.mxu0 0.0
  %4173 = vmatpush1.msra.mxu0 0.0
  %4174 = vmatprep.subr.mxu0 0.0
  %4175 = vmatpush1.msra.mxu0 0.0
  %4176 = vmatprep.subr.mxu0 0.0
  %4177 = vmatpush1.msra.mxu0 0.0
  %4178 = vmatprep.subr.mxu0 0.0
  %4179 = vmatpush1.msra.mxu0 0.0
  %4180 = vmatprep.subr.mxu0 0.0
  %4181 = vmatpush1.msra.mxu0 %v4128
  %4182 = vmatprep.subr.mxu0 0.0
  %4183 = vmatpush1.msra.mxu0 %v4127
  %4184 = vmatprep.subr.mxu0 0.0
  %4185 = vmatpush1.msra.mxu0 %v4126
  %4186 = vmatprep.subr.mxu0 0.0
  %4187 = vmatpush1.msra.mxu0 %v4125
  %4188 = vmatprep.subr.mxu0 0.0
  %4189 = vmatpush2.msra.mxu0 0.0
  %4190 = vmatprep.subr.mxu0 0.0
  %4191 = vmatpush2.msra.mxu0 0.0
  %4192 = vmatprep.subr.mxu0 0.0
  %4193 = vmatpush2.msra.mxu0 0.0
  %4194 = vmatprep.subr.mxu0 0.0
  %4195 = vmatpush2.msra.mxu0 0.0
  %4196 = vmatprep.subr.mxu0 0.0
  %4197 = vmatpush2.msra.mxu0 0.0
  %4198 = vmatprep.subr.mxu0 0.0
  %4199 = vmatpush2.msra.mxu0 0.0
  %4200 = vmatprep.subr.mxu0 0.0
  %4201 = vmatpush2.msra.mxu0 0.0
  %4202 = vmatprep.subr.mxu0 0.0
  %4203 = vmatpush2.msra.mxu0 0.0
  %4204 = vmatprep.subr.mxu0 0.0
  %4205 = vmatpush2.msra.mxu0 0.0
  %4206 = vmatprep.subr.mxu0 0.0
  %4207 = vmatpush2.msra.mxu0 0.0
  %4208 = vmatprep.subr.mxu0 0.0
  %4209 = vmatpush2.msra.mxu0 0.0
  %4210 = vmatprep.subr.mxu0 0.0
  %4211 = vmatpush2.msra.mxu0 0.0
  %4212 = vmatprep.subr.mxu0 0.0
  %4213 = vmatpush2.msra.mxu0 0.0
  %4214 = vmatprep.subr.mxu0 0.0
  %4215 = vmatpush2.msra.mxu0 0.0
  %4216 = vmatprep.subr.mxu0 0.0
  %4217 = vmatpush2.msra.mxu0 0.0
  %4218 = vmatprep.subr.mxu0 0.0
  %4219 = vmatpush2.msra.mxu0 0.0
  %4220 = vmatprep.mubr.f32.mxu0 0.0
  %4221 = vmatmul.mubr.f32.gmra.mxu0 %v4130
  %v4222 = vpop.f32.mrf.mxu0
  %v4223 = vadd.f32 0.0, %v4222
  %v4224 = vpop.f32.mrf.mxu0
  %4225 = vmatprep.mubr.f32.mxu0 0.0
  %4226 = vmatmul.mubr.f32.gmra.mxu0 %v4133
  %v4227 = vpop.f32.mrf.mxu0
  %v4228 = vadd.f32 0.0, %v4227
  %v4229 = vpop.f32.mrf.mxu0
  %4230 = vmatprep.mubr.f32.mxu0 0.0
  %4231 = vmatmul.mubr.f32.gmra.mxu0 %v4136
  %v4232 = vpop.f32.mrf.mxu0
  %v4233 = vadd.f32 0.0, %v4232
  %v4234 = vpop.f32.mrf.mxu0
  %4235 = vmatprep.mubr.f32.mxu0 0.0
  %4236 = vmatmul.mubr.f32.gmra.mxu0 %v4139
  %v4237 = vpop.f32.mrf.mxu0
  %v4238 = vadd.f32 0.0, %v4237
  %v4239 = vpop.f32.mrf.mxu0
  %4240 = vmatprep.mubr.f32.mxu0 0.0
  %4241 = vmatmul.mubr.f32.gmra.mxu0 %v4142
  %v4242 = vpop.f32.mrf.mxu0
  %v4243 = vadd.f32 0.0, %v4242
  %v4244 = vpop.f32.mrf.mxu0
  %4245 = vmatprep.mubr.f32.mxu0 0.0
  %4246 = vmatmul.mubr.f32.gmra.mxu0 %v4145
  %v4247 = vpop.f32.mrf.mxu0
  %v4248 = vadd.f32 0.0, %v4247
  %v4249 = vpop.f32.mrf.mxu0
  %4250 = vmatprep.mubr.f32.mxu0 0.0
  %4251 = vmatmul.mubr.f32.gmra.mxu0 %v4148
  %v4252 = vpop.f32.mrf.mxu0
  %v4253 = vadd.f32 0.0, %v4252
  %v4254 = vpop.f32.mrf.mxu0
  %4255 = vmatprep.mubr.f32.mxu0 0.0
  %4256 = vmatmul.mubr.f32.gmra.mxu0 %v4151
  %v4257 = vpop.f32.mrf.mxu0
  %v4258 = vadd.f32 0.0, %v4257
  %v4259 = vpop.f32.mrf.mxu0
  %4260 = vmatprep.mubr.f32.mxu0 0.0
  %4261 = vmatmul.mubr.f32.gmra.mxu0 %v4154
  %v4262 = vpop.f32.mrf.mxu0
  %v4263 = vadd.f32 0.0, %v4262
  %v4264 = vpop.f32.mrf.mxu0
  %4265 = vdwg.mxu0
  %v4266 = vadd.f32 %v4107, %v4223
  %v4267 = vadd.f32 %v4108, %v4228
  %v4268 = vadd.f32 %v4109, %v4233
  %v4269 = vadd.f32 %v4110, %v4238
  %v4270 = vadd.f32 %v4111, %v4243
  %v4271 = vadd.f32 %v4112, %v4248
  %v4272 = vadd.f32 %v4113, %v4253
  %v4273 = vadd.f32 %v4114, %v4258
  %v4274 = vadd.f32 %v4115, %v4263
  %v4275 = vld [vmem:[#allocation2 + $0x438] sm:$0xff]
  %v4276 = vld [vmem:[#allocation2 + $0x440] sm:$0xff]
  %v4277 = vld [vmem:[#allocation2 + $0x448] sm:$0xff]
  %v4278 = vld [vmem:[#allocation2 + $0x450] sm:$0xff]
  %v4279 = vld [vmem:[#allocation2 + $0x458] sm:$0xff]
  %v4280 = vld [vmem:[#allocation2 + $0x460] sm:$0xff]
  %v4281 = vld [vmem:[#allocation2 + $0x468] sm:$0xff]
  %v4282 = vld [vmem:[#allocation2 + $0x470] sm:$0xff]
  %v4283 = vld [vmem:[#allocation2 + $0x478] sm:$0xff]
  %v4284 = vld [vmem:[%s2 + $0x1e0] sm:$0xff]
  %v4285 = vld [vmem:[%s2 + $0x1e8] sm:$0xff]
  %v4286 = vld [vmem:[%s2 + $0x1f0] sm:$0xff]
  %v4287 = vld [vmem:[%s2 + $0x1f8] sm:$0xff]
  %v4289 = vsel %vm1679, %v4275, 0
  %v4292 = vsel %vm1679, %v4276, 0
  %v4295 = vsel %vm1679, %v4277, 0
  %v4298 = vsel %vm1679, %v4278, 0
  %v4301 = vsel %vm1679, %v4279, 0
  %v4304 = vsel %vm1679, %v4280, 0
  %v4307 = vsel %vm1679, %v4281, 0
  %v4310 = vsel %vm1679, %v4282, 0
  %v4313 = vsel %vm1679, %v4283, 0
  %4315 = vmatprep.subr.mxu0 0.0
  %4316 = vmatpush1.msra.mxu0 0.0
  %4317 = vmatprep.subr.mxu0 0.0
  %4318 = vmatpush1.msra.mxu0 0.0
  %4319 = vmatprep.subr.mxu0 0.0
  %4320 = vmatpush1.msra.mxu0 0.0
  %4321 = vmatprep.subr.mxu0 0.0
  %4322 = vmatpush1.msra.mxu0 0.0
  %4323 = vmatprep.subr.mxu0 0.0
  %4324 = vmatpush1.msra.mxu0 0.0
  %4325 = vmatprep.subr.mxu0 0.0
  %4326 = vmatpush1.msra.mxu0 0.0
  %4327 = vmatprep.subr.mxu0 0.0
  %4328 = vmatpush1.msra.mxu0 0.0
  %4329 = vmatprep.subr.mxu0 0.0
  %4330 = vmatpush1.msra.mxu0 0.0
  %4331 = vmatprep.subr.mxu0 0.0
  %4332 = vmatpush1.msra.mxu0 0.0
  %4333 = vmatprep.subr.mxu0 0.0
  %4334 = vmatpush1.msra.mxu0 0.0
  %4335 = vmatprep.subr.mxu0 0.0
  %4336 = vmatpush1.msra.mxu0 0.0
  %4337 = vmatprep.subr.mxu0 0.0
  %4338 = vmatpush1.msra.mxu0 0.0
  %4339 = vmatprep.subr.mxu0 0.0
  %4340 = vmatpush1.msra.mxu0 %v4287
  %4341 = vmatprep.subr.mxu0 0.0
  %4342 = vmatpush1.msra.mxu0 %v4286
  %4343 = vmatprep.subr.mxu0 0.0
  %4344 = vmatpush1.msra.mxu0 %v4285
  %4345 = vmatprep.subr.mxu0 0.0
  %4346 = vmatpush1.msra.mxu0 %v4284
  %4347 = vmatprep.subr.mxu0 0.0
  %4348 = vmatpush2.msra.mxu0 0.0
  %4349 = vmatprep.subr.mxu0 0.0
  %4350 = vmatpush2.msra.mxu0 0.0
  %4351 = vmatprep.subr.mxu0 0.0
  %4352 = vmatpush2.msra.mxu0 0.0
  %4353 = vmatprep.subr.mxu0 0.0
  %4354 = vmatpush2.msra.mxu0 0.0
  %4355 = vmatprep.subr.mxu0 0.0
  %4356 = vmatpush2.msra.mxu0 0.0
  %4357 = vmatprep.subr.mxu0 0.0
  %4358 = vmatpush2.msra.mxu0 0.0
  %4359 = vmatprep.subr.mxu0 0.0
  %4360 = vmatpush2.msra.mxu0 0.0
  %4361 = vmatprep.subr.mxu0 0.0
  %4362 = vmatpush2.msra.mxu0 0.0
  %4363 = vmatprep.subr.mxu0 0.0
  %4364 = vmatpush2.msra.mxu0 0.0
  %4365 = vmatprep.subr.mxu0 0.0
  %4366 = vmatpush2.msra.mxu0 0.0
  %4367 = vmatprep.subr.mxu0 0.0
  %4368 = vmatpush2.msra.mxu0 0.0
  %4369 = vmatprep.subr.mxu0 0.0
  %4370 = vmatpush2.msra.mxu0 0.0
  %4371 = vmatprep.subr.mxu0 0.0
  %4372 = vmatpush2.msra.mxu0 0.0
  %4373 = vmatprep.subr.mxu0 0.0
  %4374 = vmatpush2.msra.mxu0 0.0
  %4375 = vmatprep.subr.mxu0 0.0
  %4376 = vmatpush2.msra.mxu0 0.0
  %4377 = vmatprep.subr.mxu0 0.0
  %4378 = vmatpush2.msra.mxu0 0.0
  %4379 = vmatprep.mubr.f32.mxu0 0.0
  %4380 = vmatmul.mubr.f32.gmra.mxu0 %v4289
  %v4381 = vpop.f32.mrf.mxu0
  %v4382 = vadd.f32 0.0, %v4381
  %v4383 = vpop.f32.mrf.mxu0
  %4384 = vmatprep.mubr.f32.mxu0 0.0
  %4385 = vmatmul.mubr.f32.gmra.mxu0 %v4292
  %v4386 = vpop.f32.mrf.mxu0
  %v4387 = vadd.f32 0.0, %v4386
  %v4388 = vpop.f32.mrf.mxu0
  %4389 = vmatprep.mubr.f32.mxu0 0.0
  %4390 = vmatmul.mubr.f32.gmra.mxu0 %v4295
  %v4391 = vpop.f32.mrf.mxu0
  %v4392 = vadd.f32 0.0, %v4391
  %v4393 = vpop.f32.mrf.mxu0
  %4394 = vmatprep.mubr.f32.mxu0 0.0
  %4395 = vmatmul.mubr.f32.gmra.mxu0 %v4298
  %v4396 = vpop.f32.mrf.mxu0
  %v4397 = vadd.f32 0.0, %v4396
  %v4398 = vpop.f32.mrf.mxu0
  %4399 = vmatprep.mubr.f32.mxu0 0.0
  %4400 = vmatmul.mubr.f32.gmra.mxu0 %v4301
  %v4401 = vpop.f32.mrf.mxu0
  %v4402 = vadd.f32 0.0, %v4401
  %v4403 = vpop.f32.mrf.mxu0
  %4404 = vmatprep.mubr.f32.mxu0 0.0
  %4405 = vmatmul.mubr.f32.gmra.mxu0 %v4304
  %v4406 = vpop.f32.mrf.mxu0
  %v4407 = vadd.f32 0.0, %v4406
  %v4408 = vpop.f32.mrf.mxu0
  %4409 = vmatprep.mubr.f32.mxu0 0.0
  %4410 = vmatmul.mubr.f32.gmra.mxu0 %v4307
  %v4411 = vpop.f32.mrf.mxu0
  %v4412 = vadd.f32 0.0, %v4411
  %v4413 = vpop.f32.mrf.mxu0
  %4414 = vmatprep.mubr.f32.mxu0 0.0
  %4415 = vmatmul.mubr.f32.gmra.mxu0 %v4310
  %v4416 = vpop.f32.mrf.mxu0
  %v4417 = vadd.f32 0.0, %v4416
  %v4418 = vpop.f32.mrf.mxu0
  %4419 = vmatprep.mubr.f32.mxu0 0.0
  %4420 = vmatmul.mubr.f32.gmra.mxu0 %v4313
  %v4421 = vpop.f32.mrf.mxu0
  %v4422 = vadd.f32 0.0, %v4421
  %v4423 = vpop.f32.mrf.mxu0
  %4424 = vdwg.mxu0
  %v4425 = vadd.f32 %v4266, %v4382
  %v4426 = vadd.f32 %v4267, %v4387
  %v4427 = vadd.f32 %v4268, %v4392
  %v4428 = vadd.f32 %v4269, %v4397
  %v4429 = vadd.f32 %v4270, %v4402
  %v4430 = vadd.f32 %v4271, %v4407
  %v4431 = vadd.f32 %v4272, %v4412
  %v4432 = vadd.f32 %v4273, %v4417
  %v4433 = vadd.f32 %v4274, %v4422
  %v4434 = vld [vmem:[#allocation2 + $0x480] sm:$0xff]
  %v4435 = vld [vmem:[#allocation2 + $0x488] sm:$0xff]
  %v4436 = vld [vmem:[#allocation2 + $0x490] sm:$0xff]
  %v4437 = vld [vmem:[#allocation2 + $0x498] sm:$0xff]
  %v4438 = vld [vmem:[#allocation2 + $0x4a0] sm:$0xff]
  %v4439 = vld [vmem:[#allocation2 + $0x4a8] sm:$0xff]
  %v4440 = vld [vmem:[#allocation2 + $0x4b0] sm:$0xff]
  %v4441 = vld [vmem:[#allocation2 + $0x4b8] sm:$0xff]
  %v4442 = vld [vmem:[#allocation2 + $0x4c0] sm:$0xff]
  %v4443 = vld [vmem:[%s2 + $0x200] sm:$0xff]
  %v4444 = vld [vmem:[%s2 + $0x208] sm:$0xff]
  %v4445 = vld [vmem:[%s2 + $0x210] sm:$0xff]
  %v4446 = vld [vmem:[%s2 + $0x218] sm:$0xff]
  %v4448 = vsel %vm1679, %v4434, 0
  %v4451 = vsel %vm1679, %v4435, 0
  %v4454 = vsel %vm1679, %v4436, 0
  %v4457 = vsel %vm1679, %v4437, 0
  %v4460 = vsel %vm1679, %v4438, 0
  %v4463 = vsel %vm1679, %v4439, 0
  %v4466 = vsel %vm1679, %v4440, 0
  %v4469 = vsel %vm1679, %v4441, 0
  %v4472 = vsel %vm1679, %v4442, 0
  %4474 = vmatprep.subr.mxu0 0.0
  %4475 = vmatpush1.msra.mxu0 0.0
  %4476 = vmatprep.subr.mxu0 0.0
  %4477 = vmatpush1.msra.mxu0 0.0
  %4478 = vmatprep.subr.mxu0 0.0
  %4479 = vmatpush1.msra.mxu0 0.0
  %4480 = vmatprep.subr.mxu0 0.0
  %4481 = vmatpush1.msra.mxu0 0.0
  %4482 = vmatprep.subr.mxu0 0.0
  %4483 = vmatpush1.msra.mxu0 0.0
  %4484 = vmatprep.subr.mxu0 0.0
  %4485 = vmatpush1.msra.mxu0 0.0
  %4486 = vmatprep.subr.mxu0 0.0
  %4487 = vmatpush1.msra.mxu0 0.0
  %4488 = vmatprep.subr.mxu0 0.0
  %4489 = vmatpush1.msra.mxu0 0.0
  %4490 = vmatprep.subr.mxu0 0.0
  %4491 = vmatpush1.msra.mxu0 0.0
  %4492 = vmatprep.subr.mxu0 0.0
  %4493 = vmatpush1.msra.mxu0 0.0
  %4494 = vmatprep.subr.mxu0 0.0
  %4495 = vmatpush1.msra.mxu0 0.0
  %4496 = vmatprep.subr.mxu0 0.0
  %4497 = vmatpush1.msra.mxu0 0.0
  %4498 = vmatprep.subr.mxu0 0.0
  %4499 = vmatpush1.msra.mxu0 %v4446
  %4500 = vmatprep.subr.mxu0 0.0
  %4501 = vmatpush1.msra.mxu0 %v4445
  %4502 = vmatprep.subr.mxu0 0.0
  %4503 = vmatpush1.msra.mxu0 %v4444
  %4504 = vmatprep.subr.mxu0 0.0
  %4505 = vmatpush1.msra.mxu0 %v4443
  %4506 = vmatprep.subr.mxu0 0.0
  %4507 = vmatpush2.msra.mxu0 0.0
  %4508 = vmatprep.subr.mxu0 0.0
  %4509 = vmatpush2.msra.mxu0 0.0
  %4510 = vmatprep.subr.mxu0 0.0
  %4511 = vmatpush2.msra.mxu0 0.0
  %4512 = vmatprep.subr.mxu0 0.0
  %4513 = vmatpush2.msra.mxu0 0.0
  %4514 = vmatprep.subr.mxu0 0.0
  %4515 = vmatpush2.msra.mxu0 0.0
  %4516 = vmatprep.subr.mxu0 0.0
  %4517 = vmatpush2.msra.mxu0 0.0
  %4518 = vmatprep.subr.mxu0 0.0
  %4519 = vmatpush2.msra.mxu0 0.0
  %4520 = vmatprep.subr.mxu0 0.0
  %4521 = vmatpush2.msra.mxu0 0.0
  %4522 = vmatprep.subr.mxu0 0.0
  %4523 = vmatpush2.msra.mxu0 0.0
  %4524 = vmatprep.subr.mxu0 0.0
  %4525 = vmatpush2.msra.mxu0 0.0
  %4526 = vmatprep.subr.mxu0 0.0
  %4527 = vmatpush2.msra.mxu0 0.0
  %4528 = vmatprep.subr.mxu0 0.0
  %4529 = vmatpush2.msra.mxu0 0.0
  %4530 = vmatprep.subr.mxu0 0.0
  %4531 = vmatpush2.msra.mxu0 0.0
  %4532 = vmatprep.subr.mxu0 0.0
  %4533 = vmatpush2.msra.mxu0 0.0
  %4534 = vmatprep.subr.mxu0 0.0
  %4535 = vmatpush2.msra.mxu0 0.0
  %4536 = vmatprep.subr.mxu0 0.0
  %4537 = vmatpush2.msra.mxu0 0.0
  %4538 = vmatprep.mubr.f32.mxu0 0.0
  %4539 = vmatmul.mubr.f32.gmra.mxu0 %v4448
  %v4540 = vpop.f32.mrf.mxu0
  %v4541 = vadd.f32 0.0, %v4540
  %v4542 = vpop.f32.mrf.mxu0
  %4543 = vmatprep.mubr.f32.mxu0 0.0
  %4544 = vmatmul.mubr.f32.gmra.mxu0 %v4451
  %v4545 = vpop.f32.mrf.mxu0
  %v4546 = vadd.f32 0.0, %v4545
  %v4547 = vpop.f32.mrf.mxu0
  %4548 = vmatprep.mubr.f32.mxu0 0.0
  %4549 = vmatmul.mubr.f32.gmra.mxu0 %v4454
  %v4550 = vpop.f32.mrf.mxu0
  %v4551 = vadd.f32 0.0, %v4550
  %v4552 = vpop.f32.mrf.mxu0
  %4553 = vmatprep.mubr.f32.mxu0 0.0
  %4554 = vmatmul.mubr.f32.gmra.mxu0 %v4457
  %v4555 = vpop.f32.mrf.mxu0
  %v4556 = vadd.f32 0.0, %v4555
  %v4557 = vpop.f32.mrf.mxu0
  %4558 = vmatprep.mubr.f32.mxu0 0.0
  %4559 = vmatmul.mubr.f32.gmra.mxu0 %v4460
  %v4560 = vpop.f32.mrf.mxu0
  %v4561 = vadd.f32 0.0, %v4560
  %v4562 = vpop.f32.mrf.mxu0
  %4563 = vmatprep.mubr.f32.mxu0 0.0
  %4564 = vmatmul.mubr.f32.gmra.mxu0 %v4463
  %v4565 = vpop.f32.mrf.mxu0
  %v4566 = vadd.f32 0.0, %v4565
  %v4567 = vpop.f32.mrf.mxu0
  %4568 = vmatprep.mubr.f32.mxu0 0.0
  %4569 = vmatmul.mubr.f32.gmra.mxu0 %v4466
  %v4570 = vpop.f32.mrf.mxu0
  %v4571 = vadd.f32 0.0, %v4570
  %v4572 = vpop.f32.mrf.mxu0
  %4573 = vmatprep.mubr.f32.mxu0 0.0
  %4574 = vmatmul.mubr.f32.gmra.mxu0 %v4469
  %v4575 = vpop.f32.mrf.mxu0
  %v4576 = vadd.f32 0.0, %v4575
  %v4577 = vpop.f32.mrf.mxu0
  %4578 = vmatprep.mubr.f32.mxu0 0.0
  %4579 = vmatmul.mubr.f32.gmra.mxu0 %v4472
  %v4580 = vpop.f32.mrf.mxu0
  %v4581 = vadd.f32 0.0, %v4580
  %v4582 = vpop.f32.mrf.mxu0
  %4583 = vdwg.mxu0
  %v4584 = vadd.f32 %v4425, %v4541
  %v4585 = vadd.f32 %v4426, %v4546
  %v4586 = vadd.f32 %v4427, %v4551
  %v4587 = vadd.f32 %v4428, %v4556
  %v4588 = vadd.f32 %v4429, %v4561
  %v4589 = vadd.f32 %v4430, %v4566
  %v4590 = vadd.f32 %v4431, %v4571
  %v4591 = vadd.f32 %v4432, %v4576
  %v4592 = vadd.f32 %v4433, %v4581
  %v4593 = vld [vmem:[#allocation2 + $0x4c8] sm:$0xff]
  %v4594 = vld [vmem:[#allocation2 + $0x4d0] sm:$0xff]
  %v4595 = vld [vmem:[#allocation2 + $0x4d8] sm:$0xff]
  %v4596 = vld [vmem:[#allocation2 + $0x4e0] sm:$0xff]
  %v4597 = vld [vmem:[#allocation2 + $0x4e8] sm:$0xff]
  %v4598 = vld [vmem:[#allocation2 + $0x4f0] sm:$0xff]
  %v4599 = vld [vmem:[#allocation2 + $0x4f8] sm:$0xff]
  %v4600 = vld [vmem:[#allocation2 + $0x500] sm:$0xff]
  %v4601 = vld [vmem:[#allocation2 + $0x508] sm:$0xff]
  %v4602 = vld [vmem:[%s2 + $0x220] sm:$0xff]
  %v4603 = vld [vmem:[%s2 + $0x228] sm:$0xff]
  %v4604 = vld [vmem:[%s2 + $0x230] sm:$0xff]
  %v4605 = vld [vmem:[%s2 + $0x238] sm:$0xff]
  %v4607 = vsel %vm1679, %v4593, 0
  %v4610 = vsel %vm1679, %v4594, 0
  %v4613 = vsel %vm1679, %v4595, 0
  %v4616 = vsel %vm1679, %v4596, 0
  %v4619 = vsel %vm1679, %v4597, 0
  %v4622 = vsel %vm1679, %v4598, 0
  %v4625 = vsel %vm1679, %v4599, 0
  %v4628 = vsel %vm1679, %v4600, 0
  %v4631 = vsel %vm1679, %v4601, 0
  %4633 = vmatprep.subr.mxu0 0.0
  %4634 = vmatpush1.msra.mxu0 0.0
  %4635 = vmatprep.subr.mxu0 0.0
  %4636 = vmatpush1.msra.mxu0 0.0
  %4637 = vmatprep.subr.mxu0 0.0
  %4638 = vmatpush1.msra.mxu0 0.0
  %4639 = vmatprep.subr.mxu0 0.0
  %4640 = vmatpush1.msra.mxu0 0.0
  %4641 = vmatprep.subr.mxu0 0.0
  %4642 = vmatpush1.msra.mxu0 0.0
  %4643 = vmatprep.subr.mxu0 0.0
  %4644 = vmatpush1.msra.mxu0 0.0
  %4645 = vmatprep.subr.mxu0 0.0
  %4646 = vmatpush1.msra.mxu0 0.0
  %4647 = vmatprep.subr.mxu0 0.0
  %4648 = vmatpush1.msra.mxu0 0.0
  %4649 = vmatprep.subr.mxu0 0.0
  %4650 = vmatpush1.msra.mxu0 0.0
  %4651 = vmatprep.subr.mxu0 0.0
  %4652 = vmatpush1.msra.mxu0 0.0
  %4653 = vmatprep.subr.mxu0 0.0
  %4654 = vmatpush1.msra.mxu0 0.0
  %4655 = vmatprep.subr.mxu0 0.0
  %4656 = vmatpush1.msra.mxu0 0.0
  %4657 = vmatprep.subr.mxu0 0.0
  %4658 = vmatpush1.msra.mxu0 %v4605
  %4659 = vmatprep.subr.mxu0 0.0
  %4660 = vmatpush1.msra.mxu0 %v4604
  %4661 = vmatprep.subr.mxu0 0.0
  %4662 = vmatpush1.msra.mxu0 %v4603
  %4663 = vmatprep.subr.mxu0 0.0
  %4664 = vmatpush1.msra.mxu0 %v4602
  %4665 = vmatprep.subr.mxu0 0.0
  %4666 = vmatpush2.msra.mxu0 0.0
  %4667 = vmatprep.subr.mxu0 0.0
  %4668 = vmatpush2.msra.mxu0 0.0
  %4669 = vmatprep.subr.mxu0 0.0
  %4670 = vmatpush2.msra.mxu0 0.0
  %4671 = vmatprep.subr.mxu0 0.0
  %4672 = vmatpush2.msra.mxu0 0.0
  %4673 = vmatprep.subr.mxu0 0.0
  %4674 = vmatpush2.msra.mxu0 0.0
  %4675 = vmatprep.subr.mxu0 0.0
  %4676 = vmatpush2.msra.mxu0 0.0
  %4677 = vmatprep.subr.mxu0 0.0
  %4678 = vmatpush2.msra.mxu0 0.0
  %4679 = vmatprep.subr.mxu0 0.0
  %4680 = vmatpush2.msra.mxu0 0.0
  %4681 = vmatprep.subr.mxu0 0.0
  %4682 = vmatpush2.msra.mxu0 0.0
  %4683 = vmatprep.subr.mxu0 0.0
  %4684 = vmatpush2.msra.mxu0 0.0
  %4685 = vmatprep.subr.mxu0 0.0
  %4686 = vmatpush2.msra.mxu0 0.0
  %4687 = vmatprep.subr.mxu0 0.0
  %4688 = vmatpush2.msra.mxu0 0.0
  %4689 = vmatprep.subr.mxu0 0.0
  %4690 = vmatpush2.msra.mxu0 0.0
  %4691 = vmatprep.subr.mxu0 0.0
  %4692 = vmatpush2.msra.mxu0 0.0
  %4693 = vmatprep.subr.mxu0 0.0
  %4694 = vmatpush2.msra.mxu0 0.0
  %4695 = vmatprep.subr.mxu0 0.0
  %4696 = vmatpush2.msra.mxu0 0.0
  %4697 = vmatprep.mubr.f32.mxu0 0.0
  %4698 = vmatmul.mubr.f32.gmra.mxu0 %v4607
  %v4699 = vpop.f32.mrf.mxu0
  %v4700 = vadd.f32 0.0, %v4699
  %v4701 = vpop.f32.mrf.mxu0
  %4702 = vmatprep.mubr.f32.mxu0 0.0
  %4703 = vmatmul.mubr.f32.gmra.mxu0 %v4610
  %v4704 = vpop.f32.mrf.mxu0
  %v4705 = vadd.f32 0.0, %v4704
  %v4706 = vpop.f32.mrf.mxu0
  %4707 = vmatprep.mubr.f32.mxu0 0.0
  %4708 = vmatmul.mubr.f32.gmra.mxu0 %v4613
  %v4709 = vpop.f32.mrf.mxu0
  %v4710 = vadd.f32 0.0, %v4709
  %v4711 = vpop.f32.mrf.mxu0
  %4712 = vmatprep.mubr.f32.mxu0 0.0
  %4713 = vmatmul.mubr.f32.gmra.mxu0 %v4616
  %v4714 = vpop.f32.mrf.mxu0
  %v4715 = vadd.f32 0.0, %v4714
  %v4716 = vpop.f32.mrf.mxu0
  %4717 = vmatprep.mubr.f32.mxu0 0.0
  %4718 = vmatmul.mubr.f32.gmra.mxu0 %v4619
  %v4719 = vpop.f32.mrf.mxu0
  %v4720 = vadd.f32 0.0, %v4719
  %v4721 = vpop.f32.mrf.mxu0
  %4722 = vmatprep.mubr.f32.mxu0 0.0
  %4723 = vmatmul.mubr.f32.gmra.mxu0 %v4622
  %v4724 = vpop.f32.mrf.mxu0
  %v4725 = vadd.f32 0.0, %v4724
  %v4726 = vpop.f32.mrf.mxu0
  %4727 = vmatprep.mubr.f32.mxu0 0.0
  %4728 = vmatmul.mubr.f32.gmra.mxu0 %v4625
  %v4729 = vpop.f32.mrf.mxu0
  %v4730 = vadd.f32 0.0, %v4729
  %v4731 = vpop.f32.mrf.mxu0
  %4732 = vmatprep.mubr.f32.mxu0 0.0
  %4733 = vmatmul.mubr.f32.gmra.mxu0 %v4628
  %v4734 = vpop.f32.mrf.mxu0
  %v4735 = vadd.f32 0.0, %v4734
  %v4736 = vpop.f32.mrf.mxu0
  %4737 = vmatprep.mubr.f32.mxu0 0.0
  %4738 = vmatmul.mubr.f32.gmra.mxu0 %v4631
  %v4739 = vpop.f32.mrf.mxu0
  %v4740 = vadd.f32 0.0, %v4739
  %v4741 = vpop.f32.mrf.mxu0
  %4742 = vdwg.mxu0
  %v4743 = vadd.f32 %v4584, %v4700
  %v4744 = vadd.f32 %v4585, %v4705
  %v4745 = vadd.f32 %v4586, %v4710
  %v4746 = vadd.f32 %v4587, %v4715
  %v4747 = vadd.f32 %v4588, %v4720
  %v4748 = vadd.f32 %v4589, %v4725
  %v4749 = vadd.f32 %v4590, %v4730
  %v4750 = vadd.f32 %v4591, %v4735
  %v4751 = vadd.f32 %v4592, %v4740
  %v4752 = vld [vmem:[#allocation2 + $0x510] sm:$0xff]
  %v4753 = vld [vmem:[#allocation2 + $0x518] sm:$0xff]
  %v4754 = vld [vmem:[#allocation2 + $0x520] sm:$0xff]
  %v4755 = vld [vmem:[#allocation2 + $0x528] sm:$0xff]
  %v4756 = vld [vmem:[#allocation2 + $0x530] sm:$0xff]
  %v4757 = vld [vmem:[#allocation2 + $0x538] sm:$0xff]
  %v4758 = vld [vmem:[#allocation2 + $0x540] sm:$0xff]
  %v4759 = vld [vmem:[#allocation2 + $0x548] sm:$0xff]
  %v4760 = vld [vmem:[#allocation2 + $0x550] sm:$0xff]
  %v4761 = vld [vmem:[%s2 + $0x240] sm:$0xff]
  %v4762 = vld [vmem:[%s2 + $0x248] sm:$0xff]
  %v4763 = vld [vmem:[%s2 + $0x250] sm:$0xff]
  %v4764 = vld [vmem:[%s2 + $0x258] sm:$0xff]
  %v4766 = vsel %vm1679, %v4752, 0
  %v4769 = vsel %vm1679, %v4753, 0
  %v4772 = vsel %vm1679, %v4754, 0
  %v4775 = vsel %vm1679, %v4755, 0
  %v4778 = vsel %vm1679, %v4756, 0
  %v4781 = vsel %vm1679, %v4757, 0
  %v4784 = vsel %vm1679, %v4758, 0
  %v4787 = vsel %vm1679, %v4759, 0
  %v4790 = vsel %vm1679, %v4760, 0
  %4792 = vmatprep.subr.mxu0 0.0
  %4793 = vmatpush1.msra.mxu0 0.0
  %4794 = vmatprep.subr.mxu0 0.0
  %4795 = vmatpush1.msra.mxu0 0.0
  %4796 = vmatprep.subr.mxu0 0.0
  %4797 = vmatpush1.msra.mxu0 0.0
  %4798 = vmatprep.subr.mxu0 0.0
  %4799 = vmatpush1.msra.mxu0 0.0
  %4800 = vmatprep.subr.mxu0 0.0
  %4801 = vmatpush1.msra.mxu0 0.0
  %4802 = vmatprep.subr.mxu0 0.0
  %4803 = vmatpush1.msra.mxu0 0.0
  %4804 = vmatprep.subr.mxu0 0.0
  %4805 = vmatpush1.msra.mxu0 0.0
  %4806 = vmatprep.subr.mxu0 0.0
  %4807 = vmatpush1.msra.mxu0 0.0
  %4808 = vmatprep.subr.mxu0 0.0
  %4809 = vmatpush1.msra.mxu0 0.0
  %4810 = vmatprep.subr.mxu0 0.0
  %4811 = vmatpush1.msra.mxu0 0.0
  %4812 = vmatprep.subr.mxu0 0.0
  %4813 = vmatpush1.msra.mxu0 0.0
  %4814 = vmatprep.subr.mxu0 0.0
  %4815 = vmatpush1.msra.mxu0 0.0
  %4816 = vmatprep.subr.mxu0 0.0
  %4817 = vmatpush1.msra.mxu0 %v4764
  %4818 = vmatprep.subr.mxu0 0.0
  %4819 = vmatpush1.msra.mxu0 %v4763
  %4820 = vmatprep.subr.mxu0 0.0
  %4821 = vmatpush1.msra.mxu0 %v4762
  %4822 = vmatprep.subr.mxu0 0.0
  %4823 = vmatpush1.msra.mxu0 %v4761
  %4824 = vmatprep.subr.mxu0 0.0
  %4825 = vmatpush2.msra.mxu0 0.0
  %4826 = vmatprep.subr.mxu0 0.0
  %4827 = vmatpush2.msra.mxu0 0.0
  %4828 = vmatprep.subr.mxu0 0.0
  %4829 = vmatpush2.msra.mxu0 0.0
  %4830 = vmatprep.subr.mxu0 0.0
  %4831 = vmatpush2.msra.mxu0 0.0
  %4832 = vmatprep.subr.mxu0 0.0
  %4833 = vmatpush2.msra.mxu0 0.0
  %4834 = vmatprep.subr.mxu0 0.0
  %4835 = vmatpush2.msra.mxu0 0.0
  %4836 = vmatprep.subr.mxu0 0.0
  %4837 = vmatpush2.msra.mxu0 0.0
  %4838 = vmatprep.subr.mxu0 0.0
  %4839 = vmatpush2.msra.mxu0 0.0
  %4840 = vmatprep.subr.mxu0 0.0
  %4841 = vmatpush2.msra.mxu0 0.0
  %4842 = vmatprep.subr.mxu0 0.0
  %4843 = vmatpush2.msra.mxu0 0.0
  %4844 = vmatprep.subr.mxu0 0.0
  %4845 = vmatpush2.msra.mxu0 0.0
  %4846 = vmatprep.subr.mxu0 0.0
  %4847 = vmatpush2.msra.mxu0 0.0
  %4848 = vmatprep.subr.mxu0 0.0
  %4849 = vmatpush2.msra.mxu0 0.0
  %4850 = vmatprep.subr.mxu0 0.0
  %4851 = vmatpush2.msra.mxu0 0.0
  %4852 = vmatprep.subr.mxu0 0.0
  %4853 = vmatpush2.msra.mxu0 0.0
  %4854 = vmatprep.subr.mxu0 0.0
  %4855 = vmatpush2.msra.mxu0 0.0
  %4856 = vmatprep.mubr.f32.mxu0 0.0
  %4857 = vmatmul.mubr.f32.gmra.mxu0 %v4766
  %v4858 = vpop.f32.mrf.mxu0
  %v4859 = vadd.f32 0.0, %v4858
  %v4860 = vpop.f32.mrf.mxu0
  %4861 = vmatprep.mubr.f32.mxu0 0.0
  %4862 = vmatmul.mubr.f32.gmra.mxu0 %v4769
  %v4863 = vpop.f32.mrf.mxu0
  %v4864 = vadd.f32 0.0, %v4863
  %v4865 = vpop.f32.mrf.mxu0
  %4866 = vmatprep.mubr.f32.mxu0 0.0
  %4867 = vmatmul.mubr.f32.gmra.mxu0 %v4772
  %v4868 = vpop.f32.mrf.mxu0
  %v4869 = vadd.f32 0.0, %v4868
  %v4870 = vpop.f32.mrf.mxu0
  %4871 = vmatprep.mubr.f32.mxu0 0.0
  %4872 = vmatmul.mubr.f32.gmra.mxu0 %v4775
  %v4873 = vpop.f32.mrf.mxu0
  %v4874 = vadd.f32 0.0, %v4873
  %v4875 = vpop.f32.mrf.mxu0
  %4876 = vmatprep.mubr.f32.mxu0 0.0
  %4877 = vmatmul.mubr.f32.gmra.mxu0 %v4778
  %v4878 = vpop.f32.mrf.mxu0
  %v4879 = vadd.f32 0.0, %v4878
  %v4880 = vpop.f32.mrf.mxu0
  %4881 = vmatprep.mubr.f32.mxu0 0.0
  %4882 = vmatmul.mubr.f32.gmra.mxu0 %v4781
  %v4883 = vpop.f32.mrf.mxu0
  %v4884 = vadd.f32 0.0, %v4883
  %v4885 = vpop.f32.mrf.mxu0
  %4886 = vmatprep.mubr.f32.mxu0 0.0
  %4887 = vmatmul.mubr.f32.gmra.mxu0 %v4784
  %v4888 = vpop.f32.mrf.mxu0
  %v4889 = vadd.f32 0.0, %v4888
  %v4890 = vpop.f32.mrf.mxu0
  %4891 = vmatprep.mubr.f32.mxu0 0.0
  %4892 = vmatmul.mubr.f32.gmra.mxu0 %v4787
  %v4893 = vpop.f32.mrf.mxu0
  %v4894 = vadd.f32 0.0, %v4893
  %v4895 = vpop.f32.mrf.mxu0
  %4896 = vmatprep.mubr.f32.mxu0 0.0
  %4897 = vmatmul.mubr.f32.gmra.mxu0 %v4790
  %v4898 = vpop.f32.mrf.mxu0
  %v4899 = vadd.f32 0.0, %v4898
  %v4900 = vpop.f32.mrf.mxu0
  %4901 = vdwg.mxu0
  %v4902 = vadd.f32 %v4743, %v4859
  %v4903 = vadd.f32 %v4744, %v4864
  %v4904 = vadd.f32 %v4745, %v4869
  %v4905 = vadd.f32 %v4746, %v4874
  %v4906 = vadd.f32 %v4747, %v4879
  %v4907 = vadd.f32 %v4748, %v4884
  %v4908 = vadd.f32 %v4749, %v4889
  %v4909 = vadd.f32 %v4750, %v4894
  %v4910 = vadd.f32 %v4751, %v4899
  %v4911 = vld [vmem:[#allocation2 + $0x558] sm:$0xff]
  %v4912 = vld [vmem:[#allocation2 + $0x560] sm:$0xff]
  %v4913 = vld [vmem:[#allocation2 + $0x568] sm:$0xff]
  %v4914 = vld [vmem:[#allocation2 + $0x570] sm:$0xff]
  %v4915 = vld [vmem:[#allocation2 + $0x578] sm:$0xff]
  %v4916 = vld [vmem:[#allocation2 + $0x580] sm:$0xff]
  %v4917 = vld [vmem:[#allocation2 + $0x588] sm:$0xff]
  %v4918 = vld [vmem:[#allocation2 + $0x590] sm:$0xff]
  %v4919 = vld [vmem:[#allocation2 + $0x598] sm:$0xff]
  %v4920 = vld [vmem:[%s2 + $0x260] sm:$0xff]
  %v4921 = vld [vmem:[%s2 + $0x268] sm:$0xff]
  %v4922 = vld [vmem:[%s2 + $0x270] sm:$0xff]
  %v4923 = vld [vmem:[%s2 + $0x278] sm:$0xff]
  %v4925 = vsel %vm1679, %v4911, 0
  %v4928 = vsel %vm1679, %v4912, 0
  %v4931 = vsel %vm1679, %v4913, 0
  %v4934 = vsel %vm1679, %v4914, 0
  %v4937 = vsel %vm1679, %v4915, 0
  %v4940 = vsel %vm1679, %v4916, 0
  %v4943 = vsel %vm1679, %v4917, 0
  %v4946 = vsel %vm1679, %v4918, 0
  %v4949 = vsel %vm1679, %v4919, 0
  %4951 = vmatprep.subr.mxu0 0.0
  %4952 = vmatpush1.msra.mxu0 0.0
  %4953 = vmatprep.subr.mxu0 0.0
  %4954 = vmatpush1.msra.mxu0 0.0
  %4955 = vmatprep.subr.mxu0 0.0
  %4956 = vmatpush1.msra.mxu0 0.0
  %4957 = vmatprep.subr.mxu0 0.0
  %4958 = vmatpush1.msra.mxu0 0.0
  %4959 = vmatprep.subr.mxu0 0.0
  %4960 = vmatpush1.msra.mxu0 0.0
  %4961 = vmatprep.subr.mxu0 0.0
  %4962 = vmatpush1.msra.mxu0 0.0
  %4963 = vmatprep.subr.mxu0 0.0
  %4964 = vmatpush1.msra.mxu0 0.0
  %4965 = vmatprep.subr.mxu0 0.0
  %4966 = vmatpush1.msra.mxu0 0.0
  %4967 = vmatprep.subr.mxu0 0.0
  %4968 = vmatpush1.msra.mxu0 0.0
  %4969 = vmatprep.subr.mxu0 0.0
  %4970 = vmatpush1.msra.mxu0 0.0
  %4971 = vmatprep.subr.mxu0 0.0
  %4972 = vmatpush1.msra.mxu0 0.0
  %4973 = vmatprep.subr.mxu0 0.0
  %4974 = vmatpush1.msra.mxu0 0.0
  %4975 = vmatprep.subr.mxu0 0.0
  %4976 = vmatpush1.msra.mxu0 %v4923
  %4977 = vmatprep.subr.mxu0 0.0
  %4978 = vmatpush1.msra.mxu0 %v4922
  %4979 = vmatprep.subr.mxu0 0.0
  %4980 = vmatpush1.msra.mxu0 %v4921
  %4981 = vmatprep.subr.mxu0 0.0
  %4982 = vmatpush1.msra.mxu0 %v4920
  %4983 = vmatprep.subr.mxu0 0.0
  %4984 = vmatpush2.msra.mxu0 0.0
  %4985 = vmatprep.subr.mxu0 0.0
  %4986 = vmatpush2.msra.mxu0 0.0
  %4987 = vmatprep.subr.mxu0 0.0
  %4988 = vmatpush2.msra.mxu0 0.0
  %4989 = vmatprep.subr.mxu0 0.0
  %4990 = vmatpush2.msra.mxu0 0.0
  %4991 = vmatprep.subr.mxu0 0.0
  %4992 = vmatpush2.msra.mxu0 0.0
  %4993 = vmatprep.subr.mxu0 0.0
  %4994 = vmatpush2.msra.mxu0 0.0
  %4995 = vmatprep.subr.mxu0 0.0
  %4996 = vmatpush2.msra.mxu0 0.0
  %4997 = vmatprep.subr.mxu0 0.0
  %4998 = vmatpush2.msra.mxu0 0.0
  %4999 = vmatprep.subr.mxu0 0.0
  %5000 = vmatpush2.msra.mxu0 0.0
  %5001 = vmatprep.subr.mxu0 0.0
  %5002 = vmatpush2.msra.mxu0 0.0
  %5003 = vmatprep.subr.mxu0 0.0
  %5004 = vmatpush2.msra.mxu0 0.0
  %5005 = vmatprep.subr.mxu0 0.0
  %5006 = vmatpush2.msra.mxu0 0.0
  %5007 = vmatprep.subr.mxu0 0.0
  %5008 = vmatpush2.msra.mxu0 0.0
  %5009 = vmatprep.subr.mxu0 0.0
  %5010 = vmatpush2.msra.mxu0 0.0
  %5011 = vmatprep.subr.mxu0 0.0
  %5012 = vmatpush2.msra.mxu0 0.0
  %5013 = vmatprep.subr.mxu0 0.0
  %5014 = vmatpush2.msra.mxu0 0.0
  %5015 = vmatprep.mubr.f32.mxu0 0.0
  %5016 = vmatmul.mubr.f32.gmra.mxu0 %v4925
  %v5017 = vpop.f32.mrf.mxu0
  %v5018 = vadd.f32 0.0, %v5017
  %v5019 = vpop.f32.mrf.mxu0
  %5020 = vmatprep.mubr.f32.mxu0 0.0
  %5021 = vmatmul.mubr.f32.gmra.mxu0 %v4928
  %v5022 = vpop.f32.mrf.mxu0
  %v5023 = vadd.f32 0.0, %v5022
  %v5024 = vpop.f32.mrf.mxu0
  %5025 = vmatprep.mubr.f32.mxu0 0.0
  %5026 = vmatmul.mubr.f32.gmra.mxu0 %v4931
  %v5027 = vpop.f32.mrf.mxu0
  %v5028 = vadd.f32 0.0, %v5027
  %v5029 = vpop.f32.mrf.mxu0
  %5030 = vmatprep.mubr.f32.mxu0 0.0
  %5031 = vmatmul.mubr.f32.gmra.mxu0 %v4934
  %v5032 = vpop.f32.mrf.mxu0
  %v5033 = vadd.f32 0.0, %v5032
  %v5034 = vpop.f32.mrf.mxu0
  %5035 = vmatprep.mubr.f32.mxu0 0.0
  %5036 = vmatmul.mubr.f32.gmra.mxu0 %v4937
  %v5037 = vpop.f32.mrf.mxu0
  %v5038 = vadd.f32 0.0, %v5037
  %v5039 = vpop.f32.mrf.mxu0
  %5040 = vmatprep.mubr.f32.mxu0 0.0
  %5041 = vmatmul.mubr.f32.gmra.mxu0 %v4940
  %v5042 = vpop.f32.mrf.mxu0
  %v5043 = vadd.f32 0.0, %v5042
  %v5044 = vpop.f32.mrf.mxu0
  %5045 = vmatprep.mubr.f32.mxu0 0.0
  %5046 = vmatmul.mubr.f32.gmra.mxu0 %v4943
  %v5047 = vpop.f32.mrf.mxu0
  %v5048 = vadd.f32 0.0, %v5047
  %v5049 = vpop.f32.mrf.mxu0
  %5050 = vmatprep.mubr.f32.mxu0 0.0
  %5051 = vmatmul.mubr.f32.gmra.mxu0 %v4946
  %v5052 = vpop.f32.mrf.mxu0
  %v5053 = vadd.f32 0.0, %v5052
  %v5054 = vpop.f32.mrf.mxu0
  %5055 = vmatprep.mubr.f32.mxu0 0.0
  %5056 = vmatmul.mubr.f32.gmra.mxu0 %v4949
  %v5057 = vpop.f32.mrf.mxu0
  %v5058 = vadd.f32 0.0, %v5057
  %v5059 = vpop.f32.mrf.mxu0
  %5060 = vdwg.mxu0
  %v5061 = vadd.f32 %v4902, %v5018
  %v5062 = vadd.f32 %v4903, %v5023
  %v5063 = vadd.f32 %v4904, %v5028
  %v5064 = vadd.f32 %v4905, %v5033
  %v5065 = vadd.f32 %v4906, %v5038
  %v5066 = vadd.f32 %v4907, %v5043
  %v5067 = vadd.f32 %v4908, %v5048
  %v5068 = vadd.f32 %v4909, %v5053
  %v5069 = vadd.f32 %v4910, %v5058
  %v5070 = vld [vmem:[#allocation2 + $0x5a0] sm:$0xff]
  %v5071 = vld [vmem:[#allocation2 + $0x5a8] sm:$0xff]
  %v5072 = vld [vmem:[#allocation2 + $0x5b0] sm:$0xff]
  %v5073 = vld [vmem:[#allocation2 + $0x5b8] sm:$0xff]
  %v5074 = vld [vmem:[#allocation2 + $0x5c0] sm:$0xff]
  %v5075 = vld [vmem:[#allocation2 + $0x5c8] sm:$0xff]
  %v5076 = vld [vmem:[#allocation2 + $0x5d0] sm:$0xff]
  %v5077 = vld [vmem:[#allocation2 + $0x5d8] sm:$0xff]
  %v5078 = vld [vmem:[#allocation2 + $0x5e0] sm:$0xff]
  %v5079 = vld [vmem:[%s2 + $0x280] sm:$0xff]
  %v5080 = vld [vmem:[%s2 + $0x288] sm:$0xff]
  %v5081 = vld [vmem:[%s2 + $0x290] sm:$0xff]
  %v5082 = vld [vmem:[%s2 + $0x298] sm:$0xff]
  %v5084 = vsel %vm1679, %v5070, 0
  %v5087 = vsel %vm1679, %v5071, 0
  %v5090 = vsel %vm1679, %v5072, 0
  %v5093 = vsel %vm1679, %v5073, 0
  %v5096 = vsel %vm1679, %v5074, 0
  %v5099 = vsel %vm1679, %v5075, 0
  %v5102 = vsel %vm1679, %v5076, 0
  %v5105 = vsel %vm1679, %v5077, 0
  %v5108 = vsel %vm1679, %v5078, 0
  %5110 = vmatprep.subr.mxu0 0.0
  %5111 = vmatpush1.msra.mxu0 0.0
  %5112 = vmatprep.subr.mxu0 0.0
  %5113 = vmatpush1.msra.mxu0 0.0
  %5114 = vmatprep.subr.mxu0 0.0
  %5115 = vmatpush1.msra.mxu0 0.0
  %5116 = vmatprep.subr.mxu0 0.0
  %5117 = vmatpush1.msra.mxu0 0.0
  %5118 = vmatprep.subr.mxu0 0.0
  %5119 = vmatpush1.msra.mxu0 0.0
  %5120 = vmatprep.subr.mxu0 0.0
  %5121 = vmatpush1.msra.mxu0 0.0
  %5122 = vmatprep.subr.mxu0 0.0
  %5123 = vmatpush1.msra.mxu0 0.0
  %5124 = vmatprep.subr.mxu0 0.0
  %5125 = vmatpush1.msra.mxu0 0.0
  %5126 = vmatprep.subr.mxu0 0.0
  %5127 = vmatpush1.msra.mxu0 0.0
  %5128 = vmatprep.subr.mxu0 0.0
  %5129 = vmatpush1.msra.mxu0 0.0
  %5130 = vmatprep.subr.mxu0 0.0
  %5131 = vmatpush1.msra.mxu0 0.0
  %5132 = vmatprep.subr.mxu0 0.0
  %5133 = vmatpush1.msra.mxu0 0.0
  %5134 = vmatprep.subr.mxu0 0.0
  %5135 = vmatpush1.msra.mxu0 %v5082
  %5136 = vmatprep.subr.mxu0 0.0
  %5137 = vmatpush1.msra.mxu0 %v5081
  %5138 = vmatprep.subr.mxu0 0.0
  %5139 = vmatpush1.msra.mxu0 %v5080
  %5140 = vmatprep.subr.mxu0 0.0
  %5141 = vmatpush1.msra.mxu0 %v5079
  %5142 = vmatprep.subr.mxu0 0.0
  %5143 = vmatpush2.msra.mxu0 0.0
  %5144 = vmatprep.subr.mxu0 0.0
  %5145 = vmatpush2.msra.mxu0 0.0
  %5146 = vmatprep.subr.mxu0 0.0
  %5147 = vmatpush2.msra.mxu0 0.0
  %5148 = vmatprep.subr.mxu0 0.0
  %5149 = vmatpush2.msra.mxu0 0.0
  %5150 = vmatprep.subr.mxu0 0.0
  %5151 = vmatpush2.msra.mxu0 0.0
  %5152 = vmatprep.subr.mxu0 0.0
  %5153 = vmatpush2.msra.mxu0 0.0
  %5154 = vmatprep.subr.mxu0 0.0
  %5155 = vmatpush2.msra.mxu0 0.0
  %5156 = vmatprep.subr.mxu0 0.0
  %5157 = vmatpush2.msra.mxu0 0.0
  %5158 = vmatprep.subr.mxu0 0.0
  %5159 = vmatpush2.msra.mxu0 0.0
  %5160 = vmatprep.subr.mxu0 0.0
  %5161 = vmatpush2.msra.mxu0 0.0
  %5162 = vmatprep.subr.mxu0 0.0
  %5163 = vmatpush2.msra.mxu0 0.0
  %5164 = vmatprep.subr.mxu0 0.0
  %5165 = vmatpush2.msra.mxu0 0.0
  %5166 = vmatprep.subr.mxu0 0.0
  %5167 = vmatpush2.msra.mxu0 0.0
  %5168 = vmatprep.subr.mxu0 0.0
  %5169 = vmatpush2.msra.mxu0 0.0
  %5170 = vmatprep.subr.mxu0 0.0
  %5171 = vmatpush2.msra.mxu0 0.0
  %5172 = vmatprep.subr.mxu0 0.0
  %5173 = vmatpush2.msra.mxu0 0.0
  %5174 = vmatprep.mubr.f32.mxu0 0.0
  %5175 = vmatmul.mubr.f32.gmra.mxu0 %v5084
  %v5176 = vpop.f32.mrf.mxu0
  %v5177 = vadd.f32 0.0, %v5176
  %v5178 = vpop.f32.mrf.mxu0
  %5179 = vmatprep.mubr.f32.mxu0 0.0
  %5180 = vmatmul.mubr.f32.gmra.mxu0 %v5087
  %v5181 = vpop.f32.mrf.mxu0
  %v5182 = vadd.f32 0.0, %v5181
  %v5183 = vpop.f32.mrf.mxu0
  %5184 = vmatprep.mubr.f32.mxu0 0.0
  %5185 = vmatmul.mubr.f32.gmra.mxu0 %v5090
  %v5186 = vpop.f32.mrf.mxu0
  %v5187 = vadd.f32 0.0, %v5186
  %v5188 = vpop.f32.mrf.mxu0
  %5189 = vmatprep.mubr.f32.mxu0 0.0
  %5190 = vmatmul.mubr.f32.gmra.mxu0 %v5093
  %v5191 = vpop.f32.mrf.mxu0
  %v5192 = vadd.f32 0.0, %v5191
  %v5193 = vpop.f32.mrf.mxu0
  %5194 = vmatprep.mubr.f32.mxu0 0.0
  %5195 = vmatmul.mubr.f32.gmra.mxu0 %v5096
  %v5196 = vpop.f32.mrf.mxu0
  %v5197 = vadd.f32 0.0, %v5196
  %v5198 = vpop.f32.mrf.mxu0
  %5199 = vmatprep.mubr.f32.mxu0 0.0
  %5200 = vmatmul.mubr.f32.gmra.mxu0 %v5099
  %v5201 = vpop.f32.mrf.mxu0
  %v5202 = vadd.f32 0.0, %v5201
  %v5203 = vpop.f32.mrf.mxu0
  %5204 = vmatprep.mubr.f32.mxu0 0.0
  %5205 = vmatmul.mubr.f32.gmra.mxu0 %v5102
  %v5206 = vpop.f32.mrf.mxu0
  %v5207 = vadd.f32 0.0, %v5206
  %v5208 = vpop.f32.mrf.mxu0
  %5209 = vmatprep.mubr.f32.mxu0 0.0
  %5210 = vmatmul.mubr.f32.gmra.mxu0 %v5105
  %v5211 = vpop.f32.mrf.mxu0
  %v5212 = vadd.f32 0.0, %v5211
  %v5213 = vpop.f32.mrf.mxu0
  %5214 = vmatprep.mubr.f32.mxu0 0.0
  %5215 = vmatmul.mubr.f32.gmra.mxu0 %v5108
  %v5216 = vpop.f32.mrf.mxu0
  %v5217 = vadd.f32 0.0, %v5216
  %v5218 = vpop.f32.mrf.mxu0
  %5219 = vdwg.mxu0
  %v5220 = vadd.f32 %v5061, %v5177
  %v5221 = vadd.f32 %v5062, %v5182
  %v5222 = vadd.f32 %v5063, %v5187
  %v5223 = vadd.f32 %v5064, %v5192
  %v5224 = vadd.f32 %v5065, %v5197
  %v5225 = vadd.f32 %v5066, %v5202
  %v5226 = vadd.f32 %v5067, %v5207
  %v5227 = vadd.f32 %v5068, %v5212
  %v5228 = vadd.f32 %v5069, %v5217
  %v5229 = vld [vmem:[#allocation2 + $0x5e8] sm:$0xff]
  %v5230 = vld [vmem:[#allocation2 + $0x5f0] sm:$0xff]
  %v5231 = vld [vmem:[#allocation2 + $0x5f8] sm:$0xff]
  %v5232 = vld [vmem:[#allocation2 + $0x600] sm:$0xff]
  %v5233 = vld [vmem:[#allocation2 + $0x608] sm:$0xff]
  %v5234 = vld [vmem:[#allocation2 + $0x610] sm:$0xff]
  %v5235 = vld [vmem:[#allocation2 + $0x618] sm:$0xff]
  %v5236 = vld [vmem:[#allocation2 + $0x620] sm:$0xff]
  %v5237 = vld [vmem:[#allocation2 + $0x628] sm:$0xff]
  %v5238 = vld [vmem:[%s2 + $0x2a0] sm:$0xff]
  %v5239 = vld [vmem:[%s2 + $0x2a8] sm:$0xff]
  %v5240 = vld [vmem:[%s2 + $0x2b0] sm:$0xff]
  %v5241 = vld [vmem:[%s2 + $0x2b8] sm:$0xff]
  %v5243 = vsel %vm1679, %v5229, 0
  %v5246 = vsel %vm1679, %v5230, 0
  %v5249 = vsel %vm1679, %v5231, 0
  %v5252 = vsel %vm1679, %v5232, 0
  %v5255 = vsel %vm1679, %v5233, 0
  %v5258 = vsel %vm1679, %v5234, 0
  %v5261 = vsel %vm1679, %v5235, 0
  %v5264 = vsel %vm1679, %v5236, 0
  %v5267 = vsel %vm1679, %v5237, 0
  %5269 = vmatprep.subr.mxu0 0.0
  %5270 = vmatpush1.msra.mxu0 0.0
  %5271 = vmatprep.subr.mxu0 0.0
  %5272 = vmatpush1.msra.mxu0 0.0
  %5273 = vmatprep.subr.mxu0 0.0
  %5274 = vmatpush1.msra.mxu0 0.0
  %5275 = vmatprep.subr.mxu0 0.0
  %5276 = vmatpush1.msra.mxu0 0.0
  %5277 = vmatprep.subr.mxu0 0.0
  %5278 = vmatpush1.msra.mxu0 0.0
  %5279 = vmatprep.subr.mxu0 0.0
  %5280 = vmatpush1.msra.mxu0 0.0
  %5281 = vmatprep.subr.mxu0 0.0
  %5282 = vmatpush1.msra.mxu0 0.0
  %5283 = vmatprep.subr.mxu0 0.0
  %5284 = vmatpush1.msra.mxu0 0.0
  %5285 = vmatprep.subr.mxu0 0.0
  %5286 = vmatpush1.msra.mxu0 0.0
  %5287 = vmatprep.subr.mxu0 0.0
  %5288 = vmatpush1.msra.mxu0 0.0
  %5289 = vmatprep.subr.mxu0 0.0
  %5290 = vmatpush1.msra.mxu0 0.0
  %5291 = vmatprep.subr.mxu0 0.0
  %5292 = vmatpush1.msra.mxu0 0.0
  %5293 = vmatprep.subr.mxu0 0.0
  %5294 = vmatpush1.msra.mxu0 %v5241
  %5295 = vmatprep.subr.mxu0 0.0
  %5296 = vmatpush1.msra.mxu0 %v5240
  %5297 = vmatprep.subr.mxu0 0.0
  %5298 = vmatpush1.msra.mxu0 %v5239
  %5299 = vmatprep.subr.mxu0 0.0
  %5300 = vmatpush1.msra.mxu0 %v5238
  %5301 = vmatprep.subr.mxu0 0.0
  %5302 = vmatpush2.msra.mxu0 0.0
  %5303 = vmatprep.subr.mxu0 0.0
  %5304 = vmatpush2.msra.mxu0 0.0
  %5305 = vmatprep.subr.mxu0 0.0
  %5306 = vmatpush2.msra.mxu0 0.0
  %5307 = vmatprep.subr.mxu0 0.0
  %5308 = vmatpush2.msra.mxu0 0.0
  %5309 = vmatprep.subr.mxu0 0.0
  %5310 = vmatpush2.msra.mxu0 0.0
  %5311 = vmatprep.subr.mxu0 0.0
  %5312 = vmatpush2.msra.mxu0 0.0
  %5313 = vmatprep.subr.mxu0 0.0
  %5314 = vmatpush2.msra.mxu0 0.0
  %5315 = vmatprep.subr.mxu0 0.0
  %5316 = vmatpush2.msra.mxu0 0.0
  %5317 = vmatprep.subr.mxu0 0.0
  %5318 = vmatpush2.msra.mxu0 0.0
  %5319 = vmatprep.subr.mxu0 0.0
  %5320 = vmatpush2.msra.mxu0 0.0
  %5321 = vmatprep.subr.mxu0 0.0
  %5322 = vmatpush2.msra.mxu0 0.0
  %5323 = vmatprep.subr.mxu0 0.0
  %5324 = vmatpush2.msra.mxu0 0.0
  %5325 = vmatprep.subr.mxu0 0.0
  %5326 = vmatpush2.msra.mxu0 0.0
  %5327 = vmatprep.subr.mxu0 0.0
  %5328 = vmatpush2.msra.mxu0 0.0
  %5329 = vmatprep.subr.mxu0 0.0
  %5330 = vmatpush2.msra.mxu0 0.0
  %5331 = vmatprep.subr.mxu0 0.0
  %5332 = vmatpush2.msra.mxu0 0.0
  %5333 = vmatprep.mubr.f32.mxu0 0.0
  %5334 = vmatmul.mubr.f32.gmra.mxu0 %v5243
  %v5335 = vpop.f32.mrf.mxu0
  %v5336 = vadd.f32 0.0, %v5335
  %v5337 = vpop.f32.mrf.mxu0
  %5338 = vmatprep.mubr.f32.mxu0 0.0
  %5339 = vmatmul.mubr.f32.gmra.mxu0 %v5246
  %v5340 = vpop.f32.mrf.mxu0
  %v5341 = vadd.f32 0.0, %v5340
  %v5342 = vpop.f32.mrf.mxu0
  %5343 = vmatprep.mubr.f32.mxu0 0.0
  %5344 = vmatmul.mubr.f32.gmra.mxu0 %v5249
  %v5345 = vpop.f32.mrf.mxu0
  %v5346 = vadd.f32 0.0, %v5345
  %v5347 = vpop.f32.mrf.mxu0
  %5348 = vmatprep.mubr.f32.mxu0 0.0
  %5349 = vmatmul.mubr.f32.gmra.mxu0 %v5252
  %v5350 = vpop.f32.mrf.mxu0
  %v5351 = vadd.f32 0.0, %v5350
  %v5352 = vpop.f32.mrf.mxu0
  %5353 = vmatprep.mubr.f32.mxu0 0.0
  %5354 = vmatmul.mubr.f32.gmra.mxu0 %v5255
  %v5355 = vpop.f32.mrf.mxu0
  %v5356 = vadd.f32 0.0, %v5355
  %v5357 = vpop.f32.mrf.mxu0
  %5358 = vmatprep.mubr.f32.mxu0 0.0
  %5359 = vmatmul.mubr.f32.gmra.mxu0 %v5258
  %v5360 = vpop.f32.mrf.mxu0
  %v5361 = vadd.f32 0.0, %v5360
  %v5362 = vpop.f32.mrf.mxu0
  %5363 = vmatprep.mubr.f32.mxu0 0.0
  %5364 = vmatmul.mubr.f32.gmra.mxu0 %v5261
  %v5365 = vpop.f32.mrf.mxu0
  %v5366 = vadd.f32 0.0, %v5365
  %v5367 = vpop.f32.mrf.mxu0
  %5368 = vmatprep.mubr.f32.mxu0 0.0
  %5369 = vmatmul.mubr.f32.gmra.mxu0 %v5264
  %v5370 = vpop.f32.mrf.mxu0
  %v5371 = vadd.f32 0.0, %v5370
  %v5372 = vpop.f32.mrf.mxu0
  %5373 = vmatprep.mubr.f32.mxu0 0.0
  %5374 = vmatmul.mubr.f32.gmra.mxu0 %v5267
  %v5375 = vpop.f32.mrf.mxu0
  %v5376 = vadd.f32 0.0, %v5375
  %v5377 = vpop.f32.mrf.mxu0
  %5378 = vdwg.mxu0
  %v5379 = vadd.f32 %v5220, %v5336
  %v5380 = vadd.f32 %v5221, %v5341
  %v5381 = vadd.f32 %v5222, %v5346
  %v5382 = vadd.f32 %v5223, %v5351
  %v5383 = vadd.f32 %v5224, %v5356
  %v5384 = vadd.f32 %v5225, %v5361
  %v5385 = vadd.f32 %v5226, %v5366
  %v5386 = vadd.f32 %v5227, %v5371
  %v5387 = vadd.f32 %v5228, %v5376
  %v5388 = vld [vmem:[#allocation2 + $0x630] sm:$0xff]
  %v5389 = vld [vmem:[#allocation2 + $0x638] sm:$0xff]
  %v5390 = vld [vmem:[#allocation2 + $0x640] sm:$0xff]
  %v5391 = vld [vmem:[#allocation2 + $0x648] sm:$0xff]
  %v5392 = vld [vmem:[#allocation2 + $0x650] sm:$0xff]
  %v5393 = vld [vmem:[#allocation2 + $0x658] sm:$0xff]
  %v5394 = vld [vmem:[#allocation2 + $0x660] sm:$0xff]
  %v5395 = vld [vmem:[#allocation2 + $0x668] sm:$0xff]
  %v5396 = vld [vmem:[#allocation2 + $0x670] sm:$0xff]
  %v5397 = vld [vmem:[%s2 + $0x2c0] sm:$0xff]
  %v5398 = vld [vmem:[%s2 + $0x2c8] sm:$0xff]
  %v5399 = vld [vmem:[%s2 + $0x2d0] sm:$0xff]
  %v5400 = vld [vmem:[%s2 + $0x2d8] sm:$0xff]
  %v5402 = vsel %vm1679, %v5388, 0
  %v5405 = vsel %vm1679, %v5389, 0
  %v5408 = vsel %vm1679, %v5390, 0
  %v5411 = vsel %vm1679, %v5391, 0
  %v5414 = vsel %vm1679, %v5392, 0
  %v5417 = vsel %vm1679, %v5393, 0
  %v5420 = vsel %vm1679, %v5394, 0
  %v5423 = vsel %vm1679, %v5395, 0
  %v5426 = vsel %vm1679, %v5396, 0
  %5428 = vmatprep.subr.mxu0 0.0
  %5429 = vmatpush1.msra.mxu0 0.0
  %5430 = vmatprep.subr.mxu0 0.0
  %5431 = vmatpush1.msra.mxu0 0.0
  %5432 = vmatprep.subr.mxu0 0.0
  %5433 = vmatpush1.msra.mxu0 0.0
  %5434 = vmatprep.subr.mxu0 0.0
  %5435 = vmatpush1.msra.mxu0 0.0
  %5436 = vmatprep.subr.mxu0 0.0
  %5437 = vmatpush1.msra.mxu0 0.0
  %5438 = vmatprep.subr.mxu0 0.0
  %5439 = vmatpush1.msra.mxu0 0.0
  %5440 = vmatprep.subr.mxu0 0.0
  %5441 = vmatpush1.msra.mxu0 0.0
  %5442 = vmatprep.subr.mxu0 0.0
  %5443 = vmatpush1.msra.mxu0 0.0
  %5444 = vmatprep.subr.mxu0 0.0
  %5445 = vmatpush1.msra.mxu0 0.0
  %5446 = vmatprep.subr.mxu0 0.0
  %5447 = vmatpush1.msra.mxu0 0.0
  %5448 = vmatprep.subr.mxu0 0.0
  %5449 = vmatpush1.msra.mxu0 0.0
  %5450 = vmatprep.subr.mxu0 0.0
  %5451 = vmatpush1.msra.mxu0 0.0
  %5452 = vmatprep.subr.mxu0 0.0
  %5453 = vmatpush1.msra.mxu0 %v5400
  %5454 = vmatprep.subr.mxu0 0.0
  %5455 = vmatpush1.msra.mxu0 %v5399
  %5456 = vmatprep.subr.mxu0 0.0
  %5457 = vmatpush1.msra.mxu0 %v5398
  %5458 = vmatprep.subr.mxu0 0.0
  %5459 = vmatpush1.msra.mxu0 %v5397
  %5460 = vmatprep.subr.mxu0 0.0
  %5461 = vmatpush2.msra.mxu0 0.0
  %5462 = vmatprep.subr.mxu0 0.0
  %5463 = vmatpush2.msra.mxu0 0.0
  %5464 = vmatprep.subr.mxu0 0.0
  %5465 = vmatpush2.msra.mxu0 0.0
  %5466 = vmatprep.subr.mxu0 0.0
  %5467 = vmatpush2.msra.mxu0 0.0
  %5468 = vmatprep.subr.mxu0 0.0
  %5469 = vmatpush2.msra.mxu0 0.0
  %5470 = vmatprep.subr.mxu0 0.0
  %5471 = vmatpush2.msra.mxu0 0.0
  %5472 = vmatprep.subr.mxu0 0.0
  %5473 = vmatpush2.msra.mxu0 0.0
  %5474 = vmatprep.subr.mxu0 0.0
  %5475 = vmatpush2.msra.mxu0 0.0
  %5476 = vmatprep.subr.mxu0 0.0
  %5477 = vmatpush2.msra.mxu0 0.0
  %5478 = vmatprep.subr.mxu0 0.0
  %5479 = vmatpush2.msra.mxu0 0.0
  %5480 = vmatprep.subr.mxu0 0.0
  %5481 = vmatpush2.msra.mxu0 0.0
  %5482 = vmatprep.subr.mxu0 0.0
  %5483 = vmatpush2.msra.mxu0 0.0
  %5484 = vmatprep.subr.mxu0 0.0
  %5485 = vmatpush2.msra.mxu0 0.0
  %5486 = vmatprep.subr.mxu0 0.0
  %5487 = vmatpush2.msra.mxu0 0.0
  %5488 = vmatprep.subr.mxu0 0.0
  %5489 = vmatpush2.msra.mxu0 0.0
  %5490 = vmatprep.subr.mxu0 0.0
  %5491 = vmatpush2.msra.mxu0 0.0
  %5492 = vmatprep.mubr.f32.mxu0 0.0
  %5493 = vmatmul.mubr.f32.gmra.mxu0 %v5402
  %v5494 = vpop.f32.mrf.mxu0
  %v5495 = vadd.f32 0.0, %v5494
  %v5496 = vpop.f32.mrf.mxu0
  %5497 = vmatprep.mubr.f32.mxu0 0.0
  %5498 = vmatmul.mubr.f32.gmra.mxu0 %v5405
  %v5499 = vpop.f32.mrf.mxu0
  %v5500 = vadd.f32 0.0, %v5499
  %v5501 = vpop.f32.mrf.mxu0
  %5502 = vmatprep.mubr.f32.mxu0 0.0
  %5503 = vmatmul.mubr.f32.gmra.mxu0 %v5408
  %v5504 = vpop.f32.mrf.mxu0
  %v5505 = vadd.f32 0.0, %v5504
  %v5506 = vpop.f32.mrf.mxu0
  %5507 = vmatprep.mubr.f32.mxu0 0.0
  %5508 = vmatmul.mubr.f32.gmra.mxu0 %v5411
  %v5509 = vpop.f32.mrf.mxu0
  %v5510 = vadd.f32 0.0, %v5509
  %v5511 = vpop.f32.mrf.mxu0
  %5512 = vmatprep.mubr.f32.mxu0 0.0
  %5513 = vmatmul.mubr.f32.gmra.mxu0 %v5414
  %v5514 = vpop.f32.mrf.mxu0
  %v5515 = vadd.f32 0.0, %v5514
  %v5516 = vpop.f32.mrf.mxu0
  %5517 = vmatprep.mubr.f32.mxu0 0.0
  %5518 = vmatmul.mubr.f32.gmra.mxu0 %v5417
  %v5519 = vpop.f32.mrf.mxu0
  %v5520 = vadd.f32 0.0, %v5519
  %v5521 = vpop.f32.mrf.mxu0
  %5522 = vmatprep.mubr.f32.mxu0 0.0
  %5523 = vmatmul.mubr.f32.gmra.mxu0 %v5420
  %v5524 = vpop.f32.mrf.mxu0
  %v5525 = vadd.f32 0.0, %v5524
  %v5526 = vpop.f32.mrf.mxu0
  %5527 = vmatprep.mubr.f32.mxu0 0.0
  %5528 = vmatmul.mubr.f32.gmra.mxu0 %v5423
  %v5529 = vpop.f32.mrf.mxu0
  %v5530 = vadd.f32 0.0, %v5529
  %v5531 = vpop.f32.mrf.mxu0
  %5532 = vmatprep.mubr.f32.mxu0 0.0
  %5533 = vmatmul.mubr.f32.gmra.mxu0 %v5426
  %v5534 = vpop.f32.mrf.mxu0
  %v5535 = vadd.f32 0.0, %v5534
  %v5536 = vpop.f32.mrf.mxu0
  %5537 = vdwg.mxu0
  %v5538 = vadd.f32 %v5379, %v5495
  %v5539 = vadd.f32 %v5380, %v5500
  %v5540 = vadd.f32 %v5381, %v5505
  %v5541 = vadd.f32 %v5382, %v5510
  %v5542 = vadd.f32 %v5383, %v5515
  %v5543 = vadd.f32 %v5384, %v5520
  %v5544 = vadd.f32 %v5385, %v5525
  %v5545 = vadd.f32 %v5386, %v5530
  %v5546 = vadd.f32 %v5387, %v5535
  %v5547 = vld [vmem:[#allocation2 + $0x678] sm:$0xff]
  %v5548 = vld [vmem:[#allocation2 + $0x680] sm:$0xff]
  %v5549 = vld [vmem:[#allocation2 + $0x688] sm:$0xff]
  %v5550 = vld [vmem:[#allocation2 + $0x690] sm:$0xff]
  %v5551 = vld [vmem:[#allocation2 + $0x698] sm:$0xff]
  %v5552 = vld [vmem:[#allocation2 + $0x6a0] sm:$0xff]
  %v5553 = vld [vmem:[#allocation2 + $0x6a8] sm:$0xff]
  %v5554 = vld [vmem:[#allocation2 + $0x6b0] sm:$0xff]
  %v5555 = vld [vmem:[#allocation2 + $0x6b8] sm:$0xff]
  %v5556 = vld [vmem:[%s2 + $0x2e0] sm:$0xff]
  %v5557 = vld [vmem:[%s2 + $0x2e8] sm:$0xff]
  %v5558 = vld [vmem:[%s2 + $0x2f0] sm:$0xff]
  %v5559 = vld [vmem:[%s2 + $0x2f8] sm:$0xff]
  %v5561 = vsel %vm1679, %v5547, 0
  %v5564 = vsel %vm1679, %v5548, 0
  %v5567 = vsel %vm1679, %v5549, 0
  %v5570 = vsel %vm1679, %v5550, 0
  %v5573 = vsel %vm1679, %v5551, 0
  %v5576 = vsel %vm1679, %v5552, 0
  %v5579 = vsel %vm1679, %v5553, 0
  %v5582 = vsel %vm1679, %v5554, 0
  %v5585 = vsel %vm1679, %v5555, 0
  %5587 = vmatprep.subr.mxu0 0.0
  %5588 = vmatpush1.msra.mxu0 0.0
  %5589 = vmatprep.subr.mxu0 0.0
  %5590 = vmatpush1.msra.mxu0 0.0
  %5591 = vmatprep.subr.mxu0 0.0
  %5592 = vmatpush1.msra.mxu0 0.0
  %5593 = vmatprep.subr.mxu0 0.0
  %5594 = vmatpush1.msra.mxu0 0.0
  %5595 = vmatprep.subr.mxu0 0.0
  %5596 = vmatpush1.msra.mxu0 0.0
  %5597 = vmatprep.subr.mxu0 0.0
  %5598 = vmatpush1.msra.mxu0 0.0
  %5599 = vmatprep.subr.mxu0 0.0
  %5600 = vmatpush1.msra.mxu0 0.0
  %5601 = vmatprep.subr.mxu0 0.0
  %5602 = vmatpush1.msra.mxu0 0.0
  %5603 = vmatprep.subr.mxu0 0.0
  %5604 = vmatpush1.msra.mxu0 0.0
  %5605 = vmatprep.subr.mxu0 0.0
  %5606 = vmatpush1.msra.mxu0 0.0
  %5607 = vmatprep.subr.mxu0 0.0
  %5608 = vmatpush1.msra.mxu0 0.0
  %5609 = vmatprep.subr.mxu0 0.0
  %5610 = vmatpush1.msra.mxu0 0.0
  %5611 = vmatprep.subr.mxu0 0.0
  %5612 = vmatpush1.msra.mxu0 %v5559
  %5613 = vmatprep.subr.mxu0 0.0
  %5614 = vmatpush1.msra.mxu0 %v5558
  %5615 = vmatprep.subr.mxu0 0.0
  %5616 = vmatpush1.msra.mxu0 %v5557
  %5617 = vmatprep.subr.mxu0 0.0
  %5618 = vmatpush1.msra.mxu0 %v5556
  %5619 = vmatprep.subr.mxu0 0.0
  %5620 = vmatpush2.msra.mxu0 0.0
  %5621 = vmatprep.subr.mxu0 0.0
  %5622 = vmatpush2.msra.mxu0 0.0
  %5623 = vmatprep.subr.mxu0 0.0
  %5624 = vmatpush2.msra.mxu0 0.0
  %5625 = vmatprep.subr.mxu0 0.0
  %5626 = vmatpush2.msra.mxu0 0.0
  %5627 = vmatprep.subr.mxu0 0.0
  %5628 = vmatpush2.msra.mxu0 0.0
  %5629 = vmatprep.subr.mxu0 0.0
  %5630 = vmatpush2.msra.mxu0 0.0
  %5631 = vmatprep.subr.mxu0 0.0
  %5632 = vmatpush2.msra.mxu0 0.0
  %5633 = vmatprep.subr.mxu0 0.0
  %5634 = vmatpush2.msra.mxu0 0.0
  %5635 = vmatprep.subr.mxu0 0.0
  %5636 = vmatpush2.msra.mxu0 0.0
  %5637 = vmatprep.subr.mxu0 0.0
  %5638 = vmatpush2.msra.mxu0 0.0
  %5639 = vmatprep.subr.mxu0 0.0
  %5640 = vmatpush2.msra.mxu0 0.0
  %5641 = vmatprep.subr.mxu0 0.0
  %5642 = vmatpush2.msra.mxu0 0.0
  %5643 = vmatprep.subr.mxu0 0.0
  %5644 = vmatpush2.msra.mxu0 0.0
  %5645 = vmatprep.subr.mxu0 0.0
  %5646 = vmatpush2.msra.mxu0 0.0
  %5647 = vmatprep.subr.mxu0 0.0
  %5648 = vmatpush2.msra.mxu0 0.0
  %5649 = vmatprep.subr.mxu0 0.0
  %5650 = vmatpush2.msra.mxu0 0.0
  %5651 = vmatprep.mubr.f32.mxu0 0.0
  %5652 = vmatmul.mubr.f32.gmra.mxu0 %v5561
  %v5653 = vpop.f32.mrf.mxu0
  %v5654 = vadd.f32 0.0, %v5653
  %v5655 = vpop.f32.mrf.mxu0
  %5656 = vmatprep.mubr.f32.mxu0 0.0
  %5657 = vmatmul.mubr.f32.gmra.mxu0 %v5564
  %v5658 = vpop.f32.mrf.mxu0
  %v5659 = vadd.f32 0.0, %v5658
  %v5660 = vpop.f32.mrf.mxu0
  %5661 = vmatprep.mubr.f32.mxu0 0.0
  %5662 = vmatmul.mubr.f32.gmra.mxu0 %v5567
  %v5663 = vpop.f32.mrf.mxu0
  %v5664 = vadd.f32 0.0, %v5663
  %v5665 = vpop.f32.mrf.mxu0
  %5666 = vmatprep.mubr.f32.mxu0 0.0
  %5667 = vmatmul.mubr.f32.gmra.mxu0 %v5570
  %v5668 = vpop.f32.mrf.mxu0
  %v5669 = vadd.f32 0.0, %v5668
  %v5670 = vpop.f32.mrf.mxu0
  %5671 = vmatprep.mubr.f32.mxu0 0.0
  %5672 = vmatmul.mubr.f32.gmra.mxu0 %v5573
  %v5673 = vpop.f32.mrf.mxu0
  %v5674 = vadd.f32 0.0, %v5673
  %v5675 = vpop.f32.mrf.mxu0
  %5676 = vmatprep.mubr.f32.mxu0 0.0
  %5677 = vmatmul.mubr.f32.gmra.mxu0 %v5576
  %v5678 = vpop.f32.mrf.mxu0
  %v5679 = vadd.f32 0.0, %v5678
  %v5680 = vpop.f32.mrf.mxu0
  %5681 = vmatprep.mubr.f32.mxu0 0.0
  %5682 = vmatmul.mubr.f32.gmra.mxu0 %v5579
  %v5683 = vpop.f32.mrf.mxu0
  %v5684 = vadd.f32 0.0, %v5683
  %v5685 = vpop.f32.mrf.mxu0
  %5686 = vmatprep.mubr.f32.mxu0 0.0
  %5687 = vmatmul.mubr.f32.gmra.mxu0 %v5582
  %v5688 = vpop.f32.mrf.mxu0
  %v5689 = vadd.f32 0.0, %v5688
  %v5690 = vpop.f32.mrf.mxu0
  %5691 = vmatprep.mubr.f32.mxu0 0.0
  %5692 = vmatmul.mubr.f32.gmra.mxu0 %v5585
  %v5693 = vpop.f32.mrf.mxu0
  %v5694 = vadd.f32 0.0, %v5693
  %v5695 = vpop.f32.mrf.mxu0
  %5696 = vdwg.mxu0
  %v5697 = vadd.f32 %v5538, %v5654
  %v5698 = vadd.f32 %v5539, %v5659
  %v5699 = vadd.f32 %v5540, %v5664
  %v5700 = vadd.f32 %v5541, %v5669
  %v5701 = vadd.f32 %v5542, %v5674
  %v5702 = vadd.f32 %v5543, %v5679
  %v5703 = vadd.f32 %v5544, %v5684
  %v5704 = vadd.f32 %v5545, %v5689
  %v5705 = vadd.f32 %v5546, %v5694
  %v5706 = vld [vmem:[#allocation2 + $0x6c0] sm:$0xff]
  %v5707 = vld [vmem:[#allocation2 + $0x6c8] sm:$0xff]
  %v5708 = vld [vmem:[#allocation2 + $0x6d0] sm:$0xff]
  %v5709 = vld [vmem:[#allocation2 + $0x6d8] sm:$0xff]
  %v5710 = vld [vmem:[#allocation2 + $0x6e0] sm:$0xff]
  %v5711 = vld [vmem:[#allocation2 + $0x6e8] sm:$0xff]
  %v5712 = vld [vmem:[#allocation2 + $0x6f0] sm:$0xff]
  %v5713 = vld [vmem:[#allocation2 + $0x6f8] sm:$0xff]
  %v5714 = vld [vmem:[#allocation2 + $0x700] sm:$0xff]
  %v5715 = vld [vmem:[%s2 + $0x300] sm:$0xff]
  %v5716 = vld [vmem:[%s2 + $0x308] sm:$0xff]
  %v5717 = vld [vmem:[%s2 + $0x310] sm:$0xff]
  %v5718 = vld [vmem:[%s2 + $0x318] sm:$0xff]
  %v5720 = vsel %vm1679, %v5706, 0
  %v5723 = vsel %vm1679, %v5707, 0
  %v5726 = vsel %vm1679, %v5708, 0
  %v5729 = vsel %vm1679, %v5709, 0
  %v5732 = vsel %vm1679, %v5710, 0
  %v5735 = vsel %vm1679, %v5711, 0
  %v5738 = vsel %vm1679, %v5712, 0
  %v5741 = vsel %vm1679, %v5713, 0
  %v5744 = vsel %vm1679, %v5714, 0
  %5746 = vmatprep.subr.mxu0 0.0
  %5747 = vmatpush1.msra.mxu0 0.0
  %5748 = vmatprep.subr.mxu0 0.0
  %5749 = vmatpush1.msra.mxu0 0.0
  %5750 = vmatprep.subr.mxu0 0.0
  %5751 = vmatpush1.msra.mxu0 0.0
  %5752 = vmatprep.subr.mxu0 0.0
  %5753 = vmatpush1.msra.mxu0 0.0
  %5754 = vmatprep.subr.mxu0 0.0
  %5755 = vmatpush1.msra.mxu0 0.0
  %5756 = vmatprep.subr.mxu0 0.0
  %5757 = vmatpush1.msra.mxu0 0.0
  %5758 = vmatprep.subr.mxu0 0.0
  %5759 = vmatpush1.msra.mxu0 0.0
  %5760 = vmatprep.subr.mxu0 0.0
  %5761 = vmatpush1.msra.mxu0 0.0
  %5762 = vmatprep.subr.mxu0 0.0
  %5763 = vmatpush1.msra.mxu0 0.0
  %5764 = vmatprep.subr.mxu0 0.0
  %5765 = vmatpush1.msra.mxu0 0.0
  %5766 = vmatprep.subr.mxu0 0.0
  %5767 = vmatpush1.msra.mxu0 0.0
  %5768 = vmatprep.subr.mxu0 0.0
  %5769 = vmatpush1.msra.mxu0 0.0
  %5770 = vmatprep.subr.mxu0 0.0
  %5771 = vmatpush1.msra.mxu0 %v5718
  %5772 = vmatprep.subr.mxu0 0.0
  %5773 = vmatpush1.msra.mxu0 %v5717
  %5774 = vmatprep.subr.mxu0 0.0
  %5775 = vmatpush1.msra.mxu0 %v5716
  %5776 = vmatprep.subr.mxu0 0.0
  %5777 = vmatpush1.msra.mxu0 %v5715
  %5778 = vmatprep.subr.mxu0 0.0
  %5779 = vmatpush2.msra.mxu0 0.0
  %5780 = vmatprep.subr.mxu0 0.0
  %5781 = vmatpush2.msra.mxu0 0.0
  %5782 = vmatprep.subr.mxu0 0.0
  %5783 = vmatpush2.msra.mxu0 0.0
  %5784 = vmatprep.subr.mxu0 0.0
  %5785 = vmatpush2.msra.mxu0 0.0
  %5786 = vmatprep.subr.mxu0 0.0
  %5787 = vmatpush2.msra.mxu0 0.0
  %5788 = vmatprep.subr.mxu0 0.0
  %5789 = vmatpush2.msra.mxu0 0.0
  %5790 = vmatprep.subr.mxu0 0.0
  %5791 = vmatpush2.msra.mxu0 0.0
  %5792 = vmatprep.subr.mxu0 0.0
  %5793 = vmatpush2.msra.mxu0 0.0
  %5794 = vmatprep.subr.mxu0 0.0
  %5795 = vmatpush2.msra.mxu0 0.0
  %5796 = vmatprep.subr.mxu0 0.0
  %5797 = vmatpush2.msra.mxu0 0.0
  %5798 = vmatprep.subr.mxu0 0.0
  %5799 = vmatpush2.msra.mxu0 0.0
  %5800 = vmatprep.subr.mxu0 0.0
  %5801 = vmatpush2.msra.mxu0 0.0
  %5802 = vmatprep.subr.mxu0 0.0
  %5803 = vmatpush2.msra.mxu0 0.0
  %5804 = vmatprep.subr.mxu0 0.0
  %5805 = vmatpush2.msra.mxu0 0.0
  %5806 = vmatprep.subr.mxu0 0.0
  %5807 = vmatpush2.msra.mxu0 0.0
  %5808 = vmatprep.subr.mxu0 0.0
  %5809 = vmatpush2.msra.mxu0 0.0
  %5810 = vmatprep.mubr.f32.mxu0 0.0
  %5811 = vmatmul.mubr.f32.gmra.mxu0 %v5720
  %v5812 = vpop.f32.mrf.mxu0
  %v5813 = vadd.f32 0.0, %v5812
  %v5814 = vpop.f32.mrf.mxu0
  %5815 = vmatprep.mubr.f32.mxu0 0.0
  %5816 = vmatmul.mubr.f32.gmra.mxu0 %v5723
  %v5817 = vpop.f32.mrf.mxu0
  %v5818 = vadd.f32 0.0, %v5817
  %v5819 = vpop.f32.mrf.mxu0
  %5820 = vmatprep.mubr.f32.mxu0 0.0
  %5821 = vmatmul.mubr.f32.gmra.mxu0 %v5726
  %v5822 = vpop.f32.mrf.mxu0
  %v5823 = vadd.f32 0.0, %v5822
  %v5824 = vpop.f32.mrf.mxu0
  %5825 = vmatprep.mubr.f32.mxu0 0.0
  %5826 = vmatmul.mubr.f32.gmra.mxu0 %v5729
  %v5827 = vpop.f32.mrf.mxu0
  %v5828 = vadd.f32 0.0, %v5827
  %v5829 = vpop.f32.mrf.mxu0
  %5830 = vmatprep.mubr.f32.mxu0 0.0
  %5831 = vmatmul.mubr.f32.gmra.mxu0 %v5732
  %v5832 = vpop.f32.mrf.mxu0
  %v5833 = vadd.f32 0.0, %v5832
  %v5834 = vpop.f32.mrf.mxu0
  %5835 = vmatprep.mubr.f32.mxu0 0.0
  %5836 = vmatmul.mubr.f32.gmra.mxu0 %v5735
  %v5837 = vpop.f32.mrf.mxu0
  %v5838 = vadd.f32 0.0, %v5837
  %v5839 = vpop.f32.mrf.mxu0
  %5840 = vmatprep.mubr.f32.mxu0 0.0
  %5841 = vmatmul.mubr.f32.gmra.mxu0 %v5738
  %v5842 = vpop.f32.mrf.mxu0
  %v5843 = vadd.f32 0.0, %v5842
  %v5844 = vpop.f32.mrf.mxu0
  %5845 = vmatprep.mubr.f32.mxu0 0.0
  %5846 = vmatmul.mubr.f32.gmra.mxu0 %v5741
  %v5847 = vpop.f32.mrf.mxu0
  %v5848 = vadd.f32 0.0, %v5847
  %v5849 = vpop.f32.mrf.mxu0
  %5850 = vmatprep.mubr.f32.mxu0 0.0
  %5851 = vmatmul.mubr.f32.gmra.mxu0 %v5744
  %v5852 = vpop.f32.mrf.mxu0
  %v5853 = vadd.f32 0.0, %v5852
  %v5854 = vpop.f32.mrf.mxu0
  %5855 = vdwg.mxu0
  %v5856 = vadd.f32 %v5697, %v5813
  %v5857 = vadd.f32 %v5698, %v5818
  %v5858 = vadd.f32 %v5699, %v5823
  %v5859 = vadd.f32 %v5700, %v5828
  %v5860 = vadd.f32 %v5701, %v5833
  %v5861 = vadd.f32 %v5702, %v5838
  %v5862 = vadd.f32 %v5703, %v5843
  %v5863 = vadd.f32 %v5704, %v5848
  %v5864 = vadd.f32 %v5705, %v5853
  %v5865 = vlaneseq
  %v5866 = vshrl.u32 %v5865, 7
  %v5867 = vsub.s32 0, %v5866
  %v5868 = vrot.slane %v1906, %v5867
  %v5869 = vadd.f32 %v5856, %v5868
  %v5870 = vadd.f32 %v5857, %v5868
  %v5871 = vadd.f32 %v5858, %v5868
  %v5872 = vadd.f32 %v5859, %v5868
  %v5873 = vadd.f32 %v5860, %v5868
  %v5874 = vadd.f32 %v5861, %v5868
  %v5875 = vadd.f32 %v5862, %v5868
  %v5876 = vadd.f32 %v5863, %v5868
  %v5877 = vadd.f32 %v5864, %v5868
  %v5878 = vmax.f32 %v5869, 0.0
  %v5879 = vmax.f32 %v5870, 0.0
  %v5880 = vmax.f32 %v5871, 0.0
  %v5881 = vmax.f32 %v5872, 0.0
  %v5882 = vmax.f32 %v5873, 0.0
  %v5883 = vmax.f32 %v5874, 0.0
  %v5884 = vmax.f32 %v5875, 0.0
  %v5885 = vmax.f32 %v5876, 0.0
  %v5886 = vmax.f32 %v5877, 0.0
  %v5887 = vld [vmem:[%s3] sm:$0xff]
  %v5888 = vld [vmem:[%s3 + $0x8] sm:$0xff]
  %v5889 = vld [vmem:[%s3 + $0x10] sm:$0xff]
  %v5890 = vld [vmem:[%s3 + $0x18] sm:$0xff]
  %v5891 = vld [vmem:[%s3 + $0x20] sm:$0xff]
  %v5892 = vld [vmem:[%s3 + $0x28] sm:$0xff]
  %v5893 = vld [vmem:[%s3 + $0x30] sm:$0xff]
  %v5894 = vld [vmem:[%s3 + $0x38] sm:$0xff]
  %v5895 = vld [vmem:[%s3 + $0x40] sm:$0xff]
  %v5896 = vld [vmem:[%s3 + $0x48] sm:$0xff]
  %v5897 = vld [vmem:[%s3 + $0x50] sm:$0xff]
  %v5898 = vld [vmem:[%s3 + $0x58] sm:$0xff]
  %v5899 = vld [vmem:[%s3 + $0x60] sm:$0xff]
  %v5900 = vld [vmem:[%s3 + $0x68] sm:$0xff]
  %v5901 = vld [vmem:[%s3 + $0x70] sm:$0xff]
  %v5902 = vld [vmem:[%s3 + $0x78] sm:$0xff]
  %vm5903 = vcmask 523264
  %v5905 = vsel %vm5903, %v5879, 0
  %5907 = vmatprep.subr.mxu0 0.0
  %5908 = vmatpush1.msra.mxu0 0.0
  %5909 = vmatprep.subr.mxu0 0.0
  %5910 = vmatpush1.msra.mxu0 0.0
  %5911 = vmatprep.subr.mxu0 0.0
  %5912 = vmatpush1.msra.mxu0 0.0
  %5913 = vmatprep.subr.mxu0 0.0
  %5914 = vmatpush1.msra.mxu0 0.0
  %5915 = vmatprep.subr.mxu0 0.0
  %5916 = vmatpush1.msra.mxu0 0.0
  %5917 = vmatprep.subr.mxu0 0.0
  %5918 = vmatpush1.msra.mxu0 0.0
  %5919 = vmatprep.subr.mxu0 0.0
  %5920 = vmatpush1.msra.mxu0 0.0
  %5921 = vmatprep.subr.mxu0 0.0
  %5922 = vmatpush1.msra.mxu0 0.0
  %5923 = vmatprep.subr.mxu0 0.0
  %5924 = vmatpush1.msra.mxu0 %v5902
  %5925 = vmatprep.subr.mxu0 0.0
  %5926 = vmatpush1.msra.mxu0 %v5901
  %5927 = vmatprep.subr.mxu0 0.0
  %5928 = vmatpush1.msra.mxu0 %v5900
  %5929 = vmatprep.subr.mxu0 0.0
  %5930 = vmatpush1.msra.mxu0 %v5899
  %5931 = vmatprep.subr.mxu0 0.0
  %5932 = vmatpush1.msra.mxu0 %v5898
  %5933 = vmatprep.subr.mxu0 0.0
  %5934 = vmatpush1.msra.mxu0 %v5897
  %5935 = vmatprep.subr.mxu0 0.0
  %5936 = vmatpush1.msra.mxu0 %v5896
  %5937 = vmatprep.subr.mxu0 0.0
  %5938 = vmatpush1.msra.mxu0 %v5895
  %5939 = vmatprep.subr.mxu0 0.0
  %5940 = vmatpush2.msra.mxu0 0.0
  %5941 = vmatprep.subr.mxu0 0.0
  %5942 = vmatpush2.msra.mxu0 0.0
  %5943 = vmatprep.subr.mxu0 0.0
  %5944 = vmatpush2.msra.mxu0 0.0
  %5945 = vmatprep.subr.mxu0 0.0
  %5946 = vmatpush2.msra.mxu0 0.0
  %5947 = vmatprep.subr.mxu0 0.0
  %5948 = vmatpush2.msra.mxu0 0.0
  %5949 = vmatprep.subr.mxu0 0.0
  %5950 = vmatpush2.msra.mxu0 0.0
  %5951 = vmatprep.subr.mxu0 0.0
  %5952 = vmatpush2.msra.mxu0 0.0
  %5953 = vmatprep.subr.mxu0 0.0
  %5954 = vmatpush2.msra.mxu0 0.0
  %5955 = vmatprep.subr.mxu0 0.0
  %5956 = vmatpush2.msra.mxu0 0.0
  %5957 = vmatprep.subr.mxu0 0.0
  %5958 = vmatpush2.msra.mxu0 0.0
  %5959 = vmatprep.subr.mxu0 0.0
  %5960 = vmatpush2.msra.mxu0 0.0
  %5961 = vmatprep.subr.mxu0 0.0
  %5962 = vmatpush2.msra.mxu0 0.0
  %5963 = vmatprep.subr.mxu0 0.0
  %5964 = vmatpush2.msra.mxu0 0.0
  %5965 = vmatprep.subr.mxu0 0.0
  %5966 = vmatpush2.msra.mxu0 0.0
  %5967 = vmatprep.subr.mxu0 0.0
  %5968 = vmatpush2.msra.mxu0 0.0
  %5969 = vmatprep.subr.mxu0 0.0
  %5970 = vmatpush2.msra.mxu0 0.0
  %5971 = vmatprep.mubr.f32.mxu0 0.0
  %5972 = vmatmul.mubr.f32.gmra.mxu0 %v5905
  %v5973 = vpop.f32.mrf.mxu0
  %v5974 = vadd.f32 0.0, %v5973
  %v5975 = vpop.f32.mrf.mxu0
  %5976 = vdwg.mxu0
  %v5978 = vsel %vm5903, %v5878, 0
  %5980 = vmatprep.subr.mxu0 0.0
  %5981 = vmatpush1.msra.mxu0 0.0
  %5982 = vmatprep.subr.mxu0 0.0
  %5983 = vmatpush1.msra.mxu0 0.0
  %5984 = vmatprep.subr.mxu0 0.0
  %5985 = vmatpush1.msra.mxu0 0.0
  %5986 = vmatprep.subr.mxu0 0.0
  %5987 = vmatpush1.msra.mxu0 0.0
  %5988 = vmatprep.subr.mxu0 0.0
  %5989 = vmatpush1.msra.mxu0 0.0
  %5990 = vmatprep.subr.mxu0 0.0
  %5991 = vmatpush1.msra.mxu0 0.0
  %5992 = vmatprep.subr.mxu0 0.0
  %5993 = vmatpush1.msra.mxu0 0.0
  %5994 = vmatprep.subr.mxu0 0.0
  %5995 = vmatpush1.msra.mxu0 0.0
  %5996 = vmatprep.subr.mxu0 0.0
  %5997 = vmatpush1.msra.mxu0 %v5894
  %5998 = vmatprep.subr.mxu0 0.0
  %5999 = vmatpush1.msra.mxu0 %v5893
  %6000 = vmatprep.subr.mxu0 0.0
  %6001 = vmatpush1.msra.mxu0 %v5892
  %6002 = vmatprep.subr.mxu0 0.0
  %6003 = vmatpush1.msra.mxu0 %v5891
  %6004 = vmatprep.subr.mxu0 0.0
  %6005 = vmatpush1.msra.mxu0 %v5890
  %6006 = vmatprep.subr.mxu0 0.0
  %6007 = vmatpush1.msra.mxu0 %v5889
  %6008 = vmatprep.subr.mxu0 0.0
  %6009 = vmatpush1.msra.mxu0 %v5888
  %6010 = vmatprep.subr.mxu0 0.0
  %6011 = vmatpush1.msra.mxu0 %v5887
  %6012 = vmatprep.subr.mxu0 0.0
  %6013 = vmatpush2.msra.mxu0 0.0
  %6014 = vmatprep.subr.mxu0 0.0
  %6015 = vmatpush2.msra.mxu0 0.0
  %6016 = vmatprep.subr.mxu0 0.0
  %6017 = vmatpush2.msra.mxu0 0.0
  %6018 = vmatprep.subr.mxu0 0.0
  %6019 = vmatpush2.msra.mxu0 0.0
  %6020 = vmatprep.subr.mxu0 0.0
  %6021 = vmatpush2.msra.mxu0 0.0
  %6022 = vmatprep.subr.mxu0 0.0
  %6023 = vmatpush2.msra.mxu0 0.0
  %6024 = vmatprep.subr.mxu0 0.0
  %6025 = vmatpush2.msra.mxu0 0.0
  %6026 = vmatprep.subr.mxu0 0.0
  %6027 = vmatpush2.msra.mxu0 0.0
  %6028 = vmatprep.subr.mxu0 0.0
  %6029 = vmatpush2.msra.mxu0 0.0
  %6030 = vmatprep.subr.mxu0 0.0
  %6031 = vmatpush2.msra.mxu0 0.0
  %6032 = vmatprep.subr.mxu0 0.0
  %6033 = vmatpush2.msra.mxu0 0.0
  %6034 = vmatprep.subr.mxu0 0.0
  %6035 = vmatpush2.msra.mxu0 0.0
  %6036 = vmatprep.subr.mxu0 0.0
  %6037 = vmatpush2.msra.mxu0 0.0
  %6038 = vmatprep.subr.mxu0 0.0
  %6039 = vmatpush2.msra.mxu0 0.0
  %6040 = vmatprep.subr.mxu0 0.0
  %6041 = vmatpush2.msra.mxu0 0.0
  %6042 = vmatprep.subr.mxu0 0.0
  %6043 = vmatpush2.msra.mxu0 0.0
  %6044 = vmatprep.mubr.f32.mxu0 0.0
  %6045 = vmatmul.mubr.f32.gmra.mxu0 %v5978
  %v6046 = vpop.f32.mrf.mxu0
  %v6047 = vadd.f32 %v5974, %v6046
  %v6048 = vpop.f32.mrf.mxu0
  %6049 = vdwg.mxu0
  %v6050 = vld [vmem:[%s3 + $0x80] sm:$0xff]
  %v6051 = vld [vmem:[%s3 + $0x88] sm:$0xff]
  %v6052 = vld [vmem:[%s3 + $0x90] sm:$0xff]
  %v6053 = vld [vmem:[%s3 + $0x98] sm:$0xff]
  %v6054 = vld [vmem:[%s3 + $0xa0] sm:$0xff]
  %v6055 = vld [vmem:[%s3 + $0xa8] sm:$0xff]
  %v6056 = vld [vmem:[%s3 + $0xb0] sm:$0xff]
  %v6057 = vld [vmem:[%s3 + $0xb8] sm:$0xff]
  %v6059 = vsel %vm5903, %v5880, 0
  %6061 = vmatprep.subr.mxu0 0.0
  %6062 = vmatpush1.msra.mxu0 0.0
  %6063 = vmatprep.subr.mxu0 0.0
  %6064 = vmatpush1.msra.mxu0 0.0
  %6065 = vmatprep.subr.mxu0 0.0
  %6066 = vmatpush1.msra.mxu0 0.0
  %6067 = vmatprep.subr.mxu0 0.0
  %6068 = vmatpush1.msra.mxu0 0.0
  %6069 = vmatprep.subr.mxu0 0.0
  %6070 = vmatpush1.msra.mxu0 0.0
  %6071 = vmatprep.subr.mxu0 0.0
  %6072 = vmatpush1.msra.mxu0 0.0
  %6073 = vmatprep.subr.mxu0 0.0
  %6074 = vmatpush1.msra.mxu0 0.0
  %6075 = vmatprep.subr.mxu0 0.0
  %6076 = vmatpush1.msra.mxu0 0.0
  %6077 = vmatprep.subr.mxu0 0.0
  %6078 = vmatpush1.msra.mxu0 %v6057
  %6079 = vmatprep.subr.mxu0 0.0
  %6080 = vmatpush1.msra.mxu0 %v6056
  %6081 = vmatprep.subr.mxu0 0.0
  %6082 = vmatpush1.msra.mxu0 %v6055
  %6083 = vmatprep.subr.mxu0 0.0
  %6084 = vmatpush1.msra.mxu0 %v6054
  %6085 = vmatprep.subr.mxu0 0.0
  %6086 = vmatpush1.msra.mxu0 %v6053
  %6087 = vmatprep.subr.mxu0 0.0
  %6088 = vmatpush1.msra.mxu0 %v6052
  %6089 = vmatprep.subr.mxu0 0.0
  %6090 = vmatpush1.msra.mxu0 %v6051
  %6091 = vmatprep.subr.mxu0 0.0
  %6092 = vmatpush1.msra.mxu0 %v6050
  %6093 = vmatprep.subr.mxu0 0.0
  %6094 = vmatpush2.msra.mxu0 0.0
  %6095 = vmatprep.subr.mxu0 0.0
  %6096 = vmatpush2.msra.mxu0 0.0
  %6097 = vmatprep.subr.mxu0 0.0
  %6098 = vmatpush2.msra.mxu0 0.0
  %6099 = vmatprep.subr.mxu0 0.0
  %6100 = vmatpush2.msra.mxu0 0.0
  %6101 = vmatprep.subr.mxu0 0.0
  %6102 = vmatpush2.msra.mxu0 0.0
  %6103 = vmatprep.subr.mxu0 0.0
  %6104 = vmatpush2.msra.mxu0 0.0
  %6105 = vmatprep.subr.mxu0 0.0
  %6106 = vmatpush2.msra.mxu0 0.0
  %6107 = vmatprep.subr.mxu0 0.0
  %6108 = vmatpush2.msra.mxu0 0.0
  %6109 = vmatprep.subr.mxu0 0.0
  %6110 = vmatpush2.msra.mxu0 0.0
  %6111 = vmatprep.subr.mxu0 0.0
  %6112 = vmatpush2.msra.mxu0 0.0
  %6113 = vmatprep.subr.mxu0 0.0
  %6114 = vmatpush2.msra.mxu0 0.0
  %6115 = vmatprep.subr.mxu0 0.0
  %6116 = vmatpush2.msra.mxu0 0.0
  %6117 = vmatprep.subr.mxu0 0.0
  %6118 = vmatpush2.msra.mxu0 0.0
  %6119 = vmatprep.subr.mxu0 0.0
  %6120 = vmatpush2.msra.mxu0 0.0
  %6121 = vmatprep.subr.mxu0 0.0
  %6122 = vmatpush2.msra.mxu0 0.0
  %6123 = vmatprep.subr.mxu0 0.0
  %6124 = vmatpush2.msra.mxu0 0.0
  %6125 = vmatprep.mubr.f32.mxu0 0.0
  %6126 = vmatmul.mubr.f32.gmra.mxu0 %v6059
  %v6127 = vpop.f32.mrf.mxu0
  %v6128 = vadd.f32 0.0, %v6127
  %v6129 = vpop.f32.mrf.mxu0
  %6130 = vdwg.mxu0
  %v6131 = vadd.f32 %v6047, %v6128
  %v6132 = vld [vmem:[%s3 + $0xc0] sm:$0xff]
  %v6133 = vld [vmem:[%s3 + $0xc8] sm:$0xff]
  %v6134 = vld [vmem:[%s3 + $0xd0] sm:$0xff]
  %v6135 = vld [vmem:[%s3 + $0xd8] sm:$0xff]
  %v6136 = vld [vmem:[%s3 + $0xe0] sm:$0xff]
  %v6137 = vld [vmem:[%s3 + $0xe8] sm:$0xff]
  %v6138 = vld [vmem:[%s3 + $0xf0] sm:$0xff]
  %v6139 = vld [vmem:[%s3 + $0xf8] sm:$0xff]
  %v6141 = vsel %vm5903, %v5881, 0
  %6143 = vmatprep.subr.mxu0 0.0
  %6144 = vmatpush1.msra.mxu0 0.0
  %6145 = vmatprep.subr.mxu0 0.0
  %6146 = vmatpush1.msra.mxu0 0.0
  %6147 = vmatprep.subr.mxu0 0.0
  %6148 = vmatpush1.msra.mxu0 0.0
  %6149 = vmatprep.subr.mxu0 0.0
  %6150 = vmatpush1.msra.mxu0 0.0
  %6151 = vmatprep.subr.mxu0 0.0
  %6152 = vmatpush1.msra.mxu0 0.0
  %6153 = vmatprep.subr.mxu0 0.0
  %6154 = vmatpush1.msra.mxu0 0.0
  %6155 = vmatprep.subr.mxu0 0.0
  %6156 = vmatpush1.msra.mxu0 0.0
  %6157 = vmatprep.subr.mxu0 0.0
  %6158 = vmatpush1.msra.mxu0 0.0
  %6159 = vmatprep.subr.mxu0 0.0
  %6160 = vmatpush1.msra.mxu0 %v6139
  %6161 = vmatprep.subr.mxu0 0.0
  %6162 = vmatpush1.msra.mxu0 %v6138
  %6163 = vmatprep.subr.mxu0 0.0
  %6164 = vmatpush1.msra.mxu0 %v6137
  %6165 = vmatprep.subr.mxu0 0.0
  %6166 = vmatpush1.msra.mxu0 %v6136
  %6167 = vmatprep.subr.mxu0 0.0
  %6168 = vmatpush1.msra.mxu0 %v6135
  %6169 = vmatprep.subr.mxu0 0.0
  %6170 = vmatpush1.msra.mxu0 %v6134
  %6171 = vmatprep.subr.mxu0 0.0
  %6172 = vmatpush1.msra.mxu0 %v6133
  %6173 = vmatprep.subr.mxu0 0.0
  %6174 = vmatpush1.msra.mxu0 %v6132
  %6175 = vmatprep.subr.mxu0 0.0
  %6176 = vmatpush2.msra.mxu0 0.0
  %6177 = vmatprep.subr.mxu0 0.0
  %6178 = vmatpush2.msra.mxu0 0.0
  %6179 = vmatprep.subr.mxu0 0.0
  %6180 = vmatpush2.msra.mxu0 0.0
  %6181 = vmatprep.subr.mxu0 0.0
  %6182 = vmatpush2.msra.mxu0 0.0
  %6183 = vmatprep.subr.mxu0 0.0
  %6184 = vmatpush2.msra.mxu0 0.0
  %6185 = vmatprep.subr.mxu0 0.0
  %6186 = vmatpush2.msra.mxu0 0.0
  %6187 = vmatprep.subr.mxu0 0.0
  %6188 = vmatpush2.msra.mxu0 0.0
  %6189 = vmatprep.subr.mxu0 0.0
  %6190 = vmatpush2.msra.mxu0 0.0
  %6191 = vmatprep.subr.mxu0 0.0
  %6192 = vmatpush2.msra.mxu0 0.0
  %6193 = vmatprep.subr.mxu0 0.0
  %6194 = vmatpush2.msra.mxu0 0.0
  %6195 = vmatprep.subr.mxu0 0.0
  %6196 = vmatpush2.msra.mxu0 0.0
  %6197 = vmatprep.subr.mxu0 0.0
  %6198 = vmatpush2.msra.mxu0 0.0
  %6199 = vmatprep.subr.mxu0 0.0
  %6200 = vmatpush2.msra.mxu0 0.0
  %6201 = vmatprep.subr.mxu0 0.0
  %6202 = vmatpush2.msra.mxu0 0.0
  %6203 = vmatprep.subr.mxu0 0.0
  %6204 = vmatpush2.msra.mxu0 0.0
  %6205 = vmatprep.subr.mxu0 0.0
  %6206 = vmatpush2.msra.mxu0 0.0
  %6207 = vmatprep.mubr.f32.mxu0 0.0
  %6208 = vmatmul.mubr.f32.gmra.mxu0 %v6141
  %v6209 = vpop.f32.mrf.mxu0
  %v6210 = vadd.f32 0.0, %v6209
  %v6211 = vpop.f32.mrf.mxu0
  %6212 = vdwg.mxu0
  %v6213 = vadd.f32 %v6131, %v6210
  %v6214 = vld [vmem:[%s3 + $0x100] sm:$0xff]
  %v6215 = vld [vmem:[%s3 + $0x108] sm:$0xff]
  %v6216 = vld [vmem:[%s3 + $0x110] sm:$0xff]
  %v6217 = vld [vmem:[%s3 + $0x118] sm:$0xff]
  %v6218 = vld [vmem:[%s3 + $0x120] sm:$0xff]
  %v6219 = vld [vmem:[%s3 + $0x128] sm:$0xff]
  %v6220 = vld [vmem:[%s3 + $0x130] sm:$0xff]
  %v6221 = vld [vmem:[%s3 + $0x138] sm:$0xff]
  %v6223 = vsel %vm5903, %v5882, 0
  %6225 = vmatprep.subr.mxu0 0.0
  %6226 = vmatpush1.msra.mxu0 0.0
  %6227 = vmatprep.subr.mxu0 0.0
  %6228 = vmatpush1.msra.mxu0 0.0
  %6229 = vmatprep.subr.mxu0 0.0
  %6230 = vmatpush1.msra.mxu0 0.0
  %6231 = vmatprep.subr.mxu0 0.0
  %6232 = vmatpush1.msra.mxu0 0.0
  %6233 = vmatprep.subr.mxu0 0.0
  %6234 = vmatpush1.msra.mxu0 0.0
  %6235 = vmatprep.subr.mxu0 0.0
  %6236 = vmatpush1.msra.mxu0 0.0
  %6237 = vmatprep.subr.mxu0 0.0
  %6238 = vmatpush1.msra.mxu0 0.0
  %6239 = vmatprep.subr.mxu0 0.0
  %6240 = vmatpush1.msra.mxu0 0.0
  %6241 = vmatprep.subr.mxu0 0.0
  %6242 = vmatpush1.msra.mxu0 %v6221
  %6243 = vmatprep.subr.mxu0 0.0
  %6244 = vmatpush1.msra.mxu0 %v6220
  %6245 = vmatprep.subr.mxu0 0.0
  %6246 = vmatpush1.msra.mxu0 %v6219
  %6247 = vmatprep.subr.mxu0 0.0
  %6248 = vmatpush1.msra.mxu0 %v6218
  %6249 = vmatprep.subr.mxu0 0.0
  %6250 = vmatpush1.msra.mxu0 %v6217
  %6251 = vmatprep.subr.mxu0 0.0
  %6252 = vmatpush1.msra.mxu0 %v6216
  %6253 = vmatprep.subr.mxu0 0.0
  %6254 = vmatpush1.msra.mxu0 %v6215
  %6255 = vmatprep.subr.mxu0 0.0
  %6256 = vmatpush1.msra.mxu0 %v6214
  %6257 = vmatprep.subr.mxu0 0.0
  %6258 = vmatpush2.msra.mxu0 0.0
  %6259 = vmatprep.subr.mxu0 0.0
  %6260 = vmatpush2.msra.mxu0 0.0
  %6261 = vmatprep.subr.mxu0 0.0
  %6262 = vmatpush2.msra.mxu0 0.0
  %6263 = vmatprep.subr.mxu0 0.0
  %6264 = vmatpush2.msra.mxu0 0.0
  %6265 = vmatprep.subr.mxu0 0.0
  %6266 = vmatpush2.msra.mxu0 0.0
  %6267 = vmatprep.subr.mxu0 0.0
  %6268 = vmatpush2.msra.mxu0 0.0
  %6269 = vmatprep.subr.mxu0 0.0
  %6270 = vmatpush2.msra.mxu0 0.0
  %6271 = vmatprep.subr.mxu0 0.0
  %6272 = vmatpush2.msra.mxu0 0.0
  %6273 = vmatprep.subr.mxu0 0.0
  %6274 = vmatpush2.msra.mxu0 0.0
  %6275 = vmatprep.subr.mxu0 0.0
  %6276 = vmatpush2.msra.mxu0 0.0
  %6277 = vmatprep.subr.mxu0 0.0
  %6278 = vmatpush2.msra.mxu0 0.0
  %6279 = vmatprep.subr.mxu0 0.0
  %6280 = vmatpush2.msra.mxu0 0.0
  %6281 = vmatprep.subr.mxu0 0.0
  %6282 = vmatpush2.msra.mxu0 0.0
  %6283 = vmatprep.subr.mxu0 0.0
  %6284 = vmatpush2.msra.mxu0 0.0
  %6285 = vmatprep.subr.mxu0 0.0
  %6286 = vmatpush2.msra.mxu0 0.0
  %6287 = vmatprep.subr.mxu0 0.0
  %6288 = vmatpush2.msra.mxu0 0.0
  %6289 = vmatprep.mubr.f32.mxu0 0.0
  %6290 = vmatmul.mubr.f32.gmra.mxu0 %v6223
  %v6291 = vpop.f32.mrf.mxu0
  %v6292 = vadd.f32 0.0, %v6291
  %v6293 = vpop.f32.mrf.mxu0
  %6294 = vdwg.mxu0
  %v6295 = vadd.f32 %v6213, %v6292
  %v6296 = vld [vmem:[%s3 + $0x140] sm:$0xff]
  %v6297 = vld [vmem:[%s3 + $0x148] sm:$0xff]
  %v6298 = vld [vmem:[%s3 + $0x150] sm:$0xff]
  %v6299 = vld [vmem:[%s3 + $0x158] sm:$0xff]
  %v6300 = vld [vmem:[%s3 + $0x160] sm:$0xff]
  %v6301 = vld [vmem:[%s3 + $0x168] sm:$0xff]
  %v6302 = vld [vmem:[%s3 + $0x170] sm:$0xff]
  %v6303 = vld [vmem:[%s3 + $0x178] sm:$0xff]
  %v6305 = vsel %vm5903, %v5883, 0
  %6307 = vmatprep.subr.mxu0 0.0
  %6308 = vmatpush1.msra.mxu0 0.0
  %6309 = vmatprep.subr.mxu0 0.0
  %6310 = vmatpush1.msra.mxu0 0.0
  %6311 = vmatprep.subr.mxu0 0.0
  %6312 = vmatpush1.msra.mxu0 0.0
  %6313 = vmatprep.subr.mxu0 0.0
  %6314 = vmatpush1.msra.mxu0 0.0
  %6315 = vmatprep.subr.mxu0 0.0
  %6316 = vmatpush1.msra.mxu0 0.0
  %6317 = vmatprep.subr.mxu0 0.0
  %6318 = vmatpush1.msra.mxu0 0.0
  %6319 = vmatprep.subr.mxu0 0.0
  %6320 = vmatpush1.msra.mxu0 0.0
  %6321 = vmatprep.subr.mxu0 0.0
  %6322 = vmatpush1.msra.mxu0 0.0
  %6323 = vmatprep.subr.mxu0 0.0
  %6324 = vmatpush1.msra.mxu0 %v6303
  %6325 = vmatprep.subr.mxu0 0.0
  %6326 = vmatpush1.msra.mxu0 %v6302
  %6327 = vmatprep.subr.mxu0 0.0
  %6328 = vmatpush1.msra.mxu0 %v6301
  %6329 = vmatprep.subr.mxu0 0.0
  %6330 = vmatpush1.msra.mxu0 %v6300
  %6331 = vmatprep.subr.mxu0 0.0
  %6332 = vmatpush1.msra.mxu0 %v6299
  %6333 = vmatprep.subr.mxu0 0.0
  %6334 = vmatpush1.msra.mxu0 %v6298
  %6335 = vmatprep.subr.mxu0 0.0
  %6336 = vmatpush1.msra.mxu0 %v6297
  %6337 = vmatprep.subr.mxu0 0.0
  %6338 = vmatpush1.msra.mxu0 %v6296
  %6339 = vmatprep.subr.mxu0 0.0
  %6340 = vmatpush2.msra.mxu0 0.0
  %6341 = vmatprep.subr.mxu0 0.0
  %6342 = vmatpush2.msra.mxu0 0.0
  %6343 = vmatprep.subr.mxu0 0.0
  %6344 = vmatpush2.msra.mxu0 0.0
  %6345 = vmatprep.subr.mxu0 0.0
  %6346 = vmatpush2.msra.mxu0 0.0
  %6347 = vmatprep.subr.mxu0 0.0
  %6348 = vmatpush2.msra.mxu0 0.0
  %6349 = vmatprep.subr.mxu0 0.0
  %6350 = vmatpush2.msra.mxu0 0.0
  %6351 = vmatprep.subr.mxu0 0.0
  %6352 = vmatpush2.msra.mxu0 0.0
  %6353 = vmatprep.subr.mxu0 0.0
  %6354 = vmatpush2.msra.mxu0 0.0
  %6355 = vmatprep.subr.mxu0 0.0
  %6356 = vmatpush2.msra.mxu0 0.0
  %6357 = vmatprep.subr.mxu0 0.0
  %6358 = vmatpush2.msra.mxu0 0.0
  %6359 = vmatprep.subr.mxu0 0.0
  %6360 = vmatpush2.msra.mxu0 0.0
  %6361 = vmatprep.subr.mxu0 0.0
  %6362 = vmatpush2.msra.mxu0 0.0
  %6363 = vmatprep.subr.mxu0 0.0
  %6364 = vmatpush2.msra.mxu0 0.0
  %6365 = vmatprep.subr.mxu0 0.0
  %6366 = vmatpush2.msra.mxu0 0.0
  %6367 = vmatprep.subr.mxu0 0.0
  %6368 = vmatpush2.msra.mxu0 0.0
  %6369 = vmatprep.subr.mxu0 0.0
  %6370 = vmatpush2.msra.mxu0 0.0
  %6371 = vmatprep.mubr.f32.mxu0 0.0
  %6372 = vmatmul.mubr.f32.gmra.mxu0 %v6305
  %v6373 = vpop.f32.mrf.mxu0
  %v6374 = vadd.f32 0.0, %v6373
  %v6375 = vpop.f32.mrf.mxu0
  %6376 = vdwg.mxu0
  %v6377 = vadd.f32 %v6295, %v6374
  %v6378 = vld [vmem:[%s3 + $0x180] sm:$0xff]
  %v6379 = vld [vmem:[%s3 + $0x188] sm:$0xff]
  %v6380 = vld [vmem:[%s3 + $0x190] sm:$0xff]
  %v6381 = vld [vmem:[%s3 + $0x198] sm:$0xff]
  %v6382 = vld [vmem:[%s3 + $0x1a0] sm:$0xff]
  %v6383 = vld [vmem:[%s3 + $0x1a8] sm:$0xff]
  %v6384 = vld [vmem:[%s3 + $0x1b0] sm:$0xff]
  %v6385 = vld [vmem:[%s3 + $0x1b8] sm:$0xff]
  %v6387 = vsel %vm5903, %v5884, 0
  %6389 = vmatprep.subr.mxu0 0.0
  %6390 = vmatpush1.msra.mxu0 0.0
  %6391 = vmatprep.subr.mxu0 0.0
  %6392 = vmatpush1.msra.mxu0 0.0
  %6393 = vmatprep.subr.mxu0 0.0
  %6394 = vmatpush1.msra.mxu0 0.0
  %6395 = vmatprep.subr.mxu0 0.0
  %6396 = vmatpush1.msra.mxu0 0.0
  %6397 = vmatprep.subr.mxu0 0.0
  %6398 = vmatpush1.msra.mxu0 0.0
  %6399 = vmatprep.subr.mxu0 0.0
  %6400 = vmatpush1.msra.mxu0 0.0
  %6401 = vmatprep.subr.mxu0 0.0
  %6402 = vmatpush1.msra.mxu0 0.0
  %6403 = vmatprep.subr.mxu0 0.0
  %6404 = vmatpush1.msra.mxu0 0.0
  %6405 = vmatprep.subr.mxu0 0.0
  %6406 = vmatpush1.msra.mxu0 %v6385
  %6407 = vmatprep.subr.mxu0 0.0
  %6408 = vmatpush1.msra.mxu0 %v6384
  %6409 = vmatprep.subr.mxu0 0.0
  %6410 = vmatpush1.msra.mxu0 %v6383
  %6411 = vmatprep.subr.mxu0 0.0
  %6412 = vmatpush1.msra.mxu0 %v6382
  %6413 = vmatprep.subr.mxu0 0.0
  %6414 = vmatpush1.msra.mxu0 %v6381
  %6415 = vmatprep.subr.mxu0 0.0
  %6416 = vmatpush1.msra.mxu0 %v6380
  %6417 = vmatprep.subr.mxu0 0.0
  %6418 = vmatpush1.msra.mxu0 %v6379
  %6419 = vmatprep.subr.mxu0 0.0
  %6420 = vmatpush1.msra.mxu0 %v6378
  %6421 = vmatprep.subr.mxu0 0.0
  %6422 = vmatpush2.msra.mxu0 0.0
  %6423 = vmatprep.subr.mxu0 0.0
  %6424 = vmatpush2.msra.mxu0 0.0
  %6425 = vmatprep.subr.mxu0 0.0
  %6426 = vmatpush2.msra.mxu0 0.0
  %6427 = vmatprep.subr.mxu0 0.0
  %6428 = vmatpush2.msra.mxu0 0.0
  %6429 = vmatprep.subr.mxu0 0.0
  %6430 = vmatpush2.msra.mxu0 0.0
  %6431 = vmatprep.subr.mxu0 0.0
  %6432 = vmatpush2.msra.mxu0 0.0
  %6433 = vmatprep.subr.mxu0 0.0
  %6434 = vmatpush2.msra.mxu0 0.0
  %6435 = vmatprep.subr.mxu0 0.0
  %6436 = vmatpush2.msra.mxu0 0.0
  %6437 = vmatprep.subr.mxu0 0.0
  %6438 = vmatpush2.msra.mxu0 0.0
  %6439 = vmatprep.subr.mxu0 0.0
  %6440 = vmatpush2.msra.mxu0 0.0
  %6441 = vmatprep.subr.mxu0 0.0
  %6442 = vmatpush2.msra.mxu0 0.0
  %6443 = vmatprep.subr.mxu0 0.0
  %6444 = vmatpush2.msra.mxu0 0.0
  %6445 = vmatprep.subr.mxu0 0.0
  %6446 = vmatpush2.msra.mxu0 0.0
  %6447 = vmatprep.subr.mxu0 0.0
  %6448 = vmatpush2.msra.mxu0 0.0
  %6449 = vmatprep.subr.mxu0 0.0
  %6450 = vmatpush2.msra.mxu0 0.0
  %6451 = vmatprep.subr.mxu0 0.0
  %6452 = vmatpush2.msra.mxu0 0.0
  %6453 = vmatprep.mubr.f32.mxu0 0.0
  %6454 = vmatmul.mubr.f32.gmra.mxu0 %v6387
  %v6455 = vpop.f32.mrf.mxu0
  %v6456 = vadd.f32 0.0, %v6455
  %v6457 = vpop.f32.mrf.mxu0
  %6458 = vdwg.mxu0
  %v6459 = vadd.f32 %v6377, %v6456
  %v6460 = vld [vmem:[%s3 + $0x1c0] sm:$0xff]
  %v6461 = vld [vmem:[%s3 + $0x1c8] sm:$0xff]
  %v6462 = vld [vmem:[%s3 + $0x1d0] sm:$0xff]
  %v6463 = vld [vmem:[%s3 + $0x1d8] sm:$0xff]
  %v6464 = vld [vmem:[%s3 + $0x1e0] sm:$0xff]
  %v6465 = vld [vmem:[%s3 + $0x1e8] sm:$0xff]
  %v6466 = vld [vmem:[%s3 + $0x1f0] sm:$0xff]
  %v6467 = vld [vmem:[%s3 + $0x1f8] sm:$0xff]
  %v6469 = vsel %vm5903, %v5885, 0
  %6471 = vmatprep.subr.mxu0 0.0
  %6472 = vmatpush1.msra.mxu0 0.0
  %6473 = vmatprep.subr.mxu0 0.0
  %6474 = vmatpush1.msra.mxu0 0.0
  %6475 = vmatprep.subr.mxu0 0.0
  %6476 = vmatpush1.msra.mxu0 0.0
  %6477 = vmatprep.subr.mxu0 0.0
  %6478 = vmatpush1.msra.mxu0 0.0
  %6479 = vmatprep.subr.mxu0 0.0
  %6480 = vmatpush1.msra.mxu0 0.0
  %6481 = vmatprep.subr.mxu0 0.0
  %6482 = vmatpush1.msra.mxu0 0.0
  %6483 = vmatprep.subr.mxu0 0.0
  %6484 = vmatpush1.msra.mxu0 0.0
  %6485 = vmatprep.subr.mxu0 0.0
  %6486 = vmatpush1.msra.mxu0 0.0
  %6487 = vmatprep.subr.mxu0 0.0
  %6488 = vmatpush1.msra.mxu0 %v6467
  %6489 = vmatprep.subr.mxu0 0.0
  %6490 = vmatpush1.msra.mxu0 %v6466
  %6491 = vmatprep.subr.mxu0 0.0
  %6492 = vmatpush1.msra.mxu0 %v6465
  %6493 = vmatprep.subr.mxu0 0.0
  %6494 = vmatpush1.msra.mxu0 %v6464
  %6495 = vmatprep.subr.mxu0 0.0
  %6496 = vmatpush1.msra.mxu0 %v6463
  %6497 = vmatprep.subr.mxu0 0.0
  %6498 = vmatpush1.msra.mxu0 %v6462
  %6499 = vmatprep.subr.mxu0 0.0
  %6500 = vmatpush1.msra.mxu0 %v6461
  %6501 = vmatprep.subr.mxu0 0.0
  %6502 = vmatpush1.msra.mxu0 %v6460
  %6503 = vmatprep.subr.mxu0 0.0
  %6504 = vmatpush2.msra.mxu0 0.0
  %6505 = vmatprep.subr.mxu0 0.0
  %6506 = vmatpush2.msra.mxu0 0.0
  %6507 = vmatprep.subr.mxu0 0.0
  %6508 = vmatpush2.msra.mxu0 0.0
  %6509 = vmatprep.subr.mxu0 0.0
  %6510 = vmatpush2.msra.mxu0 0.0
  %6511 = vmatprep.subr.mxu0 0.0
  %6512 = vmatpush2.msra.mxu0 0.0
  %6513 = vmatprep.subr.mxu0 0.0
  %6514 = vmatpush2.msra.mxu0 0.0
  %6515 = vmatprep.subr.mxu0 0.0
  %6516 = vmatpush2.msra.mxu0 0.0
  %6517 = vmatprep.subr.mxu0 0.0
  %6518 = vmatpush2.msra.mxu0 0.0
  %6519 = vmatprep.subr.mxu0 0.0
  %6520 = vmatpush2.msra.mxu0 0.0
  %6521 = vmatprep.subr.mxu0 0.0
  %6522 = vmatpush2.msra.mxu0 0.0
  %6523 = vmatprep.subr.mxu0 0.0
  %6524 = vmatpush2.msra.mxu0 0.0
  %6525 = vmatprep.subr.mxu0 0.0
  %6526 = vmatpush2.msra.mxu0 0.0
  %6527 = vmatprep.subr.mxu0 0.0
  %6528 = vmatpush2.msra.mxu0 0.0
  %6529 = vmatprep.subr.mxu0 0.0
  %6530 = vmatpush2.msra.mxu0 0.0
  %6531 = vmatprep.subr.mxu0 0.0
  %6532 = vmatpush2.msra.mxu0 0.0
  %6533 = vmatprep.subr.mxu0 0.0
  %6534 = vmatpush2.msra.mxu0 0.0
  %6535 = vmatprep.mubr.f32.mxu0 0.0
  %6536 = vmatmul.mubr.f32.gmra.mxu0 %v6469
  %v6537 = vpop.f32.mrf.mxu0
  %v6538 = vadd.f32 0.0, %v6537
  %v6539 = vpop.f32.mrf.mxu0
  %6540 = vdwg.mxu0
  %v6541 = vadd.f32 %v6459, %v6538
  %v6542 = vld [vmem:[%s3 + $0x200] sm:$0xff]
  %v6543 = vld [vmem:[%s3 + $0x208] sm:$0xff]
  %v6544 = vld [vmem:[%s3 + $0x210] sm:$0xff]
  %v6545 = vld [vmem:[%s3 + $0x218] sm:$0xff]
  %v6546 = vld [vmem:[%s3 + $0x220] sm:$0xff]
  %v6547 = vld [vmem:[%s3 + $0x228] sm:$0xff]
  %v6548 = vld [vmem:[%s3 + $0x230] sm:$0xff]
  %v6549 = vld [vmem:[%s3 + $0x238] sm:$0xff]
  %v6551 = vsel %vm5903, %v5886, 0
  %6553 = vmatprep.subr.mxu0 0.0
  %6554 = vmatpush1.msra.mxu0 0.0
  %6555 = vmatprep.subr.mxu0 0.0
  %6556 = vmatpush1.msra.mxu0 0.0
  %6557 = vmatprep.subr.mxu0 0.0
  %6558 = vmatpush1.msra.mxu0 0.0
  %6559 = vmatprep.subr.mxu0 0.0
  %6560 = vmatpush1.msra.mxu0 0.0
  %6561 = vmatprep.subr.mxu0 0.0
  %6562 = vmatpush1.msra.mxu0 0.0
  %6563 = vmatprep.subr.mxu0 0.0
  %6564 = vmatpush1.msra.mxu0 0.0
  %6565 = vmatprep.subr.mxu0 0.0
  %6566 = vmatpush1.msra.mxu0 0.0
  %6567 = vmatprep.subr.mxu0 0.0
  %6568 = vmatpush1.msra.mxu0 0.0
  %6569 = vmatprep.subr.mxu0 0.0
  %6570 = vmatpush1.msra.mxu0 %v6549
  %6571 = vmatprep.subr.mxu0 0.0
  %6572 = vmatpush1.msra.mxu0 %v6548
  %6573 = vmatprep.subr.mxu0 0.0
  %6574 = vmatpush1.msra.mxu0 %v6547
  %6575 = vmatprep.subr.mxu0 0.0
  %6576 = vmatpush1.msra.mxu0 %v6546
  %6577 = vmatprep.subr.mxu0 0.0
  %6578 = vmatpush1.msra.mxu0 %v6545
  %6579 = vmatprep.subr.mxu0 0.0
  %6580 = vmatpush1.msra.mxu0 %v6544
  %6581 = vmatprep.subr.mxu0 0.0
  %6582 = vmatpush1.msra.mxu0 %v6543
  %6583 = vmatprep.subr.mxu0 0.0
  %6584 = vmatpush1.msra.mxu0 %v6542
  %6585 = vmatprep.subr.mxu0 0.0
  %6586 = vmatpush2.msra.mxu0 0.0
  %6587 = vmatprep.subr.mxu0 0.0
  %6588 = vmatpush2.msra.mxu0 0.0
  %6589 = vmatprep.subr.mxu0 0.0
  %6590 = vmatpush2.msra.mxu0 0.0
  %6591 = vmatprep.subr.mxu0 0.0
  %6592 = vmatpush2.msra.mxu0 0.0
  %6593 = vmatprep.subr.mxu0 0.0
  %6594 = vmatpush2.msra.mxu0 0.0
  %6595 = vmatprep.subr.mxu0 0.0
  %6596 = vmatpush2.msra.mxu0 0.0
  %6597 = vmatprep.subr.mxu0 0.0
  %6598 = vmatpush2.msra.mxu0 0.0
  %6599 = vmatprep.subr.mxu0 0.0
  %6600 = vmatpush2.msra.mxu0 0.0
  %6601 = vmatprep.subr.mxu0 0.0
  %6602 = vmatpush2.msra.mxu0 0.0
  %6603 = vmatprep.subr.mxu0 0.0
  %6604 = vmatpush2.msra.mxu0 0.0
  %6605 = vmatprep.subr.mxu0 0.0
  %6606 = vmatpush2.msra.mxu0 0.0
  %6607 = vmatprep.subr.mxu0 0.0
  %6608 = vmatpush2.msra.mxu0 0.0
  %6609 = vmatprep.subr.mxu0 0.0
  %6610 = vmatpush2.msra.mxu0 0.0
  %6611 = vmatprep.subr.mxu0 0.0
  %6612 = vmatpush2.msra.mxu0 0.0
  %6613 = vmatprep.subr.mxu0 0.0
  %6614 = vmatpush2.msra.mxu0 0.0
  %6615 = vmatprep.subr.mxu0 0.0
  %6616 = vmatpush2.msra.mxu0 0.0
  %6617 = vmatprep.mubr.f32.mxu0 0.0
  %6618 = vmatmul.mubr.f32.gmra.mxu0 %v6551
  %v6619 = vpop.f32.mrf.mxu0
  %v6620 = vadd.f32 0.0, %v6619
  %v6621 = vpop.f32.mrf.mxu0
  %6622 = vdwg.mxu0
  %v6623 = vadd.f32 %v6541, %v6620
  %v6624 = vlaneseq
  %v6625 = vshrl.u32 %v6624, 7
  %v6626 = vsub.s32 0, %v6625
  %v6627 = vrot.slane %v1905, %v6626
  %v6628 = vadd.f32 %v6623, %v6627
  %v6629 = vmax.f32 %v6628, 0.0
  %v6630 = vld [vmem:[%s4] sm:$0xff]
  %v6631 = vld [vmem:[%s4 + $0x8] sm:$0xff]
  %v6632 = vld [vmem:[%s4 + $0x10] sm:$0xff]
  %v6633 = vld [vmem:[%s4 + $0x18] sm:$0xff]
  %v6634 = vld [vmem:[%s4 + $0x20] sm:$0xff]
  %v6635 = vld [vmem:[%s4 + $0x28] sm:$0xff]
  %v6636 = vld [vmem:[%s4 + $0x30] sm:$0xff]
  %v6637 = vld [vmem:[%s4 + $0x38] sm:$0xff]
  %v6638 = vld [vmem:[%s4 + $0x40] sm:$0xff]
  %v6639 = vld [vmem:[%s4 + $0x48] sm:$0xff]
  %v6640 = vld [vmem:[%s4 + $0x50] sm:$0xff]
  %v6641 = vld [vmem:[%s4 + $0x58] sm:$0xff]
  %v6642 = vld [vmem:[%s4 + $0x60] sm:$0xff]
  %v6643 = vld [vmem:[%s4 + $0x68] sm:$0xff]
  %v6644 = vld [vmem:[%s4 + $0x70] sm:$0xff]
  %v6645 = vld [vmem:[%s4 + $0x78] sm:$0xff]
  %v6646 = vlaneseq
  %v6647 = vshrl.u32 %v6646, 7
  %v6648 = vsub.s32 0, %v6647
  %v6649 = vrot.slane %v1907, %v6648
  %6650 = vmatprep.subr.mxu0 0.0
  %6651 = vmatpush1.msra.mxu0 %v6645
  %6652 = vmatprep.subr.mxu0 0.0
  %6653 = vmatpush1.msra.mxu0 %v6644
  %6654 = vmatprep.subr.mxu0 0.0
  %6655 = vmatpush1.msra.mxu0 %v6643
  %6656 = vmatprep.subr.mxu0 0.0
  %6657 = vmatpush1.msra.mxu0 %v6642
  %6658 = vmatprep.subr.mxu0 0.0
  %6659 = vmatpush1.msra.mxu0 %v6641
  %6660 = vmatprep.subr.mxu0 0.0
  %6661 = vmatpush1.msra.mxu0 %v6640
  %6662 = vmatprep.subr.mxu0 0.0
  %6663 = vmatpush1.msra.mxu0 %v6639
  %6664 = vmatprep.subr.mxu0 0.0
  %6665 = vmatpush1.msra.mxu0 %v6638
  %6666 = vmatprep.subr.mxu0 0.0
  %6667 = vmatpush1.msra.mxu0 %v6637
  %6668 = vmatprep.subr.mxu0 0.0
  %6669 = vmatpush1.msra.mxu0 %v6636
  %6670 = vmatprep.subr.mxu0 0.0
  %6671 = vmatpush1.msra.mxu0 %v6635
  %6672 = vmatprep.subr.mxu0 0.0
  %6673 = vmatpush1.msra.mxu0 %v6634
  %6674 = vmatprep.subr.mxu0 0.0
  %6675 = vmatpush1.msra.mxu0 %v6633
  %6676 = vmatprep.subr.mxu0 0.0
  %6677 = vmatpush1.msra.mxu0 %v6632
  %6678 = vmatprep.subr.mxu0 0.0
  %6679 = vmatpush1.msra.mxu0 %v6631
  %6680 = vmatprep.subr.mxu0 0.0
  %6681 = vmatpush1.msra.mxu0 %v6630
  %6682 = vmatprep.subr.mxu0 0.0
  %6683 = vmatpush2.msra.mxu0 0.0
  %6684 = vmatprep.subr.mxu0 0.0
  %6685 = vmatpush2.msra.mxu0 0.0
  %6686 = vmatprep.subr.mxu0 0.0
  %6687 = vmatpush2.msra.mxu0 0.0
  %6688 = vmatprep.subr.mxu0 0.0
  %6689 = vmatpush2.msra.mxu0 0.0
  %6690 = vmatprep.subr.mxu0 0.0
  %6691 = vmatpush2.msra.mxu0 0.0
  %6692 = vmatprep.subr.mxu0 0.0
  %6693 = vmatpush2.msra.mxu0 0.0
  %6694 = vmatprep.subr.mxu0 0.0
  %6695 = vmatpush2.msra.mxu0 0.0
  %6696 = vmatprep.subr.mxu0 0.0
  %6697 = vmatpush2.msra.mxu0 0.0
  %6698 = vmatprep.subr.mxu0 0.0
  %6699 = vmatpush2.msra.mxu0 0.0
  %6700 = vmatprep.subr.mxu0 0.0
  %6701 = vmatpush2.msra.mxu0 0.0
  %6702 = vmatprep.subr.mxu0 0.0
  %6703 = vmatpush2.msra.mxu0 0.0
  %6704 = vmatprep.subr.mxu0 0.0
  %6705 = vmatpush2.msra.mxu0 0.0
  %6706 = vmatprep.subr.mxu0 0.0
  %6707 = vmatpush2.msra.mxu0 0.0
  %6708 = vmatprep.subr.mxu0 0.0
  %6709 = vmatpush2.msra.mxu0 0.0
  %6710 = vmatprep.subr.mxu0 0.0
  %6711 = vmatpush2.msra.mxu0 0.0
  %6712 = vmatprep.subr.mxu0 0.0
  %6713 = vmatpush2.msra.mxu0 0.0
  %6714 = vmatprep.mubr.f32.mxu0 0.0
  %6715 = vmatmul.mubr.f32.gmra.mxu0 %v6629
  %v6716 = vpop.f32.mrf.mxu0
  %v6717 = vadd.f32 %v6649, %v6716
  %v6718 = vpop.f32.mrf.mxu0
  %6719 = vdwg.mxu0
  %6721 = vset.pattern.permute.xlu0 0
  %6722 = vperm.xlu0 %6721, %v6717
  %v6723 = vpop.permute.xlu0 %6722
  %v6725 = vadd.f32 %v6723, %v6717
  %6726 = vrot.lane.b32.xlu0 %v6717, 127
  %v6727 = vpop.permute.xlu0 %6726
  %vm6729 = vcmask 48128
  %v6730 = vsel %vm6729, %v6727, 0.0
  %6731 = vadd.xlane.f32.xlu0 %v6730
  %v6732 = vpop.xlane.xlu0 %6731
  %v6733 = vrcp.pop 6.0
  %v6734 = vmul.f32 %v6732, %v6733
  %v6735 = vsub.f32 %v6725, %v6734
  %6736 = vset.pattern.permute.xlu0 7
  %6737 = vperm.xlu0 %6736, %v6717
  %v6738 = vpop.permute.xlu0 %6737
  %v6740 = vadd.f32 %v6738, %v6717
  %6741 = vrot.lane.b32.xlu0 %v6717, 120
  %v6742 = vpop.permute.xlu0 %6741
  %v6744 = vsel %vm6729, %v6742, 0.0
  %6745 = vadd.xlane.f32.xlu0 %v6744
  %v6746 = vpop.xlane.xlu0 %6745
  %v6747 = vmul.f32 %v6746, %v6733
  %v6748 = vsub.f32 %v6740, %v6747
  %6750 = vrot.lane.b32.xlu0 %v6735, 127
  %v6751 = vpop.permute.xlu0 %6750
  %6753 = vst.msk [vmem:[%s6] sm:$0xff] %vm6729, %v6751
  %6755 = vrot.lane.b32.xlu0 %v6748, 126
  %v6756 = vpop.permute.xlu0 %6755
  %vm6758 = vcmask 97328
  %6759 = vst.msk [vmem:[%s6] sm:$0xff] %vm6758, %v6756
  // Predicated region
  $region26: #{mean_var_dqn_forward.1} parent=0 // pred_check
    _
  $region27: #{mean_var_dqn_forward.1} parent=0 // pred_check_branch
    %6761 = sbr.rel (0) target = $region29
  $region28: #{mean_var_dqn_forward.1} parent=0 // pred_region
    _
  $region29: #{mean_var_dqn_forward.1} parent=0 // pred_fallthru
    _
  // Predicated region
  $region30: #{mean_var_dqn_forward.1} parent=0 // pred_check
    _
  $region31: #{mean_var_dqn_forward.1} parent=0 // pred_check_branch
    %6763 = sbr.rel (0) target = $region33
  $region32: #{mean_var_dqn_forward.1} parent=0 // pred_region
    _
  $region33: #{mean_var_dqn_forward.1} parent=0 // pred_fallthru
    _

</llo_original>
